<compile_context>
chip_gen: v7x
topology: tpu7x:2x2x1
jax: 0.10.0
libtpu: 0.0.40
codegen_flags: <defaults>
</compile_context>

<pallas_src>
import functools
import math

import jax
import jax.numpy as jnp
from jax.experimental import pallas as pl
from jax.experimental.pallas import tpu as pltpu

F32 = jnp.float32
BF16 = jnp.bfloat16
LN_EPS = 1e-5       # PyTorch nn.LayerNorm default
OUT_PAD = 128       # lane-dense output width (o_dim padded up to this)


# ----------------------------- in-kernel math helpers -----------------------------

def _gelu(x):
    # TODO(synk): PyTorch F.gelu default is erf-based; Mosaic has no erf lowering, so we
    # use the tanh approximation (max abs diff ~1e-3).
    c = math.sqrt(2.0 / math.pi)
    return 0.5 * x * (1.0 + jnp.tanh(c * (x + 0.044715 * x * x * x)))


def _layernorm(z, g, b):
    mu = jnp.mean(z, axis=-1, keepdims=True)
    var = jnp.mean(jnp.square(z - mu), axis=-1, keepdims=True)
    return (z - mu) * jax.lax.rsqrt(var + LN_EPS) * g + b


# ----------------------------- fused forward kernel -----------------------------

def _fused_forward_kernel(x_ref, temb_ref, pe_ref, rows_ref, bqkv_ref, bff1_ref,
                          w_in_ref, w_qkv_ref, w_o_ref, w_ff1_ref, w_ff2_ref,
                          w_out1_ref, w_out2_ref, o_ref, attn_sc, *, n_head):
    """Whole DiffusionModel forward for one block of B_TILE batch elements."""
    b_tile, S, i_pad = x_ref.shape
    D = pe_ref.shape[1]
    n_layer = w_qkv_ref.shape[0]
    out_pad = o_ref.shape[2]
    Dh = D // n_head
    M = b_tile * S
    scale = 1.0 / math.sqrt(Dh)

    def row(idx, width=D):                      # packed (1, width) f32 parameter row
        return rows_ref[idx:idx + 1, :width]

    def mm(a, w, bias_row):                     # bf16 MXU matmul, f32 accumulate + bias
        return jnp.dot(a.astype(BF16), w, preferred_element_type=F32) + bias_row

    # ---- input projection: x @ W_in + b_in  (M = B_TILE*S rows fills the MXU) --------
    h = mm(x_ref[...].reshape(M, i_pad), w_in_ref[...], row(0))            # (M, D) f32

    # ---- add (precomputed) time embedding + positional encoding, input LayerNorm ------
    h = (h.reshape(b_tile, S, D) + temb_ref[...] + pe_ref[...][None]).reshape(M, D)
    h = _layernorm(h, row(1), row(2))

    # ---- transformer encoder layers (post-norm, batch_first, GELU FFN) ----------------
    for li in range(n_layer):
        r0 = 5 + 6 * li
        qkv = mm(h, w_qkv_ref[li], bqkv_ref[li:li + 1, :])                 # (M, 3D)
        q = qkv[:, :D].reshape(b_tile, S, D)
        k = qkv[:, D:2 * D].reshape(b_tile, S, D)
        v = qkv[:, 2 * D:].reshape(b_tile, S, D)

        # per-head attention, batched over the B_TILE axis; head outputs go straight
        # into the lane-dense VMEM scratch (no list + concat).
        for hh in range(n_head):
            sl = slice(hh * Dh, (hh + 1) * Dh)
            qh = q[:, :, sl].astype(BF16)                                   # (b, S, Dh)
            kh = k[:, :, sl].astype(BF16)
            vh = v[:, :, sl].astype(BF16)
            s = jnp.einsum("bqd,bkd->bqk", qh, kh,
                           preferred_element_type=F32) * scale             # (b, S, S)
            p = jnp.exp(s - jnp.max(s, axis=-1, keepdims=True))
            p = p * pl.reciprocal(jnp.sum(p, axis=-1, keepdims=True), approx=True)
            attn_sc[:, :, sl] = jnp.einsum("bqk,bkd->bqd", p.astype(BF16), vh,
                                           preferred_element_type=F32)

        attn = mm(attn_sc[...].reshape(M, D), w_o_ref[li], row(r0 + 0))     # (M, D)
        h = _layernorm(h + attn, row(r0 + 1), row(r0 + 2))

        ff = _gelu(mm(h, w_ff1_ref[li], bff1_ref[li:li + 1, :]))            # (M, 4D)
        ff = mm(ff, w_ff2_ref[li], row(r0 + 3))                             # (M, D)
        h = _layernorm(h + ff, row(r0 + 4), row(r0 + 5))

    # ---- output head: Linear -> GELU -> (Dropout=id) -> Linear (lane-dense store) -----
    o1 = _gelu(mm(h, w_out1_ref[...], row(3)))                              # (M, D)
    out = mm(o1, w_out2_ref[...], row(4, width=out_pad))                    # (M, 128)
    o_ref[...] = out.reshape(b_tile, S, out_pad).astype(o_ref.dtype)


# ----------------------------- parameters / glue -----------------------------

def _round_up(x, m):
    return ((x + m - 1) // m) * m


def positional_encoding(max_len, d_model):
    position = jnp.arange(max_len, dtype=F32)[:, None]
    div_term = jnp.exp(jnp.arange(0, d_model, 2, dtype=F32)
                       * (-math.log(10000.0) / d_model))
    ang = position * div_term
    pe = jnp.zeros((max_len, d_model), F32)
    pe = pe.at[:, 0::2].set(jnp.sin(ang))
    pe = pe.at[:, 1::2].set(jnp.cos(ang))
    return pe


def init_params(key, *, d_model, n_layer, i_dim, o_dim, max_len):
    keys = iter(jax.random.split(key, 5 + 4 * n_layer))

    def dense(fan_in, fan_out, dtype=BF16):
        # matmul weights stored bf16 (MXU operands; halves HBM->VMEM bytes)
        return (0.02 * jax.random.normal(next(keys), (fan_in, fan_out), F32)).astype(dtype)

    zeros = lambda n: jnp.zeros((n,), F32)
    ones = lambda n: jnp.ones((n,), F32)

    params = {
        "w_in": dense(i_dim, d_model), "b_in": zeros(d_model),
        # time_embed: Linear(1, D) -> SiLU -> Linear(D, D)  (applied in the wrapper)
        "wt1": dense(1, d_model, dtype=F32), "bt1": zeros(d_model),
        "wt2": dense(d_model, d_model), "bt2": zeros(d_model),
        "ln_in_g": ones(d_model), "ln_in_b": zeros(d_model),
        "pe": positional_encoding(max_len, d_model),
        "w_out1": dense(d_model, d_model), "b_out1": zeros(d_model),
        "w_out2": dense(d_model, o_dim), "b_out2": zeros(o_dim),
        "layers": [],
    }
    for _ in range(n_layer):
        params["layers"].append({
            # NOTE: (D, 3D) column-blocked [q|k|v]; porting real nn.MultiheadAttention
            # in_proj_weight ((3D, D), row-blocked) requires a transpose + reordering.
            "w_qkv": dense(d_model, 3 * d_model), "b_qkv": zeros(3 * d_model),
            "w_o": dense(d_model, d_model), "b_o": zeros(d_model),
            "ln1_g": ones(d_model), "ln1_b": zeros(d_model),
            "w_ff1": dense(d_model, 4 * d_model), "b_ff1": zeros(4 * d_model),
            "w_ff2": dense(4 * d_model, d_model), "b_ff2": zeros(d_model),
            "ln2_g": ones(d_model), "ln2_b": zeros(d_model),
        })
    return params


def _const_spec(shape):
    nd = len(shape)

    def idx(i):
        return (0,) * nd

    return pl.BlockSpec(shape, idx)


def diffusion_forward(params, x, t, *, n_head):
    """x: (B, S, i_dim) float32, t: (B,) int -> (B, S, o_dim) float32."""
    B, S, I = x.shape
    D = params["w_in"].shape[1]
    o_dim = params["w_out2"].shape[1]
    n_layer = len(params["layers"])
    assert D % n_head == 0 and D % 128 == 0 and o_dim <= OUT_PAD <= D

    I_PAD = _round_up(I, 32)

    # ---- row-block sizing: fold batch into the matmul M dim (~256 rows per step) ------
    B_TILE = max(1, min(B, max(1, 256 // S)))
    B_pad = _round_up(B, B_TILE)
    NB = B_pad // B_TILE

    # ---- inputs: pad i_dim / batch, cast to bf16 ---------------------------------------
    x_p = jnp.pad(x.astype(BF16), ((0, B_pad - B), (0, 0), (0, I_PAD - I)))

    # ---- time embedding (tiny (B, D)); precomputed outside the kernel ------------------
    t_col = t.astype(F32).reshape(B, 1)
    th = jax.nn.silu(t_col @ params["wt1"].astype(F32) + params["bt1"])
    temb = th @ params["wt2"].astype(F32) + params["bt2"]
    temb = jnp.pad(temb, ((0, B_pad - B), (0, 0))).reshape(B_pad, 1, D)     # (B_pad,1,D)

    pe = params["pe"][:S]                                                   # (S, D) f32

    # ---- packed parameter tables --------------------------------------------------------
    def frow(v):
        v = v.astype(F32).reshape(-1)
        return jnp.pad(v, (0, D - v.shape[0]))

    Ls = params["layers"]
    rows = [frow(params["b_in"]), frow(params["ln_in_g"]), frow(params["ln_in_b"]),
            frow(params["b_out1"]), frow(params["b_out2"])]
    for L in Ls:
        rows += [frow(L["b_o"]), frow(L["ln1_g"]), frow(L["ln1_b"]),
                 frow(L["b_ff2"]), frow(L["ln2_g"]), frow(L["ln2_b"])]
    rows_d = jnp.stack(rows)                                                # (5+6L, D) f32

    b_qkv_all = jnp.stack([L["b_qkv"] for L in Ls]).astype(F32)             # (L, 3D)
    b_ff1_all = jnp.stack([L["b_ff1"] for L in Ls]).astype(F32)             # (L, 4D)
    w_qkv_all = jnp.stack([L["w_qkv"] for L in Ls])                         # (L, D, 3D) bf16
    w_o_all = jnp.stack([L["w_o"] for L in Ls])                             # (L, D, D)
    w_ff1_all = jnp.stack([L["w_ff1"] for L in Ls])                         # (L, D, 4D)
    w_ff2_all = jnp.stack([L["w_ff2"] for L in Ls])                         # (L, 4D, D)

    w_in_p = jnp.pad(params["w_in"], ((0, I_PAD - I), (0, 0)))              # (I_PAD, D)
    w_out1 = params["w_out1"]                                               # (D, D)
    w_out2_p = jnp.pad(params["w_out2"], ((0, 0), (0, OUT_PAD - o_dim)))    # (D, 128)

    mats = [rows_d, b_qkv_all, b_ff1_all, w_in_p, w_qkv_all, w_o_all,
            w_ff1_all, w_ff2_all, w_out1, w_out2_p]

    grid_spec = pltpu.PrefetchScalarGridSpec(
        num_scalar_prefetch=0,
        grid=(NB,),
        in_specs=[pl.BlockSpec((B_TILE, S, I_PAD), lambda i: (i, 0, 0)),    # x row-block
                  pl.BlockSpec((B_TILE, 1, D), lambda i: (i, 0, 0)),        # t_emb row-block
                  pl.BlockSpec((S, D), lambda i: (0, 0))]                   # PE (shared)
                 + [_const_spec(m.shape) for m in mats],                    # packed params
        out_specs=pl.BlockSpec((B_TILE, S, OUT_PAD), lambda i: (i, 0, 0)),  # lane-dense
        scratch_shapes=[pltpu.VMEM((B_TILE, S, D), F32)],                   # attn scratch
    )

    kernel = functools.partial(_fused_forward_kernel, n_head=n_head)
    out = pl.pallas_call(
        kernel,
        out_shape=jax.ShapeDtypeStruct((B_pad, S, OUT_PAD), F32),
        grid_spec=grid_spec,
        compiler_params=pltpu.CompilerParams(
            dimension_semantics=("parallel",),            # batch blocks -> megacore
            vmem_limit_bytes=32 * 1024 * 1024,
        ),
    )(x_p, temb, pe, *mats)

    return out[:B, :, :o_dim]


# ----------------------------- demo -----------------------------

if __name__ == "__main__":
    config = dict(d_model=128, n_head=8, n_layer=2, i_dim=21, o_dim=2)
    B, S = 2, 16
    TIME_STEPS = 1000

    key = jax.random.PRNGKey(0)
    kp, kx, kt = jax.random.split(key, 3)

    params = init_params(
        kp,
        d_model=config["d_model"], n_layer=config["n_layer"],
        i_dim=config["i_dim"], o_dim=config["o_dim"], max_len=64,
    )

    x = jax.random.normal(kx, (B, S, config["i_dim"]), F32)     # one-hot-like features
    t = jax.random.randint(kt, (B,), 0, TIME_STEPS)             # diffusion time steps

    fwd = jax.jit(functools.partial(diffusion_forward, n_head=config["n_head"]))
    out = jax.block_until_ready(fwd(params, x, t))

    assert out.shape == (B, S, config["o_dim"]), out.shape
    assert bool(jnp.all(jnp.isfinite(out)))
    print("KERNEL_OK")
</pallas_src>

<mosaic_0001>
module attributes {stable_mosaic.version = 11 : i64} {
  func.func @_fused_forward_kernel(%arg0: i32, %arg1: memref<2x16x32xbf16, #tpu.memory_space<vmem>>, %arg2: memref<2x1x128xf32, #tpu.memory_space<vmem>>, %arg3: memref<16x128xf32, #tpu.memory_space<vmem>>, %arg4: memref<17x128xf32, #tpu.memory_space<vmem>>, %arg5: memref<2x384xf32, #tpu.memory_space<vmem>>, %arg6: memref<2x512xf32, #tpu.memory_space<vmem>>, %arg7: memref<32x128xbf16, #tpu.memory_space<vmem>>, %arg8: memref<2x128x384xbf16, #tpu.memory_space<vmem>>, %arg9: memref<2x128x128xbf16, #tpu.memory_space<vmem>>, %arg10: memref<2x128x512xbf16, #tpu.memory_space<vmem>>, %arg11: memref<2x512x128xbf16, #tpu.memory_space<vmem>>, %arg12: memref<128x128xbf16, #tpu.memory_space<vmem>>, %arg13: memref<128x128xbf16, #tpu.memory_space<vmem>>, %arg14: memref<2x16x128xf32, #tpu.memory_space<vmem>>, %arg15: memref<2x16x128xf32, #tpu.memory_space<vmem>>) attributes {dimension_semantics = [#tpu.dimension_semantics<parallel>], iteration_bounds = array<i64: 1>, scalar_prefetch = 0 : i64, scratch_operands = 1 : i64, tpu.core_type = #tpu.core_type<tc>, window_params = [{transform_indices = @transform_0, window_bounds = array<i64: 2, 16, 32>}, {transform_indices = @transform_1, window_bounds = array<i64: 2, 1, 128>}, {pipeline_mode = #tpu.pipeline_mode<synchronous>, transform_indices = @transform_2, window_bounds = array<i64: 16, 128>}, {pipeline_mode = #tpu.pipeline_mode<synchronous>, transform_indices = @transform_3, window_bounds = array<i64: 17, 128>}, {pipeline_mode = #tpu.pipeline_mode<synchronous>, transform_indices = @transform_4, window_bounds = array<i64: 2, 384>}, {pipeline_mode = #tpu.pipeline_mode<synchronous>, transform_indices = @transform_5, window_bounds = array<i64: 2, 512>}, {pipeline_mode = #tpu.pipeline_mode<synchronous>, transform_indices = @transform_6, window_bounds = array<i64: 32, 128>}, {pipeline_mode = #tpu.pipeline_mode<synchronous>, transform_indices = @transform_7, window_bounds = array<i64: 2, 128, 384>}, {pipeline_mode = #tpu.pipeline_mode<synchronous>, transform_indices = @transform_8, window_bounds = array<i64: 2, 128, 128>}, {pipeline_mode = #tpu.pipeline_mode<synchronous>, transform_indices = @transform_9, window_bounds = array<i64: 2, 128, 512>}, {pipeline_mode = #tpu.pipeline_mode<synchronous>, transform_indices = @transform_10, window_bounds = array<i64: 2, 512, 128>}, {pipeline_mode = #tpu.pipeline_mode<synchronous>, transform_indices = @transform_11, window_bounds = array<i64: 128, 128>}, {pipeline_mode = #tpu.pipeline_mode<synchronous>, transform_indices = @transform_12, window_bounds = array<i64: 128, 128>}, {transform_indices = @transform_13, window_bounds = array<i64: 2, 16, 128>}]} {
    %c0 = arith.constant 0 : index
    %c0_0 = arith.constant 0 : index
    %c0_1 = arith.constant 0 : index
    %0 = vector.load %arg1[%c0, %c0_0, %c0_1] : memref<2x16x32xbf16, #tpu.memory_space<vmem>>, vector<2x16x32xbf16>
    %1 = vector.shape_cast %0 : vector<2x16x32xbf16> to vector<32x32xbf16>
    %c0_2 = arith.constant 0 : index
    %c0_3 = arith.constant 0 : index
    %2 = vector.load %arg7[%c0_2, %c0_3] : memref<32x128xbf16, #tpu.memory_space<vmem>>, vector<32x128xbf16>
    %c0_4 = arith.constant 0 : index
    %c0_5 = arith.constant 0 : index
    %3 = vector.load %arg4[%c0_4, %c0_5] : memref<17x128xf32, #tpu.memory_space<vmem>>, vector<1x128xf32>
    %cst = arith.constant dense<0.000000e+00> : vector<32x128xf32>
    %4 = tpu.matmul %1, %2, %cst {dimension_numbers = #tpu.dot_dimension_numbers<[1], [0], [0], [1], [0, 0, 1, 1], [], []>} : vector<32x32xbf16>, vector<32x128xbf16>, vector<32x128xf32> -> vector<32x128xf32>
    %5 = vector.broadcast %3 : vector<1x128xf32> to vector<32x128xf32>
    %6 = arith.addf %4, %5 : vector<32x128xf32>
    %7 = vector.shape_cast %6 : vector<32x128xf32> to vector<2x16x128xf32>
    %c0_6 = arith.constant 0 : index
    %c0_7 = arith.constant 0 : index
    %c0_8 = arith.constant 0 : index
    %8 = vector.load %arg2[%c0_6, %c0_7, %c0_8] : memref<2x1x128xf32, #tpu.memory_space<vmem>>, vector<2x1x128xf32>
    %9 = vector.broadcast %8 : vector<2x1x128xf32> to vector<2x16x128xf32>
    %10 = arith.addf %7, %9 : vector<2x16x128xf32>
    %c0_9 = arith.constant 0 : index
    %c0_10 = arith.constant 0 : index
    %11 = vector.load %arg3[%c0_9, %c0_10] : memref<16x128xf32, #tpu.memory_space<vmem>>, vector<16x128xf32>
    %12 = vector.shape_cast %11 : vector<16x128xf32> to vector<1x16x128xf32>
    %13 = vector.broadcast %12 : vector<1x16x128xf32> to vector<2x16x128xf32>
    %14 = arith.addf %10, %13 : vector<2x16x128xf32>
    %15 = vector.shape_cast %14 : vector<2x16x128xf32> to vector<32x128xf32>
    %c1 = arith.constant 1 : index
    %c0_11 = arith.constant 0 : index
    %16 = vector.load %arg4[%c1, %c0_11] : memref<17x128xf32, #tpu.memory_space<vmem>>, vector<1x128xf32>
    %c2 = arith.constant 2 : index
    %c0_12 = arith.constant 0 : index
    %17 = vector.load %arg4[%c2, %c0_12] : memref<17x128xf32, #tpu.memory_space<vmem>>, vector<1x128xf32>
    %cst_13 = arith.constant dense<0.000000e+00> : vector<32xf32>
    %18 = vector.multi_reduction <add>, %15, %cst_13 [1] : vector<32x128xf32> to vector<32xf32>
    %19 = vector.shape_cast %18 : vector<32xf32> to vector<32x1xf32>
    %cst_14 = arith.constant 1.280000e+02 : f32
    %20 = vector.broadcast %cst_14 : f32 to vector<32x1xf32>
    %21 = arith.divf %19, %20 : vector<32x1xf32>
    %22 = vector.broadcast %21 : vector<32x1xf32> to vector<32x128xf32>
    %23 = arith.subf %15, %22 : vector<32x128xf32>
    %24 = arith.mulf %23, %23 : vector<32x128xf32>
    %cst_15 = arith.constant dense<0.000000e+00> : vector<32xf32>
    %25 = vector.multi_reduction <add>, %24, %cst_15 [1] : vector<32x128xf32> to vector<32xf32>
    %26 = vector.shape_cast %25 : vector<32xf32> to vector<32x1xf32>
    %cst_16 = arith.constant 1.280000e+02 : f32
    %27 = vector.broadcast %cst_16 : f32 to vector<32x1xf32>
    %28 = arith.divf %26, %27 : vector<32x1xf32>
    %29 = vector.broadcast %21 : vector<32x1xf32> to vector<32x128xf32>
    %30 = arith.subf %15, %29 : vector<32x128xf32>
    %cst_17 = arith.constant 9.99999974E-6 : f32
    %31 = vector.broadcast %cst_17 : f32 to vector<32x1xf32>
    %32 = arith.addf %28, %31 : vector<32x1xf32>
    %33 = math.rsqrt %32 : vector<32x1xf32>
    %34 = vector.broadcast %33 : vector<32x1xf32> to vector<32x128xf32>
    %35 = arith.mulf %30, %34 : vector<32x128xf32>
    %36 = vector.broadcast %16 : vector<1x128xf32> to vector<32x128xf32>
    %37 = arith.mulf %35, %36 : vector<32x128xf32>
    %38 = vector.broadcast %17 : vector<1x128xf32> to vector<32x128xf32>
    %39 = arith.addf %37, %38 : vector<32x128xf32>
    %c0_18 = arith.constant 0 : index
    %c0_19 = arith.constant 0 : index
    %c0_20 = arith.constant 0 : index
    %40 = vector.load %arg8[%c0_18, %c0_19, %c0_20] : memref<2x128x384xbf16, #tpu.memory_space<vmem>>, vector<1x128x384xbf16>
    %41 = vector.shape_cast %40 : vector<1x128x384xbf16> to vector<128x384xbf16>
    %c0_21 = arith.constant 0 : index
    %c0_22 = arith.constant 0 : index
    %42 = vector.load %arg5[%c0_21, %c0_22] : memref<2x384xf32, #tpu.memory_space<vmem>>, vector<1x384xf32>
    %43 = arith.truncf %39 : vector<32x128xf32> to vector<32x128xbf16>
    %cst_23 = arith.constant dense<0.000000e+00> : vector<32x384xf32>
    %44 = tpu.matmul %43, %41, %cst_23 {dimension_numbers = #tpu.dot_dimension_numbers<[1], [0], [0], [1], [0, 0, 1, 1], [], []>} : vector<32x128xbf16>, vector<128x384xbf16>, vector<32x384xf32> -> vector<32x384xf32>
    %45 = vector.broadcast %42 : vector<1x384xf32> to vector<32x384xf32>
    %46 = arith.addf %44, %45 : vector<32x384xf32>
    %47 = vector.extract_strided_slice %46 {offsets = [0, 0], sizes = [32, 128], strides = [1, 1]} : vector<32x384xf32> to vector<32x128xf32>
    %48 = vector.shape_cast %47 : vector<32x128xf32> to vector<2x16x128xf32>
    %49 = vector.extract_strided_slice %46 {offsets = [0, 128], sizes = [32, 128], strides = [1, 1]} : vector<32x384xf32> to vector<32x128xf32>
    %50 = vector.shape_cast %49 : vector<32x128xf32> to vector<2x16x128xf32>
    %51 = vector.extract_strided_slice %46 {offsets = [0, 256], sizes = [32, 128], strides = [1, 1]} : vector<32x384xf32> to vector<32x128xf32>
    %52 = vector.shape_cast %51 : vector<32x128xf32> to vector<2x16x128xf32>
    %53 = vector.extract_strided_slice %48 {offsets = [0, 0, 0], sizes = [2, 16, 16], strides = [1, 1, 1]} : vector<2x16x128xf32> to vector<2x16x16xf32>
    %54 = arith.truncf %53 : vector<2x16x16xf32> to vector<2x16x16xbf16>
    %55 = vector.extract_strided_slice %50 {offsets = [0, 0, 0], sizes = [2, 16, 16], strides = [1, 1, 1]} : vector<2x16x128xf32> to vector<2x16x16xf32>
    %56 = arith.truncf %55 : vector<2x16x16xf32> to vector<2x16x16xbf16>
    %57 = vector.extract_strided_slice %52 {offsets = [0, 0, 0], sizes = [2, 16, 16], strides = [1, 1, 1]} : vector<2x16x128xf32> to vector<2x16x16xf32>
    %58 = arith.truncf %57 : vector<2x16x16xf32> to vector<2x16x16xbf16>
    "tpu.trace_start"() <{level = 10 : i32, message = "bqd,bkd->bqk"}> : () -> ()
    %cst_24 = arith.constant dense<0.000000e+00> : vector<2x16x16xf32>
    %59 = tpu.matmul %54, %56, %cst_24 {dimension_numbers = #tpu.dot_dimension_numbers<[2], [2], [1], [1], [0, 0, 0, 1, 1, 1], [0], [0]>} : vector<2x16x16xbf16>, vector<2x16x16xbf16>, vector<2x16x16xf32> -> vector<2x16x16xf32>
    "tpu.trace_stop"() : () -> ()
    %cst_25 = arith.constant 2.500000e-01 : f32
    %60 = vector.broadcast %cst_25 : f32 to vector<2x16x16xf32>
    %61 = arith.mulf %59, %60 : vector<2x16x16xf32>
    %cst_26 = arith.constant dense<0xFF800000> : vector<2x16xf32>
    %62 = vector.multi_reduction <maximumf>, %61, %cst_26 [2] : vector<2x16x16xf32> to vector<2x16xf32>
    %63 = vector.shape_cast %62 : vector<2x16xf32> to vector<2x16x1xf32>
    %64 = vector.broadcast %63 : vector<2x16x1xf32> to vector<2x16x16xf32>
    %65 = arith.subf %61, %64 : vector<2x16x16xf32>
    %66 = math.exp %65 : vector<2x16x16xf32>
    %cst_27 = arith.constant dense<0.000000e+00> : vector<2x16xf32>
    %67 = vector.multi_reduction <add>, %66, %cst_27 [2] : vector<2x16x16xf32> to vector<2x16xf32>
    %68 = vector.shape_cast %67 : vector<2x16xf32> to vector<2x16x1xf32>
    %69 = tpu.reciprocal %68 {approx = true} : vector<2x16x1xf32> -> vector<2x16x1xf32>
    %70 = vector.broadcast %69 : vector<2x16x1xf32> to vector<2x16x16xf32>
    %71 = arith.mulf %66, %70 : vector<2x16x16xf32>
    %72 = arith.truncf %71 : vector<2x16x16xf32> to vector<2x16x16xbf16>
    "tpu.trace_start"() <{level = 10 : i32, message = "bqk,bkd->bqd"}> : () -> ()
    %cst_28 = arith.constant dense<0.000000e+00> : vector<2x16x16xf32>
    %73 = tpu.matmul %72, %58, %cst_28 {dimension_numbers = #tpu.dot_dimension_numbers<[2], [1], [1], [2], [0, 0, 0, 1, 1, 2], [0], [0]>} : vector<2x16x16xbf16>, vector<2x16x16xbf16>, vector<2x16x16xf32> -> vector<2x16x16xf32>
    "tpu.trace_stop"() : () -> ()
    %c0_29 = arith.constant 0 : index
    %c0_30 = arith.constant 0 : index
    %c0_31 = arith.constant 0 : index
    %74 = vector.load %arg15[%c0_29, %c0_30, %c0_31] : memref<2x16x128xf32, #tpu.memory_space<vmem>>, vector<2x16x16xf32>
    tpu.vector_store %arg15[%c0_29, %c0_30, %c0_31], %73 {strides = array<i32>} : memref<2x16x128xf32, #tpu.memory_space<vmem>>, vector<2x16x16xf32>,
    %75 = vector.extract_strided_slice %48 {offsets = [0, 0, 16], sizes = [2, 16, 16], strides = [1, 1, 1]} : vector<2x16x128xf32> to vector<2x16x16xf32>
    %76 = arith.truncf %75 : vector<2x16x16xf32> to vector<2x16x16xbf16>
    %77 = vector.extract_strided_slice %50 {offsets = [0, 0, 16], sizes = [2, 16, 16], strides = [1, 1, 1]} : vector<2x16x128xf32> to vector<2x16x16xf32>
    %78 = arith.truncf %77 : vector<2x16x16xf32> to vector<2x16x16xbf16>
    %79 = vector.extract_strided_slice %52 {offsets = [0, 0, 16], sizes = [2, 16, 16], strides = [1, 1, 1]} : vector<2x16x128xf32> to vector<2x16x16xf32>
    %80 = arith.truncf %79 : vector<2x16x16xf32> to vector<2x16x16xbf16>
    "tpu.trace_start"() <{level = 10 : i32, message = "bqd,bkd->bqk"}> : () -> ()
    %cst_32 = arith.constant dense<0.000000e+00> : vector<2x16x16xf32>
    %81 = tpu.matmul %76, %78, %cst_32 {dimension_numbers = #tpu.dot_dimension_numbers<[2], [2], [1], [1], [0, 0, 0, 1, 1, 1], [0], [0]>} : vector<2x16x16xbf16>, vector<2x16x16xbf16>, vector<2x16x16xf32> -> vector<2x16x16xf32>
    "tpu.trace_stop"() : () -> ()
    %cst_33 = arith.constant 2.500000e-01 : f32
    %82 = vector.broadcast %cst_33 : f32 to vector<2x16x16xf32>
    %83 = arith.mulf %81, %82 : vector<2x16x16xf32>
    %cst_34 = arith.constant dense<0xFF800000> : vector<2x16xf32>
    %84 = vector.multi_reduction <maximumf>, %83, %cst_34 [2] : vector<2x16x16xf32> to vector<2x16xf32>
    %85 = vector.shape_cast %84 : vector<2x16xf32> to vector<2x16x1xf32>
    %86 = vector.broadcast %85 : vector<2x16x1xf32> to vector<2x16x16xf32>
    %87 = arith.subf %83, %86 : vector<2x16x16xf32>
    %88 = math.exp %87 : vector<2x16x16xf32>
    %cst_35 = arith.constant dense<0.000000e+00> : vector<2x16xf32>
    %89 = vector.multi_reduction <add>, %88, %cst_35 [2] : vector<2x16x16xf32> to vector<2x16xf32>
    %90 = vector.shape_cast %89 : vector<2x16xf32> to vector<2x16x1xf32>
    %91 = tpu.reciprocal %90 {approx = true} : vector<2x16x1xf32> -> vector<2x16x1xf32>
    %92 = vector.broadcast %91 : vector<2x16x1xf32> to vector<2x16x16xf32>
    %93 = arith.mulf %88, %92 : vector<2x16x16xf32>
    %94 = arith.truncf %93 : vector<2x16x16xf32> to vector<2x16x16xbf16>
    "tpu.trace_start"() <{level = 10 : i32, message = "bqk,bkd->bqd"}> : () -> ()
    %cst_36 = arith.constant dense<0.000000e+00> : vector<2x16x16xf32>
    %95 = tpu.matmul %94, %80, %cst_36 {dimension_numbers = #tpu.dot_dimension_numbers<[2], [1], [1], [2], [0, 0, 0, 1, 1, 2], [0], [0]>} : vector<2x16x16xbf16>, vector<2x16x16xbf16>, vector<2x16x16xf32> -> vector<2x16x16xf32>
    "tpu.trace_stop"() : () -> ()
    %c0_37 = arith.constant 0 : index
    %c0_38 = arith.constant 0 : index
    %c16 = arith.constant 16 : index
    %96 = vector.load %arg15[%c0_37, %c0_38, %c16] : memref<2x16x128xf32, #tpu.memory_space<vmem>>, vector<2x16x16xf32>
    tpu.vector_store %arg15[%c0_37, %c0_38, %c16], %95 {strides = array<i32>} : memref<2x16x128xf32, #tpu.memory_space<vmem>>, vector<2x16x16xf32>,
    %97 = vector.extract_strided_slice %48 {offsets = [0, 0, 32], sizes = [2, 16, 16], strides = [1, 1, 1]} : vector<2x16x128xf32> to vector<2x16x16xf32>
    %98 = arith.truncf %97 : vector<2x16x16xf32> to vector<2x16x16xbf16>
    %99 = vector.extract_strided_slice %50 {offsets = [0, 0, 32], sizes = [2, 16, 16], strides = [1, 1, 1]} : vector<2x16x128xf32> to vector<2x16x16xf32>
    %100 = arith.truncf %99 : vector<2x16x16xf32> to vector<2x16x16xbf16>
    %101 = vector.extract_strided_slice %52 {offsets = [0, 0, 32], sizes = [2, 16, 16], strides = [1, 1, 1]} : vector<2x16x128xf32> to vector<2x16x16xf32>
    %102 = arith.truncf %101 : vector<2x16x16xf32> to vector<2x16x16xbf16>
    "tpu.trace_start"() <{level = 10 : i32, message = "bqd,bkd->bqk"}> : () -> ()
    %cst_39 = arith.constant dense<0.000000e+00> : vector<2x16x16xf32>
    %103 = tpu.matmul %98, %100, %cst_39 {dimension_numbers = #tpu.dot_dimension_numbers<[2], [2], [1], [1], [0, 0, 0, 1, 1, 1], [0], [0]>} : vector<2x16x16xbf16>, vector<2x16x16xbf16>, vector<2x16x16xf32> -> vector<2x16x16xf32>
    "tpu.trace_stop"() : () -> ()
    %cst_40 = arith.constant 2.500000e-01 : f32
    %104 = vector.broadcast %cst_40 : f32 to vector<2x16x16xf32>
    %105 = arith.mulf %103, %104 : vector<2x16x16xf32>
    %cst_41 = arith.constant dense<0xFF800000> : vector<2x16xf32>
    %106 = vector.multi_reduction <maximumf>, %105, %cst_41 [2] : vector<2x16x16xf32> to vector<2x16xf32>
    %107 = vector.shape_cast %106 : vector<2x16xf32> to vector<2x16x1xf32>
    %108 = vector.broadcast %107 : vector<2x16x1xf32> to vector<2x16x16xf32>
    %109 = arith.subf %105, %108 : vector<2x16x16xf32>
    %110 = math.exp %109 : vector<2x16x16xf32>
    %cst_42 = arith.constant dense<0.000000e+00> : vector<2x16xf32>
    %111 = vector.multi_reduction <add>, %110, %cst_42 [2] : vector<2x16x16xf32> to vector<2x16xf32>
    %112 = vector.shape_cast %111 : vector<2x16xf32> to vector<2x16x1xf32>
    %113 = tpu.reciprocal %112 {approx = true} : vector<2x16x1xf32> -> vector<2x16x1xf32>
    %114 = vector.broadcast %113 : vector<2x16x1xf32> to vector<2x16x16xf32>
    %115 = arith.mulf %110, %114 : vector<2x16x16xf32>
    %116 = arith.truncf %115 : vector<2x16x16xf32> to vector<2x16x16xbf16>
    "tpu.trace_start"() <{level = 10 : i32, message = "bqk,bkd->bqd"}> : () -> ()
    %cst_43 = arith.constant dense<0.000000e+00> : vector<2x16x16xf32>
    %117 = tpu.matmul %116, %102, %cst_43 {dimension_numbers = #tpu.dot_dimension_numbers<[2], [1], [1], [2], [0, 0, 0, 1, 1, 2], [0], [0]>} : vector<2x16x16xbf16>, vector<2x16x16xbf16>, vector<2x16x16xf32> -> vector<2x16x16xf32>
    "tpu.trace_stop"() : () -> ()
    %c0_44 = arith.constant 0 : index
    %c0_45 = arith.constant 0 : index
    %c32 = arith.constant 32 : index
    %118 = vector.load %arg15[%c0_44, %c0_45, %c32] : memref<2x16x128xf32, #tpu.memory_space<vmem>>, vector<2x16x16xf32>
    tpu.vector_store %arg15[%c0_44, %c0_45, %c32], %117 {strides = array<i32>} : memref<2x16x128xf32, #tpu.memory_space<vmem>>, vector<2x16x16xf32>,
    %119 = vector.extract_strided_slice %48 {offsets = [0, 0, 48], sizes = [2, 16, 16], strides = [1, 1, 1]} : vector<2x16x128xf32> to vector<2x16x16xf32>
    %120 = arith.truncf %119 : vector<2x16x16xf32> to vector<2x16x16xbf16>
    %121 = vector.extract_strided_slice %50 {offsets = [0, 0, 48], sizes = [2, 16, 16], strides = [1, 1, 1]} : vector<2x16x128xf32> to vector<2x16x16xf32>
    %122 = arith.truncf %121 : vector<2x16x16xf32> to vector<2x16x16xbf16>
    %123 = vector.extract_strided_slice %52 {offsets = [0, 0, 48], sizes = [2, 16, 16], strides = [1, 1, 1]} : vector<2x16x128xf32> to vector<2x16x16xf32>
    %124 = arith.truncf %123 : vector<2x16x16xf32> to vector<2x16x16xbf16>
    "tpu.trace_start"() <{level = 10 : i32, message = "bqd,bkd->bqk"}> : () -> ()
    %cst_46 = arith.constant dense<0.000000e+00> : vector<2x16x16xf32>
    %125 = tpu.matmul %120, %122, %cst_46 {dimension_numbers = #tpu.dot_dimension_numbers<[2], [2], [1], [1], [0, 0, 0, 1, 1, 1], [0], [0]>} : vector<2x16x16xbf16>, vector<2x16x16xbf16>, vector<2x16x16xf32> -> vector<2x16x16xf32>
    "tpu.trace_stop"() : () -> ()
    %cst_47 = arith.constant 2.500000e-01 : f32
    %126 = vector.broadcast %cst_47 : f32 to vector<2x16x16xf32>
    %127 = arith.mulf %125, %126 : vector<2x16x16xf32>
    %cst_48 = arith.constant dense<0xFF800000> : vector<2x16xf32>
    %128 = vector.multi_reduction <maximumf>, %127, %cst_48 [2] : vector<2x16x16xf32> to vector<2x16xf32>
    %129 = vector.shape_cast %128 : vector<2x16xf32> to vector<2x16x1xf32>
    %130 = vector.broadcast %129 : vector<2x16x1xf32> to vector<2x16x16xf32>
    %131 = arith.subf %127, %130 : vector<2x16x16xf32>
    %132 = math.exp %131 : vector<2x16x16xf32>
    %cst_49 = arith.constant dense<0.000000e+00> : vector<2x16xf32>
    %133 = vector.multi_reduction <add>, %132, %cst_49 [2] : vector<2x16x16xf32> to vector<2x16xf32>
    %134 = vector.shape_cast %133 : vector<2x16xf32> to vector<2x16x1xf32>
    %135 = tpu.reciprocal %134 {approx = true} : vector<2x16x1xf32> -> vector<2x16x1xf32>
    %136 = vector.broadcast %135 : vector<2x16x1xf32> to vector<2x16x16xf32>
    %137 = arith.mulf %132, %136 : vector<2x16x16xf32>
    %138 = arith.truncf %137 : vector<2x16x16xf32> to vector<2x16x16xbf16>
    "tpu.trace_start"() <{level = 10 : i32, message = "bqk,bkd->bqd"}> : () -> ()
    %cst_50 = arith.constant dense<0.000000e+00> : vector<2x16x16xf32>
    %139 = tpu.matmul %138, %124, %cst_50 {dimension_numbers = #tpu.dot_dimension_numbers<[2], [1], [1], [2], [0, 0, 0, 1, 1, 2], [0], [0]>} : vector<2x16x16xbf16>, vector<2x16x16xbf16>, vector<2x16x16xf32> -> vector<2x16x16xf32>
    "tpu.trace_stop"() : () -> ()
    %c0_51 = arith.constant 0 : index
    %c0_52 = arith.constant 0 : index
    %c48 = arith.constant 48 : index
    %140 = vector.load %arg15[%c0_51, %c0_52, %c48] : memref<2x16x128xf32, #tpu.memory_space<vmem>>, vector<2x16x16xf32>
    tpu.vector_store %arg15[%c0_51, %c0_52, %c48], %139 {strides = array<i32>} : memref<2x16x128xf32, #tpu.memory_space<vmem>>, vector<2x16x16xf32>,
    %141 = vector.extract_strided_slice %48 {offsets = [0, 0, 64], sizes = [2, 16, 16], strides = [1, 1, 1]} : vector<2x16x128xf32> to vector<2x16x16xf32>
    %142 = arith.truncf %141 : vector<2x16x16xf32> to vector<2x16x16xbf16>
    %143 = vector.extract_strided_slice %50 {offsets = [0, 0, 64], sizes = [2, 16, 16], strides = [1, 1, 1]} : vector<2x16x128xf32> to vector<2x16x16xf32>
    %144 = arith.truncf %143 : vector<2x16x16xf32> to vector<2x16x16xbf16>
    %145 = vector.extract_strided_slice %52 {offsets = [0, 0, 64], sizes = [2, 16, 16], strides = [1, 1, 1]} : vector<2x16x128xf32> to vector<2x16x16xf32>
    %146 = arith.truncf %145 : vector<2x16x16xf32> to vector<2x16x16xbf16>
    "tpu.trace_start"() <{level = 10 : i32, message = "bqd,bkd->bqk"}> : () -> ()
    %cst_53 = arith.constant dense<0.000000e+00> : vector<2x16x16xf32>
    %147 = tpu.matmul %142, %144, %cst_53 {dimension_numbers = #tpu.dot_dimension_numbers<[2], [2], [1], [1], [0, 0, 0, 1, 1, 1], [0], [0]>} : vector<2x16x16xbf16>, vector<2x16x16xbf16>, vector<2x16x16xf32> -> vector<2x16x16xf32>
    "tpu.trace_stop"() : () -> ()
    %cst_54 = arith.constant 2.500000e-01 : f32
    %148 = vector.broadcast %cst_54 : f32 to vector<2x16x16xf32>
    %149 = arith.mulf %147, %148 : vector<2x16x16xf32>
    %cst_55 = arith.constant dense<0xFF800000> : vector<2x16xf32>
    %150 = vector.multi_reduction <maximumf>, %149, %cst_55 [2] : vector<2x16x16xf32> to vector<2x16xf32>
    %151 = vector.shape_cast %150 : vector<2x16xf32> to vector<2x16x1xf32>
    %152 = vector.broadcast %151 : vector<2x16x1xf32> to vector<2x16x16xf32>
    %153 = arith.subf %149, %152 : vector<2x16x16xf32>
    %154 = math.exp %153 : vector<2x16x16xf32>
    %cst_56 = arith.constant dense<0.000000e+00> : vector<2x16xf32>
    %155 = vector.multi_reduction <add>, %154, %cst_56 [2] : vector<2x16x16xf32> to vector<2x16xf32>
    %156 = vector.shape_cast %155 : vector<2x16xf32> to vector<2x16x1xf32>
    %157 = tpu.reciprocal %156 {approx = true} : vector<2x16x1xf32> -> vector<2x16x1xf32>
    %158 = vector.broadcast %157 : vector<2x16x1xf32> to vector<2x16x16xf32>
    %159 = arith.mulf %154, %158 : vector<2x16x16xf32>
    %160 = arith.truncf %159 : vector<2x16x16xf32> to vector<2x16x16xbf16>
    "tpu.trace_start"() <{level = 10 : i32, message = "bqk,bkd->bqd"}> : () -> ()
    %cst_57 = arith.constant dense<0.000000e+00> : vector<2x16x16xf32>
    %161 = tpu.matmul %160, %146, %cst_57 {dimension_numbers = #tpu.dot_dimension_numbers<[2], [1], [1], [2], [0, 0, 0, 1, 1, 2], [0], [0]>} : vector<2x16x16xbf16>, vector<2x16x16xbf16>, vector<2x16x16xf32> -> vector<2x16x16xf32>
    "tpu.trace_stop"() : () -> ()
    %c0_58 = arith.constant 0 : index
    %c0_59 = arith.constant 0 : index
    %c64 = arith.constant 64 : index
    %162 = vector.load %arg15[%c0_58, %c0_59, %c64] : memref<2x16x128xf32, #tpu.memory_space<vmem>>, vector<2x16x16xf32>
    tpu.vector_store %arg15[%c0_58, %c0_59, %c64], %161 {strides = array<i32>} : memref<2x16x128xf32, #tpu.memory_space<vmem>>, vector<2x16x16xf32>,
    %163 = vector.extract_strided_slice %48 {offsets = [0, 0, 80], sizes = [2, 16, 16], strides = [1, 1, 1]} : vector<2x16x128xf32> to vector<2x16x16xf32>
    %164 = arith.truncf %163 : vector<2x16x16xf32> to vector<2x16x16xbf16>
    %165 = vector.extract_strided_slice %50 {offsets = [0, 0, 80], sizes = [2, 16, 16], strides = [1, 1, 1]} : vector<2x16x128xf32> to vector<2x16x16xf32>
    %166 = arith.truncf %165 : vector<2x16x16xf32> to vector<2x16x16xbf16>
    %167 = vector.extract_strided_slice %52 {offsets = [0, 0, 80], sizes = [2, 16, 16], strides = [1, 1, 1]} : vector<2x16x128xf32> to vector<2x16x16xf32>
    %168 = arith.truncf %167 : vector<2x16x16xf32> to vector<2x16x16xbf16>
    "tpu.trace_start"() <{level = 10 : i32, message = "bqd,bkd->bqk"}> : () -> ()
    %cst_60 = arith.constant dense<0.000000e+00> : vector<2x16x16xf32>
    %169 = tpu.matmul %164, %166, %cst_60 {dimension_numbers = #tpu.dot_dimension_numbers<[2], [2], [1], [1], [0, 0, 0, 1, 1, 1], [0], [0]>} : vector<2x16x16xbf16>, vector<2x16x16xbf16>, vector<2x16x16xf32> -> vector<2x16x16xf32>
    "tpu.trace_stop"() : () -> ()
    %cst_61 = arith.constant 2.500000e-01 : f32
    %170 = vector.broadcast %cst_61 : f32 to vector<2x16x16xf32>
    %171 = arith.mulf %169, %170 : vector<2x16x16xf32>
    %cst_62 = arith.constant dense<0xFF800000> : vector<2x16xf32>
    %172 = vector.multi_reduction <maximumf>, %171, %cst_62 [2] : vector<2x16x16xf32> to vector<2x16xf32>
    %173 = vector.shape_cast %172 : vector<2x16xf32> to vector<2x16x1xf32>
    %174 = vector.broadcast %173 : vector<2x16x1xf32> to vector<2x16x16xf32>
    %175 = arith.subf %171, %174 : vector<2x16x16xf32>
    %176 = math.exp %175 : vector<2x16x16xf32>
    %cst_63 = arith.constant dense<0.000000e+00> : vector<2x16xf32>
    %177 = vector.multi_reduction <add>, %176, %cst_63 [2] : vector<2x16x16xf32> to vector<2x16xf32>
    %178 = vector.shape_cast %177 : vector<2x16xf32> to vector<2x16x1xf32>
    %179 = tpu.reciprocal %178 {approx = true} : vector<2x16x1xf32> -> vector<2x16x1xf32>
    %180 = vector.broadcast %179 : vector<2x16x1xf32> to vector<2x16x16xf32>
    %181 = arith.mulf %176, %180 : vector<2x16x16xf32>
    %182 = arith.truncf %181 : vector<2x16x16xf32> to vector<2x16x16xbf16>
    "tpu.trace_start"() <{level = 10 : i32, message = "bqk,bkd->bqd"}> : () -> ()
    %cst_64 = arith.constant dense<0.000000e+00> : vector<2x16x16xf32>
    %183 = tpu.matmul %182, %168, %cst_64 {dimension_numbers = #tpu.dot_dimension_numbers<[2], [1], [1], [2], [0, 0, 0, 1, 1, 2], [0], [0]>} : vector<2x16x16xbf16>, vector<2x16x16xbf16>, vector<2x16x16xf32> -> vector<2x16x16xf32>
    "tpu.trace_stop"() : () -> ()
    %c0_65 = arith.constant 0 : index
    %c0_66 = arith.constant 0 : index
    %c80 = arith.constant 80 : index
    %184 = vector.load %arg15[%c0_65, %c0_66, %c80] : memref<2x16x128xf32, #tpu.memory_space<vmem>>, vector<2x16x16xf32>
    tpu.vector_store %arg15[%c0_65, %c0_66, %c80], %183 {strides = array<i32>} : memref<2x16x128xf32, #tpu.memory_space<vmem>>, vector<2x16x16xf32>,
    %185 = vector.extract_strided_slice %48 {offsets = [0, 0, 96], sizes = [2, 16, 16], strides = [1, 1, 1]} : vector<2x16x128xf32> to vector<2x16x16xf32>
    %186 = arith.truncf %185 : vector<2x16x16xf32> to vector<2x16x16xbf16>
    %187 = vector.extract_strided_slice %50 {offsets = [0, 0, 96], sizes = [2, 16, 16], strides = [1, 1, 1]} : vector<2x16x128xf32> to vector<2x16x16xf32>
    %188 = arith.truncf %187 : vector<2x16x16xf32> to vector<2x16x16xbf16>
    %189 = vector.extract_strided_slice %52 {offsets = [0, 0, 96], sizes = [2, 16, 16], strides = [1, 1, 1]} : vector<2x16x128xf32> to vector<2x16x16xf32>
    %190 = arith.truncf %189 : vector<2x16x16xf32> to vector<2x16x16xbf16>
    "tpu.trace_start"() <{level = 10 : i32, message = "bqd,bkd->bqk"}> : () -> ()
    %cst_67 = arith.constant dense<0.000000e+00> : vector<2x16x16xf32>
    %191 = tpu.matmul %186, %188, %cst_67 {dimension_numbers = #tpu.dot_dimension_numbers<[2], [2], [1], [1], [0, 0, 0, 1, 1, 1], [0], [0]>} : vector<2x16x16xbf16>, vector<2x16x16xbf16>, vector<2x16x16xf32> -> vector<2x16x16xf32>
    "tpu.trace_stop"() : () -> ()
    %cst_68 = arith.constant 2.500000e-01 : f32
    %192 = vector.broadcast %cst_68 : f32 to vector<2x16x16xf32>
    %193 = arith.mulf %191, %192 : vector<2x16x16xf32>
    %cst_69 = arith.constant dense<0xFF800000> : vector<2x16xf32>
    %194 = vector.multi_reduction <maximumf>, %193, %cst_69 [2] : vector<2x16x16xf32> to vector<2x16xf32>
    %195 = vector.shape_cast %194 : vector<2x16xf32> to vector<2x16x1xf32>
    %196 = vector.broadcast %195 : vector<2x16x1xf32> to vector<2x16x16xf32>
    %197 = arith.subf %193, %196 : vector<2x16x16xf32>
    %198 = math.exp %197 : vector<2x16x16xf32>
    %cst_70 = arith.constant dense<0.000000e+00> : vector<2x16xf32>
    %199 = vector.multi_reduction <add>, %198, %cst_70 [2] : vector<2x16x16xf32> to vector<2x16xf32>
    %200 = vector.shape_cast %199 : vector<2x16xf32> to vector<2x16x1xf32>
    %201 = tpu.reciprocal %200 {approx = true} : vector<2x16x1xf32> -> vector<2x16x1xf32>
    %202 = vector.broadcast %201 : vector<2x16x1xf32> to vector<2x16x16xf32>
    %203 = arith.mulf %198, %202 : vector<2x16x16xf32>
    %204 = arith.truncf %203 : vector<2x16x16xf32> to vector<2x16x16xbf16>
    "tpu.trace_start"() <{level = 10 : i32, message = "bqk,bkd->bqd"}> : () -> ()
    %cst_71 = arith.constant dense<0.000000e+00> : vector<2x16x16xf32>
    %205 = tpu.matmul %204, %190, %cst_71 {dimension_numbers = #tpu.dot_dimension_numbers<[2], [1], [1], [2], [0, 0, 0, 1, 1, 2], [0], [0]>} : vector<2x16x16xbf16>, vector<2x16x16xbf16>, vector<2x16x16xf32> -> vector<2x16x16xf32>
    "tpu.trace_stop"() : () -> ()
    %c0_72 = arith.constant 0 : index
    %c0_73 = arith.constant 0 : index
    %c96 = arith.constant 96 : index
    %206 = vector.load %arg15[%c0_72, %c0_73, %c96] : memref<2x16x128xf32, #tpu.memory_space<vmem>>, vector<2x16x16xf32>
    tpu.vector_store %arg15[%c0_72, %c0_73, %c96], %205 {strides = array<i32>} : memref<2x16x128xf32, #tpu.memory_space<vmem>>, vector<2x16x16xf32>,
    %207 = vector.extract_strided_slice %48 {offsets = [0, 0, 112], sizes = [2, 16, 16], strides = [1, 1, 1]} : vector<2x16x128xf32> to vector<2x16x16xf32>
    %208 = arith.truncf %207 : vector<2x16x16xf32> to vector<2x16x16xbf16>
    %209 = vector.extract_strided_slice %50 {offsets = [0, 0, 112], sizes = [2, 16, 16], strides = [1, 1, 1]} : vector<2x16x128xf32> to vector<2x16x16xf32>
    %210 = arith.truncf %209 : vector<2x16x16xf32> to vector<2x16x16xbf16>
    %211 = vector.extract_strided_slice %52 {offsets = [0, 0, 112], sizes = [2, 16, 16], strides = [1, 1, 1]} : vector<2x16x128xf32> to vector<2x16x16xf32>
    %212 = arith.truncf %211 : vector<2x16x16xf32> to vector<2x16x16xbf16>
    "tpu.trace_start"() <{level = 10 : i32, message = "bqd,bkd->bqk"}> : () -> ()
    %cst_74 = arith.constant dense<0.000000e+00> : vector<2x16x16xf32>
    %213 = tpu.matmul %208, %210, %cst_74 {dimension_numbers = #tpu.dot_dimension_numbers<[2], [2], [1], [1], [0, 0, 0, 1, 1, 1], [0], [0]>} : vector<2x16x16xbf16>, vector<2x16x16xbf16>, vector<2x16x16xf32> -> vector<2x16x16xf32>
    "tpu.trace_stop"() : () -> ()
    %cst_75 = arith.constant 2.500000e-01 : f32
    %214 = vector.broadcast %cst_75 : f32 to vector<2x16x16xf32>
    %215 = arith.mulf %213, %214 : vector<2x16x16xf32>
    %cst_76 = arith.constant dense<0xFF800000> : vector<2x16xf32>
    %216 = vector.multi_reduction <maximumf>, %215, %cst_76 [2] : vector<2x16x16xf32> to vector<2x16xf32>
    %217 = vector.shape_cast %216 : vector<2x16xf32> to vector<2x16x1xf32>
    %218 = vector.broadcast %217 : vector<2x16x1xf32> to vector<2x16x16xf32>
    %219 = arith.subf %215, %218 : vector<2x16x16xf32>
    %220 = math.exp %219 : vector<2x16x16xf32>
    %cst_77 = arith.constant dense<0.000000e+00> : vector<2x16xf32>
    %221 = vector.multi_reduction <add>, %220, %cst_77 [2] : vector<2x16x16xf32> to vector<2x16xf32>
    %222 = vector.shape_cast %221 : vector<2x16xf32> to vector<2x16x1xf32>
    %223 = tpu.reciprocal %222 {approx = true} : vector<2x16x1xf32> -> vector<2x16x1xf32>
    %224 = vector.broadcast %223 : vector<2x16x1xf32> to vector<2x16x16xf32>
    %225 = arith.mulf %220, %224 : vector<2x16x16xf32>
    %226 = arith.truncf %225 : vector<2x16x16xf32> to vector<2x16x16xbf16>
    "tpu.trace_start"() <{level = 10 : i32, message = "bqk,bkd->bqd"}> : () -> ()
    %cst_78 = arith.constant dense<0.000000e+00> : vector<2x16x16xf32>
    %227 = tpu.matmul %226, %212, %cst_78 {dimension_numbers = #tpu.dot_dimension_numbers<[2], [1], [1], [2], [0, 0, 0, 1, 1, 2], [0], [0]>} : vector<2x16x16xbf16>, vector<2x16x16xbf16>, vector<2x16x16xf32> -> vector<2x16x16xf32>
    "tpu.trace_stop"() : () -> ()
    %c0_79 = arith.constant 0 : index
    %c0_80 = arith.constant 0 : index
    %c112 = arith.constant 112 : index
    %228 = vector.load %arg15[%c0_79, %c0_80, %c112] : memref<2x16x128xf32, #tpu.memory_space<vmem>>, vector<2x16x16xf32>
    tpu.vector_store %arg15[%c0_79, %c0_80, %c112], %227 {strides = array<i32>} : memref<2x16x128xf32, #tpu.memory_space<vmem>>, vector<2x16x16xf32>,
    %c0_81 = arith.constant 0 : index
    %c0_82 = arith.constant 0 : index
    %c0_83 = arith.constant 0 : index
    %229 = vector.load %arg15[%c0_81, %c0_82, %c0_83] : memref<2x16x128xf32, #tpu.memory_space<vmem>>, vector<2x16x128xf32>
    %230 = vector.shape_cast %229 : vector<2x16x128xf32> to vector<32x128xf32>
    %c0_84 = arith.constant 0 : index
    %c0_85 = arith.constant 0 : index
    %c0_86 = arith.constant 0 : index
    %231 = vector.load %arg9[%c0_84, %c0_85, %c0_86] : memref<2x128x128xbf16, #tpu.memory_space<vmem>>, vector<1x128x128xbf16>
    %232 = vector.shape_cast %231 : vector<1x128x128xbf16> to vector<128x128xbf16>
    %c5 = arith.constant 5 : index
    %c0_87 = arith.constant 0 : index
    %233 = vector.load %arg4[%c5, %c0_87] : memref<17x128xf32, #tpu.memory_space<vmem>>, vector<1x128xf32>
    %234 = arith.truncf %230 : vector<32x128xf32> to vector<32x128xbf16>
    %cst_88 = arith.constant dense<0.000000e+00> : vector<32x128xf32>
    %235 = tpu.matmul %234, %232, %cst_88 {dimension_numbers = #tpu.dot_dimension_numbers<[1], [0], [0], [1], [0, 0, 1, 1], [], []>} : vector<32x128xbf16>, vector<128x128xbf16>, vector<32x128xf32> -> vector<32x128xf32>
    %236 = vector.broadcast %233 : vector<1x128xf32> to vector<32x128xf32>
    %237 = arith.addf %235, %236 : vector<32x128xf32>
    %238 = arith.addf %39, %237 : vector<32x128xf32>
    %c6 = arith.constant 6 : index
    %c0_89 = arith.constant 0 : index
    %239 = vector.load %arg4[%c6, %c0_89] : memref<17x128xf32, #tpu.memory_space<vmem>>, vector<1x128xf32>
    %c7 = arith.constant 7 : index
    %c0_90 = arith.constant 0 : index
    %240 = vector.load %arg4[%c7, %c0_90] : memref<17x128xf32, #tpu.memory_space<vmem>>, vector<1x128xf32>
    %cst_91 = arith.constant dense<0.000000e+00> : vector<32xf32>
    %241 = vector.multi_reduction <add>, %238, %cst_91 [1] : vector<32x128xf32> to vector<32xf32>
    %242 = vector.shape_cast %241 : vector<32xf32> to vector<32x1xf32>
    %cst_92 = arith.constant 1.280000e+02 : f32
    %243 = vector.broadcast %cst_92 : f32 to vector<32x1xf32>
    %244 = arith.divf %242, %243 : vector<32x1xf32>
    %245 = vector.broadcast %244 : vector<32x1xf32> to vector<32x128xf32>
    %246 = arith.subf %238, %245 : vector<32x128xf32>
    %247 = arith.mulf %246, %246 : vector<32x128xf32>
    %cst_93 = arith.constant dense<0.000000e+00> : vector<32xf32>
    %248 = vector.multi_reduction <add>, %247, %cst_93 [1] : vector<32x128xf32> to vector<32xf32>
    %249 = vector.shape_cast %248 : vector<32xf32> to vector<32x1xf32>
    %cst_94 = arith.constant 1.280000e+02 : f32
    %250 = vector.broadcast %cst_94 : f32 to vector<32x1xf32>
    %251 = arith.divf %249, %250 : vector<32x1xf32>
    %252 = vector.broadcast %244 : vector<32x1xf32> to vector<32x128xf32>
    %253 = arith.subf %238, %252 : vector<32x128xf32>
    %cst_95 = arith.constant 9.99999974E-6 : f32
    %254 = vector.broadcast %cst_95 : f32 to vector<32x1xf32>
    %255 = arith.addf %251, %254 : vector<32x1xf32>
    %256 = math.rsqrt %255 : vector<32x1xf32>
    %257 = vector.broadcast %256 : vector<32x1xf32> to vector<32x128xf32>
    %258 = arith.mulf %253, %257 : vector<32x128xf32>
    %259 = vector.broadcast %239 : vector<1x128xf32> to vector<32x128xf32>
    %260 = arith.mulf %258, %259 : vector<32x128xf32>
    %261 = vector.broadcast %240 : vector<1x128xf32> to vector<32x128xf32>
    %262 = arith.addf %260, %261 : vector<32x128xf32>
    %c0_96 = arith.constant 0 : index
    %c0_97 = arith.constant 0 : index
    %c0_98 = arith.constant 0 : index
    %263 = vector.load %arg10[%c0_96, %c0_97, %c0_98] : memref<2x128x512xbf16, #tpu.memory_space<vmem>>, vector<1x128x512xbf16>
    %264 = vector.shape_cast %263 : vector<1x128x512xbf16> to vector<128x512xbf16>
    %c0_99 = arith.constant 0 : index
    %c0_100 = arith.constant 0 : index
    %265 = vector.load %arg6[%c0_99, %c0_100] : memref<2x512xf32, #tpu.memory_space<vmem>>, vector<1x512xf32>
    %266 = arith.truncf %262 : vector<32x128xf32> to vector<32x128xbf16>
    %cst_101 = arith.constant dense<0.000000e+00> : vector<32x512xf32>
    %267 = tpu.matmul %266, %264, %cst_101 {dimension_numbers = #tpu.dot_dimension_numbers<[1], [0], [0], [1], [0, 0, 1, 1], [], []>} : vector<32x128xbf16>, vector<128x512xbf16>, vector<32x512xf32> -> vector<32x512xf32>
    %268 = vector.broadcast %265 : vector<1x512xf32> to vector<32x512xf32>
    %269 = arith.addf %267, %268 : vector<32x512xf32>
    %cst_102 = arith.constant 5.000000e-01 : f32
    %270 = vector.broadcast %cst_102 : f32 to vector<32x512xf32>
    %271 = arith.mulf %270, %269 : vector<32x512xf32>
    %cst_103 = arith.constant 4.471500e-02 : f32
    %272 = vector.broadcast %cst_103 : f32 to vector<32x512xf32>
    %273 = arith.mulf %272, %269 : vector<32x512xf32>
    %274 = arith.mulf %273, %269 : vector<32x512xf32>
    %275 = arith.mulf %274, %269 : vector<32x512xf32>
    %276 = arith.addf %269, %275 : vector<32x512xf32>
    %cst_104 = arith.constant 0.797884583 : f32
    %277 = vector.broadcast %cst_104 : f32 to vector<32x512xf32>
    %278 = arith.mulf %277, %276 : vector<32x512xf32>
    %279 = math.tanh %278 : vector<32x512xf32>
    %cst_105 = arith.constant 1.000000e+00 : f32
    %280 = vector.broadcast %cst_105 : f32 to vector<32x512xf32>
    %281 = arith.addf %280, %279 : vector<32x512xf32>
    %282 = arith.mulf %271, %281 : vector<32x512xf32>
    %c0_106 = arith.constant 0 : index
    %c0_107 = arith.constant 0 : index
    %c0_108 = arith.constant 0 : index
    %283 = vector.load %arg11[%c0_106, %c0_107, %c0_108] : memref<2x512x128xbf16, #tpu.memory_space<vmem>>, vector<1x512x128xbf16>
    %284 = vector.shape_cast %283 : vector<1x512x128xbf16> to vector<512x128xbf16>
    %c8 = arith.constant 8 : index
    %c0_109 = arith.constant 0 : index
    %285 = vector.load %arg4[%c8, %c0_109] : memref<17x128xf32, #tpu.memory_space<vmem>>, vector<1x128xf32>
    %286 = arith.truncf %282 : vector<32x512xf32> to vector<32x512xbf16>
    %cst_110 = arith.constant dense<0.000000e+00> : vector<32x128xf32>
    %287 = tpu.matmul %286, %284, %cst_110 {dimension_numbers = #tpu.dot_dimension_numbers<[1], [0], [0], [1], [0, 0, 1, 1], [], []>} : vector<32x512xbf16>, vector<512x128xbf16>, vector<32x128xf32> -> vector<32x128xf32>
    %288 = vector.broadcast %285 : vector<1x128xf32> to vector<32x128xf32>
    %289 = arith.addf %287, %288 : vector<32x128xf32>
    %290 = arith.addf %262, %289 : vector<32x128xf32>
    %c9 = arith.constant 9 : index
    %c0_111 = arith.constant 0 : index
    %291 = vector.load %arg4[%c9, %c0_111] : memref<17x128xf32, #tpu.memory_space<vmem>>, vector<1x128xf32>
    %c10 = arith.constant 10 : index
    %c0_112 = arith.constant 0 : index
    %292 = vector.load %arg4[%c10, %c0_112] : memref<17x128xf32, #tpu.memory_space<vmem>>, vector<1x128xf32>
    %cst_113 = arith.constant dense<0.000000e+00> : vector<32xf32>
    %293 = vector.multi_reduction <add>, %290, %cst_113 [1] : vector<32x128xf32> to vector<32xf32>
    %294 = vector.shape_cast %293 : vector<32xf32> to vector<32x1xf32>
    %cst_114 = arith.constant 1.280000e+02 : f32
    %295 = vector.broadcast %cst_114 : f32 to vector<32x1xf32>
    %296 = arith.divf %294, %295 : vector<32x1xf32>
    %297 = vector.broadcast %296 : vector<32x1xf32> to vector<32x128xf32>
    %298 = arith.subf %290, %297 : vector<32x128xf32>
    %299 = arith.mulf %298, %298 : vector<32x128xf32>
    %cst_115 = arith.constant dense<0.000000e+00> : vector<32xf32>
    %300 = vector.multi_reduction <add>, %299, %cst_115 [1] : vector<32x128xf32> to vector<32xf32>
    %301 = vector.shape_cast %300 : vector<32xf32> to vector<32x1xf32>
    %cst_116 = arith.constant 1.280000e+02 : f32
    %302 = vector.broadcast %cst_116 : f32 to vector<32x1xf32>
    %303 = arith.divf %301, %302 : vector<32x1xf32>
    %304 = vector.broadcast %296 : vector<32x1xf32> to vector<32x128xf32>
    %305 = arith.subf %290, %304 : vector<32x128xf32>
    %cst_117 = arith.constant 9.99999974E-6 : f32
    %306 = vector.broadcast %cst_117 : f32 to vector<32x1xf32>
    %307 = arith.addf %303, %306 : vector<32x1xf32>
    %308 = math.rsqrt %307 : vector<32x1xf32>
    %309 = vector.broadcast %308 : vector<32x1xf32> to vector<32x128xf32>
    %310 = arith.mulf %305, %309 : vector<32x128xf32>
    %311 = vector.broadcast %291 : vector<1x128xf32> to vector<32x128xf32>
    %312 = arith.mulf %310, %311 : vector<32x128xf32>
    %313 = vector.broadcast %292 : vector<1x128xf32> to vector<32x128xf32>
    %314 = arith.addf %312, %313 : vector<32x128xf32>
    %c1_118 = arith.constant 1 : index
    %c0_119 = arith.constant 0 : index
    %c0_120 = arith.constant 0 : index
    %315 = vector.load %arg8[%c1_118, %c0_119, %c0_120] : memref<2x128x384xbf16, #tpu.memory_space<vmem>>, vector<1x128x384xbf16>
    %316 = vector.shape_cast %315 : vector<1x128x384xbf16> to vector<128x384xbf16>
    %c1_121 = arith.constant 1 : index
    %c0_122 = arith.constant 0 : index
    %317 = vector.load %arg5[%c1_121, %c0_122] : memref<2x384xf32, #tpu.memory_space<vmem>>, vector<1x384xf32>
    %318 = arith.truncf %314 : vector<32x128xf32> to vector<32x128xbf16>
    %cst_123 = arith.constant dense<0.000000e+00> : vector<32x384xf32>
    %319 = tpu.matmul %318, %316, %cst_123 {dimension_numbers = #tpu.dot_dimension_numbers<[1], [0], [0], [1], [0, 0, 1, 1], [], []>} : vector<32x128xbf16>, vector<128x384xbf16>, vector<32x384xf32> -> vector<32x384xf32>
    %320 = vector.broadcast %317 : vector<1x384xf32> to vector<32x384xf32>
    %321 = arith.addf %319, %320 : vector<32x384xf32>
    %322 = vector.extract_strided_slice %321 {offsets = [0, 0], sizes = [32, 128], strides = [1, 1]} : vector<32x384xf32> to vector<32x128xf32>
    %323 = vector.shape_cast %322 : vector<32x128xf32> to vector<2x16x128xf32>
    %324 = vector.extract_strided_slice %321 {offsets = [0, 128], sizes = [32, 128], strides = [1, 1]} : vector<32x384xf32> to vector<32x128xf32>
    %325 = vector.shape_cast %324 : vector<32x128xf32> to vector<2x16x128xf32>
    %326 = vector.extract_strided_slice %321 {offsets = [0, 256], sizes = [32, 128], strides = [1, 1]} : vector<32x384xf32> to vector<32x128xf32>
    %327 = vector.shape_cast %326 : vector<32x128xf32> to vector<2x16x128xf32>
    %328 = vector.extract_strided_slice %323 {offsets = [0, 0, 0], sizes = [2, 16, 16], strides = [1, 1, 1]} : vector<2x16x128xf32> to vector<2x16x16xf32>
    %329 = arith.truncf %328 : vector<2x16x16xf32> to vector<2x16x16xbf16>
    %330 = vector.extract_strided_slice %325 {offsets = [0, 0, 0], sizes = [2, 16, 16], strides = [1, 1, 1]} : vector<2x16x128xf32> to vector<2x16x16xf32>
    %331 = arith.truncf %330 : vector<2x16x16xf32> to vector<2x16x16xbf16>
    %332 = vector.extract_strided_slice %327 {offsets = [0, 0, 0], sizes = [2, 16, 16], strides = [1, 1, 1]} : vector<2x16x128xf32> to vector<2x16x16xf32>
    %333 = arith.truncf %332 : vector<2x16x16xf32> to vector<2x16x16xbf16>
    "tpu.trace_start"() <{level = 10 : i32, message = "bqd,bkd->bqk"}> : () -> ()
    %cst_124 = arith.constant dense<0.000000e+00> : vector<2x16x16xf32>
    %334 = tpu.matmul %329, %331, %cst_124 {dimension_numbers = #tpu.dot_dimension_numbers<[2], [2], [1], [1], [0, 0, 0, 1, 1, 1], [0], [0]>} : vector<2x16x16xbf16>, vector<2x16x16xbf16>, vector<2x16x16xf32> -> vector<2x16x16xf32>
    "tpu.trace_stop"() : () -> ()
    %cst_125 = arith.constant 2.500000e-01 : f32
    %335 = vector.broadcast %cst_125 : f32 to vector<2x16x16xf32>
    %336 = arith.mulf %334, %335 : vector<2x16x16xf32>
    %cst_126 = arith.constant dense<0xFF800000> : vector<2x16xf32>
    %337 = vector.multi_reduction <maximumf>, %336, %cst_126 [2] : vector<2x16x16xf32> to vector<2x16xf32>
    %338 = vector.shape_cast %337 : vector<2x16xf32> to vector<2x16x1xf32>
    %339 = vector.broadcast %338 : vector<2x16x1xf32> to vector<2x16x16xf32>
    %340 = arith.subf %336, %339 : vector<2x16x16xf32>
    %341 = math.exp %340 : vector<2x16x16xf32>
    %cst_127 = arith.constant dense<0.000000e+00> : vector<2x16xf32>
    %342 = vector.multi_reduction <add>, %341, %cst_127 [2] : vector<2x16x16xf32> to vector<2x16xf32>
    %343 = vector.shape_cast %342 : vector<2x16xf32> to vector<2x16x1xf32>
    %344 = tpu.reciprocal %343 {approx = true} : vector<2x16x1xf32> -> vector<2x16x1xf32>
    %345 = vector.broadcast %344 : vector<2x16x1xf32> to vector<2x16x16xf32>
    %346 = arith.mulf %341, %345 : vector<2x16x16xf32>
    %347 = arith.truncf %346 : vector<2x16x16xf32> to vector<2x16x16xbf16>
    "tpu.trace_start"() <{level = 10 : i32, message = "bqk,bkd->bqd"}> : () -> ()
    %cst_128 = arith.constant dense<0.000000e+00> : vector<2x16x16xf32>
    %348 = tpu.matmul %347, %333, %cst_128 {dimension_numbers = #tpu.dot_dimension_numbers<[2], [1], [1], [2], [0, 0, 0, 1, 1, 2], [0], [0]>} : vector<2x16x16xbf16>, vector<2x16x16xbf16>, vector<2x16x16xf32> -> vector<2x16x16xf32>
    "tpu.trace_stop"() : () -> ()
    %c0_129 = arith.constant 0 : index
    %c0_130 = arith.constant 0 : index
    %c0_131 = arith.constant 0 : index
    %349 = vector.load %arg15[%c0_129, %c0_130, %c0_131] : memref<2x16x128xf32, #tpu.memory_space<vmem>>, vector<2x16x16xf32>
    tpu.vector_store %arg15[%c0_129, %c0_130, %c0_131], %348 {strides = array<i32>} : memref<2x16x128xf32, #tpu.memory_space<vmem>>, vector<2x16x16xf32>,
    %350 = vector.extract_strided_slice %323 {offsets = [0, 0, 16], sizes = [2, 16, 16], strides = [1, 1, 1]} : vector<2x16x128xf32> to vector<2x16x16xf32>
    %351 = arith.truncf %350 : vector<2x16x16xf32> to vector<2x16x16xbf16>
    %352 = vector.extract_strided_slice %325 {offsets = [0, 0, 16], sizes = [2, 16, 16], strides = [1, 1, 1]} : vector<2x16x128xf32> to vector<2x16x16xf32>
    %353 = arith.truncf %352 : vector<2x16x16xf32> to vector<2x16x16xbf16>
    %354 = vector.extract_strided_slice %327 {offsets = [0, 0, 16], sizes = [2, 16, 16], strides = [1, 1, 1]} : vector<2x16x128xf32> to vector<2x16x16xf32>
    %355 = arith.truncf %354 : vector<2x16x16xf32> to vector<2x16x16xbf16>
    "tpu.trace_start"() <{level = 10 : i32, message = "bqd,bkd->bqk"}> : () -> ()
    %cst_132 = arith.constant dense<0.000000e+00> : vector<2x16x16xf32>
    %356 = tpu.matmul %351, %353, %cst_132 {dimension_numbers = #tpu.dot_dimension_numbers<[2], [2], [1], [1], [0, 0, 0, 1, 1, 1], [0], [0]>} : vector<2x16x16xbf16>, vector<2x16x16xbf16>, vector<2x16x16xf32> -> vector<2x16x16xf32>
    "tpu.trace_stop"() : () -> ()
    %cst_133 = arith.constant 2.500000e-01 : f32
    %357 = vector.broadcast %cst_133 : f32 to vector<2x16x16xf32>
    %358 = arith.mulf %356, %357 : vector<2x16x16xf32>
    %cst_134 = arith.constant dense<0xFF800000> : vector<2x16xf32>
    %359 = vector.multi_reduction <maximumf>, %358, %cst_134 [2] : vector<2x16x16xf32> to vector<2x16xf32>
    %360 = vector.shape_cast %359 : vector<2x16xf32> to vector<2x16x1xf32>
    %361 = vector.broadcast %360 : vector<2x16x1xf32> to vector<2x16x16xf32>
    %362 = arith.subf %358, %361 : vector<2x16x16xf32>
    %363 = math.exp %362 : vector<2x16x16xf32>
    %cst_135 = arith.constant dense<0.000000e+00> : vector<2x16xf32>
    %364 = vector.multi_reduction <add>, %363, %cst_135 [2] : vector<2x16x16xf32> to vector<2x16xf32>
    %365 = vector.shape_cast %364 : vector<2x16xf32> to vector<2x16x1xf32>
    %366 = tpu.reciprocal %365 {approx = true} : vector<2x16x1xf32> -> vector<2x16x1xf32>
    %367 = vector.broadcast %366 : vector<2x16x1xf32> to vector<2x16x16xf32>
    %368 = arith.mulf %363, %367 : vector<2x16x16xf32>
    %369 = arith.truncf %368 : vector<2x16x16xf32> to vector<2x16x16xbf16>
    "tpu.trace_start"() <{level = 10 : i32, message = "bqk,bkd->bqd"}> : () -> ()
    %cst_136 = arith.constant dense<0.000000e+00> : vector<2x16x16xf32>
    %370 = tpu.matmul %369, %355, %cst_136 {dimension_numbers = #tpu.dot_dimension_numbers<[2], [1], [1], [2], [0, 0, 0, 1, 1, 2], [0], [0]>} : vector<2x16x16xbf16>, vector<2x16x16xbf16>, vector<2x16x16xf32> -> vector<2x16x16xf32>
    "tpu.trace_stop"() : () -> ()
    %c0_137 = arith.constant 0 : index
    %c0_138 = arith.constant 0 : index
    %c16_139 = arith.constant 16 : index
    %371 = vector.load %arg15[%c0_137, %c0_138, %c16_139] : memref<2x16x128xf32, #tpu.memory_space<vmem>>, vector<2x16x16xf32>
    tpu.vector_store %arg15[%c0_137, %c0_138, %c16_139], %370 {strides = array<i32>} : memref<2x16x128xf32, #tpu.memory_space<vmem>>, vector<2x16x16xf32>,
    %372 = vector.extract_strided_slice %323 {offsets = [0, 0, 32], sizes = [2, 16, 16], strides = [1, 1, 1]} : vector<2x16x128xf32> to vector<2x16x16xf32>
    %373 = arith.truncf %372 : vector<2x16x16xf32> to vector<2x16x16xbf16>
    %374 = vector.extract_strided_slice %325 {offsets = [0, 0, 32], sizes = [2, 16, 16], strides = [1, 1, 1]} : vector<2x16x128xf32> to vector<2x16x16xf32>
    %375 = arith.truncf %374 : vector<2x16x16xf32> to vector<2x16x16xbf16>
    %376 = vector.extract_strided_slice %327 {offsets = [0, 0, 32], sizes = [2, 16, 16], strides = [1, 1, 1]} : vector<2x16x128xf32> to vector<2x16x16xf32>
    %377 = arith.truncf %376 : vector<2x16x16xf32> to vector<2x16x16xbf16>
    "tpu.trace_start"() <{level = 10 : i32, message = "bqd,bkd->bqk"}> : () -> ()
    %cst_140 = arith.constant dense<0.000000e+00> : vector<2x16x16xf32>
    %378 = tpu.matmul %373, %375, %cst_140 {dimension_numbers = #tpu.dot_dimension_numbers<[2], [2], [1], [1], [0, 0, 0, 1, 1, 1], [0], [0]>} : vector<2x16x16xbf16>, vector<2x16x16xbf16>, vector<2x16x16xf32> -> vector<2x16x16xf32>
    "tpu.trace_stop"() : () -> ()
    %cst_141 = arith.constant 2.500000e-01 : f32
    %379 = vector.broadcast %cst_141 : f32 to vector<2x16x16xf32>
    %380 = arith.mulf %378, %379 : vector<2x16x16xf32>
    %cst_142 = arith.constant dense<0xFF800000> : vector<2x16xf32>
    %381 = vector.multi_reduction <maximumf>, %380, %cst_142 [2] : vector<2x16x16xf32> to vector<2x16xf32>
    %382 = vector.shape_cast %381 : vector<2x16xf32> to vector<2x16x1xf32>
    %383 = vector.broadcast %382 : vector<2x16x1xf32> to vector<2x16x16xf32>
    %384 = arith.subf %380, %383 : vector<2x16x16xf32>
    %385 = math.exp %384 : vector<2x16x16xf32>
    %cst_143 = arith.constant dense<0.000000e+00> : vector<2x16xf32>
    %386 = vector.multi_reduction <add>, %385, %cst_143 [2] : vector<2x16x16xf32> to vector<2x16xf32>
    %387 = vector.shape_cast %386 : vector<2x16xf32> to vector<2x16x1xf32>
    %388 = tpu.reciprocal %387 {approx = true} : vector<2x16x1xf32> -> vector<2x16x1xf32>
    %389 = vector.broadcast %388 : vector<2x16x1xf32> to vector<2x16x16xf32>
    %390 = arith.mulf %385, %389 : vector<2x16x16xf32>
    %391 = arith.truncf %390 : vector<2x16x16xf32> to vector<2x16x16xbf16>
    "tpu.trace_start"() <{level = 10 : i32, message = "bqk,bkd->bqd"}> : () -> ()
    %cst_144 = arith.constant dense<0.000000e+00> : vector<2x16x16xf32>
    %392 = tpu.matmul %391, %377, %cst_144 {dimension_numbers = #tpu.dot_dimension_numbers<[2], [1], [1], [2], [0, 0, 0, 1, 1, 2], [0], [0]>} : vector<2x16x16xbf16>, vector<2x16x16xbf16>, vector<2x16x16xf32> -> vector<2x16x16xf32>
    "tpu.trace_stop"() : () -> ()
    %c0_145 = arith.constant 0 : index
    %c0_146 = arith.constant 0 : index
    %c32_147 = arith.constant 32 : index
    %393 = vector.load %arg15[%c0_145, %c0_146, %c32_147] : memref<2x16x128xf32, #tpu.memory_space<vmem>>, vector<2x16x16xf32>
    tpu.vector_store %arg15[%c0_145, %c0_146, %c32_147], %392 {strides = array<i32>} : memref<2x16x128xf32, #tpu.memory_space<vmem>>, vector<2x16x16xf32>,
    %394 = vector.extract_strided_slice %323 {offsets = [0, 0, 48], sizes = [2, 16, 16], strides = [1, 1, 1]} : vector<2x16x128xf32> to vector<2x16x16xf32>
    %395 = arith.truncf %394 : vector<2x16x16xf32> to vector<2x16x16xbf16>
    %396 = vector.extract_strided_slice %325 {offsets = [0, 0, 48], sizes = [2, 16, 16], strides = [1, 1, 1]} : vector<2x16x128xf32> to vector<2x16x16xf32>
    %397 = arith.truncf %396 : vector<2x16x16xf32> to vector<2x16x16xbf16>
    %398 = vector.extract_strided_slice %327 {offsets = [0, 0, 48], sizes = [2, 16, 16], strides = [1, 1, 1]} : vector<2x16x128xf32> to vector<2x16x16xf32>
    %399 = arith.truncf %398 : vector<2x16x16xf32> to vector<2x16x16xbf16>
    "tpu.trace_start"() <{level = 10 : i32, message = "bqd,bkd->bqk"}> : () -> ()
    %cst_148 = arith.constant dense<0.000000e+00> : vector<2x16x16xf32>
    %400 = tpu.matmul %395, %397, %cst_148 {dimension_numbers = #tpu.dot_dimension_numbers<[2], [2], [1], [1], [0, 0, 0, 1, 1, 1], [0], [0]>} : vector<2x16x16xbf16>, vector<2x16x16xbf16>, vector<2x16x16xf32> -> vector<2x16x16xf32>
    "tpu.trace_stop"() : () -> ()
    %cst_149 = arith.constant 2.500000e-01 : f32
    %401 = vector.broadcast %cst_149 : f32 to vector<2x16x16xf32>
    %402 = arith.mulf %400, %401 : vector<2x16x16xf32>
    %cst_150 = arith.constant dense<0xFF800000> : vector<2x16xf32>
    %403 = vector.multi_reduction <maximumf>, %402, %cst_150 [2] : vector<2x16x16xf32> to vector<2x16xf32>
    %404 = vector.shape_cast %403 : vector<2x16xf32> to vector<2x16x1xf32>
    %405 = vector.broadcast %404 : vector<2x16x1xf32> to vector<2x16x16xf32>
    %406 = arith.subf %402, %405 : vector<2x16x16xf32>
    %407 = math.exp %406 : vector<2x16x16xf32>
    %cst_151 = arith.constant dense<0.000000e+00> : vector<2x16xf32>
    %408 = vector.multi_reduction <add>, %407, %cst_151 [2] : vector<2x16x16xf32> to vector<2x16xf32>
    %409 = vector.shape_cast %408 : vector<2x16xf32> to vector<2x16x1xf32>
    %410 = tpu.reciprocal %409 {approx = true} : vector<2x16x1xf32> -> vector<2x16x1xf32>
    %411 = vector.broadcast %410 : vector<2x16x1xf32> to vector<2x16x16xf32>
    %412 = arith.mulf %407, %411 : vector<2x16x16xf32>
    %413 = arith.truncf %412 : vector<2x16x16xf32> to vector<2x16x16xbf16>
    "tpu.trace_start"() <{level = 10 : i32, message = "bqk,bkd->bqd"}> : () -> ()
    %cst_152 = arith.constant dense<0.000000e+00> : vector<2x16x16xf32>
    %414 = tpu.matmul %413, %399, %cst_152 {dimension_numbers = #tpu.dot_dimension_numbers<[2], [1], [1], [2], [0, 0, 0, 1, 1, 2], [0], [0]>} : vector<2x16x16xbf16>, vector<2x16x16xbf16>, vector<2x16x16xf32> -> vector<2x16x16xf32>
    "tpu.trace_stop"() : () -> ()
    %c0_153 = arith.constant 0 : index
    %c0_154 = arith.constant 0 : index
    %c48_155 = arith.constant 48 : index
    %415 = vector.load %arg15[%c0_153, %c0_154, %c48_155] : memref<2x16x128xf32, #tpu.memory_space<vmem>>, vector<2x16x16xf32>
    tpu.vector_store %arg15[%c0_153, %c0_154, %c48_155], %414 {strides = array<i32>} : memref<2x16x128xf32, #tpu.memory_space<vmem>>, vector<2x16x16xf32>,
    %416 = vector.extract_strided_slice %323 {offsets = [0, 0, 64], sizes = [2, 16, 16], strides = [1, 1, 1]} : vector<2x16x128xf32> to vector<2x16x16xf32>
    %417 = arith.truncf %416 : vector<2x16x16xf32> to vector<2x16x16xbf16>
    %418 = vector.extract_strided_slice %325 {offsets = [0, 0, 64], sizes = [2, 16, 16], strides = [1, 1, 1]} : vector<2x16x128xf32> to vector<2x16x16xf32>
    %419 = arith.truncf %418 : vector<2x16x16xf32> to vector<2x16x16xbf16>
    %420 = vector.extract_strided_slice %327 {offsets = [0, 0, 64], sizes = [2, 16, 16], strides = [1, 1, 1]} : vector<2x16x128xf32> to vector<2x16x16xf32>
    %421 = arith.truncf %420 : vector<2x16x16xf32> to vector<2x16x16xbf16>
    "tpu.trace_start"() <{level = 10 : i32, message = "bqd,bkd->bqk"}> : () -> ()
    %cst_156 = arith.constant dense<0.000000e+00> : vector<2x16x16xf32>
    %422 = tpu.matmul %417, %419, %cst_156 {dimension_numbers = #tpu.dot_dimension_numbers<[2], [2], [1], [1], [0, 0, 0, 1, 1, 1], [0], [0]>} : vector<2x16x16xbf16>, vector<2x16x16xbf16>, vector<2x16x16xf32> -> vector<2x16x16xf32>
    "tpu.trace_stop"() : () -> ()
    %cst_157 = arith.constant 2.500000e-01 : f32
    %423 = vector.broadcast %cst_157 : f32 to vector<2x16x16xf32>
    %424 = arith.mulf %422, %423 : vector<2x16x16xf32>
    %cst_158 = arith.constant dense<0xFF800000> : vector<2x16xf32>
    %425 = vector.multi_reduction <maximumf>, %424, %cst_158 [2] : vector<2x16x16xf32> to vector<2x16xf32>
    %426 = vector.shape_cast %425 : vector<2x16xf32> to vector<2x16x1xf32>
    %427 = vector.broadcast %426 : vector<2x16x1xf32> to vector<2x16x16xf32>
    %428 = arith.subf %424, %427 : vector<2x16x16xf32>
    %429 = math.exp %428 : vector<2x16x16xf32>
    %cst_159 = arith.constant dense<0.000000e+00> : vector<2x16xf32>
    %430 = vector.multi_reduction <add>, %429, %cst_159 [2] : vector<2x16x16xf32> to vector<2x16xf32>
    %431 = vector.shape_cast %430 : vector<2x16xf32> to vector<2x16x1xf32>
    %432 = tpu.reciprocal %431 {approx = true} : vector<2x16x1xf32> -> vector<2x16x1xf32>
    %433 = vector.broadcast %432 : vector<2x16x1xf32> to vector<2x16x16xf32>
    %434 = arith.mulf %429, %433 : vector<2x16x16xf32>
    %435 = arith.truncf %434 : vector<2x16x16xf32> to vector<2x16x16xbf16>
    "tpu.trace_start"() <{level = 10 : i32, message = "bqk,bkd->bqd"}> : () -> ()
    %cst_160 = arith.constant dense<0.000000e+00> : vector<2x16x16xf32>
    %436 = tpu.matmul %435, %421, %cst_160 {dimension_numbers = #tpu.dot_dimension_numbers<[2], [1], [1], [2], [0, 0, 0, 1, 1, 2], [0], [0]>} : vector<2x16x16xbf16>, vector<2x16x16xbf16>, vector<2x16x16xf32> -> vector<2x16x16xf32>
    "tpu.trace_stop"() : () -> ()
    %c0_161 = arith.constant 0 : index
    %c0_162 = arith.constant 0 : index
    %c64_163 = arith.constant 64 : index
    %437 = vector.load %arg15[%c0_161, %c0_162, %c64_163] : memref<2x16x128xf32, #tpu.memory_space<vmem>>, vector<2x16x16xf32>
    tpu.vector_store %arg15[%c0_161, %c0_162, %c64_163], %436 {strides = array<i32>} : memref<2x16x128xf32, #tpu.memory_space<vmem>>, vector<2x16x16xf32>,
    %438 = vector.extract_strided_slice %323 {offsets = [0, 0, 80], sizes = [2, 16, 16], strides = [1, 1, 1]} : vector<2x16x128xf32> to vector<2x16x16xf32>
    %439 = arith.truncf %438 : vector<2x16x16xf32> to vector<2x16x16xbf16>
    %440 = vector.extract_strided_slice %325 {offsets = [0, 0, 80], sizes = [2, 16, 16], strides = [1, 1, 1]} : vector<2x16x128xf32> to vector<2x16x16xf32>
    %441 = arith.truncf %440 : vector<2x16x16xf32> to vector<2x16x16xbf16>
    %442 = vector.extract_strided_slice %327 {offsets = [0, 0, 80], sizes = [2, 16, 16], strides = [1, 1, 1]} : vector<2x16x128xf32> to vector<2x16x16xf32>
    %443 = arith.truncf %442 : vector<2x16x16xf32> to vector<2x16x16xbf16>
    "tpu.trace_start"() <{level = 10 : i32, message = "bqd,bkd->bqk"}> : () -> ()
    %cst_164 = arith.constant dense<0.000000e+00> : vector<2x16x16xf32>
    %444 = tpu.matmul %439, %441, %cst_164 {dimension_numbers = #tpu.dot_dimension_numbers<[2], [2], [1], [1], [0, 0, 0, 1, 1, 1], [0], [0]>} : vector<2x16x16xbf16>, vector<2x16x16xbf16>, vector<2x16x16xf32> -> vector<2x16x16xf32>
    "tpu.trace_stop"() : () -> ()
    %cst_165 = arith.constant 2.500000e-01 : f32
    %445 = vector.broadcast %cst_165 : f32 to vector<2x16x16xf32>
    %446 = arith.mulf %444, %445 : vector<2x16x16xf32>
    %cst_166 = arith.constant dense<0xFF800000> : vector<2x16xf32>
    %447 = vector.multi_reduction <maximumf>, %446, %cst_166 [2] : vector<2x16x16xf32> to vector<2x16xf32>
    %448 = vector.shape_cast %447 : vector<2x16xf32> to vector<2x16x1xf32>
    %449 = vector.broadcast %448 : vector<2x16x1xf32> to vector<2x16x16xf32>
    %450 = arith.subf %446, %449 : vector<2x16x16xf32>
    %451 = math.exp %450 : vector<2x16x16xf32>
    %cst_167 = arith.constant dense<0.000000e+00> : vector<2x16xf32>
    %452 = vector.multi_reduction <add>, %451, %cst_167 [2] : vector<2x16x16xf32> to vector<2x16xf32>
    %453 = vector.shape_cast %452 : vector<2x16xf32> to vector<2x16x1xf32>
    %454 = tpu.reciprocal %453 {approx = true} : vector<2x16x1xf32> -> vector<2x16x1xf32>
    %455 = vector.broadcast %454 : vector<2x16x1xf32> to vector<2x16x16xf32>
    %456 = arith.mulf %451, %455 : vector<2x16x16xf32>
    %457 = arith.truncf %456 : vector<2x16x16xf32> to vector<2x16x16xbf16>
    "tpu.trace_start"() <{level = 10 : i32, message = "bqk,bkd->bqd"}> : () -> ()
    %cst_168 = arith.constant dense<0.000000e+00> : vector<2x16x16xf32>
    %458 = tpu.matmul %457, %443, %cst_168 {dimension_numbers = #tpu.dot_dimension_numbers<[2], [1], [1], [2], [0, 0, 0, 1, 1, 2], [0], [0]>} : vector<2x16x16xbf16>, vector<2x16x16xbf16>, vector<2x16x16xf32> -> vector<2x16x16xf32>
    "tpu.trace_stop"() : () -> ()
    %c0_169 = arith.constant 0 : index
    %c0_170 = arith.constant 0 : index
    %c80_171 = arith.constant 80 : index
    %459 = vector.load %arg15[%c0_169, %c0_170, %c80_171] : memref<2x16x128xf32, #tpu.memory_space<vmem>>, vector<2x16x16xf32>
    tpu.vector_store %arg15[%c0_169, %c0_170, %c80_171], %458 {strides = array<i32>} : memref<2x16x128xf32, #tpu.memory_space<vmem>>, vector<2x16x16xf32>,
    %460 = vector.extract_strided_slice %323 {offsets = [0, 0, 96], sizes = [2, 16, 16], strides = [1, 1, 1]} : vector<2x16x128xf32> to vector<2x16x16xf32>
    %461 = arith.truncf %460 : vector<2x16x16xf32> to vector<2x16x16xbf16>
    %462 = vector.extract_strided_slice %325 {offsets = [0, 0, 96], sizes = [2, 16, 16], strides = [1, 1, 1]} : vector<2x16x128xf32> to vector<2x16x16xf32>
    %463 = arith.truncf %462 : vector<2x16x16xf32> to vector<2x16x16xbf16>
    %464 = vector.extract_strided_slice %327 {offsets = [0, 0, 96], sizes = [2, 16, 16], strides = [1, 1, 1]} : vector<2x16x128xf32> to vector<2x16x16xf32>
    %465 = arith.truncf %464 : vector<2x16x16xf32> to vector<2x16x16xbf16>
    "tpu.trace_start"() <{level = 10 : i32, message = "bqd,bkd->bqk"}> : () -> ()
    %cst_172 = arith.constant dense<0.000000e+00> : vector<2x16x16xf32>
    %466 = tpu.matmul %461, %463, %cst_172 {dimension_numbers = #tpu.dot_dimension_numbers<[2], [2], [1], [1], [0, 0, 0, 1, 1, 1], [0], [0]>} : vector<2x16x16xbf16>, vector<2x16x16xbf16>, vector<2x16x16xf32> -> vector<2x16x16xf32>
    "tpu.trace_stop"() : () -> ()
    %cst_173 = arith.constant 2.500000e-01 : f32
    %467 = vector.broadcast %cst_173 : f32 to vector<2x16x16xf32>
    %468 = arith.mulf %466, %467 : vector<2x16x16xf32>
    %cst_174 = arith.constant dense<0xFF800000> : vector<2x16xf32>
    %469 = vector.multi_reduction <maximumf>, %468, %cst_174 [2] : vector<2x16x16xf32> to vector<2x16xf32>
    %470 = vector.shape_cast %469 : vector<2x16xf32> to vector<2x16x1xf32>
    %471 = vector.broadcast %470 : vector<2x16x1xf32> to vector<2x16x16xf32>
    %472 = arith.subf %468, %471 : vector<2x16x16xf32>
    %473 = math.exp %472 : vector<2x16x16xf32>
    %cst_175 = arith.constant dense<0.000000e+00> : vector<2x16xf32>
    %474 = vector.multi_reduction <add>, %473, %cst_175 [2] : vector<2x16x16xf32> to vector<2x16xf32>
    %475 = vector.shape_cast %474 : vector<2x16xf32> to vector<2x16x1xf32>
    %476 = tpu.reciprocal %475 {approx = true} : vector<2x16x1xf32> -> vector<2x16x1xf32>
    %477 = vector.broadcast %476 : vector<2x16x1xf32> to vector<2x16x16xf32>
    %478 = arith.mulf %473, %477 : vector<2x16x16xf32>
    %479 = arith.truncf %478 : vector<2x16x16xf32> to vector<2x16x16xbf16>
    "tpu.trace_start"() <{level = 10 : i32, message = "bqk,bkd->bqd"}> : () -> ()
    %cst_176 = arith.constant dense<0.000000e+00> : vector<2x16x16xf32>
    %480 = tpu.matmul %479, %465, %cst_176 {dimension_numbers = #tpu.dot_dimension_numbers<[2], [1], [1], [2], [0, 0, 0, 1, 1, 2], [0], [0]>} : vector<2x16x16xbf16>, vector<2x16x16xbf16>, vector<2x16x16xf32> -> vector<2x16x16xf32>
    "tpu.trace_stop"() : () -> ()
    %c0_177 = arith.constant 0 : index
    %c0_178 = arith.constant 0 : index
    %c96_179 = arith.constant 96 : index
    %481 = vector.load %arg15[%c0_177, %c0_178, %c96_179] : memref<2x16x128xf32, #tpu.memory_space<vmem>>, vector<2x16x16xf32>
    tpu.vector_store %arg15[%c0_177, %c0_178, %c96_179], %480 {strides = array<i32>} : memref<2x16x128xf32, #tpu.memory_space<vmem>>, vector<2x16x16xf32>,
    %482 = vector.extract_strided_slice %323 {offsets = [0, 0, 112], sizes = [2, 16, 16], strides = [1, 1, 1]} : vector<2x16x128xf32> to vector<2x16x16xf32>
    %483 = arith.truncf %482 : vector<2x16x16xf32> to vector<2x16x16xbf16>
    %484 = vector.extract_strided_slice %325 {offsets = [0, 0, 112], sizes = [2, 16, 16], strides = [1, 1, 1]} : vector<2x16x128xf32> to vector<2x16x16xf32>
    %485 = arith.truncf %484 : vector<2x16x16xf32> to vector<2x16x16xbf16>
    %486 = vector.extract_strided_slice %327 {offsets = [0, 0, 112], sizes = [2, 16, 16], strides = [1, 1, 1]} : vector<2x16x128xf32> to vector<2x16x16xf32>
    %487 = arith.truncf %486 : vector<2x16x16xf32> to vector<2x16x16xbf16>
    "tpu.trace_start"() <{level = 10 : i32, message = "bqd,bkd->bqk"}> : () -> ()
    %cst_180 = arith.constant dense<0.000000e+00> : vector<2x16x16xf32>
    %488 = tpu.matmul %483, %485, %cst_180 {dimension_numbers = #tpu.dot_dimension_numbers<[2], [2], [1], [1], [0, 0, 0, 1, 1, 1], [0], [0]>} : vector<2x16x16xbf16>, vector<2x16x16xbf16>, vector<2x16x16xf32> -> vector<2x16x16xf32>
    "tpu.trace_stop"() : () -> ()
    %cst_181 = arith.constant 2.500000e-01 : f32
    %489 = vector.broadcast %cst_181 : f32 to vector<2x16x16xf32>
    %490 = arith.mulf %488, %489 : vector<2x16x16xf32>
    %cst_182 = arith.constant dense<0xFF800000> : vector<2x16xf32>
    %491 = vector.multi_reduction <maximumf>, %490, %cst_182 [2] : vector<2x16x16xf32> to vector<2x16xf32>
    %492 = vector.shape_cast %491 : vector<2x16xf32> to vector<2x16x1xf32>
    %493 = vector.broadcast %492 : vector<2x16x1xf32> to vector<2x16x16xf32>
    %494 = arith.subf %490, %493 : vector<2x16x16xf32>
    %495 = math.exp %494 : vector<2x16x16xf32>
    %cst_183 = arith.constant dense<0.000000e+00> : vector<2x16xf32>
    %496 = vector.multi_reduction <add>, %495, %cst_183 [2] : vector<2x16x16xf32> to vector<2x16xf32>
    %497 = vector.shape_cast %496 : vector<2x16xf32> to vector<2x16x1xf32>
    %498 = tpu.reciprocal %497 {approx = true} : vector<2x16x1xf32> -> vector<2x16x1xf32>
    %499 = vector.broadcast %498 : vector<2x16x1xf32> to vector<2x16x16xf32>
    %500 = arith.mulf %495, %499 : vector<2x16x16xf32>
    %501 = arith.truncf %500 : vector<2x16x16xf32> to vector<2x16x16xbf16>
    "tpu.trace_start"() <{level = 10 : i32, message = "bqk,bkd->bqd"}> : () -> ()
    %cst_184 = arith.constant dense<0.000000e+00> : vector<2x16x16xf32>
    %502 = tpu.matmul %501, %487, %cst_184 {dimension_numbers = #tpu.dot_dimension_numbers<[2], [1], [1], [2], [0, 0, 0, 1, 1, 2], [0], [0]>} : vector<2x16x16xbf16>, vector<2x16x16xbf16>, vector<2x16x16xf32> -> vector<2x16x16xf32>
    "tpu.trace_stop"() : () -> ()
    %c0_185 = arith.constant 0 : index
    %c0_186 = arith.constant 0 : index
    %c112_187 = arith.constant 112 : index
    %503 = vector.load %arg15[%c0_185, %c0_186, %c112_187] : memref<2x16x128xf32, #tpu.memory_space<vmem>>, vector<2x16x16xf32>
    tpu.vector_store %arg15[%c0_185, %c0_186, %c112_187], %502 {strides = array<i32>} : memref<2x16x128xf32, #tpu.memory_space<vmem>>, vector<2x16x16xf32>,
    %c0_188 = arith.constant 0 : index
    %c0_189 = arith.constant 0 : index
    %c0_190 = arith.constant 0 : index
    %504 = vector.load %arg15[%c0_188, %c0_189, %c0_190] : memref<2x16x128xf32, #tpu.memory_space<vmem>>, vector<2x16x128xf32>
    %505 = vector.shape_cast %504 : vector<2x16x128xf32> to vector<32x128xf32>
    %c1_191 = arith.constant 1 : index
    %c0_192 = arith.constant 0 : index
    %c0_193 = arith.constant 0 : index
    %506 = vector.load %arg9[%c1_191, %c0_192, %c0_193] : memref<2x128x128xbf16, #tpu.memory_space<vmem>>, vector<1x128x128xbf16>
    %507 = vector.shape_cast %506 : vector<1x128x128xbf16> to vector<128x128xbf16>
    %c11 = arith.constant 11 : index
    %c0_194 = arith.constant 0 : index
    %508 = vector.load %arg4[%c11, %c0_194] : memref<17x128xf32, #tpu.memory_space<vmem>>, vector<1x128xf32>
    %509 = arith.truncf %505 : vector<32x128xf32> to vector<32x128xbf16>
    %cst_195 = arith.constant dense<0.000000e+00> : vector<32x128xf32>
    %510 = tpu.matmul %509, %507, %cst_195 {dimension_numbers = #tpu.dot_dimension_numbers<[1], [0], [0], [1], [0, 0, 1, 1], [], []>} : vector<32x128xbf16>, vector<128x128xbf16>, vector<32x128xf32> -> vector<32x128xf32>
    %511 = vector.broadcast %508 : vector<1x128xf32> to vector<32x128xf32>
    %512 = arith.addf %510, %511 : vector<32x128xf32>
    %513 = arith.addf %314, %512 : vector<32x128xf32>
    %c12 = arith.constant 12 : index
    %c0_196 = arith.constant 0 : index
    %514 = vector.load %arg4[%c12, %c0_196] : memref<17x128xf32, #tpu.memory_space<vmem>>, vector<1x128xf32>
    %c13 = arith.constant 13 : index
    %c0_197 = arith.constant 0 : index
    %515 = vector.load %arg4[%c13, %c0_197] : memref<17x128xf32, #tpu.memory_space<vmem>>, vector<1x128xf32>
    %cst_198 = arith.constant dense<0.000000e+00> : vector<32xf32>
    %516 = vector.multi_reduction <add>, %513, %cst_198 [1] : vector<32x128xf32> to vector<32xf32>
    %517 = vector.shape_cast %516 : vector<32xf32> to vector<32x1xf32>
    %cst_199 = arith.constant 1.280000e+02 : f32
    %518 = vector.broadcast %cst_199 : f32 to vector<32x1xf32>
    %519 = arith.divf %517, %518 : vector<32x1xf32>
    %520 = vector.broadcast %519 : vector<32x1xf32> to vector<32x128xf32>
    %521 = arith.subf %513, %520 : vector<32x128xf32>
    %522 = arith.mulf %521, %521 : vector<32x128xf32>
    %cst_200 = arith.constant dense<0.000000e+00> : vector<32xf32>
    %523 = vector.multi_reduction <add>, %522, %cst_200 [1] : vector<32x128xf32> to vector<32xf32>
    %524 = vector.shape_cast %523 : vector<32xf32> to vector<32x1xf32>
    %cst_201 = arith.constant 1.280000e+02 : f32
    %525 = vector.broadcast %cst_201 : f32 to vector<32x1xf32>
    %526 = arith.divf %524, %525 : vector<32x1xf32>
    %527 = vector.broadcast %519 : vector<32x1xf32> to vector<32x128xf32>
    %528 = arith.subf %513, %527 : vector<32x128xf32>
    %cst_202 = arith.constant 9.99999974E-6 : f32
    %529 = vector.broadcast %cst_202 : f32 to vector<32x1xf32>
    %530 = arith.addf %526, %529 : vector<32x1xf32>
    %531 = math.rsqrt %530 : vector<32x1xf32>
    %532 = vector.broadcast %531 : vector<32x1xf32> to vector<32x128xf32>
    %533 = arith.mulf %528, %532 : vector<32x128xf32>
    %534 = vector.broadcast %514 : vector<1x128xf32> to vector<32x128xf32>
    %535 = arith.mulf %533, %534 : vector<32x128xf32>
    %536 = vector.broadcast %515 : vector<1x128xf32> to vector<32x128xf32>
    %537 = arith.addf %535, %536 : vector<32x128xf32>
    %c1_203 = arith.constant 1 : index
    %c0_204 = arith.constant 0 : index
    %c0_205 = arith.constant 0 : index
    %538 = vector.load %arg10[%c1_203, %c0_204, %c0_205] : memref<2x128x512xbf16, #tpu.memory_space<vmem>>, vector<1x128x512xbf16>
    %539 = vector.shape_cast %538 : vector<1x128x512xbf16> to vector<128x512xbf16>
    %c1_206 = arith.constant 1 : index
    %c0_207 = arith.constant 0 : index
    %540 = vector.load %arg6[%c1_206, %c0_207] : memref<2x512xf32, #tpu.memory_space<vmem>>, vector<1x512xf32>
    %541 = arith.truncf %537 : vector<32x128xf32> to vector<32x128xbf16>
    %cst_208 = arith.constant dense<0.000000e+00> : vector<32x512xf32>
    %542 = tpu.matmul %541, %539, %cst_208 {dimension_numbers = #tpu.dot_dimension_numbers<[1], [0], [0], [1], [0, 0, 1, 1], [], []>} : vector<32x128xbf16>, vector<128x512xbf16>, vector<32x512xf32> -> vector<32x512xf32>
    %543 = vector.broadcast %540 : vector<1x512xf32> to vector<32x512xf32>
    %544 = arith.addf %542, %543 : vector<32x512xf32>
    %cst_209 = arith.constant 5.000000e-01 : f32
    %545 = vector.broadcast %cst_209 : f32 to vector<32x512xf32>
    %546 = arith.mulf %545, %544 : vector<32x512xf32>
    %cst_210 = arith.constant 4.471500e-02 : f32
    %547 = vector.broadcast %cst_210 : f32 to vector<32x512xf32>
    %548 = arith.mulf %547, %544 : vector<32x512xf32>
    %549 = arith.mulf %548, %544 : vector<32x512xf32>
    %550 = arith.mulf %549, %544 : vector<32x512xf32>
    %551 = arith.addf %544, %550 : vector<32x512xf32>
    %cst_211 = arith.constant 0.797884583 : f32
    %552 = vector.broadcast %cst_211 : f32 to vector<32x512xf32>
    %553 = arith.mulf %552, %551 : vector<32x512xf32>
    %554 = math.tanh %553 : vector<32x512xf32>
    %cst_212 = arith.constant 1.000000e+00 : f32
    %555 = vector.broadcast %cst_212 : f32 to vector<32x512xf32>
    %556 = arith.addf %555, %554 : vector<32x512xf32>
    %557 = arith.mulf %546, %556 : vector<32x512xf32>
    %c1_213 = arith.constant 1 : index
    %c0_214 = arith.constant 0 : index
    %c0_215 = arith.constant 0 : index
    %558 = vector.load %arg11[%c1_213, %c0_214, %c0_215] : memref<2x512x128xbf16, #tpu.memory_space<vmem>>, vector<1x512x128xbf16>
    %559 = vector.shape_cast %558 : vector<1x512x128xbf16> to vector<512x128xbf16>
    %c14 = arith.constant 14 : index
    %c0_216 = arith.constant 0 : index
    %560 = vector.load %arg4[%c14, %c0_216] : memref<17x128xf32, #tpu.memory_space<vmem>>, vector<1x128xf32>
    %561 = arith.truncf %557 : vector<32x512xf32> to vector<32x512xbf16>
    %cst_217 = arith.constant dense<0.000000e+00> : vector<32x128xf32>
    %562 = tpu.matmul %561, %559, %cst_217 {dimension_numbers = #tpu.dot_dimension_numbers<[1], [0], [0], [1], [0, 0, 1, 1], [], []>} : vector<32x512xbf16>, vector<512x128xbf16>, vector<32x128xf32> -> vector<32x128xf32>
    %563 = vector.broadcast %560 : vector<1x128xf32> to vector<32x128xf32>
    %564 = arith.addf %562, %563 : vector<32x128xf32>
    %565 = arith.addf %537, %564 : vector<32x128xf32>
    %c15 = arith.constant 15 : index
    %c0_218 = arith.constant 0 : index
    %566 = vector.load %arg4[%c15, %c0_218] : memref<17x128xf32, #tpu.memory_space<vmem>>, vector<1x128xf32>
    %c16_219 = arith.constant 16 : index
    %c0_220 = arith.constant 0 : index
    %567 = vector.load %arg4[%c16_219, %c0_220] : memref<17x128xf32, #tpu.memory_space<vmem>>, vector<1x128xf32>
    %cst_221 = arith.constant dense<0.000000e+00> : vector<32xf32>
    %568 = vector.multi_reduction <add>, %565, %cst_221 [1] : vector<32x128xf32> to vector<32xf32>
    %569 = vector.shape_cast %568 : vector<32xf32> to vector<32x1xf32>
    %cst_222 = arith.constant 1.280000e+02 : f32
    %570 = vector.broadcast %cst_222 : f32 to vector<32x1xf32>
    %571 = arith.divf %569, %570 : vector<32x1xf32>
    %572 = vector.broadcast %571 : vector<32x1xf32> to vector<32x128xf32>
    %573 = arith.subf %565, %572 : vector<32x128xf32>
    %574 = arith.mulf %573, %573 : vector<32x128xf32>
    %cst_223 = arith.constant dense<0.000000e+00> : vector<32xf32>
    %575 = vector.multi_reduction <add>, %574, %cst_223 [1] : vector<32x128xf32> to vector<32xf32>
    %576 = vector.shape_cast %575 : vector<32xf32> to vector<32x1xf32>
    %cst_224 = arith.constant 1.280000e+02 : f32
    %577 = vector.broadcast %cst_224 : f32 to vector<32x1xf32>
    %578 = arith.divf %576, %577 : vector<32x1xf32>
    %579 = vector.broadcast %571 : vector<32x1xf32> to vector<32x128xf32>
    %580 = arith.subf %565, %579 : vector<32x128xf32>
    %cst_225 = arith.constant 9.99999974E-6 : f32
    %581 = vector.broadcast %cst_225 : f32 to vector<32x1xf32>
    %582 = arith.addf %578, %581 : vector<32x1xf32>
    %583 = math.rsqrt %582 : vector<32x1xf32>
    %584 = vector.broadcast %583 : vector<32x1xf32> to vector<32x128xf32>
    %585 = arith.mulf %580, %584 : vector<32x128xf32>
    %586 = vector.broadcast %566 : vector<1x128xf32> to vector<32x128xf32>
    %587 = arith.mulf %585, %586 : vector<32x128xf32>
    %588 = vector.broadcast %567 : vector<1x128xf32> to vector<32x128xf32>
    %589 = arith.addf %587, %588 : vector<32x128xf32>
    %c0_226 = arith.constant 0 : index
    %c0_227 = arith.constant 0 : index
    %590 = vector.load %arg12[%c0_226, %c0_227] : memref<128x128xbf16, #tpu.memory_space<vmem>>, vector<128x128xbf16>
    %c3 = arith.constant 3 : index
    %c0_228 = arith.constant 0 : index
    %591 = vector.load %arg4[%c3, %c0_228] : memref<17x128xf32, #tpu.memory_space<vmem>>, vector<1x128xf32>
    %592 = arith.truncf %589 : vector<32x128xf32> to vector<32x128xbf16>
    %cst_229 = arith.constant dense<0.000000e+00> : vector<32x128xf32>
    %593 = tpu.matmul %592, %590, %cst_229 {dimension_numbers = #tpu.dot_dimension_numbers<[1], [0], [0], [1], [0, 0, 1, 1], [], []>} : vector<32x128xbf16>, vector<128x128xbf16>, vector<32x128xf32> -> vector<32x128xf32>
    %594 = vector.broadcast %591 : vector<1x128xf32> to vector<32x128xf32>
    %595 = arith.addf %593, %594 : vector<32x128xf32>
    %cst_230 = arith.constant 5.000000e-01 : f32
    %596 = vector.broadcast %cst_230 : f32 to vector<32x128xf32>
    %597 = arith.mulf %596, %595 : vector<32x128xf32>
    %cst_231 = arith.constant 4.471500e-02 : f32
    %598 = vector.broadcast %cst_231 : f32 to vector<32x128xf32>
    %599 = arith.mulf %598, %595 : vector<32x128xf32>
    %600 = arith.mulf %599, %595 : vector<32x128xf32>
    %601 = arith.mulf %600, %595 : vector<32x128xf32>
    %602 = arith.addf %595, %601 : vector<32x128xf32>
    %cst_232 = arith.constant 0.797884583 : f32
    %603 = vector.broadcast %cst_232 : f32 to vector<32x128xf32>
    %604 = arith.mulf %603, %602 : vector<32x128xf32>
    %605 = math.tanh %604 : vector<32x128xf32>
    %cst_233 = arith.constant 1.000000e+00 : f32
    %606 = vector.broadcast %cst_233 : f32 to vector<32x128xf32>
    %607 = arith.addf %606, %605 : vector<32x128xf32>
    %608 = arith.mulf %597, %607 : vector<32x128xf32>
    %c0_234 = arith.constant 0 : index
    %c0_235 = arith.constant 0 : index
    %609 = vector.load %arg13[%c0_234, %c0_235] : memref<128x128xbf16, #tpu.memory_space<vmem>>, vector<128x128xbf16>
    %c4 = arith.constant 4 : index
    %c0_236 = arith.constant 0 : index
    %610 = vector.load %arg4[%c4, %c0_236] : memref<17x128xf32, #tpu.memory_space<vmem>>, vector<1x128xf32>
    %611 = arith.truncf %608 : vector<32x128xf32> to vector<32x128xbf16>
    %cst_237 = arith.constant dense<0.000000e+00> : vector<32x128xf32>
    %612 = tpu.matmul %611, %609, %cst_237 {dimension_numbers = #tpu.dot_dimension_numbers<[1], [0], [0], [1], [0, 0, 1, 1], [], []>} : vector<32x128xbf16>, vector<128x128xbf16>, vector<32x128xf32> -> vector<32x128xf32>
    %613 = vector.broadcast %610 : vector<1x128xf32> to vector<32x128xf32>
    %614 = arith.addf %612, %613 : vector<32x128xf32>
    %615 = vector.shape_cast %614 : vector<32x128xf32> to vector<2x16x128xf32>
    %c0_238 = arith.constant 0 : index
    %c0_239 = arith.constant 0 : index
    %c0_240 = arith.constant 0 : index
    %616 = vector.load %arg14[%c0_238, %c0_239, %c0_240] : memref<2x16x128xf32, #tpu.memory_space<vmem>>, vector<2x16x128xf32>
    tpu.vector_store %arg14[%c0_238, %c0_239, %c0_240], %615 {strides = array<i32>} : memref<2x16x128xf32, #tpu.memory_space<vmem>>, vector<2x16x128xf32>,
    return
  }
  func.func @transform_0(%arg0: i32) -> (i32, i32, i32) {
    %c0_i32 = arith.constant 0 : i32
    %c0_i32_0 = arith.constant 0 : i32
    %c0_i32_1 = arith.constant 0 : i32
    return %arg0, %c0_i32, %c0_i32_0 : i32, i32, i32
  }
  func.func @transform_1(%arg0: i32) -> (i32, i32, i32) {
    %c0_i32 = arith.constant 0 : i32
    %c0_i32_0 = arith.constant 0 : i32
    %c0_i32_1 = arith.constant 0 : i32
    return %arg0, %c0_i32, %c0_i32_0 : i32, i32, i32
  }
  func.func @transform_2(%arg0: i32) -> (i32, i32) {
    %c0_i32 = arith.constant 0 : i32
    %c0_i32_0 = arith.constant 0 : i32
    %c0_i32_1 = arith.constant 0 : i32
    return %c0_i32, %c0_i32_0 : i32, i32
  }
  func.func @transform_3(%arg0: i32) -> (i32, i32) {
    %c0_i32 = arith.constant 0 : i32
    %c0_i32_0 = arith.constant 0 : i32
    %c0_i32_1 = arith.constant 0 : i32
    return %c0_i32, %c0_i32_0 : i32, i32
  }
  func.func @transform_4(%arg0: i32) -> (i32, i32) {
    %c0_i32 = arith.constant 0 : i32
    %c0_i32_0 = arith.constant 0 : i32
    %c0_i32_1 = arith.constant 0 : i32
    return %c0_i32, %c0_i32_0 : i32, i32
  }
  func.func @transform_5(%arg0: i32) -> (i32, i32) {
    %c0_i32 = arith.constant 0 : i32
    %c0_i32_0 = arith.constant 0 : i32
    %c0_i32_1 = arith.constant 0 : i32
    return %c0_i32, %c0_i32_0 : i32, i32
  }
  func.func @transform_6(%arg0: i32) -> (i32, i32) {
    %c0_i32 = arith.constant 0 : i32
    %c0_i32_0 = arith.constant 0 : i32
    %c0_i32_1 = arith.constant 0 : i32
    return %c0_i32, %c0_i32_0 : i32, i32
  }
  func.func @transform_7(%arg0: i32) -> (i32, i32, i32) {
    %c0_i32 = arith.constant 0 : i32
    %c0_i32_0 = arith.constant 0 : i32
    %c0_i32_1 = arith.constant 0 : i32
    %c0_i32_2 = arith.constant 0 : i32
    return %c0_i32, %c0_i32_0, %c0_i32_1 : i32, i32, i32
  }
  func.func @transform_8(%arg0: i32) -> (i32, i32, i32) {
    %c0_i32 = arith.constant 0 : i32
    %c0_i32_0 = arith.constant 0 : i32
    %c0_i32_1 = arith.constant 0 : i32
    %c0_i32_2 = arith.constant 0 : i32
    return %c0_i32, %c0_i32_0, %c0_i32_1 : i32, i32, i32
  }
  func.func @transform_9(%arg0: i32) -> (i32, i32, i32) {
    %c0_i32 = arith.constant 0 : i32
    %c0_i32_0 = arith.constant 0 : i32
    %c0_i32_1 = arith.constant 0 : i32
    %c0_i32_2 = arith.constant 0 : i32
    return %c0_i32, %c0_i32_0, %c0_i32_1 : i32, i32, i32
  }
  func.func @transform_10(%arg0: i32) -> (i32, i32, i32) {
    %c0_i32 = arith.constant 0 : i32
    %c0_i32_0 = arith.constant 0 : i32
    %c0_i32_1 = arith.constant 0 : i32
    %c0_i32_2 = arith.constant 0 : i32
    return %c0_i32, %c0_i32_0, %c0_i32_1 : i32, i32, i32
  }
  func.func @transform_11(%arg0: i32) -> (i32, i32) {
    %c0_i32 = arith.constant 0 : i32
    %c0_i32_0 = arith.constant 0 : i32
    %c0_i32_1 = arith.constant 0 : i32
    return %c0_i32, %c0_i32_0 : i32, i32
  }
  func.func @transform_12(%arg0: i32) -> (i32, i32) {
    %c0_i32 = arith.constant 0 : i32
    %c0_i32_0 = arith.constant 0 : i32
    %c0_i32_1 = arith.constant 0 : i32
    return %c0_i32, %c0_i32_0 : i32, i32
  }
  func.func @transform_13(%arg0: i32) -> (i32, i32, i32) {
    %c0_i32 = arith.constant 0 : i32
    %c0_i32_0 = arith.constant 0 : i32
    %c0_i32_1 = arith.constant 0 : i32
    return %arg0, %c0_i32, %c0_i32_0 : i32, i32, i32
  }
}

</mosaic_0001>

<llo_original>
// kernel: diffusion_forward.1
$region0: #{diffusion_forward.1}
  #allocation0 [shape = 'u32[]', space=smem, size = 0x4, offset = 0x4, fixed_abs, tag = 'smem constant byte address 0x4 - core index']
  #allocation1 [shape = 'u32[144,128]{1,0:T(1,128)}', space=vmem, size = 0x12000, scoped, tag = 'internal scratch']
  #allocation2 [shape = 'f32[2,16,128]{2,1,0:T(8,128)}', space=vmem, size = 0x4000, scoped, tag = 'scratch operand']
  %s0 = inlined_call_operand.vmem [shape: bf16[2,16,32], index: 0, kind: input, shape index: {}]
  %s1 = inlined_call_operand.vmem [shape: f32[2,1,128], index: 1, kind: input, shape index: {}]
  %s2 = inlined_call_operand.vmem [shape: f32[16,128], index: 2, kind: input, shape index: {}]
  %s3 = inlined_call_operand.vmem [shape: f32[17,128], index: 3, kind: input, shape index: {}]
  %s4 = inlined_call_operand.vmem [shape: f32[2,384], index: 4, kind: input, shape index: {}]
  %s5 = inlined_call_operand.vmem [shape: f32[2,512], index: 5, kind: input, shape index: {}]
  %s6 = inlined_call_operand.vmem [shape: bf16[32,128], index: 6, kind: input, shape index: {}]
  %s7 = inlined_call_operand.vmem [shape: bf16[2,128,384], index: 7, kind: input, shape index: {}]
  %s8 = inlined_call_operand.vmem [shape: bf16[2,128,128], index: 8, kind: input, shape index: {}]
  %s9 = inlined_call_operand.vmem [shape: bf16[2,128,512], index: 9, kind: input, shape index: {}]
  %s10 = inlined_call_operand.vmem [shape: bf16[2,512,128], index: 10, kind: input, shape index: {}]
  %s11 = inlined_call_operand.vmem [shape: bf16[128,128], index: 11, kind: input, shape index: {}]
  %s12 = inlined_call_operand.vmem [shape: bf16[128,128], index: 12, kind: input, shape index: {}]
  %s13 = inlined_call_operand.vmem [shape: f32[2,16,128], index: 13, kind: output, shape index: {}]
  %s14 = sld [smem:[#allocation0]]
  $region62: #{diffusion_forward.1} parent=0
    _
  %s16 = ssub.s32 1, %s14
  %s17 = scalar_select 0, %s16, %s14
  // Predicated region
  $region2: #{diffusion_forward.1} parent=0 // pred_check
    _
  $region3: #{diffusion_forward.1} parent=0 // pred_check_branch
    %19 = sbr.rel (0) target = $region5
  $region4: #{diffusion_forward.1} parent=0 // pred_region
    _
  $region5: #{diffusion_forward.1} parent=0 // pred_fallthru
    _
  // Predicated region
  $region6: #{diffusion_forward.1} parent=0 // pred_check
    _
  $region7: #{diffusion_forward.1} parent=0 // pred_check_branch
    %21 = sbr.rel (0) target = $region9
  $region8: #{diffusion_forward.1} parent=0 // pred_region
    _
  $region9: #{diffusion_forward.1} parent=0 // pred_fallthru
    _
  // Predicated region
  $region10: #{diffusion_forward.1} parent=0 // pred_check
    _
  $region11: #{diffusion_forward.1} parent=0 // pred_check_branch
    %23 = sbr.rel (0) target = $region13
  $region12: #{diffusion_forward.1} parent=0 // pred_region
    _
  $region13: #{diffusion_forward.1} parent=0 // pred_fallthru
    _
  // Predicated region
  $region14: #{diffusion_forward.1} parent=0 // pred_check
    _
  $region15: #{diffusion_forward.1} parent=0 // pred_check_branch
    %25 = sbr.rel (0) target = $region17
  $region16: #{diffusion_forward.1} parent=0 // pred_region
    _
  $region17: #{diffusion_forward.1} parent=0 // pred_fallthru
    _
  // Predicated region
  $region18: #{diffusion_forward.1} parent=0 // pred_check
    _
  $region19: #{diffusion_forward.1} parent=0 // pred_check_branch
    %27 = sbr.rel (0) target = $region21
  $region20: #{diffusion_forward.1} parent=0 // pred_region
    _
  $region21: #{diffusion_forward.1} parent=0 // pred_fallthru
    _
  // Predicated region
  $region22: #{diffusion_forward.1} parent=0 // pred_check
    _
  $region23: #{diffusion_forward.1} parent=0 // pred_check_branch
    %29 = sbr.rel (0) target = $region25
  $region24: #{diffusion_forward.1} parent=0 // pred_region
    _
  $region25: #{diffusion_forward.1} parent=0 // pred_fallthru
    _
  // Predicated region
  $region26: #{diffusion_forward.1} parent=0 // pred_check
    _
  $region27: #{diffusion_forward.1} parent=0 // pred_check_branch
    %31 = sbr.rel (0) target = $region29
  $region28: #{diffusion_forward.1} parent=0 // pred_region
    _
  $region29: #{diffusion_forward.1} parent=0 // pred_fallthru
    _
  // Predicated region
  $region30: #{diffusion_forward.1} parent=0 // pred_check
    _
  $region31: #{diffusion_forward.1} parent=0 // pred_check_branch
    %33 = sbr.rel (0) target = $region33
  $region32: #{diffusion_forward.1} parent=0 // pred_region
    _
  $region33: #{diffusion_forward.1} parent=0 // pred_fallthru
    _
  // Predicated region
  $region34: #{diffusion_forward.1} parent=0 // pred_check
    _
  $region35: #{diffusion_forward.1} parent=0 // pred_check_branch
    %35 = sbr.rel (0) target = $region37
  $region36: #{diffusion_forward.1} parent=0 // pred_region
    _
  $region37: #{diffusion_forward.1} parent=0 // pred_fallthru
    _
  // Predicated region
  $region38: #{diffusion_forward.1} parent=0 // pred_check
    _
  $region39: #{diffusion_forward.1} parent=0 // pred_check_branch
    %37 = sbr.rel (0) target = $region41
  $region40: #{diffusion_forward.1} parent=0 // pred_region
    _
  $region41: #{diffusion_forward.1} parent=0 // pred_fallthru
    _
  // Predicated region
  $region42: #{diffusion_forward.1} parent=0 // pred_check
    _
  $region43: #{diffusion_forward.1} parent=0 // pred_check_branch
    %39 = sbr.rel (0) target = $region45
  $region44: #{diffusion_forward.1} parent=0 // pred_region
    _
  $region45: #{diffusion_forward.1} parent=0 // pred_fallthru
    _
  // Predicated region
  $region46: #{diffusion_forward.1} parent=0 // pred_check
    _
  $region47: #{diffusion_forward.1} parent=0 // pred_check_branch
    %41 = sbr.rel (0) target = $region49
  $region48: #{diffusion_forward.1} parent=0 // pred_region
    _
  $region49: #{diffusion_forward.1} parent=0 // pred_fallthru
    _
  // Predicated region
  $region50: #{diffusion_forward.1} parent=0 // pred_check
    _
  $region51: #{diffusion_forward.1} parent=0 // pred_check_branch
    %43 = sbr.rel (0) target = $region53
  $region52: #{diffusion_forward.1} parent=0 // pred_region
    _
  $region53: #{diffusion_forward.1} parent=0 // pred_fallthru
    _
  %v45 = vld [vmem:[%s0] sm:$0xf]
  %v46 = vld [vmem:[%s0 + $0x4] sm:$0xf]
  %v47 = vld [vmem:[%s0 + $0x8] sm:$0xf]
  %v48 = vld [vmem:[%s0 + $0xc] sm:$0xf]
  %v49 = vld [vmem:[%s6] sm:$0xf]
  %v50 = vld [vmem:[%s6 + $0x4] sm:$0xf]
  %v51 = vld [vmem:[%s6 + $0x8] sm:$0xf]
  %v52 = vld [vmem:[%s6 + $0xc] sm:$0xf]
  %v53 = vld [vmem:[%s3] sm:$0x1]
  %v54 = vlaneseq
  %v55 = vshrl.u32 %v54, 7
  %v56 = vsub.s32 0, %v55
  %v57 = vrot.slane %v53, %v56
  %v62 = vunpack.c.l.b16 %v45
  %v63 = vunpack.c.l.b16 %v46
  %v64 = vunpack.c.l.b16 %v47
  %v65 = vunpack.c.l.b16 %v48
  %v66 = vpack.c.b16 %v63, %v62
  %v67 = vpack.c.b16 %v65, %v64
  %v72 = vunpack.c.l.b16 %v49
  %v73 = vunpack.c.l.b16 %v50
  %v74 = vunpack.c.l.b16 %v51
  %v75 = vunpack.c.l.b16 %v52
  %v76 = vpack.c.b16 %v73, %v72
  %v77 = vpack.c.b16 %v75, %v74
  %vm80 = vcmask 261120
  %v82 = vsel %vm80, %v66, 0
  %v85 = vsel %vm80, %v67, 0
  %87 = vmatprep.subr.bf16.mxu0 0
  %88 = vmatpush1.bf16.msra.mxu0 %v76
  %89 = vmatprep.subr.bf16.mxu0 0
  %90 = vmatpush1.bf16.msra.mxu0 %v77
  %91 = vmatprep.subr.bf16.mxu0 0
  %92 = vmatpush1.bf16.msra.mxu0 0
  %93 = vmatprep.subr.bf16.mxu0 0
  %94 = vmatpush1.bf16.msra.mxu0 0
  %95 = vmatprep.subr.bf16.mxu0 0
  %96 = vmatpush1.bf16.msra.mxu0 0
  %97 = vmatprep.subr.bf16.mxu0 0
  %98 = vmatpush1.bf16.msra.mxu0 0
  %99 = vmatprep.subr.bf16.mxu0 0
  %100 = vmatpush1.bf16.msra.mxu0 0
  %101 = vmatprep.subr.bf16.mxu0 0
  %102 = vmatpush1.bf16.msra.mxu0 0
  %103 = vmatprep.subr.bf16.mxu0 0
  %104 = vmatpush1.bf16.msra.mxu0 0
  %105 = vmatprep.subr.bf16.mxu0 0
  %106 = vmatpush1.bf16.msra.mxu0 0
  %107 = vmatprep.subr.bf16.mxu0 0
  %108 = vmatpush1.bf16.msra.mxu0 0
  %109 = vmatprep.subr.bf16.mxu0 0
  %110 = vmatpush1.bf16.msra.mxu0 0
  %111 = vmatprep.subr.bf16.mxu0 0
  %112 = vmatpush1.bf16.msra.mxu0 0
  %113 = vmatprep.subr.bf16.mxu0 0
  %114 = vmatpush1.bf16.msra.mxu0 0
  %115 = vmatprep.subr.bf16.mxu0 0
  %116 = vmatpush1.bf16.msra.mxu0 0
  %117 = vmatprep.subr.bf16.mxu0 0
  %118 = vmatpush1.bf16.msra.mxu0 0
  %119 = vmatprep.mubr.bf16.mxu0 0
  %120 = vmatmul.mubr.bf16.gmra.mrb[0].mxu0 %v82
  %v121 = vpop.f32.mrb[0].mxu0
  %v122 = vadd.f32 %v57, %v121
  %v123 = vpop.f32.mrb[0].mxu0
  %v124 = vpop.f32.mrb[0].mxu0
  %v125 = vadd.f32 %v57, %v124
  %v126 = vpop.f32.mrb[0].mxu0
  %127 = vmatprep.mubr.bf16.mxu0 0
  %128 = vmatmul.mubr.bf16.gmra.mrb[0].mxu0 %v85
  %v129 = vpop.f32.mrb[0].mxu0
  %v130 = vadd.f32 %v57, %v129
  %v131 = vpop.f32.mrb[0].mxu0
  %v132 = vpop.f32.mrb[0].mxu0
  %v133 = vadd.f32 %v57, %v132
  %v134 = vpop.f32.mrb[0].mxu0
  %135 = vdwg.mxu0
  %v136 = vld [vmem:[%s1] sm:$0x1]
  %v137 = vld [vmem:[%s1 + $0x1] sm:$0x1]
  %v140 = vlaneseq
  %v141 = vshrl.u32 %v140, 7
  %v142 = vsub.s32 0, %v141
  %v143 = vrot.slane %v136, %v142
  %v144 = vlaneseq
  %v145 = vshrl.u32 %v144, 7
  %v146 = vsub.s32 0, %v145
  %v147 = vrot.slane %v137, %v146
  %v150 = vadd.f32 %v122, %v143
  %v151 = vadd.f32 %v125, %v143
  %v152 = vadd.f32 %v130, %v147
  %v153 = vadd.f32 %v133, %v147
  %v154 = vld [vmem:[%s2] sm:$0xff]
  %v155 = vld [vmem:[%s2 + $0x8] sm:$0xff]
  %v156 = vadd.f32 %v150, %v154
  %v157 = vadd.f32 %v151, %v155
  %v158 = vadd.f32 %v152, %v154
  %v159 = vadd.f32 %v153, %v155
  %v160 = vld [vmem:[%s3 + $0x1] sm:$0x1]
  %v161 = vld [vmem:[%s3 + $0x2] sm:$0x1]
  %162 = vadd.xlane.f32.xlu0 %v156
  %v163 = vpop.xlane.xlu0 %162
  %164 = vadd.xlane.f32.xlu0 %v157
  %v165 = vpop.xlane.xlu0 %164
  %166 = vadd.xlane.f32.xlu0 %v158
  %v167 = vpop.xlane.xlu0 %166
  %168 = vadd.xlane.f32.xlu0 %v159
  %v169 = vpop.xlane.xlu0 %168
  %v170 = vrcp.pop 128.0
  %v171 = vmul.f32 %v163, %v170
  %v172 = vmul.f32 %v165, %v170
  %v173 = vmul.f32 %v167, %v170
  %v174 = vmul.f32 %v169, %v170
  %v175 = vsub.f32 %v156, %v171
  %v176 = vsub.f32 %v157, %v172
  %v177 = vsub.f32 %v158, %v173
  %v178 = vsub.f32 %v159, %v174
  %v179 = vmul.f32 %v175, %v175
  %v180 = vmul.f32 %v176, %v176
  %v181 = vmul.f32 %v177, %v177
  %v182 = vmul.f32 %v178, %v178
  %183 = vadd.xlane.f32.xlu0 %v179
  %v184 = vpop.xlane.xlu0 %183
  %185 = vadd.xlane.f32.xlu0 %v180
  %v186 = vpop.xlane.xlu0 %185
  %187 = vadd.xlane.f32.xlu0 %v181
  %v188 = vpop.xlane.xlu0 %187
  %189 = vadd.xlane.f32.xlu0 %v182
  %v190 = vpop.xlane.xlu0 %189
  %v191 = vmul.f32 %v184, %v170
  %v192 = vmul.f32 %v186, %v170
  %v193 = vmul.f32 %v188, %v170
  %v194 = vmul.f32 %v190, %v170
  %v195 = vadd.f32 %v191, 1e-05
  %v196 = vadd.f32 %v192, 1e-05
  %v197 = vadd.f32 %v193, 1e-05
  %v198 = vadd.f32 %v194, 1e-05
  %v199 = vrsqrt.pop %v195
  %v200 = vrsqrt.pop %v196
  %v201 = vrsqrt.pop %v197
  %v202 = vrsqrt.pop %v198
  %v203 = vmul.f32 %v175, %v199
  %v204 = vmul.f32 %v176, %v200
  %v205 = vmul.f32 %v177, %v201
  %v206 = vmul.f32 %v178, %v202
  %v207 = vlaneseq
  %v208 = vshrl.u32 %v207, 7
  %v209 = vsub.s32 0, %v208
  %v210 = vrot.slane %v160, %v209
  %v211 = vmul.f32 %v203, %v210
  %v212 = vmul.f32 %v204, %v210
  %v213 = vmul.f32 %v205, %v210
  %v214 = vmul.f32 %v206, %v210
  %v215 = vlaneseq
  %v216 = vshrl.u32 %v215, 7
  %v217 = vsub.s32 0, %v216
  %v218 = vrot.slane %v161, %v217
  %v219 = vadd.f32 %v211, %v218
  %v220 = vadd.f32 %v212, %v218
  %v221 = vadd.f32 %v213, %v218
  %v222 = vadd.f32 %v214, %v218
  %v223 = vld [vmem:[%s7] sm:$0xff]
  %v224 = vld [vmem:[%s7 + $0x8] sm:$0xf]
  %v225 = vld [vmem:[%s7 + $0xc] sm:$0xff]
  %v226 = vld [vmem:[%s7 + $0x14] sm:$0xf]
  %v227 = vld [vmem:[%s7 + $0x18] sm:$0xff]
  %v228 = vld [vmem:[%s7 + $0x20] sm:$0xf]
  %v229 = vld [vmem:[%s7 + $0x24] sm:$0xff]
  %v230 = vld [vmem:[%s7 + $0x2c] sm:$0xf]
  %v231 = vld [vmem:[%s7 + $0x30] sm:$0xff]
  %v232 = vld [vmem:[%s7 + $0x38] sm:$0xf]
  %v233 = vld [vmem:[%s7 + $0x3c] sm:$0xff]
  %v234 = vld [vmem:[%s7 + $0x44] sm:$0xf]
  %v235 = vld [vmem:[%s7 + $0x48] sm:$0xff]
  %v236 = vld [vmem:[%s7 + $0x50] sm:$0xf]
  %v237 = vld [vmem:[%s7 + $0x54] sm:$0xff]
  %v238 = vld [vmem:[%s7 + $0x5c] sm:$0xf]
  %v239 = vld [vmem:[%s7 + $0x60] sm:$0xff]
  %v240 = vld [vmem:[%s7 + $0x68] sm:$0xf]
  %v241 = vld [vmem:[%s7 + $0x6c] sm:$0xff]
  %v242 = vld [vmem:[%s7 + $0x74] sm:$0xf]
  %v243 = vld [vmem:[%s7 + $0x78] sm:$0xff]
  %v244 = vld [vmem:[%s7 + $0x80] sm:$0xf]
  %v245 = vld [vmem:[%s7 + $0x84] sm:$0xff]
  %v246 = vld [vmem:[%s7 + $0x8c] sm:$0xf]
  %v247 = vld [vmem:[%s7 + $0x90] sm:$0xff]
  %v248 = vld [vmem:[%s7 + $0x98] sm:$0xf]
  %v249 = vld [vmem:[%s7 + $0x9c] sm:$0xff]
  %v250 = vld [vmem:[%s7 + $0xa4] sm:$0xf]
  %v251 = vld [vmem:[%s7 + $0xa8] sm:$0xff]
  %v252 = vld [vmem:[%s7 + $0xb0] sm:$0xf]
  %v253 = vld [vmem:[%s7 + $0xb4] sm:$0xff]
  %v254 = vld [vmem:[%s7 + $0xbc] sm:$0xf]
  %v255 = vld [vmem:[%s4] ss:$2 sm:$0x7]
  %v256 = vpack.c.bf16 %v220, %v219
  %v257 = vpack.c.bf16 %v222, %v221
  %v259 = vlaneseq
  %v260 = vshrl.u32 %v259, 7
  %v261 = vsub.s32 0, %v260
  %v262 = vrot.slane %v255, %v261
  %v263 = vlaneseq
  %v264 = vshrl.u32 %v263, 7
  %v265 = vsub.s32 1, %v264
  %v266 = vrot.slane %v255, %v265
  %v267 = vlaneseq
  %v268 = vshrl.u32 %v267, 7
  %v269 = vsub.s32 2, %v268
  %v270 = vrot.slane %v255, %v269
  %v306 = vunpack.c.l.b16 %v223
  %v307 = vunpack.c.h.b16 %v223
  %v308 = vunpack.c.l.b16 %v224
  %v309 = vunpack.c.l.b16 %v225
  %v310 = vunpack.c.h.b16 %v225
  %v311 = vunpack.c.l.b16 %v226
  %v312 = vunpack.c.l.b16 %v227
  %v313 = vunpack.c.h.b16 %v227
  %v314 = vunpack.c.l.b16 %v228
  %v315 = vunpack.c.l.b16 %v229
  %v316 = vunpack.c.h.b16 %v229
  %v317 = vunpack.c.l.b16 %v230
  %v318 = vunpack.c.l.b16 %v231
  %v319 = vunpack.c.h.b16 %v231
  %v320 = vunpack.c.l.b16 %v232
  %v321 = vunpack.c.l.b16 %v233
  %v322 = vunpack.c.h.b16 %v233
  %v323 = vunpack.c.l.b16 %v234
  %v324 = vunpack.c.l.b16 %v235
  %v325 = vunpack.c.h.b16 %v235
  %v326 = vunpack.c.l.b16 %v236
  %v327 = vunpack.c.l.b16 %v237
  %v328 = vunpack.c.h.b16 %v237
  %v329 = vunpack.c.l.b16 %v238
  %v330 = vunpack.c.l.b16 %v239
  %v331 = vunpack.c.h.b16 %v239
  %v332 = vunpack.c.l.b16 %v240
  %v333 = vunpack.c.l.b16 %v241
  %v334 = vunpack.c.h.b16 %v241
  %v335 = vunpack.c.l.b16 %v242
  %v336 = vunpack.c.l.b16 %v243
  %v337 = vunpack.c.h.b16 %v243
  %v338 = vunpack.c.l.b16 %v244
  %v339 = vunpack.c.l.b16 %v245
  %v340 = vunpack.c.h.b16 %v245
  %v341 = vunpack.c.l.b16 %v246
  %v342 = vunpack.c.l.b16 %v247
  %v343 = vunpack.c.h.b16 %v247
  %v344 = vunpack.c.l.b16 %v248
  %v345 = vunpack.c.l.b16 %v249
  %v346 = vunpack.c.h.b16 %v249
  %v347 = vunpack.c.l.b16 %v250
  %v348 = vunpack.c.l.b16 %v251
  %v349 = vunpack.c.h.b16 %v251
  %v350 = vunpack.c.l.b16 %v252
  %v351 = vunpack.c.l.b16 %v253
  %v352 = vunpack.c.h.b16 %v253
  %v353 = vunpack.c.l.b16 %v254
  %v354 = vpack.c.b16 %v309, %v306
  %v355 = vpack.c.b16 %v310, %v307
  %v356 = vpack.c.b16 %v311, %v308
  %v357 = vpack.c.b16 %v315, %v312
  %v358 = vpack.c.b16 %v316, %v313
  %v359 = vpack.c.b16 %v317, %v314
  %v360 = vpack.c.b16 %v321, %v318
  %v361 = vpack.c.b16 %v322, %v319
  %v362 = vpack.c.b16 %v323, %v320
  %v363 = vpack.c.b16 %v327, %v324
  %v364 = vpack.c.b16 %v328, %v325
  %v365 = vpack.c.b16 %v329, %v326
  %v366 = vpack.c.b16 %v333, %v330
  %v367 = vpack.c.b16 %v334, %v331
  %v368 = vpack.c.b16 %v335, %v332
  %v369 = vpack.c.b16 %v339, %v336
  %v370 = vpack.c.b16 %v340, %v337
  %v371 = vpack.c.b16 %v341, %v338
  %v372 = vpack.c.b16 %v345, %v342
  %v373 = vpack.c.b16 %v346, %v343
  %v374 = vpack.c.b16 %v347, %v344
  %v375 = vpack.c.b16 %v351, %v348
  %v376 = vpack.c.b16 %v352, %v349
  %v377 = vpack.c.b16 %v353, %v350
  %402 = vmatprep.subr.bf16.mxu0 %v355
  %403 = vmatpush1.bf16.msra.mxu0 %v354
  %404 = vmatprep.subr.bf16.mxu0 %v358
  %405 = vmatpush1.bf16.msra.mxu0 %v357
  %406 = vmatprep.subr.bf16.mxu0 %v361
  %407 = vmatpush1.bf16.msra.mxu0 %v360
  %408 = vmatprep.subr.bf16.mxu0 %v364
  %409 = vmatpush1.bf16.msra.mxu0 %v363
  %410 = vmatprep.subr.bf16.mxu0 %v367
  %411 = vmatpush1.bf16.msra.mxu0 %v366
  %412 = vmatprep.subr.bf16.mxu0 %v370
  %413 = vmatpush1.bf16.msra.mxu0 %v369
  %414 = vmatprep.subr.bf16.mxu0 %v373
  %415 = vmatpush1.bf16.msra.mxu0 %v372
  %416 = vmatprep.subr.bf16.mxu0 %v376
  %417 = vmatpush1.bf16.msra.mxu0 %v375
  %418 = vmatprep.subr.bf16.mxu0 0
  %419 = vmatpush1.bf16.msra.mxu0 0
  %420 = vmatprep.subr.bf16.mxu0 0
  %421 = vmatpush1.bf16.msra.mxu0 0
  %422 = vmatprep.subr.bf16.mxu0 0
  %423 = vmatpush1.bf16.msra.mxu0 0
  %424 = vmatprep.subr.bf16.mxu0 0
  %425 = vmatpush1.bf16.msra.mxu0 0
  %426 = vmatprep.subr.bf16.mxu0 0
  %427 = vmatpush1.bf16.msra.mxu0 0
  %428 = vmatprep.subr.bf16.mxu0 0
  %429 = vmatpush1.bf16.msra.mxu0 0
  %430 = vmatprep.subr.bf16.mxu0 0
  %431 = vmatpush1.bf16.msra.mxu0 0
  %432 = vmatprep.subr.bf16.mxu0 0
  %433 = vmatpush1.bf16.msra.mxu0 0
  %434 = vmatprep.mubr.bf16.mxu0 0
  %435 = vmatmul.mubr.bf16.gmra.mrb[0].mxu0 %v256
  %v436 = vpop.f32.mrb[0].mxu0
  %v437 = vadd.f32 %v262, %v436
  %v438 = vpop.f32.mrb[0].mxu0
  %v439 = vadd.f32 %v266, %v438
  %v440 = vpop.f32.mrb[0].mxu0
  %v441 = vadd.f32 %v262, %v440
  %v442 = vpop.f32.mrb[0].mxu0
  %v443 = vadd.f32 %v266, %v442
  %444 = vmatprep.mubr.bf16.mxu0 0
  %445 = vmatmul.mubr.bf16.gmra.mrb[0].mxu0 %v257
  %v446 = vpop.f32.mrb[0].mxu0
  %v447 = vadd.f32 %v262, %v446
  %v448 = vpop.f32.mrb[0].mxu0
  %v449 = vadd.f32 %v266, %v448
  %v450 = vpop.f32.mrb[0].mxu0
  %v451 = vadd.f32 %v262, %v450
  %v452 = vpop.f32.mrb[0].mxu0
  %v453 = vadd.f32 %v266, %v452
  %454 = vdwg.mxu0
  %455 = vmatprep.subr.bf16.mxu0 0
  %456 = vmatpush1.bf16.msra.mxu0 %v356
  %457 = vmatprep.subr.bf16.mxu0 0
  %458 = vmatpush1.bf16.msra.mxu0 %v359
  %459 = vmatprep.subr.bf16.mxu0 0
  %460 = vmatpush1.bf16.msra.mxu0 %v362
  %461 = vmatprep.subr.bf16.mxu0 0
  %462 = vmatpush1.bf16.msra.mxu0 %v365
  %463 = vmatprep.subr.bf16.mxu0 0
  %464 = vmatpush1.bf16.msra.mxu0 %v368
  %465 = vmatprep.subr.bf16.mxu0 0
  %466 = vmatpush1.bf16.msra.mxu0 %v371
  %467 = vmatprep.subr.bf16.mxu0 0
  %468 = vmatpush1.bf16.msra.mxu0 %v374
  %469 = vmatprep.subr.bf16.mxu0 0
  %470 = vmatpush1.bf16.msra.mxu0 %v377
  %471 = vmatprep.subr.bf16.mxu0 0
  %472 = vmatpush1.bf16.msra.mxu0 0
  %473 = vmatprep.subr.bf16.mxu0 0
  %474 = vmatpush1.bf16.msra.mxu0 0
  %475 = vmatprep.subr.bf16.mxu0 0
  %476 = vmatpush1.bf16.msra.mxu0 0
  %477 = vmatprep.subr.bf16.mxu0 0
  %478 = vmatpush1.bf16.msra.mxu0 0
  %479 = vmatprep.subr.bf16.mxu0 0
  %480 = vmatpush1.bf16.msra.mxu0 0
  %481 = vmatprep.subr.bf16.mxu0 0
  %482 = vmatpush1.bf16.msra.mxu0 0
  %483 = vmatprep.subr.bf16.mxu0 0
  %484 = vmatpush1.bf16.msra.mxu0 0
  %485 = vmatprep.subr.bf16.mxu0 0
  %486 = vmatpush1.bf16.msra.mxu0 0
  %487 = vmatprep.mubr.bf16.mxu0 0
  %488 = vmatmul.mubr.bf16.gmra.mrb[0].mxu0 %v256
  %v489 = vpop.f32.mrb[0].mxu0
  %v490 = vadd.f32 %v270, %v489
  %v491 = vpop.f32.mrb[0].mxu0
  %v492 = vpop.f32.mrb[0].mxu0
  %v493 = vadd.f32 %v270, %v492
  %v494 = vpop.f32.mrb[0].mxu0
  %495 = vmatprep.mubr.bf16.mxu0 0
  %496 = vmatmul.mubr.bf16.gmra.mrb[0].mxu0 %v257
  %v497 = vpop.f32.mrb[0].mxu0
  %v498 = vadd.f32 %v270, %v497
  %v499 = vpop.f32.mrb[0].mxu0
  %v500 = vpop.f32.mrb[0].mxu0
  %v501 = vadd.f32 %v270, %v500
  %v502 = vpop.f32.mrb[0].mxu0
  %503 = vdwg.mxu0
  %v504 = vpack.c.bf16 %v441, %v437
  %v505 = vpack.c.bf16 %v451, %v447
  %v506 = vpack.c.bf16 %v443, %v439
  %v507 = vpack.c.bf16 %v453, %v449
  %v508 = vpack.c.bf16 %v493, %v490
  %v509 = vpack.c.bf16 %v501, %v498
  %vm510 = vcmask 130048
  %v512 = vsel %vm510, %v504, 0
  %v515 = vsel %vm510, %v506, 0
  %517 = vmatprep.subr.bf16.mxu0 0
  %518 = vmatpush1.bf16.xpose.msra.mxu0 %v515
  %519 = vmatprep.subr.bf16.mxu0 0
  %520 = vmatpush1.bf16.xpose.msra.mxu0 0
  %521 = vmatprep.subr.bf16.mxu0 0
  %522 = vmatpush1.bf16.xpose.msra.mxu0 0
  %523 = vmatprep.subr.bf16.mxu0 0
  %524 = vmatpush1.bf16.xpose.msra.mxu0 0
  %525 = vmatprep.subr.bf16.mxu0 0
  %526 = vmatpush1.bf16.xpose.msra.mxu0 0
  %527 = vmatprep.subr.bf16.mxu0 0
  %528 = vmatpush1.bf16.xpose.msra.mxu0 0
  %529 = vmatprep.subr.bf16.mxu0 0
  %530 = vmatpush1.bf16.xpose.msra.mxu0 0
  %531 = vmatprep.subr.bf16.mxu0 0
  %532 = vmatpush1.bf16.xpose.msra.mxu0 0
  %533 = vmatprep.subr.bf16.mxu0 0
  %534 = vmatpush1.bf16.xpose.msra.mxu0 0
  %535 = vmatprep.subr.bf16.mxu0 0
  %536 = vmatpush1.bf16.xpose.msra.mxu0 0
  %537 = vmatprep.subr.bf16.mxu0 0
  %538 = vmatpush1.bf16.xpose.msra.mxu0 0
  %539 = vmatprep.subr.bf16.mxu0 0
  %540 = vmatpush1.bf16.xpose.msra.mxu0 0
  %541 = vmatprep.subr.bf16.mxu0 0
  %542 = vmatpush1.bf16.xpose.msra.mxu0 0
  %543 = vmatprep.subr.bf16.mxu0 0
  %544 = vmatpush1.bf16.xpose.msra.mxu0 0
  %545 = vmatprep.subr.bf16.mxu0 0
  %546 = vmatpush1.bf16.xpose.msra.mxu0 0
  %547 = vmatprep.subr.bf16.mxu0 0
  %548 = vmatpush1.bf16.xpose.msra.mxu0 0
  %549 = vmatprep.mubr.bf16.mxu0 0
  %550 = vmatmul.mubr.bf16.gmra.mrb[0].mxu0 %v512
  %v551 = vpop.f32.mrb[0].mxu0
  %v552 = vadd.f32 0.0, %v551
  %v553 = vpop.f32.mrb[0].mxu0
  %v554 = vpop.f32.mrb[0].mxu0
  %v555 = vadd.f32 0.0, %v554
  %v556 = vpop.f32.mrb[0].mxu0
  %557 = vdwg.mxu0
  %v559 = vsel %vm510, %v505, 0
  %v562 = vsel %vm510, %v507, 0
  %564 = vmatprep.subr.bf16.mxu0 0
  %565 = vmatpush1.bf16.xpose.msra.mxu0 %v562
  %566 = vmatprep.subr.bf16.mxu0 0
  %567 = vmatpush1.bf16.xpose.msra.mxu0 0
  %568 = vmatprep.subr.bf16.mxu0 0
  %569 = vmatpush1.bf16.xpose.msra.mxu0 0
  %570 = vmatprep.subr.bf16.mxu0 0
  %571 = vmatpush1.bf16.xpose.msra.mxu0 0
  %572 = vmatprep.subr.bf16.mxu0 0
  %573 = vmatpush1.bf16.xpose.msra.mxu0 0
  %574 = vmatprep.subr.bf16.mxu0 0
  %575 = vmatpush1.bf16.xpose.msra.mxu0 0
  %576 = vmatprep.subr.bf16.mxu0 0
  %577 = vmatpush1.bf16.xpose.msra.mxu0 0
  %578 = vmatprep.subr.bf16.mxu0 0
  %579 = vmatpush1.bf16.xpose.msra.mxu0 0
  %580 = vmatprep.subr.bf16.mxu0 0
  %581 = vmatpush1.bf16.xpose.msra.mxu0 0
  %582 = vmatprep.subr.bf16.mxu0 0
  %583 = vmatpush1.bf16.xpose.msra.mxu0 0
  %584 = vmatprep.subr.bf16.mxu0 0
  %585 = vmatpush1.bf16.xpose.msra.mxu0 0
  %586 = vmatprep.subr.bf16.mxu0 0
  %587 = vmatpush1.bf16.xpose.msra.mxu0 0
  %588 = vmatprep.subr.bf16.mxu0 0
  %589 = vmatpush1.bf16.xpose.msra.mxu0 0
  %590 = vmatprep.subr.bf16.mxu0 0
  %591 = vmatpush1.bf16.xpose.msra.mxu0 0
  %592 = vmatprep.subr.bf16.mxu0 0
  %593 = vmatpush1.bf16.xpose.msra.mxu0 0
  %594 = vmatprep.subr.bf16.mxu0 0
  %595 = vmatpush1.bf16.xpose.msra.mxu0 0
  %596 = vmatprep.mubr.bf16.mxu0 0
  %597 = vmatmul.mubr.bf16.gmra.mrb[0].mxu0 %v559
  %v598 = vpop.f32.mrb[0].mxu0
  %v599 = vadd.f32 0.0, %v598
  %v600 = vpop.f32.mrb[0].mxu0
  %v601 = vpop.f32.mrb[0].mxu0
  %v602 = vadd.f32 0.0, %v601
  %v603 = vpop.f32.mrb[0].mxu0
  %604 = vdwg.mxu0
  %v605 = vmul.f32 %v552, 0.25
  %v606 = vmul.f32 %v555, 0.25
  %v607 = vmul.f32 %v599, 0.25
  %v608 = vmul.f32 %v602, 0.25
  %v609 = vsel %vm510, %v605, -inf
  %610 = vmax.xlane.f32.xlu0 %v609
  %v611 = vpop.xlane.xlu0 %610
  %v612 = vsel %vm510, %v606, -inf
  %613 = vmax.xlane.f32.xlu0 %v612
  %v614 = vpop.xlane.xlu0 %613
  %v615 = vsel %vm510, %v607, -inf
  %616 = vmax.xlane.f32.xlu0 %v615
  %v617 = vpop.xlane.xlu0 %616
  %v618 = vsel %vm510, %v608, -inf
  %619 = vmax.xlane.f32.xlu0 %v618
  %v620 = vpop.xlane.xlu0 %619
  %v621 = vsub.f32 %v605, %v611
  %v622 = vsub.f32 %v606, %v614
  %v623 = vsub.f32 %v607, %v617
  %v624 = vsub.f32 %v608, %v620
  %v625 = vmul.f32 %v621, 1.442695
  %v626 = vpow.pop %v625
  %v627 = vmul.f32 %v622, 1.442695
  %v628 = vpow.pop %v627
  %v629 = vmul.f32 %v623, 1.442695
  %v630 = vpow.pop %v629
  %v631 = vmul.f32 %v624, 1.442695
  %v632 = vpow.pop %v631
  %v633 = vsel %vm510, %v626, 0.0
  %634 = vadd.xlane.f32.xlu0 %v633
  %v635 = vpop.xlane.xlu0 %634
  %v636 = vsel %vm510, %v628, 0.0
  %637 = vadd.xlane.f32.xlu0 %v636
  %v638 = vpop.xlane.xlu0 %637
  %v639 = vsel %vm510, %v630, 0.0
  %640 = vadd.xlane.f32.xlu0 %v639
  %v641 = vpop.xlane.xlu0 %640
  %v642 = vsel %vm510, %v632, 0.0
  %643 = vadd.xlane.f32.xlu0 %v642
  %v644 = vpop.xlane.xlu0 %643
  %v645 = vrcp.pop %v635
  %v646 = vrcp.pop %v638
  %v647 = vrcp.pop %v641
  %v648 = vrcp.pop %v644
  %v649 = vmul.f32 %v626, %v645
  %v650 = vmul.f32 %v628, %v646
  %v651 = vmul.f32 %v630, %v647
  %v652 = vmul.f32 %v632, %v648
  %v653 = vpack.c.bf16 %v650, %v649
  %v654 = vpack.c.bf16 %v652, %v651
  %v656 = vsel %vm510, %v653, 0
  %658 = vmatprep.subr.bf16.mxu0 0
  %659 = vmatpush1.bf16.msra.mxu0 %v508
  %660 = vmatprep.subr.bf16.mxu0 0
  %661 = vmatpush1.bf16.msra.mxu0 0
  %662 = vmatprep.subr.bf16.mxu0 0
  %663 = vmatpush1.bf16.msra.mxu0 0
  %664 = vmatprep.subr.bf16.mxu0 0
  %665 = vmatpush1.bf16.msra.mxu0 0
  %666 = vmatprep.subr.bf16.mxu0 0
  %667 = vmatpush1.bf16.msra.mxu0 0
  %668 = vmatprep.subr.bf16.mxu0 0
  %669 = vmatpush1.bf16.msra.mxu0 0
  %670 = vmatprep.subr.bf16.mxu0 0
  %671 = vmatpush1.bf16.msra.mxu0 0
  %672 = vmatprep.subr.bf16.mxu0 0
  %673 = vmatpush1.bf16.msra.mxu0 0
  %674 = vmatprep.subr.bf16.mxu0 0
  %675 = vmatpush1.bf16.msra.mxu0 0
  %676 = vmatprep.subr.bf16.mxu0 0
  %677 = vmatpush1.bf16.msra.mxu0 0
  %678 = vmatprep.subr.bf16.mxu0 0
  %679 = vmatpush1.bf16.msra.mxu0 0
  %680 = vmatprep.subr.bf16.mxu0 0
  %681 = vmatpush1.bf16.msra.mxu0 0
  %682 = vmatprep.subr.bf16.mxu0 0
  %683 = vmatpush1.bf16.msra.mxu0 0
  %684 = vmatprep.subr.bf16.mxu0 0
  %685 = vmatpush1.bf16.msra.mxu0 0
  %686 = vmatprep.subr.bf16.mxu0 0
  %687 = vmatpush1.bf16.msra.mxu0 0
  %688 = vmatprep.subr.bf16.mxu0 0
  %689 = vmatpush1.bf16.msra.mxu0 0
  %690 = vmatprep.mubr.bf16.mxu0 0
  %691 = vmatmul.mubr.bf16.gmra.mrb[0].mxu0 %v656
  %v692 = vpop.f32.mrb[0].mxu0
  %v693 = vadd.f32 0.0, %v692
  %v694 = vpop.f32.mrb[0].mxu0
  %v695 = vpop.f32.mrb[0].mxu0
  %v696 = vadd.f32 0.0, %v695
  %v697 = vpop.f32.mrb[0].mxu0
  %698 = vdwg.mxu0
  %v700 = vsel %vm510, %v654, 0
  %702 = vmatprep.subr.bf16.mxu0 0
  %703 = vmatpush1.bf16.msra.mxu0 %v509
  %704 = vmatprep.subr.bf16.mxu0 0
  %705 = vmatpush1.bf16.msra.mxu0 0
  %706 = vmatprep.subr.bf16.mxu0 0
  %707 = vmatpush1.bf16.msra.mxu0 0
  %708 = vmatprep.subr.bf16.mxu0 0
  %709 = vmatpush1.bf16.msra.mxu0 0
  %710 = vmatprep.subr.bf16.mxu0 0
  %711 = vmatpush1.bf16.msra.mxu0 0
  %712 = vmatprep.subr.bf16.mxu0 0
  %713 = vmatpush1.bf16.msra.mxu0 0
  %714 = vmatprep.subr.bf16.mxu0 0
  %715 = vmatpush1.bf16.msra.mxu0 0
  %716 = vmatprep.subr.bf16.mxu0 0
  %717 = vmatpush1.bf16.msra.mxu0 0
  %718 = vmatprep.subr.bf16.mxu0 0
  %719 = vmatpush1.bf16.msra.mxu0 0
  %720 = vmatprep.subr.bf16.mxu0 0
  %721 = vmatpush1.bf16.msra.mxu0 0
  %722 = vmatprep.subr.bf16.mxu0 0
  %723 = vmatpush1.bf16.msra.mxu0 0
  %724 = vmatprep.subr.bf16.mxu0 0
  %725 = vmatpush1.bf16.msra.mxu0 0
  %726 = vmatprep.subr.bf16.mxu0 0
  %727 = vmatpush1.bf16.msra.mxu0 0
  %728 = vmatprep.subr.bf16.mxu0 0
  %729 = vmatpush1.bf16.msra.mxu0 0
  %730 = vmatprep.subr.bf16.mxu0 0
  %731 = vmatpush1.bf16.msra.mxu0 0
  %732 = vmatprep.subr.bf16.mxu0 0
  %733 = vmatpush1.bf16.msra.mxu0 0
  %734 = vmatprep.mubr.bf16.mxu0 0
  %735 = vmatmul.mubr.bf16.gmra.mrb[0].mxu0 %v700
  %v736 = vpop.f32.mrb[0].mxu0
  %v737 = vadd.f32 0.0, %v736
  %v738 = vpop.f32.mrb[0].mxu0
  %v739 = vpop.f32.mrb[0].mxu0
  %v740 = vadd.f32 0.0, %v739
  %v741 = vpop.f32.mrb[0].mxu0
  %742 = vdwg.mxu0
  %743 = vst.msk [vmem:[#allocation2] sm:$0xff] %vm510, %v693
  %744 = vst.msk [vmem:[#allocation2 + $0x8] sm:$0xff] %vm510, %v696
  %745 = vst.msk [vmem:[#allocation2 + $0x10] sm:$0xff] %vm510, %v737
  %746 = vst.msk [vmem:[#allocation2 + $0x18] sm:$0xff] %vm510, %v740
  %748 = vrot.lane.b32.xlu0 %v504, 112
  %v749 = vpop.permute.xlu0 %748
  %751 = vrot.lane.b32.xlu0 %v506, 112
  %v752 = vpop.permute.xlu0 %751
  %v754 = vsel %vm510, %v749, 0
  %v757 = vsel %vm510, %v752, 0
  %759 = vmatprep.subr.bf16.mxu0 0
  %760 = vmatpush1.bf16.xpose.msra.mxu0 %v757
  %761 = vmatprep.subr.bf16.mxu0 0
  %762 = vmatpush1.bf16.xpose.msra.mxu0 0
  %763 = vmatprep.subr.bf16.mxu0 0
  %764 = vmatpush1.bf16.xpose.msra.mxu0 0
  %765 = vmatprep.subr.bf16.mxu0 0
  %766 = vmatpush1.bf16.xpose.msra.mxu0 0
  %767 = vmatprep.subr.bf16.mxu0 0
  %768 = vmatpush1.bf16.xpose.msra.mxu0 0
  %769 = vmatprep.subr.bf16.mxu0 0
  %770 = vmatpush1.bf16.xpose.msra.mxu0 0
  %771 = vmatprep.subr.bf16.mxu0 0
  %772 = vmatpush1.bf16.xpose.msra.mxu0 0
  %773 = vmatprep.subr.bf16.mxu0 0
  %774 = vmatpush1.bf16.xpose.msra.mxu0 0
  %775 = vmatprep.subr.bf16.mxu0 0
  %776 = vmatpush1.bf16.xpose.msra.mxu0 0
  %777 = vmatprep.subr.bf16.mxu0 0
  %778 = vmatpush1.bf16.xpose.msra.mxu0 0
  %779 = vmatprep.subr.bf16.mxu0 0
  %780 = vmatpush1.bf16.xpose.msra.mxu0 0
  %781 = vmatprep.subr.bf16.mxu0 0
  %782 = vmatpush1.bf16.xpose.msra.mxu0 0
  %783 = vmatprep.subr.bf16.mxu0 0
  %784 = vmatpush1.bf16.xpose.msra.mxu0 0
  %785 = vmatprep.subr.bf16.mxu0 0
  %786 = vmatpush1.bf16.xpose.msra.mxu0 0
  %787 = vmatprep.subr.bf16.mxu0 0
  %788 = vmatpush1.bf16.xpose.msra.mxu0 0
  %789 = vmatprep.subr.bf16.mxu0 0
  %790 = vmatpush1.bf16.xpose.msra.mxu0 0
  %791 = vmatprep.mubr.bf16.mxu0 0
  %792 = vmatmul.mubr.bf16.gmra.mrb[0].mxu0 %v754
  %v793 = vpop.f32.mrb[0].mxu0
  %v794 = vadd.f32 0.0, %v793
  %v795 = vpop.f32.mrb[0].mxu0
  %v796 = vpop.f32.mrb[0].mxu0
  %v797 = vadd.f32 0.0, %v796
  %v798 = vpop.f32.mrb[0].mxu0
  %799 = vdwg.mxu0
  %801 = vrot.lane.b32.xlu0 %v505, 112
  %v802 = vpop.permute.xlu0 %801
  %804 = vrot.lane.b32.xlu0 %v507, 112
  %v805 = vpop.permute.xlu0 %804
  %v807 = vsel %vm510, %v802, 0
  %v810 = vsel %vm510, %v805, 0
  %812 = vmatprep.subr.bf16.mxu0 0
  %813 = vmatpush1.bf16.xpose.msra.mxu0 %v810
  %814 = vmatprep.subr.bf16.mxu0 0
  %815 = vmatpush1.bf16.xpose.msra.mxu0 0
  %816 = vmatprep.subr.bf16.mxu0 0
  %817 = vmatpush1.bf16.xpose.msra.mxu0 0
  %818 = vmatprep.subr.bf16.mxu0 0
  %819 = vmatpush1.bf16.xpose.msra.mxu0 0
  %820 = vmatprep.subr.bf16.mxu0 0
  %821 = vmatpush1.bf16.xpose.msra.mxu0 0
  %822 = vmatprep.subr.bf16.mxu0 0
  %823 = vmatpush1.bf16.xpose.msra.mxu0 0
  %824 = vmatprep.subr.bf16.mxu0 0
  %825 = vmatpush1.bf16.xpose.msra.mxu0 0
  %826 = vmatprep.subr.bf16.mxu0 0
  %827 = vmatpush1.bf16.xpose.msra.mxu0 0
  %828 = vmatprep.subr.bf16.mxu0 0
  %829 = vmatpush1.bf16.xpose.msra.mxu0 0
  %830 = vmatprep.subr.bf16.mxu0 0
  %831 = vmatpush1.bf16.xpose.msra.mxu0 0
  %832 = vmatprep.subr.bf16.mxu0 0
  %833 = vmatpush1.bf16.xpose.msra.mxu0 0
  %834 = vmatprep.subr.bf16.mxu0 0
  %835 = vmatpush1.bf16.xpose.msra.mxu0 0
  %836 = vmatprep.subr.bf16.mxu0 0
  %837 = vmatpush1.bf16.xpose.msra.mxu0 0
  %838 = vmatprep.subr.bf16.mxu0 0
  %839 = vmatpush1.bf16.xpose.msra.mxu0 0
  %840 = vmatprep.subr.bf16.mxu0 0
  %841 = vmatpush1.bf16.xpose.msra.mxu0 0
  %842 = vmatprep.subr.bf16.mxu0 0
  %843 = vmatpush1.bf16.xpose.msra.mxu0 0
  %844 = vmatprep.mubr.bf16.mxu0 0
  %845 = vmatmul.mubr.bf16.gmra.mrb[0].mxu0 %v807
  %v846 = vpop.f32.mrb[0].mxu0
  %v847 = vadd.f32 0.0, %v846
  %v848 = vpop.f32.mrb[0].mxu0
  %v849 = vpop.f32.mrb[0].mxu0
  %v850 = vadd.f32 0.0, %v849
  %v851 = vpop.f32.mrb[0].mxu0
  %852 = vdwg.mxu0
  %v853 = vmul.f32 %v794, 0.25
  %v854 = vmul.f32 %v797, 0.25
  %v855 = vmul.f32 %v847, 0.25
  %v856 = vmul.f32 %v850, 0.25
  %v857 = vsel %vm510, %v853, -inf
  %858 = vmax.xlane.f32.xlu0 %v857
  %v859 = vpop.xlane.xlu0 %858
  %v860 = vsel %vm510, %v854, -inf
  %861 = vmax.xlane.f32.xlu0 %v860
  %v862 = vpop.xlane.xlu0 %861
  %v863 = vsel %vm510, %v855, -inf
  %864 = vmax.xlane.f32.xlu0 %v863
  %v865 = vpop.xlane.xlu0 %864
  %v866 = vsel %vm510, %v856, -inf
  %867 = vmax.xlane.f32.xlu0 %v866
  %v868 = vpop.xlane.xlu0 %867
  %v869 = vsub.f32 %v853, %v859
  %v870 = vsub.f32 %v854, %v862
  %v871 = vsub.f32 %v855, %v865
  %v872 = vsub.f32 %v856, %v868
  %v873 = vmul.f32 %v869, 1.442695
  %v874 = vpow.pop %v873
  %v875 = vmul.f32 %v870, 1.442695
  %v876 = vpow.pop %v875
  %v877 = vmul.f32 %v871, 1.442695
  %v878 = vpow.pop %v877
  %v879 = vmul.f32 %v872, 1.442695
  %v880 = vpow.pop %v879
  %v881 = vsel %vm510, %v874, 0.0
  %882 = vadd.xlane.f32.xlu0 %v881
  %v883 = vpop.xlane.xlu0 %882
  %v884 = vsel %vm510, %v876, 0.0
  %885 = vadd.xlane.f32.xlu0 %v884
  %v886 = vpop.xlane.xlu0 %885
  %v887 = vsel %vm510, %v878, 0.0
  %888 = vadd.xlane.f32.xlu0 %v887
  %v889 = vpop.xlane.xlu0 %888
  %v890 = vsel %vm510, %v880, 0.0
  %891 = vadd.xlane.f32.xlu0 %v890
  %v892 = vpop.xlane.xlu0 %891
  %v893 = vrcp.pop %v883
  %v894 = vrcp.pop %v886
  %v895 = vrcp.pop %v889
  %v896 = vrcp.pop %v892
  %v897 = vmul.f32 %v874, %v893
  %v898 = vmul.f32 %v876, %v894
  %v899 = vmul.f32 %v878, %v895
  %v900 = vmul.f32 %v880, %v896
  %v901 = vpack.c.bf16 %v898, %v897
  %v902 = vpack.c.bf16 %v900, %v899
  %904 = vrot.lane.b32.xlu0 %v508, 112
  %v905 = vpop.permute.xlu0 %904
  %v908 = vsel %vm510, %v901, 0
  %910 = vmatprep.subr.bf16.mxu0 0
  %911 = vmatpush1.bf16.msra.mxu0 %v905
  %912 = vmatprep.subr.bf16.mxu0 0
  %913 = vmatpush1.bf16.msra.mxu0 0
  %914 = vmatprep.subr.bf16.mxu0 0
  %915 = vmatpush1.bf16.msra.mxu0 0
  %916 = vmatprep.subr.bf16.mxu0 0
  %917 = vmatpush1.bf16.msra.mxu0 0
  %918 = vmatprep.subr.bf16.mxu0 0
  %919 = vmatpush1.bf16.msra.mxu0 0
  %920 = vmatprep.subr.bf16.mxu0 0
  %921 = vmatpush1.bf16.msra.mxu0 0
  %922 = vmatprep.subr.bf16.mxu0 0
  %923 = vmatpush1.bf16.msra.mxu0 0
  %924 = vmatprep.subr.bf16.mxu0 0
  %925 = vmatpush1.bf16.msra.mxu0 0
  %926 = vmatprep.subr.bf16.mxu0 0
  %927 = vmatpush1.bf16.msra.mxu0 0
  %928 = vmatprep.subr.bf16.mxu0 0
  %929 = vmatpush1.bf16.msra.mxu0 0
  %930 = vmatprep.subr.bf16.mxu0 0
  %931 = vmatpush1.bf16.msra.mxu0 0
  %932 = vmatprep.subr.bf16.mxu0 0
  %933 = vmatpush1.bf16.msra.mxu0 0
  %934 = vmatprep.subr.bf16.mxu0 0
  %935 = vmatpush1.bf16.msra.mxu0 0
  %936 = vmatprep.subr.bf16.mxu0 0
  %937 = vmatpush1.bf16.msra.mxu0 0
  %938 = vmatprep.subr.bf16.mxu0 0
  %939 = vmatpush1.bf16.msra.mxu0 0
  %940 = vmatprep.subr.bf16.mxu0 0
  %941 = vmatpush1.bf16.msra.mxu0 0
  %942 = vmatprep.mubr.bf16.mxu0 0
  %943 = vmatmul.mubr.bf16.gmra.mrb[0].mxu0 %v908
  %v944 = vpop.f32.mrb[0].mxu0
  %v945 = vadd.f32 0.0, %v944
  %v946 = vpop.f32.mrb[0].mxu0
  %v947 = vpop.f32.mrb[0].mxu0
  %v948 = vadd.f32 0.0, %v947
  %v949 = vpop.f32.mrb[0].mxu0
  %950 = vdwg.mxu0
  %952 = vrot.lane.b32.xlu0 %v509, 112
  %v953 = vpop.permute.xlu0 %952
  %v956 = vsel %vm510, %v902, 0
  %958 = vmatprep.subr.bf16.mxu0 0
  %959 = vmatpush1.bf16.msra.mxu0 %v953
  %960 = vmatprep.subr.bf16.mxu0 0
  %961 = vmatpush1.bf16.msra.mxu0 0
  %962 = vmatprep.subr.bf16.mxu0 0
  %963 = vmatpush1.bf16.msra.mxu0 0
  %964 = vmatprep.subr.bf16.mxu0 0
  %965 = vmatpush1.bf16.msra.mxu0 0
  %966 = vmatprep.subr.bf16.mxu0 0
  %967 = vmatpush1.bf16.msra.mxu0 0
  %968 = vmatprep.subr.bf16.mxu0 0
  %969 = vmatpush1.bf16.msra.mxu0 0
  %970 = vmatprep.subr.bf16.mxu0 0
  %971 = vmatpush1.bf16.msra.mxu0 0
  %972 = vmatprep.subr.bf16.mxu0 0
  %973 = vmatpush1.bf16.msra.mxu0 0
  %974 = vmatprep.subr.bf16.mxu0 0
  %975 = vmatpush1.bf16.msra.mxu0 0
  %976 = vmatprep.subr.bf16.mxu0 0
  %977 = vmatpush1.bf16.msra.mxu0 0
  %978 = vmatprep.subr.bf16.mxu0 0
  %979 = vmatpush1.bf16.msra.mxu0 0
  %980 = vmatprep.subr.bf16.mxu0 0
  %981 = vmatpush1.bf16.msra.mxu0 0
  %982 = vmatprep.subr.bf16.mxu0 0
  %983 = vmatpush1.bf16.msra.mxu0 0
  %984 = vmatprep.subr.bf16.mxu0 0
  %985 = vmatpush1.bf16.msra.mxu0 0
  %986 = vmatprep.subr.bf16.mxu0 0
  %987 = vmatpush1.bf16.msra.mxu0 0
  %988 = vmatprep.subr.bf16.mxu0 0
  %989 = vmatpush1.bf16.msra.mxu0 0
  %990 = vmatprep.mubr.bf16.mxu0 0
  %991 = vmatmul.mubr.bf16.gmra.mrb[0].mxu0 %v956
  %v992 = vpop.f32.mrb[0].mxu0
  %v993 = vadd.f32 0.0, %v992
  %v994 = vpop.f32.mrb[0].mxu0
  %v995 = vpop.f32.mrb[0].mxu0
  %v996 = vadd.f32 0.0, %v995
  %v997 = vpop.f32.mrb[0].mxu0
  %998 = vdwg.mxu0
  %1003 = vrot.lane.b32.xlu0 %v945, 16
  %v1004 = vpop.permute.xlu0 %1003
  %1005 = vrot.lane.b32.xlu0 %v948, 16
  %v1006 = vpop.permute.xlu0 %1005
  %1007 = vrot.lane.b32.xlu0 %v993, 16
  %v1008 = vpop.permute.xlu0 %1007
  %1009 = vrot.lane.b32.xlu0 %v996, 16
  %v1010 = vpop.permute.xlu0 %1009
  %vm1015 = vcmask 261248
  %1016 = vst.msk [vmem:[#allocation2] sm:$0xff] %vm1015, %v1004
  %1017 = vst.msk [vmem:[#allocation2 + $0x8] sm:$0xff] %vm1015, %v1006
  %1018 = vst.msk [vmem:[#allocation2 + $0x10] sm:$0xff] %vm1015, %v1008
  %1019 = vst.msk [vmem:[#allocation2 + $0x18] sm:$0xff] %vm1015, %v1010
  %1020 = vrot.lane.b32.xlu0 %v504, 96
  %v1021 = vpop.permute.xlu0 %1020
  %1022 = vrot.lane.b32.xlu0 %v506, 96
  %v1023 = vpop.permute.xlu0 %1022
  %v1025 = vsel %vm510, %v1021, 0
  %v1028 = vsel %vm510, %v1023, 0
  %1030 = vmatprep.subr.bf16.mxu0 0
  %1031 = vmatpush1.bf16.xpose.msra.mxu0 %v1028
  %1032 = vmatprep.subr.bf16.mxu0 0
  %1033 = vmatpush1.bf16.xpose.msra.mxu0 0
  %1034 = vmatprep.subr.bf16.mxu0 0
  %1035 = vmatpush1.bf16.xpose.msra.mxu0 0
  %1036 = vmatprep.subr.bf16.mxu0 0
  %1037 = vmatpush1.bf16.xpose.msra.mxu0 0
  %1038 = vmatprep.subr.bf16.mxu0 0
  %1039 = vmatpush1.bf16.xpose.msra.mxu0 0
  %1040 = vmatprep.subr.bf16.mxu0 0
  %1041 = vmatpush1.bf16.xpose.msra.mxu0 0
  %1042 = vmatprep.subr.bf16.mxu0 0
  %1043 = vmatpush1.bf16.xpose.msra.mxu0 0
  %1044 = vmatprep.subr.bf16.mxu0 0
  %1045 = vmatpush1.bf16.xpose.msra.mxu0 0
  %1046 = vmatprep.subr.bf16.mxu0 0
  %1047 = vmatpush1.bf16.xpose.msra.mxu0 0
  %1048 = vmatprep.subr.bf16.mxu0 0
  %1049 = vmatpush1.bf16.xpose.msra.mxu0 0
  %1050 = vmatprep.subr.bf16.mxu0 0
  %1051 = vmatpush1.bf16.xpose.msra.mxu0 0
  %1052 = vmatprep.subr.bf16.mxu0 0
  %1053 = vmatpush1.bf16.xpose.msra.mxu0 0
  %1054 = vmatprep.subr.bf16.mxu0 0
  %1055 = vmatpush1.bf16.xpose.msra.mxu0 0
  %1056 = vmatprep.subr.bf16.mxu0 0
  %1057 = vmatpush1.bf16.xpose.msra.mxu0 0
  %1058 = vmatprep.subr.bf16.mxu0 0
  %1059 = vmatpush1.bf16.xpose.msra.mxu0 0
  %1060 = vmatprep.subr.bf16.mxu0 0
  %1061 = vmatpush1.bf16.xpose.msra.mxu0 0
  %1062 = vmatprep.mubr.bf16.mxu0 0
  %1063 = vmatmul.mubr.bf16.gmra.mrb[0].mxu0 %v1025
  %v1064 = vpop.f32.mrb[0].mxu0
  %v1065 = vadd.f32 0.0, %v1064
  %v1066 = vpop.f32.mrb[0].mxu0
  %v1067 = vpop.f32.mrb[0].mxu0
  %v1068 = vadd.f32 0.0, %v1067
  %v1069 = vpop.f32.mrb[0].mxu0
  %1070 = vdwg.mxu0
  %1071 = vrot.lane.b32.xlu0 %v505, 96
  %v1072 = vpop.permute.xlu0 %1071
  %1073 = vrot.lane.b32.xlu0 %v507, 96
  %v1074 = vpop.permute.xlu0 %1073
  %v1076 = vsel %vm510, %v1072, 0
  %v1079 = vsel %vm510, %v1074, 0
  %1081 = vmatprep.subr.bf16.mxu0 0
  %1082 = vmatpush1.bf16.xpose.msra.mxu0 %v1079
  %1083 = vmatprep.subr.bf16.mxu0 0
  %1084 = vmatpush1.bf16.xpose.msra.mxu0 0
  %1085 = vmatprep.subr.bf16.mxu0 0
  %1086 = vmatpush1.bf16.xpose.msra.mxu0 0
  %1087 = vmatprep.subr.bf16.mxu0 0
  %1088 = vmatpush1.bf16.xpose.msra.mxu0 0
  %1089 = vmatprep.subr.bf16.mxu0 0
  %1090 = vmatpush1.bf16.xpose.msra.mxu0 0
  %1091 = vmatprep.subr.bf16.mxu0 0
  %1092 = vmatpush1.bf16.xpose.msra.mxu0 0
  %1093 = vmatprep.subr.bf16.mxu0 0
  %1094 = vmatpush1.bf16.xpose.msra.mxu0 0
  %1095 = vmatprep.subr.bf16.mxu0 0
  %1096 = vmatpush1.bf16.xpose.msra.mxu0 0
  %1097 = vmatprep.subr.bf16.mxu0 0
  %1098 = vmatpush1.bf16.xpose.msra.mxu0 0
  %1099 = vmatprep.subr.bf16.mxu0 0
  %1100 = vmatpush1.bf16.xpose.msra.mxu0 0
  %1101 = vmatprep.subr.bf16.mxu0 0
  %1102 = vmatpush1.bf16.xpose.msra.mxu0 0
  %1103 = vmatprep.subr.bf16.mxu0 0
  %1104 = vmatpush1.bf16.xpose.msra.mxu0 0
  %1105 = vmatprep.subr.bf16.mxu0 0
  %1106 = vmatpush1.bf16.xpose.msra.mxu0 0
  %1107 = vmatprep.subr.bf16.mxu0 0
  %1108 = vmatpush1.bf16.xpose.msra.mxu0 0
  %1109 = vmatprep.subr.bf16.mxu0 0
  %1110 = vmatpush1.bf16.xpose.msra.mxu0 0
  %1111 = vmatprep.subr.bf16.mxu0 0
  %1112 = vmatpush1.bf16.xpose.msra.mxu0 0
  %1113 = vmatprep.mubr.bf16.mxu0 0
  %1114 = vmatmul.mubr.bf16.gmra.mrb[0].mxu0 %v1076
  %v1115 = vpop.f32.mrb[0].mxu0
  %v1116 = vadd.f32 0.0, %v1115
  %v1117 = vpop.f32.mrb[0].mxu0
  %v1118 = vpop.f32.mrb[0].mxu0
  %v1119 = vadd.f32 0.0, %v1118
  %v1120 = vpop.f32.mrb[0].mxu0
  %1121 = vdwg.mxu0
  %v1122 = vmul.f32 %v1065, 0.25
  %v1123 = vmul.f32 %v1068, 0.25
  %v1124 = vmul.f32 %v1116, 0.25
  %v1125 = vmul.f32 %v1119, 0.25
  %v1126 = vsel %vm510, %v1122, -inf
  %1127 = vmax.xlane.f32.xlu0 %v1126
  %v1128 = vpop.xlane.xlu0 %1127
  %v1129 = vsel %vm510, %v1123, -inf
  %1130 = vmax.xlane.f32.xlu0 %v1129
  %v1131 = vpop.xlane.xlu0 %1130
  %v1132 = vsel %vm510, %v1124, -inf
  %1133 = vmax.xlane.f32.xlu0 %v1132
  %v1134 = vpop.xlane.xlu0 %1133
  %v1135 = vsel %vm510, %v1125, -inf
  %1136 = vmax.xlane.f32.xlu0 %v1135
  %v1137 = vpop.xlane.xlu0 %1136
  %v1138 = vsub.f32 %v1122, %v1128
  %v1139 = vsub.f32 %v1123, %v1131
  %v1140 = vsub.f32 %v1124, %v1134
  %v1141 = vsub.f32 %v1125, %v1137
  %v1142 = vmul.f32 %v1138, 1.442695
  %v1143 = vpow.pop %v1142
  %v1144 = vmul.f32 %v1139, 1.442695
  %v1145 = vpow.pop %v1144
  %v1146 = vmul.f32 %v1140, 1.442695
  %v1147 = vpow.pop %v1146
  %v1148 = vmul.f32 %v1141, 1.442695
  %v1149 = vpow.pop %v1148
  %v1150 = vsel %vm510, %v1143, 0.0
  %1151 = vadd.xlane.f32.xlu0 %v1150
  %v1152 = vpop.xlane.xlu0 %1151
  %v1153 = vsel %vm510, %v1145, 0.0
  %1154 = vadd.xlane.f32.xlu0 %v1153
  %v1155 = vpop.xlane.xlu0 %1154
  %v1156 = vsel %vm510, %v1147, 0.0
  %1157 = vadd.xlane.f32.xlu0 %v1156
  %v1158 = vpop.xlane.xlu0 %1157
  %v1159 = vsel %vm510, %v1149, 0.0
  %1160 = vadd.xlane.f32.xlu0 %v1159
  %v1161 = vpop.xlane.xlu0 %1160
  %v1162 = vrcp.pop %v1152
  %v1163 = vrcp.pop %v1155
  %v1164 = vrcp.pop %v1158
  %v1165 = vrcp.pop %v1161
  %v1166 = vmul.f32 %v1143, %v1162
  %v1167 = vmul.f32 %v1145, %v1163
  %v1168 = vmul.f32 %v1147, %v1164
  %v1169 = vmul.f32 %v1149, %v1165
  %v1170 = vpack.c.bf16 %v1167, %v1166
  %v1171 = vpack.c.bf16 %v1169, %v1168
  %1172 = vrot.lane.b32.xlu0 %v508, 96
  %v1173 = vpop.permute.xlu0 %1172
  %v1176 = vsel %vm510, %v1170, 0
  %1178 = vmatprep.subr.bf16.mxu0 0
  %1179 = vmatpush1.bf16.msra.mxu0 %v1173
  %1180 = vmatprep.subr.bf16.mxu0 0
  %1181 = vmatpush1.bf16.msra.mxu0 0
  %1182 = vmatprep.subr.bf16.mxu0 0
  %1183 = vmatpush1.bf16.msra.mxu0 0
  %1184 = vmatprep.subr.bf16.mxu0 0
  %1185 = vmatpush1.bf16.msra.mxu0 0
  %1186 = vmatprep.subr.bf16.mxu0 0
  %1187 = vmatpush1.bf16.msra.mxu0 0
  %1188 = vmatprep.subr.bf16.mxu0 0
  %1189 = vmatpush1.bf16.msra.mxu0 0
  %1190 = vmatprep.subr.bf16.mxu0 0
  %1191 = vmatpush1.bf16.msra.mxu0 0
  %1192 = vmatprep.subr.bf16.mxu0 0
  %1193 = vmatpush1.bf16.msra.mxu0 0
  %1194 = vmatprep.subr.bf16.mxu0 0
  %1195 = vmatpush1.bf16.msra.mxu0 0
  %1196 = vmatprep.subr.bf16.mxu0 0
  %1197 = vmatpush1.bf16.msra.mxu0 0
  %1198 = vmatprep.subr.bf16.mxu0 0
  %1199 = vmatpush1.bf16.msra.mxu0 0
  %1200 = vmatprep.subr.bf16.mxu0 0
  %1201 = vmatpush1.bf16.msra.mxu0 0
  %1202 = vmatprep.subr.bf16.mxu0 0
  %1203 = vmatpush1.bf16.msra.mxu0 0
  %1204 = vmatprep.subr.bf16.mxu0 0
  %1205 = vmatpush1.bf16.msra.mxu0 0
  %1206 = vmatprep.subr.bf16.mxu0 0
  %1207 = vmatpush1.bf16.msra.mxu0 0
  %1208 = vmatprep.subr.bf16.mxu0 0
  %1209 = vmatpush1.bf16.msra.mxu0 0
  %1210 = vmatprep.mubr.bf16.mxu0 0
  %1211 = vmatmul.mubr.bf16.gmra.mrb[0].mxu0 %v1176
  %v1212 = vpop.f32.mrb[0].mxu0
  %v1213 = vadd.f32 0.0, %v1212
  %v1214 = vpop.f32.mrb[0].mxu0
  %v1215 = vpop.f32.mrb[0].mxu0
  %v1216 = vadd.f32 0.0, %v1215
  %v1217 = vpop.f32.mrb[0].mxu0
  %1218 = vdwg.mxu0
  %1219 = vrot.lane.b32.xlu0 %v509, 96
  %v1220 = vpop.permute.xlu0 %1219
  %v1223 = vsel %vm510, %v1171, 0
  %1225 = vmatprep.subr.bf16.mxu0 0
  %1226 = vmatpush1.bf16.msra.mxu0 %v1220
  %1227 = vmatprep.subr.bf16.mxu0 0
  %1228 = vmatpush1.bf16.msra.mxu0 0
  %1229 = vmatprep.subr.bf16.mxu0 0
  %1230 = vmatpush1.bf16.msra.mxu0 0
  %1231 = vmatprep.subr.bf16.mxu0 0
  %1232 = vmatpush1.bf16.msra.mxu0 0
  %1233 = vmatprep.subr.bf16.mxu0 0
  %1234 = vmatpush1.bf16.msra.mxu0 0
  %1235 = vmatprep.subr.bf16.mxu0 0
  %1236 = vmatpush1.bf16.msra.mxu0 0
  %1237 = vmatprep.subr.bf16.mxu0 0
  %1238 = vmatpush1.bf16.msra.mxu0 0
  %1239 = vmatprep.subr.bf16.mxu0 0
  %1240 = vmatpush1.bf16.msra.mxu0 0
  %1241 = vmatprep.subr.bf16.mxu0 0
  %1242 = vmatpush1.bf16.msra.mxu0 0
  %1243 = vmatprep.subr.bf16.mxu0 0
  %1244 = vmatpush1.bf16.msra.mxu0 0
  %1245 = vmatprep.subr.bf16.mxu0 0
  %1246 = vmatpush1.bf16.msra.mxu0 0
  %1247 = vmatprep.subr.bf16.mxu0 0
  %1248 = vmatpush1.bf16.msra.mxu0 0
  %1249 = vmatprep.subr.bf16.mxu0 0
  %1250 = vmatpush1.bf16.msra.mxu0 0
  %1251 = vmatprep.subr.bf16.mxu0 0
  %1252 = vmatpush1.bf16.msra.mxu0 0
  %1253 = vmatprep.subr.bf16.mxu0 0
  %1254 = vmatpush1.bf16.msra.mxu0 0
  %1255 = vmatprep.subr.bf16.mxu0 0
  %1256 = vmatpush1.bf16.msra.mxu0 0
  %1257 = vmatprep.mubr.bf16.mxu0 0
  %1258 = vmatmul.mubr.bf16.gmra.mrb[0].mxu0 %v1223
  %v1259 = vpop.f32.mrb[0].mxu0
  %v1260 = vadd.f32 0.0, %v1259
  %v1261 = vpop.f32.mrb[0].mxu0
  %v1262 = vpop.f32.mrb[0].mxu0
  %v1263 = vadd.f32 0.0, %v1262
  %v1264 = vpop.f32.mrb[0].mxu0
  %1265 = vdwg.mxu0
  %1270 = vrot.lane.b32.xlu0 %v1213, 32
  %v1271 = vpop.permute.xlu0 %1270
  %1272 = vrot.lane.b32.xlu0 %v1216, 32
  %v1273 = vpop.permute.xlu0 %1272
  %1274 = vrot.lane.b32.xlu0 %v1260, 32
  %v1275 = vpop.permute.xlu0 %1274
  %1276 = vrot.lane.b32.xlu0 %v1263, 32
  %v1277 = vpop.permute.xlu0 %1276
  %vm1282 = vcmask 392448
  %1283 = vst.msk [vmem:[#allocation2] sm:$0xff] %vm1282, %v1271
  %1284 = vst.msk [vmem:[#allocation2 + $0x8] sm:$0xff] %vm1282, %v1273
  %1285 = vst.msk [vmem:[#allocation2 + $0x10] sm:$0xff] %vm1282, %v1275
  %1286 = vst.msk [vmem:[#allocation2 + $0x18] sm:$0xff] %vm1282, %v1277
  %1287 = vrot.lane.b32.xlu0 %v504, 80
  %v1288 = vpop.permute.xlu0 %1287
  %1289 = vrot.lane.b32.xlu0 %v506, 80
  %v1290 = vpop.permute.xlu0 %1289
  %v1292 = vsel %vm510, %v1288, 0
  %v1295 = vsel %vm510, %v1290, 0
  %1297 = vmatprep.subr.bf16.mxu0 0
  %1298 = vmatpush1.bf16.xpose.msra.mxu0 %v1295
  %1299 = vmatprep.subr.bf16.mxu0 0
  %1300 = vmatpush1.bf16.xpose.msra.mxu0 0
  %1301 = vmatprep.subr.bf16.mxu0 0
  %1302 = vmatpush1.bf16.xpose.msra.mxu0 0
  %1303 = vmatprep.subr.bf16.mxu0 0
  %1304 = vmatpush1.bf16.xpose.msra.mxu0 0
  %1305 = vmatprep.subr.bf16.mxu0 0
  %1306 = vmatpush1.bf16.xpose.msra.mxu0 0
  %1307 = vmatprep.subr.bf16.mxu0 0
  %1308 = vmatpush1.bf16.xpose.msra.mxu0 0
  %1309 = vmatprep.subr.bf16.mxu0 0
  %1310 = vmatpush1.bf16.xpose.msra.mxu0 0
  %1311 = vmatprep.subr.bf16.mxu0 0
  %1312 = vmatpush1.bf16.xpose.msra.mxu0 0
  %1313 = vmatprep.subr.bf16.mxu0 0
  %1314 = vmatpush1.bf16.xpose.msra.mxu0 0
  %1315 = vmatprep.subr.bf16.mxu0 0
  %1316 = vmatpush1.bf16.xpose.msra.mxu0 0
  %1317 = vmatprep.subr.bf16.mxu0 0
  %1318 = vmatpush1.bf16.xpose.msra.mxu0 0
  %1319 = vmatprep.subr.bf16.mxu0 0
  %1320 = vmatpush1.bf16.xpose.msra.mxu0 0
  %1321 = vmatprep.subr.bf16.mxu0 0
  %1322 = vmatpush1.bf16.xpose.msra.mxu0 0
  %1323 = vmatprep.subr.bf16.mxu0 0
  %1324 = vmatpush1.bf16.xpose.msra.mxu0 0
  %1325 = vmatprep.subr.bf16.mxu0 0
  %1326 = vmatpush1.bf16.xpose.msra.mxu0 0
  %1327 = vmatprep.subr.bf16.mxu0 0
  %1328 = vmatpush1.bf16.xpose.msra.mxu0 0
  %1329 = vmatprep.mubr.bf16.mxu0 0
  %1330 = vmatmul.mubr.bf16.gmra.mrb[0].mxu0 %v1292
  %v1331 = vpop.f32.mrb[0].mxu0
  %v1332 = vadd.f32 0.0, %v1331
  %v1333 = vpop.f32.mrb[0].mxu0
  %v1334 = vpop.f32.mrb[0].mxu0
  %v1335 = vadd.f32 0.0, %v1334
  %v1336 = vpop.f32.mrb[0].mxu0
  %1337 = vdwg.mxu0
  %1338 = vrot.lane.b32.xlu0 %v505, 80
  %v1339 = vpop.permute.xlu0 %1338
  %1340 = vrot.lane.b32.xlu0 %v507, 80
  %v1341 = vpop.permute.xlu0 %1340
  %v1343 = vsel %vm510, %v1339, 0
  %v1346 = vsel %vm510, %v1341, 0
  %1348 = vmatprep.subr.bf16.mxu0 0
  %1349 = vmatpush1.bf16.xpose.msra.mxu0 %v1346
  %1350 = vmatprep.subr.bf16.mxu0 0
  %1351 = vmatpush1.bf16.xpose.msra.mxu0 0
  %1352 = vmatprep.subr.bf16.mxu0 0
  %1353 = vmatpush1.bf16.xpose.msra.mxu0 0
  %1354 = vmatprep.subr.bf16.mxu0 0
  %1355 = vmatpush1.bf16.xpose.msra.mxu0 0
  %1356 = vmatprep.subr.bf16.mxu0 0
  %1357 = vmatpush1.bf16.xpose.msra.mxu0 0
  %1358 = vmatprep.subr.bf16.mxu0 0
  %1359 = vmatpush1.bf16.xpose.msra.mxu0 0
  %1360 = vmatprep.subr.bf16.mxu0 0
  %1361 = vmatpush1.bf16.xpose.msra.mxu0 0
  %1362 = vmatprep.subr.bf16.mxu0 0
  %1363 = vmatpush1.bf16.xpose.msra.mxu0 0
  %1364 = vmatprep.subr.bf16.mxu0 0
  %1365 = vmatpush1.bf16.xpose.msra.mxu0 0
  %1366 = vmatprep.subr.bf16.mxu0 0
  %1367 = vmatpush1.bf16.xpose.msra.mxu0 0
  %1368 = vmatprep.subr.bf16.mxu0 0
  %1369 = vmatpush1.bf16.xpose.msra.mxu0 0
  %1370 = vmatprep.subr.bf16.mxu0 0
  %1371 = vmatpush1.bf16.xpose.msra.mxu0 0
  %1372 = vmatprep.subr.bf16.mxu0 0
  %1373 = vmatpush1.bf16.xpose.msra.mxu0 0
  %1374 = vmatprep.subr.bf16.mxu0 0
  %1375 = vmatpush1.bf16.xpose.msra.mxu0 0
  %1376 = vmatprep.subr.bf16.mxu0 0
  %1377 = vmatpush1.bf16.xpose.msra.mxu0 0
  %1378 = vmatprep.subr.bf16.mxu0 0
  %1379 = vmatpush1.bf16.xpose.msra.mxu0 0
  %1380 = vmatprep.mubr.bf16.mxu0 0
  %1381 = vmatmul.mubr.bf16.gmra.mrb[0].mxu0 %v1343
  %v1382 = vpop.f32.mrb[0].mxu0
  %v1383 = vadd.f32 0.0, %v1382
  %v1384 = vpop.f32.mrb[0].mxu0
  %v1385 = vpop.f32.mrb[0].mxu0
  %v1386 = vadd.f32 0.0, %v1385
  %v1387 = vpop.f32.mrb[0].mxu0
  %1388 = vdwg.mxu0
  %v1389 = vmul.f32 %v1332, 0.25
  %v1390 = vmul.f32 %v1335, 0.25
  %v1391 = vmul.f32 %v1383, 0.25
  %v1392 = vmul.f32 %v1386, 0.25
  %v1393 = vsel %vm510, %v1389, -inf
  %1394 = vmax.xlane.f32.xlu0 %v1393
  %v1395 = vpop.xlane.xlu0 %1394
  %v1396 = vsel %vm510, %v1390, -inf
  %1397 = vmax.xlane.f32.xlu0 %v1396
  %v1398 = vpop.xlane.xlu0 %1397
  %v1399 = vsel %vm510, %v1391, -inf
  %1400 = vmax.xlane.f32.xlu0 %v1399
  %v1401 = vpop.xlane.xlu0 %1400
  %v1402 = vsel %vm510, %v1392, -inf
  %1403 = vmax.xlane.f32.xlu0 %v1402
  %v1404 = vpop.xlane.xlu0 %1403
  %v1405 = vsub.f32 %v1389, %v1395
  %v1406 = vsub.f32 %v1390, %v1398
  %v1407 = vsub.f32 %v1391, %v1401
  %v1408 = vsub.f32 %v1392, %v1404
  %v1409 = vmul.f32 %v1405, 1.442695
  %v1410 = vpow.pop %v1409
  %v1411 = vmul.f32 %v1406, 1.442695
  %v1412 = vpow.pop %v1411
  %v1413 = vmul.f32 %v1407, 1.442695
  %v1414 = vpow.pop %v1413
  %v1415 = vmul.f32 %v1408, 1.442695
  %v1416 = vpow.pop %v1415
  %v1417 = vsel %vm510, %v1410, 0.0
  %1418 = vadd.xlane.f32.xlu0 %v1417
  %v1419 = vpop.xlane.xlu0 %1418
  %v1420 = vsel %vm510, %v1412, 0.0
  %1421 = vadd.xlane.f32.xlu0 %v1420
  %v1422 = vpop.xlane.xlu0 %1421
  %v1423 = vsel %vm510, %v1414, 0.0
  %1424 = vadd.xlane.f32.xlu0 %v1423
  %v1425 = vpop.xlane.xlu0 %1424
  %v1426 = vsel %vm510, %v1416, 0.0
  %1427 = vadd.xlane.f32.xlu0 %v1426
  %v1428 = vpop.xlane.xlu0 %1427
  %v1429 = vrcp.pop %v1419
  %v1430 = vrcp.pop %v1422
  %v1431 = vrcp.pop %v1425
  %v1432 = vrcp.pop %v1428
  %v1433 = vmul.f32 %v1410, %v1429
  %v1434 = vmul.f32 %v1412, %v1430
  %v1435 = vmul.f32 %v1414, %v1431
  %v1436 = vmul.f32 %v1416, %v1432
  %v1437 = vpack.c.bf16 %v1434, %v1433
  %v1438 = vpack.c.bf16 %v1436, %v1435
  %1439 = vrot.lane.b32.xlu0 %v508, 80
  %v1440 = vpop.permute.xlu0 %1439
  %v1443 = vsel %vm510, %v1437, 0
  %1445 = vmatprep.subr.bf16.mxu0 0
  %1446 = vmatpush1.bf16.msra.mxu0 %v1440
  %1447 = vmatprep.subr.bf16.mxu0 0
  %1448 = vmatpush1.bf16.msra.mxu0 0
  %1449 = vmatprep.subr.bf16.mxu0 0
  %1450 = vmatpush1.bf16.msra.mxu0 0
  %1451 = vmatprep.subr.bf16.mxu0 0
  %1452 = vmatpush1.bf16.msra.mxu0 0
  %1453 = vmatprep.subr.bf16.mxu0 0
  %1454 = vmatpush1.bf16.msra.mxu0 0
  %1455 = vmatprep.subr.bf16.mxu0 0
  %1456 = vmatpush1.bf16.msra.mxu0 0
  %1457 = vmatprep.subr.bf16.mxu0 0
  %1458 = vmatpush1.bf16.msra.mxu0 0
  %1459 = vmatprep.subr.bf16.mxu0 0
  %1460 = vmatpush1.bf16.msra.mxu0 0
  %1461 = vmatprep.subr.bf16.mxu0 0
  %1462 = vmatpush1.bf16.msra.mxu0 0
  %1463 = vmatprep.subr.bf16.mxu0 0
  %1464 = vmatpush1.bf16.msra.mxu0 0
  %1465 = vmatprep.subr.bf16.mxu0 0
  %1466 = vmatpush1.bf16.msra.mxu0 0
  %1467 = vmatprep.subr.bf16.mxu0 0
  %1468 = vmatpush1.bf16.msra.mxu0 0
  %1469 = vmatprep.subr.bf16.mxu0 0
  %1470 = vmatpush1.bf16.msra.mxu0 0
  %1471 = vmatprep.subr.bf16.mxu0 0
  %1472 = vmatpush1.bf16.msra.mxu0 0
  %1473 = vmatprep.subr.bf16.mxu0 0
  %1474 = vmatpush1.bf16.msra.mxu0 0
  %1475 = vmatprep.subr.bf16.mxu0 0
  %1476 = vmatpush1.bf16.msra.mxu0 0
  %1477 = vmatprep.mubr.bf16.mxu0 0
  %1478 = vmatmul.mubr.bf16.gmra.mrb[0].mxu0 %v1443
  %v1479 = vpop.f32.mrb[0].mxu0
  %v1480 = vadd.f32 0.0, %v1479
  %v1481 = vpop.f32.mrb[0].mxu0
  %v1482 = vpop.f32.mrb[0].mxu0
  %v1483 = vadd.f32 0.0, %v1482
  %v1484 = vpop.f32.mrb[0].mxu0
  %1485 = vdwg.mxu0
  %1486 = vrot.lane.b32.xlu0 %v509, 80
  %v1487 = vpop.permute.xlu0 %1486
  %v1490 = vsel %vm510, %v1438, 0
  %1492 = vmatprep.subr.bf16.mxu0 0
  %1493 = vmatpush1.bf16.msra.mxu0 %v1487
  %1494 = vmatprep.subr.bf16.mxu0 0
  %1495 = vmatpush1.bf16.msra.mxu0 0
  %1496 = vmatprep.subr.bf16.mxu0 0
  %1497 = vmatpush1.bf16.msra.mxu0 0
  %1498 = vmatprep.subr.bf16.mxu0 0
  %1499 = vmatpush1.bf16.msra.mxu0 0
  %1500 = vmatprep.subr.bf16.mxu0 0
  %1501 = vmatpush1.bf16.msra.mxu0 0
  %1502 = vmatprep.subr.bf16.mxu0 0
  %1503 = vmatpush1.bf16.msra.mxu0 0
  %1504 = vmatprep.subr.bf16.mxu0 0
  %1505 = vmatpush1.bf16.msra.mxu0 0
  %1506 = vmatprep.subr.bf16.mxu0 0
  %1507 = vmatpush1.bf16.msra.mxu0 0
  %1508 = vmatprep.subr.bf16.mxu0 0
  %1509 = vmatpush1.bf16.msra.mxu0 0
  %1510 = vmatprep.subr.bf16.mxu0 0
  %1511 = vmatpush1.bf16.msra.mxu0 0
  %1512 = vmatprep.subr.bf16.mxu0 0
  %1513 = vmatpush1.bf16.msra.mxu0 0
  %1514 = vmatprep.subr.bf16.mxu0 0
  %1515 = vmatpush1.bf16.msra.mxu0 0
  %1516 = vmatprep.subr.bf16.mxu0 0
  %1517 = vmatpush1.bf16.msra.mxu0 0
  %1518 = vmatprep.subr.bf16.mxu0 0
  %1519 = vmatpush1.bf16.msra.mxu0 0
  %1520 = vmatprep.subr.bf16.mxu0 0
  %1521 = vmatpush1.bf16.msra.mxu0 0
  %1522 = vmatprep.subr.bf16.mxu0 0
  %1523 = vmatpush1.bf16.msra.mxu0 0
  %1524 = vmatprep.mubr.bf16.mxu0 0
  %1525 = vmatmul.mubr.bf16.gmra.mrb[0].mxu0 %v1490
  %v1526 = vpop.f32.mrb[0].mxu0
  %v1527 = vadd.f32 0.0, %v1526
  %v1528 = vpop.f32.mrb[0].mxu0
  %v1529 = vpop.f32.mrb[0].mxu0
  %v1530 = vadd.f32 0.0, %v1529
  %v1531 = vpop.f32.mrb[0].mxu0
  %1532 = vdwg.mxu0
  %1537 = vrot.lane.b32.xlu0 %v1480, 48
  %v1538 = vpop.permute.xlu0 %1537
  %1539 = vrot.lane.b32.xlu0 %v1483, 48
  %v1540 = vpop.permute.xlu0 %1539
  %1541 = vrot.lane.b32.xlu0 %v1527, 48
  %v1542 = vpop.permute.xlu0 %1541
  %1543 = vrot.lane.b32.xlu0 %v1530, 48
  %v1544 = vpop.permute.xlu0 %1543
  %vm1549 = vcmask 523648
  %1550 = vst.msk [vmem:[#allocation2] sm:$0xff] %vm1549, %v1538
  %1551 = vst.msk [vmem:[#allocation2 + $0x8] sm:$0xff] %vm1549, %v1540
  %1552 = vst.msk [vmem:[#allocation2 + $0x10] sm:$0xff] %vm1549, %v1542
  %1553 = vst.msk [vmem:[#allocation2 + $0x18] sm:$0xff] %vm1549, %v1544
  %1554 = vrot.lane.b32.xlu0 %v504, 64
  %v1555 = vpop.permute.xlu0 %1554
  %1556 = vrot.lane.b32.xlu0 %v506, 64
  %v1557 = vpop.permute.xlu0 %1556
  %v1559 = vsel %vm510, %v1555, 0
  %v1562 = vsel %vm510, %v1557, 0
  %1564 = vmatprep.subr.bf16.mxu0 0
  %1565 = vmatpush1.bf16.xpose.msra.mxu0 %v1562
  %1566 = vmatprep.subr.bf16.mxu0 0
  %1567 = vmatpush1.bf16.xpose.msra.mxu0 0
  %1568 = vmatprep.subr.bf16.mxu0 0
  %1569 = vmatpush1.bf16.xpose.msra.mxu0 0
  %1570 = vmatprep.subr.bf16.mxu0 0
  %1571 = vmatpush1.bf16.xpose.msra.mxu0 0
  %1572 = vmatprep.subr.bf16.mxu0 0
  %1573 = vmatpush1.bf16.xpose.msra.mxu0 0
  %1574 = vmatprep.subr.bf16.mxu0 0
  %1575 = vmatpush1.bf16.xpose.msra.mxu0 0
  %1576 = vmatprep.subr.bf16.mxu0 0
  %1577 = vmatpush1.bf16.xpose.msra.mxu0 0
  %1578 = vmatprep.subr.bf16.mxu0 0
  %1579 = vmatpush1.bf16.xpose.msra.mxu0 0
  %1580 = vmatprep.subr.bf16.mxu0 0
  %1581 = vmatpush1.bf16.xpose.msra.mxu0 0
  %1582 = vmatprep.subr.bf16.mxu0 0
  %1583 = vmatpush1.bf16.xpose.msra.mxu0 0
  %1584 = vmatprep.subr.bf16.mxu0 0
  %1585 = vmatpush1.bf16.xpose.msra.mxu0 0
  %1586 = vmatprep.subr.bf16.mxu0 0
  %1587 = vmatpush1.bf16.xpose.msra.mxu0 0
  %1588 = vmatprep.subr.bf16.mxu0 0
  %1589 = vmatpush1.bf16.xpose.msra.mxu0 0
  %1590 = vmatprep.subr.bf16.mxu0 0
  %1591 = vmatpush1.bf16.xpose.msra.mxu0 0
  %1592 = vmatprep.subr.bf16.mxu0 0
  %1593 = vmatpush1.bf16.xpose.msra.mxu0 0
  %1594 = vmatprep.subr.bf16.mxu0 0
  %1595 = vmatpush1.bf16.xpose.msra.mxu0 0
  %1596 = vmatprep.mubr.bf16.mxu0 0
  %1597 = vmatmul.mubr.bf16.gmra.mrb[0].mxu0 %v1559
  %v1598 = vpop.f32.mrb[0].mxu0
  %v1599 = vadd.f32 0.0, %v1598
  %v1600 = vpop.f32.mrb[0].mxu0
  %v1601 = vpop.f32.mrb[0].mxu0
  %v1602 = vadd.f32 0.0, %v1601
  %v1603 = vpop.f32.mrb[0].mxu0
  %1604 = vdwg.mxu0
  %1605 = vrot.lane.b32.xlu0 %v505, 64
  %v1606 = vpop.permute.xlu0 %1605
  %1607 = vrot.lane.b32.xlu0 %v507, 64
  %v1608 = vpop.permute.xlu0 %1607
  %v1610 = vsel %vm510, %v1606, 0
  %v1613 = vsel %vm510, %v1608, 0
  %1615 = vmatprep.subr.bf16.mxu0 0
  %1616 = vmatpush1.bf16.xpose.msra.mxu0 %v1613
  %1617 = vmatprep.subr.bf16.mxu0 0
  %1618 = vmatpush1.bf16.xpose.msra.mxu0 0
  %1619 = vmatprep.subr.bf16.mxu0 0
  %1620 = vmatpush1.bf16.xpose.msra.mxu0 0
  %1621 = vmatprep.subr.bf16.mxu0 0
  %1622 = vmatpush1.bf16.xpose.msra.mxu0 0
  %1623 = vmatprep.subr.bf16.mxu0 0
  %1624 = vmatpush1.bf16.xpose.msra.mxu0 0
  %1625 = vmatprep.subr.bf16.mxu0 0
  %1626 = vmatpush1.bf16.xpose.msra.mxu0 0
  %1627 = vmatprep.subr.bf16.mxu0 0
  %1628 = vmatpush1.bf16.xpose.msra.mxu0 0
  %1629 = vmatprep.subr.bf16.mxu0 0
  %1630 = vmatpush1.bf16.xpose.msra.mxu0 0
  %1631 = vmatprep.subr.bf16.mxu0 0
  %1632 = vmatpush1.bf16.xpose.msra.mxu0 0
  %1633 = vmatprep.subr.bf16.mxu0 0
  %1634 = vmatpush1.bf16.xpose.msra.mxu0 0
  %1635 = vmatprep.subr.bf16.mxu0 0
  %1636 = vmatpush1.bf16.xpose.msra.mxu0 0
  %1637 = vmatprep.subr.bf16.mxu0 0
  %1638 = vmatpush1.bf16.xpose.msra.mxu0 0
  %1639 = vmatprep.subr.bf16.mxu0 0
  %1640 = vmatpush1.bf16.xpose.msra.mxu0 0
  %1641 = vmatprep.subr.bf16.mxu0 0
  %1642 = vmatpush1.bf16.xpose.msra.mxu0 0
  %1643 = vmatprep.subr.bf16.mxu0 0
  %1644 = vmatpush1.bf16.xpose.msra.mxu0 0
  %1645 = vmatprep.subr.bf16.mxu0 0
  %1646 = vmatpush1.bf16.xpose.msra.mxu0 0
  %1647 = vmatprep.mubr.bf16.mxu0 0
  %1648 = vmatmul.mubr.bf16.gmra.mrb[0].mxu0 %v1610
  %v1649 = vpop.f32.mrb[0].mxu0
  %v1650 = vadd.f32 0.0, %v1649
  %v1651 = vpop.f32.mrb[0].mxu0
  %v1652 = vpop.f32.mrb[0].mxu0
  %v1653 = vadd.f32 0.0, %v1652
  %v1654 = vpop.f32.mrb[0].mxu0
  %1655 = vdwg.mxu0
  %v1656 = vmul.f32 %v1599, 0.25
  %v1657 = vmul.f32 %v1602, 0.25
  %v1658 = vmul.f32 %v1650, 0.25
  %v1659 = vmul.f32 %v1653, 0.25
  %v1660 = vsel %vm510, %v1656, -inf
  %1661 = vmax.xlane.f32.xlu0 %v1660
  %v1662 = vpop.xlane.xlu0 %1661
  %v1663 = vsel %vm510, %v1657, -inf
  %1664 = vmax.xlane.f32.xlu0 %v1663
  %v1665 = vpop.xlane.xlu0 %1664
  %v1666 = vsel %vm510, %v1658, -inf
  %1667 = vmax.xlane.f32.xlu0 %v1666
  %v1668 = vpop.xlane.xlu0 %1667
  %v1669 = vsel %vm510, %v1659, -inf
  %1670 = vmax.xlane.f32.xlu0 %v1669
  %v1671 = vpop.xlane.xlu0 %1670
  %v1672 = vsub.f32 %v1656, %v1662
  %v1673 = vsub.f32 %v1657, %v1665
  %v1674 = vsub.f32 %v1658, %v1668
  %v1675 = vsub.f32 %v1659, %v1671
  %v1676 = vmul.f32 %v1672, 1.442695
  %v1677 = vpow.pop %v1676
  %v1678 = vmul.f32 %v1673, 1.442695
  %v1679 = vpow.pop %v1678
  %v1680 = vmul.f32 %v1674, 1.442695
  %v1681 = vpow.pop %v1680
  %v1682 = vmul.f32 %v1675, 1.442695
  %v1683 = vpow.pop %v1682
  %v1684 = vsel %vm510, %v1677, 0.0
  %1685 = vadd.xlane.f32.xlu0 %v1684
  %v1686 = vpop.xlane.xlu0 %1685
  %v1687 = vsel %vm510, %v1679, 0.0
  %1688 = vadd.xlane.f32.xlu0 %v1687
  %v1689 = vpop.xlane.xlu0 %1688
  %v1690 = vsel %vm510, %v1681, 0.0
  %1691 = vadd.xlane.f32.xlu0 %v1690
  %v1692 = vpop.xlane.xlu0 %1691
  %v1693 = vsel %vm510, %v1683, 0.0
  %1694 = vadd.xlane.f32.xlu0 %v1693
  %v1695 = vpop.xlane.xlu0 %1694
  %v1696 = vrcp.pop %v1686
  %v1697 = vrcp.pop %v1689
  %v1698 = vrcp.pop %v1692
  %v1699 = vrcp.pop %v1695
  %v1700 = vmul.f32 %v1677, %v1696
  %v1701 = vmul.f32 %v1679, %v1697
  %v1702 = vmul.f32 %v1681, %v1698
  %v1703 = vmul.f32 %v1683, %v1699
  %v1704 = vpack.c.bf16 %v1701, %v1700
  %v1705 = vpack.c.bf16 %v1703, %v1702
  %1706 = vrot.lane.b32.xlu0 %v508, 64
  %v1707 = vpop.permute.xlu0 %1706
  %v1710 = vsel %vm510, %v1704, 0
  %1712 = vmatprep.subr.bf16.mxu0 0
  %1713 = vmatpush1.bf16.msra.mxu0 %v1707
  %1714 = vmatprep.subr.bf16.mxu0 0
  %1715 = vmatpush1.bf16.msra.mxu0 0
  %1716 = vmatprep.subr.bf16.mxu0 0
  %1717 = vmatpush1.bf16.msra.mxu0 0
  %1718 = vmatprep.subr.bf16.mxu0 0
  %1719 = vmatpush1.bf16.msra.mxu0 0
  %1720 = vmatprep.subr.bf16.mxu0 0
  %1721 = vmatpush1.bf16.msra.mxu0 0
  %1722 = vmatprep.subr.bf16.mxu0 0
  %1723 = vmatpush1.bf16.msra.mxu0 0
  %1724 = vmatprep.subr.bf16.mxu0 0
  %1725 = vmatpush1.bf16.msra.mxu0 0
  %1726 = vmatprep.subr.bf16.mxu0 0
  %1727 = vmatpush1.bf16.msra.mxu0 0
  %1728 = vmatprep.subr.bf16.mxu0 0
  %1729 = vmatpush1.bf16.msra.mxu0 0
  %1730 = vmatprep.subr.bf16.mxu0 0
  %1731 = vmatpush1.bf16.msra.mxu0 0
  %1732 = vmatprep.subr.bf16.mxu0 0
  %1733 = vmatpush1.bf16.msra.mxu0 0
  %1734 = vmatprep.subr.bf16.mxu0 0
  %1735 = vmatpush1.bf16.msra.mxu0 0
  %1736 = vmatprep.subr.bf16.mxu0 0
  %1737 = vmatpush1.bf16.msra.mxu0 0
  %1738 = vmatprep.subr.bf16.mxu0 0
  %1739 = vmatpush1.bf16.msra.mxu0 0
  %1740 = vmatprep.subr.bf16.mxu0 0
  %1741 = vmatpush1.bf16.msra.mxu0 0
  %1742 = vmatprep.subr.bf16.mxu0 0
  %1743 = vmatpush1.bf16.msra.mxu0 0
  %1744 = vmatprep.mubr.bf16.mxu0 0
  %1745 = vmatmul.mubr.bf16.gmra.mrb[0].mxu0 %v1710
  %v1746 = vpop.f32.mrb[0].mxu0
  %v1747 = vadd.f32 0.0, %v1746
  %v1748 = vpop.f32.mrb[0].mxu0
  %v1749 = vpop.f32.mrb[0].mxu0
  %v1750 = vadd.f32 0.0, %v1749
  %v1751 = vpop.f32.mrb[0].mxu0
  %1752 = vdwg.mxu0
  %1753 = vrot.lane.b32.xlu0 %v509, 64
  %v1754 = vpop.permute.xlu0 %1753
  %v1757 = vsel %vm510, %v1705, 0
  %1759 = vmatprep.subr.bf16.mxu0 0
  %1760 = vmatpush1.bf16.msra.mxu0 %v1754
  %1761 = vmatprep.subr.bf16.mxu0 0
  %1762 = vmatpush1.bf16.msra.mxu0 0
  %1763 = vmatprep.subr.bf16.mxu0 0
  %1764 = vmatpush1.bf16.msra.mxu0 0
  %1765 = vmatprep.subr.bf16.mxu0 0
  %1766 = vmatpush1.bf16.msra.mxu0 0
  %1767 = vmatprep.subr.bf16.mxu0 0
  %1768 = vmatpush1.bf16.msra.mxu0 0
  %1769 = vmatprep.subr.bf16.mxu0 0
  %1770 = vmatpush1.bf16.msra.mxu0 0
  %1771 = vmatprep.subr.bf16.mxu0 0
  %1772 = vmatpush1.bf16.msra.mxu0 0
  %1773 = vmatprep.subr.bf16.mxu0 0
  %1774 = vmatpush1.bf16.msra.mxu0 0
  %1775 = vmatprep.subr.bf16.mxu0 0
  %1776 = vmatpush1.bf16.msra.mxu0 0
  %1777 = vmatprep.subr.bf16.mxu0 0
  %1778 = vmatpush1.bf16.msra.mxu0 0
  %1779 = vmatprep.subr.bf16.mxu0 0
  %1780 = vmatpush1.bf16.msra.mxu0 0
  %1781 = vmatprep.subr.bf16.mxu0 0
  %1782 = vmatpush1.bf16.msra.mxu0 0
  %1783 = vmatprep.subr.bf16.mxu0 0
  %1784 = vmatpush1.bf16.msra.mxu0 0
  %1785 = vmatprep.subr.bf16.mxu0 0
  %1786 = vmatpush1.bf16.msra.mxu0 0
  %1787 = vmatprep.subr.bf16.mxu0 0
  %1788 = vmatpush1.bf16.msra.mxu0 0
  %1789 = vmatprep.subr.bf16.mxu0 0
  %1790 = vmatpush1.bf16.msra.mxu0 0
  %1791 = vmatprep.mubr.bf16.mxu0 0
  %1792 = vmatmul.mubr.bf16.gmra.mrb[0].mxu0 %v1757
  %v1793 = vpop.f32.mrb[0].mxu0
  %v1794 = vadd.f32 0.0, %v1793
  %v1795 = vpop.f32.mrb[0].mxu0
  %v1796 = vpop.f32.mrb[0].mxu0
  %v1797 = vadd.f32 0.0, %v1796
  %v1798 = vpop.f32.mrb[0].mxu0
  %1799 = vdwg.mxu0
  %1804 = vrot.lane.b32.xlu0 %v1747, 64
  %v1805 = vpop.permute.xlu0 %1804
  %1806 = vrot.lane.b32.xlu0 %v1750, 64
  %v1807 = vpop.permute.xlu0 %1806
  %1808 = vrot.lane.b32.xlu0 %v1794, 64
  %v1809 = vpop.permute.xlu0 %1808
  %1810 = vrot.lane.b32.xlu0 %v1797, 64
  %v1811 = vpop.permute.xlu0 %1810
  %vm1816 = vcmask 654848
  %1817 = vst.msk [vmem:[#allocation2] sm:$0xff] %vm1816, %v1805
  %1818 = vst.msk [vmem:[#allocation2 + $0x8] sm:$0xff] %vm1816, %v1807
  %1819 = vst.msk [vmem:[#allocation2 + $0x10] sm:$0xff] %vm1816, %v1809
  %1820 = vst.msk [vmem:[#allocation2 + $0x18] sm:$0xff] %vm1816, %v1811
  %1821 = vrot.lane.b32.xlu0 %v504, 48
  %v1822 = vpop.permute.xlu0 %1821
  %1823 = vrot.lane.b32.xlu0 %v506, 48
  %v1824 = vpop.permute.xlu0 %1823
  %v1826 = vsel %vm510, %v1822, 0
  %v1829 = vsel %vm510, %v1824, 0
  %1831 = vmatprep.subr.bf16.mxu0 0
  %1832 = vmatpush1.bf16.xpose.msra.mxu0 %v1829
  %1833 = vmatprep.subr.bf16.mxu0 0
  %1834 = vmatpush1.bf16.xpose.msra.mxu0 0
  %1835 = vmatprep.subr.bf16.mxu0 0
  %1836 = vmatpush1.bf16.xpose.msra.mxu0 0
  %1837 = vmatprep.subr.bf16.mxu0 0
  %1838 = vmatpush1.bf16.xpose.msra.mxu0 0
  %1839 = vmatprep.subr.bf16.mxu0 0
  %1840 = vmatpush1.bf16.xpose.msra.mxu0 0
  %1841 = vmatprep.subr.bf16.mxu0 0
  %1842 = vmatpush1.bf16.xpose.msra.mxu0 0
  %1843 = vmatprep.subr.bf16.mxu0 0
  %1844 = vmatpush1.bf16.xpose.msra.mxu0 0
  %1845 = vmatprep.subr.bf16.mxu0 0
  %1846 = vmatpush1.bf16.xpose.msra.mxu0 0
  %1847 = vmatprep.subr.bf16.mxu0 0
  %1848 = vmatpush1.bf16.xpose.msra.mxu0 0
  %1849 = vmatprep.subr.bf16.mxu0 0
  %1850 = vmatpush1.bf16.xpose.msra.mxu0 0
  %1851 = vmatprep.subr.bf16.mxu0 0
  %1852 = vmatpush1.bf16.xpose.msra.mxu0 0
  %1853 = vmatprep.subr.bf16.mxu0 0
  %1854 = vmatpush1.bf16.xpose.msra.mxu0 0
  %1855 = vmatprep.subr.bf16.mxu0 0
  %1856 = vmatpush1.bf16.xpose.msra.mxu0 0
  %1857 = vmatprep.subr.bf16.mxu0 0
  %1858 = vmatpush1.bf16.xpose.msra.mxu0 0
  %1859 = vmatprep.subr.bf16.mxu0 0
  %1860 = vmatpush1.bf16.xpose.msra.mxu0 0
  %1861 = vmatprep.subr.bf16.mxu0 0
  %1862 = vmatpush1.bf16.xpose.msra.mxu0 0
  %1863 = vmatprep.mubr.bf16.mxu0 0
  %1864 = vmatmul.mubr.bf16.gmra.mrb[0].mxu0 %v1826
  %v1865 = vpop.f32.mrb[0].mxu0
  %v1866 = vadd.f32 0.0, %v1865
  %v1867 = vpop.f32.mrb[0].mxu0
  %v1868 = vpop.f32.mrb[0].mxu0
  %v1869 = vadd.f32 0.0, %v1868
  %v1870 = vpop.f32.mrb[0].mxu0
  %1871 = vdwg.mxu0
  %1872 = vrot.lane.b32.xlu0 %v505, 48
  %v1873 = vpop.permute.xlu0 %1872
  %1874 = vrot.lane.b32.xlu0 %v507, 48
  %v1875 = vpop.permute.xlu0 %1874
  %v1877 = vsel %vm510, %v1873, 0
  %v1880 = vsel %vm510, %v1875, 0
  %1882 = vmatprep.subr.bf16.mxu0 0
  %1883 = vmatpush1.bf16.xpose.msra.mxu0 %v1880
  %1884 = vmatprep.subr.bf16.mxu0 0
  %1885 = vmatpush1.bf16.xpose.msra.mxu0 0
  %1886 = vmatprep.subr.bf16.mxu0 0
  %1887 = vmatpush1.bf16.xpose.msra.mxu0 0
  %1888 = vmatprep.subr.bf16.mxu0 0
  %1889 = vmatpush1.bf16.xpose.msra.mxu0 0
  %1890 = vmatprep.subr.bf16.mxu0 0
  %1891 = vmatpush1.bf16.xpose.msra.mxu0 0
  %1892 = vmatprep.subr.bf16.mxu0 0
  %1893 = vmatpush1.bf16.xpose.msra.mxu0 0
  %1894 = vmatprep.subr.bf16.mxu0 0
  %1895 = vmatpush1.bf16.xpose.msra.mxu0 0
  %1896 = vmatprep.subr.bf16.mxu0 0
  %1897 = vmatpush1.bf16.xpose.msra.mxu0 0
  %1898 = vmatprep.subr.bf16.mxu0 0
  %1899 = vmatpush1.bf16.xpose.msra.mxu0 0
  %1900 = vmatprep.subr.bf16.mxu0 0
  %1901 = vmatpush1.bf16.xpose.msra.mxu0 0
  %1902 = vmatprep.subr.bf16.mxu0 0
  %1903 = vmatpush1.bf16.xpose.msra.mxu0 0
  %1904 = vmatprep.subr.bf16.mxu0 0
  %1905 = vmatpush1.bf16.xpose.msra.mxu0 0
  %1906 = vmatprep.subr.bf16.mxu0 0
  %1907 = vmatpush1.bf16.xpose.msra.mxu0 0
  %1908 = vmatprep.subr.bf16.mxu0 0
  %1909 = vmatpush1.bf16.xpose.msra.mxu0 0
  %1910 = vmatprep.subr.bf16.mxu0 0
  %1911 = vmatpush1.bf16.xpose.msra.mxu0 0
  %1912 = vmatprep.subr.bf16.mxu0 0
  %1913 = vmatpush1.bf16.xpose.msra.mxu0 0
  %1914 = vmatprep.mubr.bf16.mxu0 0
  %1915 = vmatmul.mubr.bf16.gmra.mrb[0].mxu0 %v1877
  %v1916 = vpop.f32.mrb[0].mxu0
  %v1917 = vadd.f32 0.0, %v1916
  %v1918 = vpop.f32.mrb[0].mxu0
  %v1919 = vpop.f32.mrb[0].mxu0
  %v1920 = vadd.f32 0.0, %v1919
  %v1921 = vpop.f32.mrb[0].mxu0
  %1922 = vdwg.mxu0
  %v1923 = vmul.f32 %v1866, 0.25
  %v1924 = vmul.f32 %v1869, 0.25
  %v1925 = vmul.f32 %v1917, 0.25
  %v1926 = vmul.f32 %v1920, 0.25
  %v1927 = vsel %vm510, %v1923, -inf
  %1928 = vmax.xlane.f32.xlu0 %v1927
  %v1929 = vpop.xlane.xlu0 %1928
  %v1930 = vsel %vm510, %v1924, -inf
  %1931 = vmax.xlane.f32.xlu0 %v1930
  %v1932 = vpop.xlane.xlu0 %1931
  %v1933 = vsel %vm510, %v1925, -inf
  %1934 = vmax.xlane.f32.xlu0 %v1933
  %v1935 = vpop.xlane.xlu0 %1934
  %v1936 = vsel %vm510, %v1926, -inf
  %1937 = vmax.xlane.f32.xlu0 %v1936
  %v1938 = vpop.xlane.xlu0 %1937
  %v1939 = vsub.f32 %v1923, %v1929
  %v1940 = vsub.f32 %v1924, %v1932
  %v1941 = vsub.f32 %v1925, %v1935
  %v1942 = vsub.f32 %v1926, %v1938
  %v1943 = vmul.f32 %v1939, 1.442695
  %v1944 = vpow.pop %v1943
  %v1945 = vmul.f32 %v1940, 1.442695
  %v1946 = vpow.pop %v1945
  %v1947 = vmul.f32 %v1941, 1.442695
  %v1948 = vpow.pop %v1947
  %v1949 = vmul.f32 %v1942, 1.442695
  %v1950 = vpow.pop %v1949
  %v1951 = vsel %vm510, %v1944, 0.0
  %1952 = vadd.xlane.f32.xlu0 %v1951
  %v1953 = vpop.xlane.xlu0 %1952
  %v1954 = vsel %vm510, %v1946, 0.0
  %1955 = vadd.xlane.f32.xlu0 %v1954
  %v1956 = vpop.xlane.xlu0 %1955
  %v1957 = vsel %vm510, %v1948, 0.0
  %1958 = vadd.xlane.f32.xlu0 %v1957
  %v1959 = vpop.xlane.xlu0 %1958
  %v1960 = vsel %vm510, %v1950, 0.0
  %1961 = vadd.xlane.f32.xlu0 %v1960
  %v1962 = vpop.xlane.xlu0 %1961
  %v1963 = vrcp.pop %v1953
  %v1964 = vrcp.pop %v1956
  %v1965 = vrcp.pop %v1959
  %v1966 = vrcp.pop %v1962
  %v1967 = vmul.f32 %v1944, %v1963
  %v1968 = vmul.f32 %v1946, %v1964
  %v1969 = vmul.f32 %v1948, %v1965
  %v1970 = vmul.f32 %v1950, %v1966
  %v1971 = vpack.c.bf16 %v1968, %v1967
  %v1972 = vpack.c.bf16 %v1970, %v1969
  %1973 = vrot.lane.b32.xlu0 %v508, 48
  %v1974 = vpop.permute.xlu0 %1973
  %v1977 = vsel %vm510, %v1971, 0
  %1979 = vmatprep.subr.bf16.mxu0 0
  %1980 = vmatpush1.bf16.msra.mxu0 %v1974
  %1981 = vmatprep.subr.bf16.mxu0 0
  %1982 = vmatpush1.bf16.msra.mxu0 0
  %1983 = vmatprep.subr.bf16.mxu0 0
  %1984 = vmatpush1.bf16.msra.mxu0 0
  %1985 = vmatprep.subr.bf16.mxu0 0
  %1986 = vmatpush1.bf16.msra.mxu0 0
  %1987 = vmatprep.subr.bf16.mxu0 0
  %1988 = vmatpush1.bf16.msra.mxu0 0
  %1989 = vmatprep.subr.bf16.mxu0 0
  %1990 = vmatpush1.bf16.msra.mxu0 0
  %1991 = vmatprep.subr.bf16.mxu0 0
  %1992 = vmatpush1.bf16.msra.mxu0 0
  %1993 = vmatprep.subr.bf16.mxu0 0
  %1994 = vmatpush1.bf16.msra.mxu0 0
  %1995 = vmatprep.subr.bf16.mxu0 0
  %1996 = vmatpush1.bf16.msra.mxu0 0
  %1997 = vmatprep.subr.bf16.mxu0 0
  %1998 = vmatpush1.bf16.msra.mxu0 0
  %1999 = vmatprep.subr.bf16.mxu0 0
  %2000 = vmatpush1.bf16.msra.mxu0 0
  %2001 = vmatprep.subr.bf16.mxu0 0
  %2002 = vmatpush1.bf16.msra.mxu0 0
  %2003 = vmatprep.subr.bf16.mxu0 0
  %2004 = vmatpush1.bf16.msra.mxu0 0
  %2005 = vmatprep.subr.bf16.mxu0 0
  %2006 = vmatpush1.bf16.msra.mxu0 0
  %2007 = vmatprep.subr.bf16.mxu0 0
  %2008 = vmatpush1.bf16.msra.mxu0 0
  %2009 = vmatprep.subr.bf16.mxu0 0
  %2010 = vmatpush1.bf16.msra.mxu0 0
  %2011 = vmatprep.mubr.bf16.mxu0 0
  %2012 = vmatmul.mubr.bf16.gmra.mrb[0].mxu0 %v1977
  %v2013 = vpop.f32.mrb[0].mxu0
  %v2014 = vadd.f32 0.0, %v2013
  %v2015 = vpop.f32.mrb[0].mxu0
  %v2016 = vpop.f32.mrb[0].mxu0
  %v2017 = vadd.f32 0.0, %v2016
  %v2018 = vpop.f32.mrb[0].mxu0
  %2019 = vdwg.mxu0
  %2020 = vrot.lane.b32.xlu0 %v509, 48
  %v2021 = vpop.permute.xlu0 %2020
  %v2024 = vsel %vm510, %v1972, 0
  %2026 = vmatprep.subr.bf16.mxu0 0
  %2027 = vmatpush1.bf16.msra.mxu0 %v2021
  %2028 = vmatprep.subr.bf16.mxu0 0
  %2029 = vmatpush1.bf16.msra.mxu0 0
  %2030 = vmatprep.subr.bf16.mxu0 0
  %2031 = vmatpush1.bf16.msra.mxu0 0
  %2032 = vmatprep.subr.bf16.mxu0 0
  %2033 = vmatpush1.bf16.msra.mxu0 0
  %2034 = vmatprep.subr.bf16.mxu0 0
  %2035 = vmatpush1.bf16.msra.mxu0 0
  %2036 = vmatprep.subr.bf16.mxu0 0
  %2037 = vmatpush1.bf16.msra.mxu0 0
  %2038 = vmatprep.subr.bf16.mxu0 0
  %2039 = vmatpush1.bf16.msra.mxu0 0
  %2040 = vmatprep.subr.bf16.mxu0 0
  %2041 = vmatpush1.bf16.msra.mxu0 0
  %2042 = vmatprep.subr.bf16.mxu0 0
  %2043 = vmatpush1.bf16.msra.mxu0 0
  %2044 = vmatprep.subr.bf16.mxu0 0
  %2045 = vmatpush1.bf16.msra.mxu0 0
  %2046 = vmatprep.subr.bf16.mxu0 0
  %2047 = vmatpush1.bf16.msra.mxu0 0
  %2048 = vmatprep.subr.bf16.mxu0 0
  %2049 = vmatpush1.bf16.msra.mxu0 0
  %2050 = vmatprep.subr.bf16.mxu0 0
  %2051 = vmatpush1.bf16.msra.mxu0 0
  %2052 = vmatprep.subr.bf16.mxu0 0
  %2053 = vmatpush1.bf16.msra.mxu0 0
  %2054 = vmatprep.subr.bf16.mxu0 0
  %2055 = vmatpush1.bf16.msra.mxu0 0
  %2056 = vmatprep.subr.bf16.mxu0 0
  %2057 = vmatpush1.bf16.msra.mxu0 0
  %2058 = vmatprep.mubr.bf16.mxu0 0
  %2059 = vmatmul.mubr.bf16.gmra.mrb[0].mxu0 %v2024
  %v2060 = vpop.f32.mrb[0].mxu0
  %v2061 = vadd.f32 0.0, %v2060
  %v2062 = vpop.f32.mrb[0].mxu0
  %v2063 = vpop.f32.mrb[0].mxu0
  %v2064 = vadd.f32 0.0, %v2063
  %v2065 = vpop.f32.mrb[0].mxu0
  %2066 = vdwg.mxu0
  %2071 = vrot.lane.b32.xlu0 %v2014, 80
  %v2072 = vpop.permute.xlu0 %2071
  %2073 = vrot.lane.b32.xlu0 %v2017, 80
  %v2074 = vpop.permute.xlu0 %2073
  %2075 = vrot.lane.b32.xlu0 %v2061, 80
  %v2076 = vpop.permute.xlu0 %2075
  %2077 = vrot.lane.b32.xlu0 %v2064, 80
  %v2078 = vpop.permute.xlu0 %2077
  %vm2083 = vcmask 786048
  %2084 = vst.msk [vmem:[#allocation2] sm:$0xff] %vm2083, %v2072
  %2085 = vst.msk [vmem:[#allocation2 + $0x8] sm:$0xff] %vm2083, %v2074
  %2086 = vst.msk [vmem:[#allocation2 + $0x10] sm:$0xff] %vm2083, %v2076
  %2087 = vst.msk [vmem:[#allocation2 + $0x18] sm:$0xff] %vm2083, %v2078
  %2088 = vrot.lane.b32.xlu0 %v504, 32
  %v2089 = vpop.permute.xlu0 %2088
  %2090 = vrot.lane.b32.xlu0 %v506, 32
  %v2091 = vpop.permute.xlu0 %2090
  %v2093 = vsel %vm510, %v2089, 0
  %v2096 = vsel %vm510, %v2091, 0
  %2098 = vmatprep.subr.bf16.mxu0 0
  %2099 = vmatpush1.bf16.xpose.msra.mxu0 %v2096
  %2100 = vmatprep.subr.bf16.mxu0 0
  %2101 = vmatpush1.bf16.xpose.msra.mxu0 0
  %2102 = vmatprep.subr.bf16.mxu0 0
  %2103 = vmatpush1.bf16.xpose.msra.mxu0 0
  %2104 = vmatprep.subr.bf16.mxu0 0
  %2105 = vmatpush1.bf16.xpose.msra.mxu0 0
  %2106 = vmatprep.subr.bf16.mxu0 0
  %2107 = vmatpush1.bf16.xpose.msra.mxu0 0
  %2108 = vmatprep.subr.bf16.mxu0 0
  %2109 = vmatpush1.bf16.xpose.msra.mxu0 0
  %2110 = vmatprep.subr.bf16.mxu0 0
  %2111 = vmatpush1.bf16.xpose.msra.mxu0 0
  %2112 = vmatprep.subr.bf16.mxu0 0
  %2113 = vmatpush1.bf16.xpose.msra.mxu0 0
  %2114 = vmatprep.subr.bf16.mxu0 0
  %2115 = vmatpush1.bf16.xpose.msra.mxu0 0
  %2116 = vmatprep.subr.bf16.mxu0 0
  %2117 = vmatpush1.bf16.xpose.msra.mxu0 0
  %2118 = vmatprep.subr.bf16.mxu0 0
  %2119 = vmatpush1.bf16.xpose.msra.mxu0 0
  %2120 = vmatprep.subr.bf16.mxu0 0
  %2121 = vmatpush1.bf16.xpose.msra.mxu0 0
  %2122 = vmatprep.subr.bf16.mxu0 0
  %2123 = vmatpush1.bf16.xpose.msra.mxu0 0
  %2124 = vmatprep.subr.bf16.mxu0 0
  %2125 = vmatpush1.bf16.xpose.msra.mxu0 0
  %2126 = vmatprep.subr.bf16.mxu0 0
  %2127 = vmatpush1.bf16.xpose.msra.mxu0 0
  %2128 = vmatprep.subr.bf16.mxu0 0
  %2129 = vmatpush1.bf16.xpose.msra.mxu0 0
  %2130 = vmatprep.mubr.bf16.mxu0 0
  %2131 = vmatmul.mubr.bf16.gmra.mrb[0].mxu0 %v2093
  %v2132 = vpop.f32.mrb[0].mxu0
  %v2133 = vadd.f32 0.0, %v2132
  %v2134 = vpop.f32.mrb[0].mxu0
  %v2135 = vpop.f32.mrb[0].mxu0
  %v2136 = vadd.f32 0.0, %v2135
  %v2137 = vpop.f32.mrb[0].mxu0
  %2138 = vdwg.mxu0
  %2139 = vrot.lane.b32.xlu0 %v505, 32
  %v2140 = vpop.permute.xlu0 %2139
  %2141 = vrot.lane.b32.xlu0 %v507, 32
  %v2142 = vpop.permute.xlu0 %2141
  %v2144 = vsel %vm510, %v2140, 0
  %v2147 = vsel %vm510, %v2142, 0
  %2149 = vmatprep.subr.bf16.mxu0 0
  %2150 = vmatpush1.bf16.xpose.msra.mxu0 %v2147
  %2151 = vmatprep.subr.bf16.mxu0 0
  %2152 = vmatpush1.bf16.xpose.msra.mxu0 0
  %2153 = vmatprep.subr.bf16.mxu0 0
  %2154 = vmatpush1.bf16.xpose.msra.mxu0 0
  %2155 = vmatprep.subr.bf16.mxu0 0
  %2156 = vmatpush1.bf16.xpose.msra.mxu0 0
  %2157 = vmatprep.subr.bf16.mxu0 0
  %2158 = vmatpush1.bf16.xpose.msra.mxu0 0
  %2159 = vmatprep.subr.bf16.mxu0 0
  %2160 = vmatpush1.bf16.xpose.msra.mxu0 0
  %2161 = vmatprep.subr.bf16.mxu0 0
  %2162 = vmatpush1.bf16.xpose.msra.mxu0 0
  %2163 = vmatprep.subr.bf16.mxu0 0
  %2164 = vmatpush1.bf16.xpose.msra.mxu0 0
  %2165 = vmatprep.subr.bf16.mxu0 0
  %2166 = vmatpush1.bf16.xpose.msra.mxu0 0
  %2167 = vmatprep.subr.bf16.mxu0 0
  %2168 = vmatpush1.bf16.xpose.msra.mxu0 0
  %2169 = vmatprep.subr.bf16.mxu0 0
  %2170 = vmatpush1.bf16.xpose.msra.mxu0 0
  %2171 = vmatprep.subr.bf16.mxu0 0
  %2172 = vmatpush1.bf16.xpose.msra.mxu0 0
  %2173 = vmatprep.subr.bf16.mxu0 0
  %2174 = vmatpush1.bf16.xpose.msra.mxu0 0
  %2175 = vmatprep.subr.bf16.mxu0 0
  %2176 = vmatpush1.bf16.xpose.msra.mxu0 0
  %2177 = vmatprep.subr.bf16.mxu0 0
  %2178 = vmatpush1.bf16.xpose.msra.mxu0 0
  %2179 = vmatprep.subr.bf16.mxu0 0
  %2180 = vmatpush1.bf16.xpose.msra.mxu0 0
  %2181 = vmatprep.mubr.bf16.mxu0 0
  %2182 = vmatmul.mubr.bf16.gmra.mrb[0].mxu0 %v2144
  %v2183 = vpop.f32.mrb[0].mxu0
  %v2184 = vadd.f32 0.0, %v2183
  %v2185 = vpop.f32.mrb[0].mxu0
  %v2186 = vpop.f32.mrb[0].mxu0
  %v2187 = vadd.f32 0.0, %v2186
  %v2188 = vpop.f32.mrb[0].mxu0
  %2189 = vdwg.mxu0
  %v2190 = vmul.f32 %v2133, 0.25
  %v2191 = vmul.f32 %v2136, 0.25
  %v2192 = vmul.f32 %v2184, 0.25
  %v2193 = vmul.f32 %v2187, 0.25
  %v2194 = vsel %vm510, %v2190, -inf
  %2195 = vmax.xlane.f32.xlu0 %v2194
  %v2196 = vpop.xlane.xlu0 %2195
  %v2197 = vsel %vm510, %v2191, -inf
  %2198 = vmax.xlane.f32.xlu0 %v2197
  %v2199 = vpop.xlane.xlu0 %2198
  %v2200 = vsel %vm510, %v2192, -inf
  %2201 = vmax.xlane.f32.xlu0 %v2200
  %v2202 = vpop.xlane.xlu0 %2201
  %v2203 = vsel %vm510, %v2193, -inf
  %2204 = vmax.xlane.f32.xlu0 %v2203
  %v2205 = vpop.xlane.xlu0 %2204
  %v2206 = vsub.f32 %v2190, %v2196
  %v2207 = vsub.f32 %v2191, %v2199
  %v2208 = vsub.f32 %v2192, %v2202
  %v2209 = vsub.f32 %v2193, %v2205
  %v2210 = vmul.f32 %v2206, 1.442695
  %v2211 = vpow.pop %v2210
  %v2212 = vmul.f32 %v2207, 1.442695
  %v2213 = vpow.pop %v2212
  %v2214 = vmul.f32 %v2208, 1.442695
  %v2215 = vpow.pop %v2214
  %v2216 = vmul.f32 %v2209, 1.442695
  %v2217 = vpow.pop %v2216
  %v2218 = vsel %vm510, %v2211, 0.0
  %2219 = vadd.xlane.f32.xlu0 %v2218
  %v2220 = vpop.xlane.xlu0 %2219
  %v2221 = vsel %vm510, %v2213, 0.0
  %2222 = vadd.xlane.f32.xlu0 %v2221
  %v2223 = vpop.xlane.xlu0 %2222
  %v2224 = vsel %vm510, %v2215, 0.0
  %2225 = vadd.xlane.f32.xlu0 %v2224
  %v2226 = vpop.xlane.xlu0 %2225
  %v2227 = vsel %vm510, %v2217, 0.0
  %2228 = vadd.xlane.f32.xlu0 %v2227
  %v2229 = vpop.xlane.xlu0 %2228
  %v2230 = vrcp.pop %v2220
  %v2231 = vrcp.pop %v2223
  %v2232 = vrcp.pop %v2226
  %v2233 = vrcp.pop %v2229
  %v2234 = vmul.f32 %v2211, %v2230
  %v2235 = vmul.f32 %v2213, %v2231
  %v2236 = vmul.f32 %v2215, %v2232
  %v2237 = vmul.f32 %v2217, %v2233
  %v2238 = vpack.c.bf16 %v2235, %v2234
  %v2239 = vpack.c.bf16 %v2237, %v2236
  %2240 = vrot.lane.b32.xlu0 %v508, 32
  %v2241 = vpop.permute.xlu0 %2240
  %v2244 = vsel %vm510, %v2238, 0
  %2246 = vmatprep.subr.bf16.mxu0 0
  %2247 = vmatpush1.bf16.msra.mxu0 %v2241
  %2248 = vmatprep.subr.bf16.mxu0 0
  %2249 = vmatpush1.bf16.msra.mxu0 0
  %2250 = vmatprep.subr.bf16.mxu0 0
  %2251 = vmatpush1.bf16.msra.mxu0 0
  %2252 = vmatprep.subr.bf16.mxu0 0
  %2253 = vmatpush1.bf16.msra.mxu0 0
  %2254 = vmatprep.subr.bf16.mxu0 0
  %2255 = vmatpush1.bf16.msra.mxu0 0
  %2256 = vmatprep.subr.bf16.mxu0 0
  %2257 = vmatpush1.bf16.msra.mxu0 0
  %2258 = vmatprep.subr.bf16.mxu0 0
  %2259 = vmatpush1.bf16.msra.mxu0 0
  %2260 = vmatprep.subr.bf16.mxu0 0
  %2261 = vmatpush1.bf16.msra.mxu0 0
  %2262 = vmatprep.subr.bf16.mxu0 0
  %2263 = vmatpush1.bf16.msra.mxu0 0
  %2264 = vmatprep.subr.bf16.mxu0 0
  %2265 = vmatpush1.bf16.msra.mxu0 0
  %2266 = vmatprep.subr.bf16.mxu0 0
  %2267 = vmatpush1.bf16.msra.mxu0 0
  %2268 = vmatprep.subr.bf16.mxu0 0
  %2269 = vmatpush1.bf16.msra.mxu0 0
  %2270 = vmatprep.subr.bf16.mxu0 0
  %2271 = vmatpush1.bf16.msra.mxu0 0
  %2272 = vmatprep.subr.bf16.mxu0 0
  %2273 = vmatpush1.bf16.msra.mxu0 0
  %2274 = vmatprep.subr.bf16.mxu0 0
  %2275 = vmatpush1.bf16.msra.mxu0 0
  %2276 = vmatprep.subr.bf16.mxu0 0
  %2277 = vmatpush1.bf16.msra.mxu0 0
  %2278 = vmatprep.mubr.bf16.mxu0 0
  %2279 = vmatmul.mubr.bf16.gmra.mrb[0].mxu0 %v2244
  %v2280 = vpop.f32.mrb[0].mxu0
  %v2281 = vadd.f32 0.0, %v2280
  %v2282 = vpop.f32.mrb[0].mxu0
  %v2283 = vpop.f32.mrb[0].mxu0
  %v2284 = vadd.f32 0.0, %v2283
  %v2285 = vpop.f32.mrb[0].mxu0
  %2286 = vdwg.mxu0
  %2287 = vrot.lane.b32.xlu0 %v509, 32
  %v2288 = vpop.permute.xlu0 %2287
  %v2291 = vsel %vm510, %v2239, 0
  %2293 = vmatprep.subr.bf16.mxu0 0
  %2294 = vmatpush1.bf16.msra.mxu0 %v2288
  %2295 = vmatprep.subr.bf16.mxu0 0
  %2296 = vmatpush1.bf16.msra.mxu0 0
  %2297 = vmatprep.subr.bf16.mxu0 0
  %2298 = vmatpush1.bf16.msra.mxu0 0
  %2299 = vmatprep.subr.bf16.mxu0 0
  %2300 = vmatpush1.bf16.msra.mxu0 0
  %2301 = vmatprep.subr.bf16.mxu0 0
  %2302 = vmatpush1.bf16.msra.mxu0 0
  %2303 = vmatprep.subr.bf16.mxu0 0
  %2304 = vmatpush1.bf16.msra.mxu0 0
  %2305 = vmatprep.subr.bf16.mxu0 0
  %2306 = vmatpush1.bf16.msra.mxu0 0
  %2307 = vmatprep.subr.bf16.mxu0 0
  %2308 = vmatpush1.bf16.msra.mxu0 0
  %2309 = vmatprep.subr.bf16.mxu0 0
  %2310 = vmatpush1.bf16.msra.mxu0 0
  %2311 = vmatprep.subr.bf16.mxu0 0
  %2312 = vmatpush1.bf16.msra.mxu0 0
  %2313 = vmatprep.subr.bf16.mxu0 0
  %2314 = vmatpush1.bf16.msra.mxu0 0
  %2315 = vmatprep.subr.bf16.mxu0 0
  %2316 = vmatpush1.bf16.msra.mxu0 0
  %2317 = vmatprep.subr.bf16.mxu0 0
  %2318 = vmatpush1.bf16.msra.mxu0 0
  %2319 = vmatprep.subr.bf16.mxu0 0
  %2320 = vmatpush1.bf16.msra.mxu0 0
  %2321 = vmatprep.subr.bf16.mxu0 0
  %2322 = vmatpush1.bf16.msra.mxu0 0
  %2323 = vmatprep.subr.bf16.mxu0 0
  %2324 = vmatpush1.bf16.msra.mxu0 0
  %2325 = vmatprep.mubr.bf16.mxu0 0
  %2326 = vmatmul.mubr.bf16.gmra.mrb[0].mxu0 %v2291
  %v2327 = vpop.f32.mrb[0].mxu0
  %v2328 = vadd.f32 0.0, %v2327
  %v2329 = vpop.f32.mrb[0].mxu0
  %v2330 = vpop.f32.mrb[0].mxu0
  %v2331 = vadd.f32 0.0, %v2330
  %v2332 = vpop.f32.mrb[0].mxu0
  %2333 = vdwg.mxu0
  %2338 = vrot.lane.b32.xlu0 %v2281, 96
  %v2339 = vpop.permute.xlu0 %2338
  %2340 = vrot.lane.b32.xlu0 %v2284, 96
  %v2341 = vpop.permute.xlu0 %2340
  %2342 = vrot.lane.b32.xlu0 %v2328, 96
  %v2343 = vpop.permute.xlu0 %2342
  %2344 = vrot.lane.b32.xlu0 %v2331, 96
  %v2345 = vpop.permute.xlu0 %2344
  %vm2350 = vcmask 917248
  %2351 = vst.msk [vmem:[#allocation2] sm:$0xff] %vm2350, %v2339
  %2352 = vst.msk [vmem:[#allocation2 + $0x8] sm:$0xff] %vm2350, %v2341
  %2353 = vst.msk [vmem:[#allocation2 + $0x10] sm:$0xff] %vm2350, %v2343
  %2354 = vst.msk [vmem:[#allocation2 + $0x18] sm:$0xff] %vm2350, %v2345
  %2355 = vrot.lane.b32.xlu0 %v504, 16
  %v2356 = vpop.permute.xlu0 %2355
  %2357 = vrot.lane.b32.xlu0 %v506, 16
  %v2358 = vpop.permute.xlu0 %2357
  %v2360 = vsel %vm510, %v2356, 0
  %v2363 = vsel %vm510, %v2358, 0
  %2365 = vmatprep.subr.bf16.mxu0 0
  %2366 = vmatpush1.bf16.xpose.msra.mxu0 %v2363
  %2367 = vmatprep.subr.bf16.mxu0 0
  %2368 = vmatpush1.bf16.xpose.msra.mxu0 0
  %2369 = vmatprep.subr.bf16.mxu0 0
  %2370 = vmatpush1.bf16.xpose.msra.mxu0 0
  %2371 = vmatprep.subr.bf16.mxu0 0
  %2372 = vmatpush1.bf16.xpose.msra.mxu0 0
  %2373 = vmatprep.subr.bf16.mxu0 0
  %2374 = vmatpush1.bf16.xpose.msra.mxu0 0
  %2375 = vmatprep.subr.bf16.mxu0 0
  %2376 = vmatpush1.bf16.xpose.msra.mxu0 0
  %2377 = vmatprep.subr.bf16.mxu0 0
  %2378 = vmatpush1.bf16.xpose.msra.mxu0 0
  %2379 = vmatprep.subr.bf16.mxu0 0
  %2380 = vmatpush1.bf16.xpose.msra.mxu0 0
  %2381 = vmatprep.subr.bf16.mxu0 0
  %2382 = vmatpush1.bf16.xpose.msra.mxu0 0
  %2383 = vmatprep.subr.bf16.mxu0 0
  %2384 = vmatpush1.bf16.xpose.msra.mxu0 0
  %2385 = vmatprep.subr.bf16.mxu0 0
  %2386 = vmatpush1.bf16.xpose.msra.mxu0 0
  %2387 = vmatprep.subr.bf16.mxu0 0
  %2388 = vmatpush1.bf16.xpose.msra.mxu0 0
  %2389 = vmatprep.subr.bf16.mxu0 0
  %2390 = vmatpush1.bf16.xpose.msra.mxu0 0
  %2391 = vmatprep.subr.bf16.mxu0 0
  %2392 = vmatpush1.bf16.xpose.msra.mxu0 0
  %2393 = vmatprep.subr.bf16.mxu0 0
  %2394 = vmatpush1.bf16.xpose.msra.mxu0 0
  %2395 = vmatprep.subr.bf16.mxu0 0
  %2396 = vmatpush1.bf16.xpose.msra.mxu0 0
  %2397 = vmatprep.mubr.bf16.mxu0 0
  %2398 = vmatmul.mubr.bf16.gmra.mrb[0].mxu0 %v2360
  %v2399 = vpop.f32.mrb[0].mxu0
  %v2400 = vadd.f32 0.0, %v2399
  %v2401 = vpop.f32.mrb[0].mxu0
  %v2402 = vpop.f32.mrb[0].mxu0
  %v2403 = vadd.f32 0.0, %v2402
  %v2404 = vpop.f32.mrb[0].mxu0
  %2405 = vdwg.mxu0
  %2406 = vrot.lane.b32.xlu0 %v505, 16
  %v2407 = vpop.permute.xlu0 %2406
  %2408 = vrot.lane.b32.xlu0 %v507, 16
  %v2409 = vpop.permute.xlu0 %2408
  %v2411 = vsel %vm510, %v2407, 0
  %v2414 = vsel %vm510, %v2409, 0
  %2416 = vmatprep.subr.bf16.mxu0 0
  %2417 = vmatpush1.bf16.xpose.msra.mxu0 %v2414
  %2418 = vmatprep.subr.bf16.mxu0 0
  %2419 = vmatpush1.bf16.xpose.msra.mxu0 0
  %2420 = vmatprep.subr.bf16.mxu0 0
  %2421 = vmatpush1.bf16.xpose.msra.mxu0 0
  %2422 = vmatprep.subr.bf16.mxu0 0
  %2423 = vmatpush1.bf16.xpose.msra.mxu0 0
  %2424 = vmatprep.subr.bf16.mxu0 0
  %2425 = vmatpush1.bf16.xpose.msra.mxu0 0
  %2426 = vmatprep.subr.bf16.mxu0 0
  %2427 = vmatpush1.bf16.xpose.msra.mxu0 0
  %2428 = vmatprep.subr.bf16.mxu0 0
  %2429 = vmatpush1.bf16.xpose.msra.mxu0 0
  %2430 = vmatprep.subr.bf16.mxu0 0
  %2431 = vmatpush1.bf16.xpose.msra.mxu0 0
  %2432 = vmatprep.subr.bf16.mxu0 0
  %2433 = vmatpush1.bf16.xpose.msra.mxu0 0
  %2434 = vmatprep.subr.bf16.mxu0 0
  %2435 = vmatpush1.bf16.xpose.msra.mxu0 0
  %2436 = vmatprep.subr.bf16.mxu0 0
  %2437 = vmatpush1.bf16.xpose.msra.mxu0 0
  %2438 = vmatprep.subr.bf16.mxu0 0
  %2439 = vmatpush1.bf16.xpose.msra.mxu0 0
  %2440 = vmatprep.subr.bf16.mxu0 0
  %2441 = vmatpush1.bf16.xpose.msra.mxu0 0
  %2442 = vmatprep.subr.bf16.mxu0 0
  %2443 = vmatpush1.bf16.xpose.msra.mxu0 0
  %2444 = vmatprep.subr.bf16.mxu0 0
  %2445 = vmatpush1.bf16.xpose.msra.mxu0 0
  %2446 = vmatprep.subr.bf16.mxu0 0
  %2447 = vmatpush1.bf16.xpose.msra.mxu0 0
  %2448 = vmatprep.mubr.bf16.mxu0 0
  %2449 = vmatmul.mubr.bf16.gmra.mrb[0].mxu0 %v2411
  %v2450 = vpop.f32.mrb[0].mxu0
  %v2451 = vadd.f32 0.0, %v2450
  %v2452 = vpop.f32.mrb[0].mxu0
  %v2453 = vpop.f32.mrb[0].mxu0
  %v2454 = vadd.f32 0.0, %v2453
  %v2455 = vpop.f32.mrb[0].mxu0
  %2456 = vdwg.mxu0
  %v2457 = vmul.f32 %v2400, 0.25
  %v2458 = vmul.f32 %v2403, 0.25
  %v2459 = vmul.f32 %v2451, 0.25
  %v2460 = vmul.f32 %v2454, 0.25
  %v2461 = vsel %vm510, %v2457, -inf
  %2462 = vmax.xlane.f32.xlu0 %v2461
  %v2463 = vpop.xlane.xlu0 %2462
  %v2464 = vsel %vm510, %v2458, -inf
  %2465 = vmax.xlane.f32.xlu0 %v2464
  %v2466 = vpop.xlane.xlu0 %2465
  %v2467 = vsel %vm510, %v2459, -inf
  %2468 = vmax.xlane.f32.xlu0 %v2467
  %v2469 = vpop.xlane.xlu0 %2468
  %v2470 = vsel %vm510, %v2460, -inf
  %2471 = vmax.xlane.f32.xlu0 %v2470
  %v2472 = vpop.xlane.xlu0 %2471
  %v2473 = vsub.f32 %v2457, %v2463
  %v2474 = vsub.f32 %v2458, %v2466
  %v2475 = vsub.f32 %v2459, %v2469
  %v2476 = vsub.f32 %v2460, %v2472
  %v2477 = vmul.f32 %v2473, 1.442695
  %v2478 = vpow.pop %v2477
  %v2479 = vmul.f32 %v2474, 1.442695
  %v2480 = vpow.pop %v2479
  %v2481 = vmul.f32 %v2475, 1.442695
  %v2482 = vpow.pop %v2481
  %v2483 = vmul.f32 %v2476, 1.442695
  %v2484 = vpow.pop %v2483
  %v2485 = vsel %vm510, %v2478, 0.0
  %2486 = vadd.xlane.f32.xlu0 %v2485
  %v2487 = vpop.xlane.xlu0 %2486
  %v2488 = vsel %vm510, %v2480, 0.0
  %2489 = vadd.xlane.f32.xlu0 %v2488
  %v2490 = vpop.xlane.xlu0 %2489
  %v2491 = vsel %vm510, %v2482, 0.0
  %2492 = vadd.xlane.f32.xlu0 %v2491
  %v2493 = vpop.xlane.xlu0 %2492
  %v2494 = vsel %vm510, %v2484, 0.0
  %2495 = vadd.xlane.f32.xlu0 %v2494
  %v2496 = vpop.xlane.xlu0 %2495
  %v2497 = vrcp.pop %v2487
  %v2498 = vrcp.pop %v2490
  %v2499 = vrcp.pop %v2493
  %v2500 = vrcp.pop %v2496
  %v2501 = vmul.f32 %v2478, %v2497
  %v2502 = vmul.f32 %v2480, %v2498
  %v2503 = vmul.f32 %v2482, %v2499
  %v2504 = vmul.f32 %v2484, %v2500
  %v2505 = vpack.c.bf16 %v2502, %v2501
  %v2506 = vpack.c.bf16 %v2504, %v2503
  %2507 = vrot.lane.b32.xlu0 %v508, 16
  %v2508 = vpop.permute.xlu0 %2507
  %v2511 = vsel %vm510, %v2505, 0
  %2513 = vmatprep.subr.bf16.mxu0 0
  %2514 = vmatpush1.bf16.msra.mxu0 %v2508
  %2515 = vmatprep.subr.bf16.mxu0 0
  %2516 = vmatpush1.bf16.msra.mxu0 0
  %2517 = vmatprep.subr.bf16.mxu0 0
  %2518 = vmatpush1.bf16.msra.mxu0 0
  %2519 = vmatprep.subr.bf16.mxu0 0
  %2520 = vmatpush1.bf16.msra.mxu0 0
  %2521 = vmatprep.subr.bf16.mxu0 0
  %2522 = vmatpush1.bf16.msra.mxu0 0
  %2523 = vmatprep.subr.bf16.mxu0 0
  %2524 = vmatpush1.bf16.msra.mxu0 0
  %2525 = vmatprep.subr.bf16.mxu0 0
  %2526 = vmatpush1.bf16.msra.mxu0 0
  %2527 = vmatprep.subr.bf16.mxu0 0
  %2528 = vmatpush1.bf16.msra.mxu0 0
  %2529 = vmatprep.subr.bf16.mxu0 0
  %2530 = vmatpush1.bf16.msra.mxu0 0
  %2531 = vmatprep.subr.bf16.mxu0 0
  %2532 = vmatpush1.bf16.msra.mxu0 0
  %2533 = vmatprep.subr.bf16.mxu0 0
  %2534 = vmatpush1.bf16.msra.mxu0 0
  %2535 = vmatprep.subr.bf16.mxu0 0
  %2536 = vmatpush1.bf16.msra.mxu0 0
  %2537 = vmatprep.subr.bf16.mxu0 0
  %2538 = vmatpush1.bf16.msra.mxu0 0
  %2539 = vmatprep.subr.bf16.mxu0 0
  %2540 = vmatpush1.bf16.msra.mxu0 0
  %2541 = vmatprep.subr.bf16.mxu0 0
  %2542 = vmatpush1.bf16.msra.mxu0 0
  %2543 = vmatprep.subr.bf16.mxu0 0
  %2544 = vmatpush1.bf16.msra.mxu0 0
  %2545 = vmatprep.mubr.bf16.mxu0 0
  %2546 = vmatmul.mubr.bf16.gmra.mrb[0].mxu0 %v2511
  %v2547 = vpop.f32.mrb[0].mxu0
  %v2548 = vadd.f32 0.0, %v2547
  %v2549 = vpop.f32.mrb[0].mxu0
  %v2550 = vpop.f32.mrb[0].mxu0
  %v2551 = vadd.f32 0.0, %v2550
  %v2552 = vpop.f32.mrb[0].mxu0
  %2553 = vdwg.mxu0
  %2554 = vrot.lane.b32.xlu0 %v509, 16
  %v2555 = vpop.permute.xlu0 %2554
  %v2558 = vsel %vm510, %v2506, 0
  %2560 = vmatprep.subr.bf16.mxu0 0
  %2561 = vmatpush1.bf16.msra.mxu0 %v2555
  %2562 = vmatprep.subr.bf16.mxu0 0
  %2563 = vmatpush1.bf16.msra.mxu0 0
  %2564 = vmatprep.subr.bf16.mxu0 0
  %2565 = vmatpush1.bf16.msra.mxu0 0
  %2566 = vmatprep.subr.bf16.mxu0 0
  %2567 = vmatpush1.bf16.msra.mxu0 0
  %2568 = vmatprep.subr.bf16.mxu0 0
  %2569 = vmatpush1.bf16.msra.mxu0 0
  %2570 = vmatprep.subr.bf16.mxu0 0
  %2571 = vmatpush1.bf16.msra.mxu0 0
  %2572 = vmatprep.subr.bf16.mxu0 0
  %2573 = vmatpush1.bf16.msra.mxu0 0
  %2574 = vmatprep.subr.bf16.mxu0 0
  %2575 = vmatpush1.bf16.msra.mxu0 0
  %2576 = vmatprep.subr.bf16.mxu0 0
  %2577 = vmatpush1.bf16.msra.mxu0 0
  %2578 = vmatprep.subr.bf16.mxu0 0
  %2579 = vmatpush1.bf16.msra.mxu0 0
  %2580 = vmatprep.subr.bf16.mxu0 0
  %2581 = vmatpush1.bf16.msra.mxu0 0
  %2582 = vmatprep.subr.bf16.mxu0 0
  %2583 = vmatpush1.bf16.msra.mxu0 0
  %2584 = vmatprep.subr.bf16.mxu0 0
  %2585 = vmatpush1.bf16.msra.mxu0 0
  %2586 = vmatprep.subr.bf16.mxu0 0
  %2587 = vmatpush1.bf16.msra.mxu0 0
  %2588 = vmatprep.subr.bf16.mxu0 0
  %2589 = vmatpush1.bf16.msra.mxu0 0
  %2590 = vmatprep.subr.bf16.mxu0 0
  %2591 = vmatpush1.bf16.msra.mxu0 0
  %2592 = vmatprep.mubr.bf16.mxu0 0
  %2593 = vmatmul.mubr.bf16.gmra.mrb[0].mxu0 %v2558
  %v2594 = vpop.f32.mrb[0].mxu0
  %v2595 = vadd.f32 0.0, %v2594
  %v2596 = vpop.f32.mrb[0].mxu0
  %v2597 = vpop.f32.mrb[0].mxu0
  %v2598 = vadd.f32 0.0, %v2597
  %v2599 = vpop.f32.mrb[0].mxu0
  %2600 = vdwg.mxu0
  %2605 = vrot.lane.b32.xlu0 %v2548, 112
  %v2606 = vpop.permute.xlu0 %2605
  %2607 = vrot.lane.b32.xlu0 %v2551, 112
  %v2608 = vpop.permute.xlu0 %2607
  %2609 = vrot.lane.b32.xlu0 %v2595, 112
  %v2610 = vpop.permute.xlu0 %2609
  %2611 = vrot.lane.b32.xlu0 %v2598, 112
  %v2612 = vpop.permute.xlu0 %2611
  %vm2617 = vcmask 1048448
  %2618 = vst.msk [vmem:[#allocation2] sm:$0xff] %vm2617, %v2606
  %2619 = vst.msk [vmem:[#allocation2 + $0x8] sm:$0xff] %vm2617, %v2608
  %2620 = vst.msk [vmem:[#allocation2 + $0x10] sm:$0xff] %vm2617, %v2610
  %2621 = vst.msk [vmem:[#allocation2 + $0x18] sm:$0xff] %vm2617, %v2612
  %v2622 = vld [vmem:[#allocation2] sm:$0xff]
  %v2623 = vld [vmem:[#allocation2 + $0x8] sm:$0xff]
  %v2624 = vld [vmem:[#allocation2 + $0x10] sm:$0xff]
  %v2625 = vld [vmem:[#allocation2 + $0x18] sm:$0xff]
  %v2626 = vld [vmem:[%s8] sm:$0xf]
  %v2627 = vld [vmem:[%s8 + $0x4] sm:$0xf]
  %v2628 = vld [vmem:[%s8 + $0x8] sm:$0xf]
  %v2629 = vld [vmem:[%s8 + $0xc] sm:$0xf]
  %v2630 = vld [vmem:[%s8 + $0x10] sm:$0xf]
  %v2631 = vld [vmem:[%s8 + $0x14] sm:$0xf]
  %v2632 = vld [vmem:[%s8 + $0x18] sm:$0xf]
  %v2633 = vld [vmem:[%s8 + $0x1c] sm:$0xf]
  %v2634 = vld [vmem:[%s8 + $0x20] sm:$0xf]
  %v2635 = vld [vmem:[%s8 + $0x24] sm:$0xf]
  %v2636 = vld [vmem:[%s8 + $0x28] sm:$0xf]
  %v2637 = vld [vmem:[%s8 + $0x2c] sm:$0xf]
  %v2638 = vld [vmem:[%s8 + $0x30] sm:$0xf]
  %v2639 = vld [vmem:[%s8 + $0x34] sm:$0xf]
  %v2640 = vld [vmem:[%s8 + $0x38] sm:$0xf]
  %v2641 = vld [vmem:[%s8 + $0x3c] sm:$0xf]
  %v2642 = vld [vmem:[%s3 + $0x5] sm:$0x1]
  %v2643 = vpack.c.bf16 %v2623, %v2622
  %v2644 = vpack.c.bf16 %v2625, %v2624
  %v2645 = vlaneseq
  %v2646 = vshrl.u32 %v2645, 7
  %v2647 = vsub.s32 0, %v2646
  %v2648 = vrot.slane %v2642, %v2647
  %v2665 = vunpack.c.l.b16 %v2626
  %v2666 = vunpack.c.l.b16 %v2627
  %v2667 = vunpack.c.l.b16 %v2628
  %v2668 = vunpack.c.l.b16 %v2629
  %v2669 = vunpack.c.l.b16 %v2630
  %v2670 = vunpack.c.l.b16 %v2631
  %v2671 = vunpack.c.l.b16 %v2632
  %v2672 = vunpack.c.l.b16 %v2633
  %v2673 = vunpack.c.l.b16 %v2634
  %v2674 = vunpack.c.l.b16 %v2635
  %v2675 = vunpack.c.l.b16 %v2636
  %v2676 = vunpack.c.l.b16 %v2637
  %v2677 = vunpack.c.l.b16 %v2638
  %v2678 = vunpack.c.l.b16 %v2639
  %v2679 = vunpack.c.l.b16 %v2640
  %v2680 = vunpack.c.l.b16 %v2641
  %v2681 = vpack.c.b16 %v2666, %v2665
  %v2682 = vpack.c.b16 %v2668, %v2667
  %v2683 = vpack.c.b16 %v2670, %v2669
  %v2684 = vpack.c.b16 %v2672, %v2671
  %v2685 = vpack.c.b16 %v2674, %v2673
  %v2686 = vpack.c.b16 %v2676, %v2675
  %v2687 = vpack.c.b16 %v2678, %v2677
  %v2688 = vpack.c.b16 %v2680, %v2679
  %2697 = vmatprep.subr.bf16.mxu0 0
  %2698 = vmatpush1.bf16.msra.mxu0 %v2681
  %2699 = vmatprep.subr.bf16.mxu0 0
  %2700 = vmatpush1.bf16.msra.mxu0 %v2682
  %2701 = vmatprep.subr.bf16.mxu0 0
  %2702 = vmatpush1.bf16.msra.mxu0 %v2683
  %2703 = vmatprep.subr.bf16.mxu0 0
  %2704 = vmatpush1.bf16.msra.mxu0 %v2684
  %2705 = vmatprep.subr.bf16.mxu0 0
  %2706 = vmatpush1.bf16.msra.mxu0 %v2685
  %2707 = vmatprep.subr.bf16.mxu0 0
  %2708 = vmatpush1.bf16.msra.mxu0 %v2686
  %2709 = vmatprep.subr.bf16.mxu0 0
  %2710 = vmatpush1.bf16.msra.mxu0 %v2687
  %2711 = vmatprep.subr.bf16.mxu0 0
  %2712 = vmatpush1.bf16.msra.mxu0 %v2688
  %2713 = vmatprep.subr.bf16.mxu0 0
  %2714 = vmatpush1.bf16.msra.mxu0 0
  %2715 = vmatprep.subr.bf16.mxu0 0
  %2716 = vmatpush1.bf16.msra.mxu0 0
  %2717 = vmatprep.subr.bf16.mxu0 0
  %2718 = vmatpush1.bf16.msra.mxu0 0
  %2719 = vmatprep.subr.bf16.mxu0 0
  %2720 = vmatpush1.bf16.msra.mxu0 0
  %2721 = vmatprep.subr.bf16.mxu0 0
  %2722 = vmatpush1.bf16.msra.mxu0 0
  %2723 = vmatprep.subr.bf16.mxu0 0
  %2724 = vmatpush1.bf16.msra.mxu0 0
  %2725 = vmatprep.subr.bf16.mxu0 0
  %2726 = vmatpush1.bf16.msra.mxu0 0
  %2727 = vmatprep.subr.bf16.mxu0 0
  %2728 = vmatpush1.bf16.msra.mxu0 0
  %2729 = vmatprep.mubr.bf16.mxu0 0
  %2730 = vmatmul.mubr.bf16.gmra.mrb[0].mxu0 %v2643
  %v2731 = vpop.f32.mrb[0].mxu0
  %v2732 = vadd.f32 %v2648, %v2731
  %v2733 = vpop.f32.mrb[0].mxu0
  %v2734 = vpop.f32.mrb[0].mxu0
  %v2735 = vadd.f32 %v2648, %v2734
  %v2736 = vpop.f32.mrb[0].mxu0
  %2737 = vmatprep.mubr.bf16.mxu0 0
  %2738 = vmatmul.mubr.bf16.gmra.mrb[0].mxu0 %v2644
  %v2739 = vpop.f32.mrb[0].mxu0
  %v2740 = vadd.f32 %v2648, %v2739
  %v2741 = vpop.f32.mrb[0].mxu0
  %v2742 = vpop.f32.mrb[0].mxu0
  %v2743 = vadd.f32 %v2648, %v2742
  %v2744 = vpop.f32.mrb[0].mxu0
  %2745 = vdwg.mxu0
  %v2746 = vadd.f32 %v219, %v2732
  %v2747 = vadd.f32 %v220, %v2735
  %v2748 = vadd.f32 %v221, %v2740
  %v2749 = vadd.f32 %v222, %v2743
  %v2750 = vld [vmem:[%s3 + $0x6] sm:$0x1]
  %v2751 = vld [vmem:[%s3 + $0x7] sm:$0x1]
  %2752 = vadd.xlane.f32.xlu0 %v2746
  %v2753 = vpop.xlane.xlu0 %2752
  %2754 = vadd.xlane.f32.xlu0 %v2747
  %v2755 = vpop.xlane.xlu0 %2754
  %2756 = vadd.xlane.f32.xlu0 %v2748
  %v2757 = vpop.xlane.xlu0 %2756
  %2758 = vadd.xlane.f32.xlu0 %v2749
  %v2759 = vpop.xlane.xlu0 %2758
  %v2760 = vmul.f32 %v2753, %v170
  %v2761 = vmul.f32 %v2755, %v170
  %v2762 = vmul.f32 %v2757, %v170
  %v2763 = vmul.f32 %v2759, %v170
  %v2764 = vsub.f32 %v2746, %v2760
  %v2765 = vsub.f32 %v2747, %v2761
  %v2766 = vsub.f32 %v2748, %v2762
  %v2767 = vsub.f32 %v2749, %v2763
  %v2768 = vmul.f32 %v2764, %v2764
  %v2769 = vmul.f32 %v2765, %v2765
  %v2770 = vmul.f32 %v2766, %v2766
  %v2771 = vmul.f32 %v2767, %v2767
  %2772 = vadd.xlane.f32.xlu0 %v2768
  %v2773 = vpop.xlane.xlu0 %2772
  %2774 = vadd.xlane.f32.xlu0 %v2769
  %v2775 = vpop.xlane.xlu0 %2774
  %2776 = vadd.xlane.f32.xlu0 %v2770
  %v2777 = vpop.xlane.xlu0 %2776
  %2778 = vadd.xlane.f32.xlu0 %v2771
  %v2779 = vpop.xlane.xlu0 %2778
  %v2780 = vmul.f32 %v2773, %v170
  %v2781 = vmul.f32 %v2775, %v170
  %v2782 = vmul.f32 %v2777, %v170
  %v2783 = vmul.f32 %v2779, %v170
  %v2784 = vadd.f32 %v2780, 1e-05
  %v2785 = vadd.f32 %v2781, 1e-05
  %v2786 = vadd.f32 %v2782, 1e-05
  %v2787 = vadd.f32 %v2783, 1e-05
  %v2788 = vrsqrt.pop %v2784
  %v2789 = vrsqrt.pop %v2785
  %v2790 = vrsqrt.pop %v2786
  %v2791 = vrsqrt.pop %v2787
  %v2792 = vmul.f32 %v2764, %v2788
  %v2793 = vmul.f32 %v2765, %v2789
  %v2794 = vmul.f32 %v2766, %v2790
  %v2795 = vmul.f32 %v2767, %v2791
  %v2796 = vlaneseq
  %v2797 = vshrl.u32 %v2796, 7
  %v2798 = vsub.s32 0, %v2797
  %v2799 = vrot.slane %v2750, %v2798
  %v2800 = vmul.f32 %v2792, %v2799
  %v2801 = vmul.f32 %v2793, %v2799
  %v2802 = vmul.f32 %v2794, %v2799
  %v2803 = vmul.f32 %v2795, %v2799
  %v2804 = vlaneseq
  %v2805 = vshrl.u32 %v2804, 7
  %v2806 = vsub.s32 0, %v2805
  %v2807 = vrot.slane %v2751, %v2806
  %v2808 = vadd.f32 %v2800, %v2807
  %v2809 = vadd.f32 %v2801, %v2807
  %v2810 = vadd.f32 %v2802, %v2807
  %v2811 = vadd.f32 %v2803, %v2807
  %v2812 = vld [vmem:[%s9] sm:$0xff]
  %v2813 = vld [vmem:[%s9 + $0x8] sm:$0xff]
  %v2814 = vld [vmem:[%s9 + $0x10] sm:$0xff]
  %v2815 = vld [vmem:[%s9 + $0x18] sm:$0xff]
  %v2816 = vld [vmem:[%s9 + $0x20] sm:$0xff]
  %v2817 = vld [vmem:[%s9 + $0x28] sm:$0xff]
  %v2818 = vld [vmem:[%s9 + $0x30] sm:$0xff]
  %v2819 = vld [vmem:[%s9 + $0x38] sm:$0xff]
  %v2820 = vld [vmem:[%s9 + $0x40] sm:$0xff]
  %v2821 = vld [vmem:[%s9 + $0x48] sm:$0xff]
  %v2822 = vld [vmem:[%s9 + $0x50] sm:$0xff]
  %v2823 = vld [vmem:[%s9 + $0x58] sm:$0xff]
  %v2824 = vld [vmem:[%s9 + $0x60] sm:$0xff]
  %v2825 = vld [vmem:[%s9 + $0x68] sm:$0xff]
  %v2826 = vld [vmem:[%s9 + $0x70] sm:$0xff]
  %v2827 = vld [vmem:[%s9 + $0x78] sm:$0xff]
  %v2828 = vld [vmem:[%s9 + $0x80] sm:$0xff]
  %v2829 = vld [vmem:[%s9 + $0x88] sm:$0xff]
  %v2830 = vld [vmem:[%s9 + $0x90] sm:$0xff]
  %v2831 = vld [vmem:[%s9 + $0x98] sm:$0xff]
  %v2832 = vld [vmem:[%s9 + $0xa0] sm:$0xff]
  %v2833 = vld [vmem:[%s9 + $0xa8] sm:$0xff]
  %v2834 = vld [vmem:[%s9 + $0xb0] sm:$0xff]
  %v2835 = vld [vmem:[%s9 + $0xb8] sm:$0xff]
  %v2836 = vld [vmem:[%s9 + $0xc0] sm:$0xff]
  %v2837 = vld [vmem:[%s9 + $0xc8] sm:$0xff]
  %v2838 = vld [vmem:[%s9 + $0xd0] sm:$0xff]
  %v2839 = vld [vmem:[%s9 + $0xd8] sm:$0xff]
  %v2840 = vld [vmem:[%s9 + $0xe0] sm:$0xff]
  %v2841 = vld [vmem:[%s9 + $0xe8] sm:$0xff]
  %v2842 = vld [vmem:[%s9 + $0xf0] sm:$0xff]
  %v2843 = vld [vmem:[%s9 + $0xf8] sm:$0xff]
  %v2844 = vld [vmem:[%s5] ss:$2 sm:$0xf]
  %v2845 = vpack.c.bf16 %v2809, %v2808
  %v2846 = vpack.c.bf16 %v2811, %v2810
  %v2848 = vlaneseq
  %v2849 = vshrl.u32 %v2848, 7
  %v2850 = vsub.s32 0, %v2849
  %v2851 = vrot.slane %v2844, %v2850
  %v2852 = vlaneseq
  %v2853 = vshrl.u32 %v2852, 7
  %v2854 = vsub.s32 1, %v2853
  %v2855 = vrot.slane %v2844, %v2854
  %v2856 = vlaneseq
  %v2857 = vshrl.u32 %v2856, 7
  %v2858 = vsub.s32 2, %v2857
  %v2859 = vrot.slane %v2844, %v2858
  %v2860 = vlaneseq
  %v2861 = vshrl.u32 %v2860, 7
  %v2862 = vsub.s32 3, %v2861
  %v2863 = vrot.slane %v2844, %v2862
  %v2900 = vunpack.c.l.b16 %v2812
  %v2901 = vunpack.c.h.b16 %v2812
  %v2902 = vunpack.c.l.b16 %v2813
  %v2903 = vunpack.c.h.b16 %v2813
  %v2904 = vunpack.c.l.b16 %v2814
  %v2905 = vunpack.c.h.b16 %v2814
  %v2906 = vunpack.c.l.b16 %v2815
  %v2907 = vunpack.c.h.b16 %v2815
  %v2908 = vunpack.c.l.b16 %v2816
  %v2909 = vunpack.c.h.b16 %v2816
  %v2910 = vunpack.c.l.b16 %v2817
  %v2911 = vunpack.c.h.b16 %v2817
  %v2912 = vunpack.c.l.b16 %v2818
  %v2913 = vunpack.c.h.b16 %v2818
  %v2914 = vunpack.c.l.b16 %v2819
  %v2915 = vunpack.c.h.b16 %v2819
  %v2916 = vunpack.c.l.b16 %v2820
  %v2917 = vunpack.c.h.b16 %v2820
  %v2918 = vunpack.c.l.b16 %v2821
  %v2919 = vunpack.c.h.b16 %v2821
  %v2920 = vunpack.c.l.b16 %v2822
  %v2921 = vunpack.c.h.b16 %v2822
  %v2922 = vunpack.c.l.b16 %v2823
  %v2923 = vunpack.c.h.b16 %v2823
  %v2924 = vunpack.c.l.b16 %v2824
  %v2925 = vunpack.c.h.b16 %v2824
  %v2926 = vunpack.c.l.b16 %v2825
  %v2927 = vunpack.c.h.b16 %v2825
  %v2928 = vunpack.c.l.b16 %v2826
  %v2929 = vunpack.c.h.b16 %v2826
  %v2930 = vunpack.c.l.b16 %v2827
  %v2931 = vunpack.c.h.b16 %v2827
  %v2932 = vunpack.c.l.b16 %v2828
  %v2933 = vunpack.c.h.b16 %v2828
  %v2934 = vunpack.c.l.b16 %v2829
  %v2935 = vunpack.c.h.b16 %v2829
  %v2936 = vunpack.c.l.b16 %v2830
  %v2937 = vunpack.c.h.b16 %v2830
  %v2938 = vunpack.c.l.b16 %v2831
  %v2939 = vunpack.c.h.b16 %v2831
  %v2940 = vunpack.c.l.b16 %v2832
  %v2941 = vunpack.c.h.b16 %v2832
  %v2942 = vunpack.c.l.b16 %v2833
  %v2943 = vunpack.c.h.b16 %v2833
  %v2944 = vunpack.c.l.b16 %v2834
  %v2945 = vunpack.c.h.b16 %v2834
  %v2946 = vunpack.c.l.b16 %v2835
  %v2947 = vunpack.c.h.b16 %v2835
  %v2948 = vunpack.c.l.b16 %v2836
  %v2949 = vunpack.c.h.b16 %v2836
  %v2950 = vunpack.c.l.b16 %v2837
  %v2951 = vunpack.c.h.b16 %v2837
  %v2952 = vunpack.c.l.b16 %v2838
  %v2953 = vunpack.c.h.b16 %v2838
  %v2954 = vunpack.c.l.b16 %v2839
  %v2955 = vunpack.c.h.b16 %v2839
  %v2956 = vunpack.c.l.b16 %v2840
  %v2957 = vunpack.c.h.b16 %v2840
  %v2958 = vunpack.c.l.b16 %v2841
  %v2959 = vunpack.c.h.b16 %v2841
  %v2960 = vunpack.c.l.b16 %v2842
  %v2961 = vunpack.c.h.b16 %v2842
  %v2962 = vunpack.c.l.b16 %v2843
  %v2963 = vunpack.c.h.b16 %v2843
  %v2964 = vpack.c.b16 %v2904, %v2900
  %v2965 = vpack.c.b16 %v2905, %v2901
  %v2966 = vpack.c.b16 %v2906, %v2902
  %v2967 = vpack.c.b16 %v2907, %v2903
  %v2968 = vpack.c.b16 %v2912, %v2908
  %v2969 = vpack.c.b16 %v2913, %v2909
  %v2970 = vpack.c.b16 %v2914, %v2910
  %v2971 = vpack.c.b16 %v2915, %v2911
  %v2972 = vpack.c.b16 %v2920, %v2916
  %v2973 = vpack.c.b16 %v2921, %v2917
  %v2974 = vpack.c.b16 %v2922, %v2918
  %v2975 = vpack.c.b16 %v2923, %v2919
  %v2976 = vpack.c.b16 %v2928, %v2924
  %v2977 = vpack.c.b16 %v2929, %v2925
  %v2978 = vpack.c.b16 %v2930, %v2926
  %v2979 = vpack.c.b16 %v2931, %v2927
  %v2980 = vpack.c.b16 %v2936, %v2932
  %v2981 = vpack.c.b16 %v2937, %v2933
  %v2982 = vpack.c.b16 %v2938, %v2934
  %v2983 = vpack.c.b16 %v2939, %v2935
  %v2984 = vpack.c.b16 %v2944, %v2940
  %v2985 = vpack.c.b16 %v2945, %v2941
  %v2986 = vpack.c.b16 %v2946, %v2942
  %v2987 = vpack.c.b16 %v2947, %v2943
  %v2988 = vpack.c.b16 %v2952, %v2948
  %v2989 = vpack.c.b16 %v2953, %v2949
  %v2990 = vpack.c.b16 %v2954, %v2950
  %v2991 = vpack.c.b16 %v2955, %v2951
  %v2992 = vpack.c.b16 %v2960, %v2956
  %v2993 = vpack.c.b16 %v2961, %v2957
  %v2994 = vpack.c.b16 %v2962, %v2958
  %v2995 = vpack.c.b16 %v2963, %v2959
  %3028 = vmatprep.subr.bf16.mxu0 %v2965
  %3029 = vmatpush1.bf16.msra.mxu0 %v2964
  %3030 = vmatprep.subr.bf16.mxu0 %v2969
  %3031 = vmatpush1.bf16.msra.mxu0 %v2968
  %3032 = vmatprep.subr.bf16.mxu0 %v2973
  %3033 = vmatpush1.bf16.msra.mxu0 %v2972
  %3034 = vmatprep.subr.bf16.mxu0 %v2977
  %3035 = vmatpush1.bf16.msra.mxu0 %v2976
  %3036 = vmatprep.subr.bf16.mxu0 %v2981
  %3037 = vmatpush1.bf16.msra.mxu0 %v2980
  %3038 = vmatprep.subr.bf16.mxu0 %v2985
  %3039 = vmatpush1.bf16.msra.mxu0 %v2984
  %3040 = vmatprep.subr.bf16.mxu0 %v2989
  %3041 = vmatpush1.bf16.msra.mxu0 %v2988
  %3042 = vmatprep.subr.bf16.mxu0 %v2993
  %3043 = vmatpush1.bf16.msra.mxu0 %v2992
  %3044 = vmatprep.subr.bf16.mxu0 0
  %3045 = vmatpush1.bf16.msra.mxu0 0
  %3046 = vmatprep.subr.bf16.mxu0 0
  %3047 = vmatpush1.bf16.msra.mxu0 0
  %3048 = vmatprep.subr.bf16.mxu0 0
  %3049 = vmatpush1.bf16.msra.mxu0 0
  %3050 = vmatprep.subr.bf16.mxu0 0
  %3051 = vmatpush1.bf16.msra.mxu0 0
  %3052 = vmatprep.subr.bf16.mxu0 0
  %3053 = vmatpush1.bf16.msra.mxu0 0
  %3054 = vmatprep.subr.bf16.mxu0 0
  %3055 = vmatpush1.bf16.msra.mxu0 0
  %3056 = vmatprep.subr.bf16.mxu0 0
  %3057 = vmatpush1.bf16.msra.mxu0 0
  %3058 = vmatprep.subr.bf16.mxu0 0
  %3059 = vmatpush1.bf16.msra.mxu0 0
  %3060 = vmatprep.mubr.bf16.mxu0 0
  %3061 = vmatmul.mubr.bf16.gmra.mrb[0].mxu0 %v2845
  %v3062 = vpop.f32.mrb[0].mxu0
  %v3063 = vadd.f32 %v2851, %v3062
  %v3064 = vpop.f32.mrb[0].mxu0
  %v3065 = vadd.f32 %v2855, %v3064
  %v3066 = vpop.f32.mrb[0].mxu0
  %v3067 = vadd.f32 %v2851, %v3066
  %v3068 = vpop.f32.mrb[0].mxu0
  %v3069 = vadd.f32 %v2855, %v3068
  %3070 = vmatprep.mubr.bf16.mxu0 0
  %3071 = vmatmul.mubr.bf16.gmra.mrb[0].mxu0 %v2846
  %v3072 = vpop.f32.mrb[0].mxu0
  %v3073 = vadd.f32 %v2851, %v3072
  %v3074 = vpop.f32.mrb[0].mxu0
  %v3075 = vadd.f32 %v2855, %v3074
  %v3076 = vpop.f32.mrb[0].mxu0
  %v3077 = vadd.f32 %v2851, %v3076
  %v3078 = vpop.f32.mrb[0].mxu0
  %v3079 = vadd.f32 %v2855, %v3078
  %3080 = vdwg.mxu0
  %3081 = vmatprep.subr.bf16.mxu0 %v2967
  %3082 = vmatpush1.bf16.msra.mxu0 %v2966
  %3083 = vmatprep.subr.bf16.mxu0 %v2971
  %3084 = vmatpush1.bf16.msra.mxu0 %v2970
  %3085 = vmatprep.subr.bf16.mxu0 %v2975
  %3086 = vmatpush1.bf16.msra.mxu0 %v2974
  %3087 = vmatprep.subr.bf16.mxu0 %v2979
  %3088 = vmatpush1.bf16.msra.mxu0 %v2978
  %3089 = vmatprep.subr.bf16.mxu0 %v2983
  %3090 = vmatpush1.bf16.msra.mxu0 %v2982
  %3091 = vmatprep.subr.bf16.mxu0 %v2987
  %3092 = vmatpush1.bf16.msra.mxu0 %v2986
  %3093 = vmatprep.subr.bf16.mxu0 %v2991
  %3094 = vmatpush1.bf16.msra.mxu0 %v2990
  %3095 = vmatprep.subr.bf16.mxu0 %v2995
  %3096 = vmatpush1.bf16.msra.mxu0 %v2994
  %3097 = vmatprep.subr.bf16.mxu0 0
  %3098 = vmatpush1.bf16.msra.mxu0 0
  %3099 = vmatprep.subr.bf16.mxu0 0
  %3100 = vmatpush1.bf16.msra.mxu0 0
  %3101 = vmatprep.subr.bf16.mxu0 0
  %3102 = vmatpush1.bf16.msra.mxu0 0
  %3103 = vmatprep.subr.bf16.mxu0 0
  %3104 = vmatpush1.bf16.msra.mxu0 0
  %3105 = vmatprep.subr.bf16.mxu0 0
  %3106 = vmatpush1.bf16.msra.mxu0 0
  %3107 = vmatprep.subr.bf16.mxu0 0
  %3108 = vmatpush1.bf16.msra.mxu0 0
  %3109 = vmatprep.subr.bf16.mxu0 0
  %3110 = vmatpush1.bf16.msra.mxu0 0
  %3111 = vmatprep.subr.bf16.mxu0 0
  %3112 = vmatpush1.bf16.msra.mxu0 0
  %3113 = vmatprep.mubr.bf16.mxu0 0
  %3114 = vmatmul.mubr.bf16.gmra.mrb[0].mxu0 %v2845
  %v3115 = vpop.f32.mrb[0].mxu0
  %v3116 = vadd.f32 %v2859, %v3115
  %v3117 = vpop.f32.mrb[0].mxu0
  %v3118 = vadd.f32 %v2863, %v3117
  %v3119 = vpop.f32.mrb[0].mxu0
  %v3120 = vadd.f32 %v2859, %v3119
  %v3121 = vpop.f32.mrb[0].mxu0
  %v3122 = vadd.f32 %v2863, %v3121
  %3123 = vmatprep.mubr.bf16.mxu0 0
  %3124 = vmatmul.mubr.bf16.gmra.mrb[0].mxu0 %v2846
  %v3125 = vpop.f32.mrb[0].mxu0
  %v3126 = vadd.f32 %v2859, %v3125
  %v3127 = vpop.f32.mrb[0].mxu0
  %v3128 = vadd.f32 %v2863, %v3127
  %v3129 = vpop.f32.mrb[0].mxu0
  %v3130 = vadd.f32 %v2859, %v3129
  %v3131 = vpop.f32.mrb[0].mxu0
  %v3132 = vadd.f32 %v2863, %v3131
  %3133 = vdwg.mxu0
  %v3134 = vmul.f32 %v3063, 0.5
  %v3135 = vmul.f32 %v3065, 0.5
  %v3136 = vmul.f32 %v3116, 0.5
  %v3137 = vmul.f32 %v3118, 0.5
  %v3138 = vmul.f32 %v3067, 0.5
  %v3139 = vmul.f32 %v3069, 0.5
  %v3140 = vmul.f32 %v3120, 0.5
  %v3141 = vmul.f32 %v3122, 0.5
  %v3142 = vmul.f32 %v3073, 0.5
  %v3143 = vmul.f32 %v3075, 0.5
  %v3144 = vmul.f32 %v3126, 0.5
  %v3145 = vmul.f32 %v3128, 0.5
  %v3146 = vmul.f32 %v3077, 0.5
  %v3147 = vmul.f32 %v3079, 0.5
  %v3148 = vmul.f32 %v3130, 0.5
  %v3149 = vmul.f32 %v3132, 0.5
  %v3150 = vmul.f32 %v3063, 0.044715
  %v3151 = vmul.f32 %v3065, 0.044715
  %v3152 = vmul.f32 %v3116, 0.044715
  %v3153 = vmul.f32 %v3118, 0.044715
  %v3154 = vmul.f32 %v3067, 0.044715
  %v3155 = vmul.f32 %v3069, 0.044715
  %v3156 = vmul.f32 %v3120, 0.044715
  %v3157 = vmul.f32 %v3122, 0.044715
  %v3158 = vmul.f32 %v3073, 0.044715
  %v3159 = vmul.f32 %v3075, 0.044715
  %v3160 = vmul.f32 %v3126, 0.044715
  %v3161 = vmul.f32 %v3128, 0.044715
  %v3162 = vmul.f32 %v3077, 0.044715
  %v3163 = vmul.f32 %v3079, 0.044715
  %v3164 = vmul.f32 %v3130, 0.044715
  %v3165 = vmul.f32 %v3132, 0.044715
  %v3166 = vmul.f32 %v3150, %v3063
  %v3167 = vmul.f32 %v3151, %v3065
  %v3168 = vmul.f32 %v3152, %v3116
  %v3169 = vmul.f32 %v3153, %v3118
  %v3170 = vmul.f32 %v3154, %v3067
  %v3171 = vmul.f32 %v3155, %v3069
  %v3172 = vmul.f32 %v3156, %v3120
  %v3173 = vmul.f32 %v3157, %v3122
  %v3174 = vmul.f32 %v3158, %v3073
  %v3175 = vmul.f32 %v3159, %v3075
  %v3176 = vmul.f32 %v3160, %v3126
  %v3177 = vmul.f32 %v3161, %v3128
  %v3178 = vmul.f32 %v3162, %v3077
  %v3179 = vmul.f32 %v3163, %v3079
  %v3180 = vmul.f32 %v3164, %v3130
  %v3181 = vmul.f32 %v3165, %v3132
  %v3182 = vmul.f32 %v3166, %v3063
  %v3183 = vmul.f32 %v3167, %v3065
  %v3184 = vmul.f32 %v3168, %v3116
  %v3185 = vmul.f32 %v3169, %v3118
  %v3186 = vmul.f32 %v3170, %v3067
  %v3187 = vmul.f32 %v3171, %v3069
  %v3188 = vmul.f32 %v3172, %v3120
  %v3189 = vmul.f32 %v3173, %v3122
  %v3190 = vmul.f32 %v3174, %v3073
  %v3191 = vmul.f32 %v3175, %v3075
  %v3192 = vmul.f32 %v3176, %v3126
  %v3193 = vmul.f32 %v3177, %v3128
  %v3194 = vmul.f32 %v3178, %v3077
  %v3195 = vmul.f32 %v3179, %v3079
  %v3196 = vmul.f32 %v3180, %v3130
  %v3197 = vmul.f32 %v3181, %v3132
  %v3198 = vadd.f32 %v3063, %v3182
  %v3199 = vadd.f32 %v3065, %v3183
  %v3200 = vadd.f32 %v3116, %v3184
  %v3201 = vadd.f32 %v3118, %v3185
  %v3202 = vadd.f32 %v3067, %v3186
  %v3203 = vadd.f32 %v3069, %v3187
  %v3204 = vadd.f32 %v3120, %v3188
  %v3205 = vadd.f32 %v3122, %v3189
  %v3206 = vadd.f32 %v3073, %v3190
  %v3207 = vadd.f32 %v3075, %v3191
  %v3208 = vadd.f32 %v3126, %v3192
  %v3209 = vadd.f32 %v3128, %v3193
  %v3210 = vadd.f32 %v3077, %v3194
  %v3211 = vadd.f32 %v3079, %v3195
  %v3212 = vadd.f32 %v3130, %v3196
  %v3213 = vadd.f32 %v3132, %v3197
  %v3214 = vmul.f32 %v3198, 0.7978846
  %v3215 = vmul.f32 %v3199, 0.7978846
  %v3216 = vmul.f32 %v3200, 0.7978846
  %v3217 = vmul.f32 %v3201, 0.7978846
  %v3218 = vmul.f32 %v3202, 0.7978846
  %v3219 = vmul.f32 %v3203, 0.7978846
  %v3220 = vmul.f32 %v3204, 0.7978846
  %v3221 = vmul.f32 %v3205, 0.7978846
  %v3222 = vmul.f32 %v3206, 0.7978846
  %v3223 = vmul.f32 %v3207, 0.7978846
  %v3224 = vmul.f32 %v3208, 0.7978846
  %v3225 = vmul.f32 %v3209, 0.7978846
  %v3226 = vmul.f32 %v3210, 0.7978846
  %v3227 = vmul.f32 %v3211, 0.7978846
  %v3228 = vmul.f32 %v3212, 0.7978846
  %v3229 = vmul.f32 %v3213, 0.7978846
  %v3230 = vtanh.pop %v3214
  %v3231 = vtanh.pop %v3215
  %v3232 = vtanh.pop %v3216
  %v3233 = vtanh.pop %v3217
  %v3234 = vtanh.pop %v3218
  %v3235 = vtanh.pop %v3219
  %v3236 = vtanh.pop %v3220
  %v3237 = vtanh.pop %v3221
  %v3238 = vtanh.pop %v3222
  %v3239 = vtanh.pop %v3223
  %v3240 = vtanh.pop %v3224
  %v3241 = vtanh.pop %v3225
  %v3242 = vtanh.pop %v3226
  %v3243 = vtanh.pop %v3227
  %v3244 = vtanh.pop %v3228
  %v3245 = vtanh.pop %v3229
  %v3246 = vadd.f32 %v3230, 1.0
  %v3247 = vadd.f32 %v3231, 1.0
  %v3248 = vadd.f32 %v3232, 1.0
  %v3249 = vadd.f32 %v3233, 1.0
  %v3250 = vadd.f32 %v3234, 1.0
  %v3251 = vadd.f32 %v3235, 1.0
  %v3252 = vadd.f32 %v3236, 1.0
  %v3253 = vadd.f32 %v3237, 1.0
  %v3254 = vadd.f32 %v3238, 1.0
  %v3255 = vadd.f32 %v3239, 1.0
  %v3256 = vadd.f32 %v3240, 1.0
  %v3257 = vadd.f32 %v3241, 1.0
  %v3258 = vadd.f32 %v3242, 1.0
  %v3259 = vadd.f32 %v3243, 1.0
  %v3260 = vadd.f32 %v3244, 1.0
  %v3261 = vadd.f32 %v3245, 1.0
  %v3262 = vmul.f32 %v3134, %v3246
  %v3263 = vmul.f32 %v3135, %v3247
  %v3264 = vmul.f32 %v3136, %v3248
  %v3265 = vmul.f32 %v3137, %v3249
  %v3266 = vmul.f32 %v3138, %v3250
  %v3267 = vmul.f32 %v3139, %v3251
  %v3268 = vmul.f32 %v3140, %v3252
  %v3269 = vmul.f32 %v3141, %v3253
  %v3270 = vmul.f32 %v3142, %v3254
  %v3271 = vmul.f32 %v3143, %v3255
  %v3272 = vmul.f32 %v3144, %v3256
  %v3273 = vmul.f32 %v3145, %v3257
  %v3274 = vmul.f32 %v3146, %v3258
  %v3275 = vmul.f32 %v3147, %v3259
  %v3276 = vmul.f32 %v3148, %v3260
  %v3277 = vmul.f32 %v3149, %v3261
  %v3278 = vld [vmem:[%s10] sm:$0xf]
  %v3279 = vld [vmem:[%s10 + $0x4] sm:$0xf]
  %v3280 = vld [vmem:[%s10 + $0x8] sm:$0xf]
  %v3281 = vld [vmem:[%s10 + $0xc] sm:$0xf]
  %v3282 = vld [vmem:[%s10 + $0x10] sm:$0xf]
  %v3283 = vld [vmem:[%s10 + $0x14] sm:$0xf]
  %v3284 = vld [vmem:[%s10 + $0x18] sm:$0xf]
  %v3285 = vld [vmem:[%s10 + $0x1c] sm:$0xf]
  %v3286 = vld [vmem:[%s10 + $0x20] sm:$0xf]
  %v3287 = vld [vmem:[%s10 + $0x24] sm:$0xf]
  %v3288 = vld [vmem:[%s10 + $0x28] sm:$0xf]
  %v3289 = vld [vmem:[%s10 + $0x2c] sm:$0xf]
  %v3290 = vld [vmem:[%s10 + $0x30] sm:$0xf]
  %v3291 = vld [vmem:[%s10 + $0x34] sm:$0xf]
  %v3292 = vld [vmem:[%s10 + $0x38] sm:$0xf]
  %v3293 = vld [vmem:[%s10 + $0x3c] sm:$0xf]
  %v3294 = vld [vmem:[%s10 + $0x40] sm:$0xf]
  %v3295 = vld [vmem:[%s10 + $0x44] sm:$0xf]
  %v3296 = vld [vmem:[%s10 + $0x48] sm:$0xf]
  %v3297 = vld [vmem:[%s10 + $0x4c] sm:$0xf]
  %v3298 = vld [vmem:[%s10 + $0x50] sm:$0xf]
  %v3299 = vld [vmem:[%s10 + $0x54] sm:$0xf]
  %v3300 = vld [vmem:[%s10 + $0x58] sm:$0xf]
  %v3301 = vld [vmem:[%s10 + $0x5c] sm:$0xf]
  %v3302 = vld [vmem:[%s10 + $0x60] sm:$0xf]
  %v3303 = vld [vmem:[%s10 + $0x64] sm:$0xf]
  %v3304 = vld [vmem:[%s10 + $0x68] sm:$0xf]
  %v3305 = vld [vmem:[%s10 + $0x6c] sm:$0xf]
  %v3306 = vld [vmem:[%s10 + $0x70] sm:$0xf]
  %v3307 = vld [vmem:[%s10 + $0x74] sm:$0xf]
  %v3308 = vld [vmem:[%s10 + $0x78] sm:$0xf]
  %v3309 = vld [vmem:[%s10 + $0x7c] sm:$0xf]
  %v3310 = vld [vmem:[%s10 + $0x80] sm:$0xf]
  %v3311 = vld [vmem:[%s10 + $0x84] sm:$0xf]
  %v3312 = vld [vmem:[%s10 + $0x88] sm:$0xf]
  %v3313 = vld [vmem:[%s10 + $0x8c] sm:$0xf]
  %v3314 = vld [vmem:[%s10 + $0x90] sm:$0xf]
  %v3315 = vld [vmem:[%s10 + $0x94] sm:$0xf]
  %v3316 = vld [vmem:[%s10 + $0x98] sm:$0xf]
  %v3317 = vld [vmem:[%s10 + $0x9c] sm:$0xf]
  %v3318 = vld [vmem:[%s10 + $0xa0] sm:$0xf]
  %v3319 = vld [vmem:[%s10 + $0xa4] sm:$0xf]
  %v3320 = vld [vmem:[%s10 + $0xa8] sm:$0xf]
  %v3321 = vld [vmem:[%s10 + $0xac] sm:$0xf]
  %v3322 = vld [vmem:[%s10 + $0xb0] sm:$0xf]
  %v3323 = vld [vmem:[%s10 + $0xb4] sm:$0xf]
  %v3324 = vld [vmem:[%s10 + $0xb8] sm:$0xf]
  %v3325 = vld [vmem:[%s10 + $0xbc] sm:$0xf]
  %v3326 = vld [vmem:[%s10 + $0xc0] sm:$0xf]
  %v3327 = vld [vmem:[%s10 + $0xc4] sm:$0xf]
  %v3328 = vld [vmem:[%s10 + $0xc8] sm:$0xf]
  %v3329 = vld [vmem:[%s10 + $0xcc] sm:$0xf]
  %v3330 = vld [vmem:[%s10 + $0xd0] sm:$0xf]
  %v3331 = vld [vmem:[%s10 + $0xd4] sm:$0xf]
  %v3332 = vld [vmem:[%s10 + $0xd8] sm:$0xf]
  %v3333 = vld [vmem:[%s10 + $0xdc] sm:$0xf]
  %v3334 = vld [vmem:[%s10 + $0xe0] sm:$0xf]
  %v3335 = vld [vmem:[%s10 + $0xe4] sm:$0xf]
  %v3336 = vld [vmem:[%s10 + $0xe8] sm:$0xf]
  %v3337 = vld [vmem:[%s10 + $0xec] sm:$0xf]
  %v3338 = vld [vmem:[%s10 + $0xf0] sm:$0xf]
  %v3339 = vld [vmem:[%s10 + $0xf4] sm:$0xf]
  %v3340 = vld [vmem:[%s10 + $0xf8] sm:$0xf]
  %v3341 = vld [vmem:[%s10 + $0xfc] sm:$0xf]
  %v3342 = vld [vmem:[%s3 + $0x8] sm:$0x1]
  %v3343 = vpack.c.bf16 %v3266, %v3262
  %v3344 = vpack.c.bf16 %v3267, %v3263
  %v3345 = vpack.c.bf16 %v3268, %v3264
  %v3346 = vpack.c.bf16 %v3269, %v3265
  %v3347 = vpack.c.bf16 %v3274, %v3270
  %v3348 = vpack.c.bf16 %v3275, %v3271
  %v3349 = vpack.c.bf16 %v3276, %v3272
  %v3350 = vpack.c.bf16 %v3277, %v3273
  %v3351 = vlaneseq
  %v3352 = vshrl.u32 %v3351, 7
  %v3353 = vsub.s32 0, %v3352
  %v3354 = vrot.slane %v3342, %v3353
  %v3419 = vunpack.c.l.b16 %v3278
  %v3420 = vunpack.c.l.b16 %v3279
  %v3421 = vunpack.c.l.b16 %v3280
  %v3422 = vunpack.c.l.b16 %v3281
  %v3423 = vunpack.c.l.b16 %v3282
  %v3424 = vunpack.c.l.b16 %v3283
  %v3425 = vunpack.c.l.b16 %v3284
  %v3426 = vunpack.c.l.b16 %v3285
  %v3427 = vunpack.c.l.b16 %v3286
  %v3428 = vunpack.c.l.b16 %v3287
  %v3429 = vunpack.c.l.b16 %v3288
  %v3430 = vunpack.c.l.b16 %v3289
  %v3431 = vunpack.c.l.b16 %v3290
  %v3432 = vunpack.c.l.b16 %v3291
  %v3433 = vunpack.c.l.b16 %v3292
  %v3434 = vunpack.c.l.b16 %v3293
  %v3435 = vunpack.c.l.b16 %v3294
  %v3436 = vunpack.c.l.b16 %v3295
  %v3437 = vunpack.c.l.b16 %v3296
  %v3438 = vunpack.c.l.b16 %v3297
  %v3439 = vunpack.c.l.b16 %v3298
  %v3440 = vunpack.c.l.b16 %v3299
  %v3441 = vunpack.c.l.b16 %v3300
  %v3442 = vunpack.c.l.b16 %v3301
  %v3443 = vunpack.c.l.b16 %v3302
  %v3444 = vunpack.c.l.b16 %v3303
  %v3445 = vunpack.c.l.b16 %v3304
  %v3446 = vunpack.c.l.b16 %v3305
  %v3447 = vunpack.c.l.b16 %v3306
  %v3448 = vunpack.c.l.b16 %v3307
  %v3449 = vunpack.c.l.b16 %v3308
  %v3450 = vunpack.c.l.b16 %v3309
  %v3451 = vunpack.c.l.b16 %v3310
  %v3452 = vunpack.c.l.b16 %v3311
  %v3453 = vunpack.c.l.b16 %v3312
  %v3454 = vunpack.c.l.b16 %v3313
  %v3455 = vunpack.c.l.b16 %v3314
  %v3456 = vunpack.c.l.b16 %v3315
  %v3457 = vunpack.c.l.b16 %v3316
  %v3458 = vunpack.c.l.b16 %v3317
  %v3459 = vunpack.c.l.b16 %v3318
  %v3460 = vunpack.c.l.b16 %v3319
  %v3461 = vunpack.c.l.b16 %v3320
  %v3462 = vunpack.c.l.b16 %v3321
  %v3463 = vunpack.c.l.b16 %v3322
  %v3464 = vunpack.c.l.b16 %v3323
  %v3465 = vunpack.c.l.b16 %v3324
  %v3466 = vunpack.c.l.b16 %v3325
  %v3467 = vunpack.c.l.b16 %v3326
  %v3468 = vunpack.c.l.b16 %v3327
  %v3469 = vunpack.c.l.b16 %v3328
  %v3470 = vunpack.c.l.b16 %v3329
  %v3471 = vunpack.c.l.b16 %v3330
  %v3472 = vunpack.c.l.b16 %v3331
  %v3473 = vunpack.c.l.b16 %v3332
  %v3474 = vunpack.c.l.b16 %v3333
  %v3475 = vunpack.c.l.b16 %v3334
  %v3476 = vunpack.c.l.b16 %v3335
  %v3477 = vunpack.c.l.b16 %v3336
  %v3478 = vunpack.c.l.b16 %v3337
  %v3479 = vunpack.c.l.b16 %v3338
  %v3480 = vunpack.c.l.b16 %v3339
  %v3481 = vunpack.c.l.b16 %v3340
  %v3482 = vunpack.c.l.b16 %v3341
  %v3483 = vpack.c.b16 %v3420, %v3419
  %v3484 = vpack.c.b16 %v3422, %v3421
  %v3485 = vpack.c.b16 %v3424, %v3423
  %v3486 = vpack.c.b16 %v3426, %v3425
  %v3487 = vpack.c.b16 %v3428, %v3427
  %v3488 = vpack.c.b16 %v3430, %v3429
  %v3489 = vpack.c.b16 %v3432, %v3431
  %v3490 = vpack.c.b16 %v3434, %v3433
  %v3491 = vpack.c.b16 %v3436, %v3435
  %v3492 = vpack.c.b16 %v3438, %v3437
  %v3493 = vpack.c.b16 %v3440, %v3439
  %v3494 = vpack.c.b16 %v3442, %v3441
  %v3495 = vpack.c.b16 %v3444, %v3443
  %v3496 = vpack.c.b16 %v3446, %v3445
  %v3497 = vpack.c.b16 %v3448, %v3447
  %v3498 = vpack.c.b16 %v3450, %v3449
  %v3499 = vpack.c.b16 %v3452, %v3451
  %v3500 = vpack.c.b16 %v3454, %v3453
  %v3501 = vpack.c.b16 %v3456, %v3455
  %v3502 = vpack.c.b16 %v3458, %v3457
  %v3503 = vpack.c.b16 %v3460, %v3459
  %v3504 = vpack.c.b16 %v3462, %v3461
  %v3505 = vpack.c.b16 %v3464, %v3463
  %v3506 = vpack.c.b16 %v3466, %v3465
  %v3507 = vpack.c.b16 %v3468, %v3467
  %v3508 = vpack.c.b16 %v3470, %v3469
  %v3509 = vpack.c.b16 %v3472, %v3471
  %v3510 = vpack.c.b16 %v3474, %v3473
  %v3511 = vpack.c.b16 %v3476, %v3475
  %v3512 = vpack.c.b16 %v3478, %v3477
  %v3513 = vpack.c.b16 %v3480, %v3479
  %v3514 = vpack.c.b16 %v3482, %v3481
  %3547 = vmatprep.subr.bf16.mxu0 0
  %3548 = vmatpush1.bf16.msra.mxu0 %v3483
  %3549 = vmatprep.subr.bf16.mxu0 0
  %3550 = vmatpush1.bf16.msra.mxu0 %v3484
  %3551 = vmatprep.subr.bf16.mxu0 0
  %3552 = vmatpush1.bf16.msra.mxu0 %v3485
  %3553 = vmatprep.subr.bf16.mxu0 0
  %3554 = vmatpush1.bf16.msra.mxu0 %v3486
  %3555 = vmatprep.subr.bf16.mxu0 0
  %3556 = vmatpush1.bf16.msra.mxu0 %v3487
  %3557 = vmatprep.subr.bf16.mxu0 0
  %3558 = vmatpush1.bf16.msra.mxu0 %v3488
  %3559 = vmatprep.subr.bf16.mxu0 0
  %3560 = vmatpush1.bf16.msra.mxu0 %v3489
  %3561 = vmatprep.subr.bf16.mxu0 0
  %3562 = vmatpush1.bf16.msra.mxu0 %v3490
  %3563 = vmatprep.subr.bf16.mxu0 0
  %3564 = vmatpush1.bf16.msra.mxu0 %v3491
  %3565 = vmatprep.subr.bf16.mxu0 0
  %3566 = vmatpush1.bf16.msra.mxu0 %v3492
  %3567 = vmatprep.subr.bf16.mxu0 0
  %3568 = vmatpush1.bf16.msra.mxu0 %v3493
  %3569 = vmatprep.subr.bf16.mxu0 0
  %3570 = vmatpush1.bf16.msra.mxu0 %v3494
  %3571 = vmatprep.subr.bf16.mxu0 0
  %3572 = vmatpush1.bf16.msra.mxu0 %v3495
  %3573 = vmatprep.subr.bf16.mxu0 0
  %3574 = vmatpush1.bf16.msra.mxu0 %v3496
  %3575 = vmatprep.subr.bf16.mxu0 0
  %3576 = vmatpush1.bf16.msra.mxu0 %v3497
  %3577 = vmatprep.subr.bf16.mxu0 0
  %3578 = vmatpush1.bf16.msra.mxu0 %v3498
  %3579 = vmatprep.mubr.bf16.mxu0 %v3344
  %3580 = vmatmul.mubr.bf16.gmra.mrb[0].mxu0 %v3343
  %v3581 = vpop.f32.mrb[0].mxu0
  %v3582 = vadd.f32 %v3354, %v3581
  %v3583 = vpop.f32.mrb[0].mxu0
  %v3584 = vpop.f32.mrb[0].mxu0
  %v3585 = vadd.f32 %v3354, %v3584
  %v3586 = vpop.f32.mrb[0].mxu0
  %3587 = vmatprep.mubr.bf16.mxu0 %v3348
  %3588 = vmatmul.mubr.bf16.gmra.mrb[0].mxu0 %v3347
  %v3589 = vpop.f32.mrb[0].mxu0
  %v3590 = vadd.f32 %v3354, %v3589
  %v3591 = vpop.f32.mrb[0].mxu0
  %v3592 = vpop.f32.mrb[0].mxu0
  %v3593 = vadd.f32 %v3354, %v3592
  %v3594 = vpop.f32.mrb[0].mxu0
  %3595 = vdwg.mxu0
  %3596 = vmatprep.subr.bf16.mxu0 0
  %3597 = vmatpush1.bf16.msra.mxu0 %v3499
  %3598 = vmatprep.subr.bf16.mxu0 0
  %3599 = vmatpush1.bf16.msra.mxu0 %v3500
  %3600 = vmatprep.subr.bf16.mxu0 0
  %3601 = vmatpush1.bf16.msra.mxu0 %v3501
  %3602 = vmatprep.subr.bf16.mxu0 0
  %3603 = vmatpush1.bf16.msra.mxu0 %v3502
  %3604 = vmatprep.subr.bf16.mxu0 0
  %3605 = vmatpush1.bf16.msra.mxu0 %v3503
  %3606 = vmatprep.subr.bf16.mxu0 0
  %3607 = vmatpush1.bf16.msra.mxu0 %v3504
  %3608 = vmatprep.subr.bf16.mxu0 0
  %3609 = vmatpush1.bf16.msra.mxu0 %v3505
  %3610 = vmatprep.subr.bf16.mxu0 0
  %3611 = vmatpush1.bf16.msra.mxu0 %v3506
  %3612 = vmatprep.subr.bf16.mxu0 0
  %3613 = vmatpush1.bf16.msra.mxu0 %v3507
  %3614 = vmatprep.subr.bf16.mxu0 0
  %3615 = vmatpush1.bf16.msra.mxu0 %v3508
  %3616 = vmatprep.subr.bf16.mxu0 0
  %3617 = vmatpush1.bf16.msra.mxu0 %v3509
  %3618 = vmatprep.subr.bf16.mxu0 0
  %3619 = vmatpush1.bf16.msra.mxu0 %v3510
  %3620 = vmatprep.subr.bf16.mxu0 0
  %3621 = vmatpush1.bf16.msra.mxu0 %v3511
  %3622 = vmatprep.subr.bf16.mxu0 0
  %3623 = vmatpush1.bf16.msra.mxu0 %v3512
  %3624 = vmatprep.subr.bf16.mxu0 0
  %3625 = vmatpush1.bf16.msra.mxu0 %v3513
  %3626 = vmatprep.subr.bf16.mxu0 0
  %3627 = vmatpush1.bf16.msra.mxu0 %v3514
  %3628 = vmatprep.mubr.bf16.mxu0 %v3346
  %3629 = vmatmul.mubr.bf16.gmra.mrb[0].mxu0 %v3345
  %v3630 = vpop.f32.mrb[0].mxu0
  %v3631 = vadd.f32 %v3582, %v3630
  %v3632 = vpop.f32.mrb[0].mxu0
  %v3633 = vpop.f32.mrb[0].mxu0
  %v3634 = vadd.f32 %v3585, %v3633
  %v3635 = vpop.f32.mrb[0].mxu0
  %3636 = vmatprep.mubr.bf16.mxu0 %v3350
  %3637 = vmatmul.mubr.bf16.gmra.mrb[0].mxu0 %v3349
  %v3638 = vpop.f32.mrb[0].mxu0
  %v3639 = vadd.f32 %v3590, %v3638
  %v3640 = vpop.f32.mrb[0].mxu0
  %v3641 = vpop.f32.mrb[0].mxu0
  %v3642 = vadd.f32 %v3593, %v3641
  %v3643 = vpop.f32.mrb[0].mxu0
  %3644 = vdwg.mxu0
  %v3645 = vadd.f32 %v2808, %v3631
  %v3646 = vadd.f32 %v2809, %v3634
  %v3647 = vadd.f32 %v2810, %v3639
  %v3648 = vadd.f32 %v2811, %v3642
  %v3649 = vld [vmem:[%s3 + $0x9] sm:$0x1]
  %v3650 = vld [vmem:[%s3 + $0xa] sm:$0x1]
  %3651 = vadd.xlane.f32.xlu0 %v3645
  %v3652 = vpop.xlane.xlu0 %3651
  %3653 = vadd.xlane.f32.xlu0 %v3646
  %v3654 = vpop.xlane.xlu0 %3653
  %3655 = vadd.xlane.f32.xlu0 %v3647
  %v3656 = vpop.xlane.xlu0 %3655
  %3657 = vadd.xlane.f32.xlu0 %v3648
  %v3658 = vpop.xlane.xlu0 %3657
  %v3659 = vmul.f32 %v3652, %v170
  %v3660 = vmul.f32 %v3654, %v170
  %v3661 = vmul.f32 %v3656, %v170
  %v3662 = vmul.f32 %v3658, %v170
  %v3663 = vsub.f32 %v3645, %v3659
  %v3664 = vsub.f32 %v3646, %v3660
  %v3665 = vsub.f32 %v3647, %v3661
  %v3666 = vsub.f32 %v3648, %v3662
  %v3667 = vmul.f32 %v3663, %v3663
  %v3668 = vmul.f32 %v3664, %v3664
  %v3669 = vmul.f32 %v3665, %v3665
  %v3670 = vmul.f32 %v3666, %v3666
  %3671 = vadd.xlane.f32.xlu0 %v3667
  %v3672 = vpop.xlane.xlu0 %3671
  %3673 = vadd.xlane.f32.xlu0 %v3668
  %v3674 = vpop.xlane.xlu0 %3673
  %3675 = vadd.xlane.f32.xlu0 %v3669
  %v3676 = vpop.xlane.xlu0 %3675
  %3677 = vadd.xlane.f32.xlu0 %v3670
  %v3678 = vpop.xlane.xlu0 %3677
  %v3679 = vmul.f32 %v3672, %v170
  %v3680 = vmul.f32 %v3674, %v170
  %v3681 = vmul.f32 %v3676, %v170
  %v3682 = vmul.f32 %v3678, %v170
  %v3683 = vadd.f32 %v3679, 1e-05
  %v3684 = vadd.f32 %v3680, 1e-05
  %v3685 = vadd.f32 %v3681, 1e-05
  %v3686 = vadd.f32 %v3682, 1e-05
  %v3687 = vrsqrt.pop %v3683
  %v3688 = vrsqrt.pop %v3684
  %v3689 = vrsqrt.pop %v3685
  %v3690 = vrsqrt.pop %v3686
  %v3691 = vmul.f32 %v3663, %v3687
  %v3692 = vmul.f32 %v3664, %v3688
  %v3693 = vmul.f32 %v3665, %v3689
  %v3694 = vmul.f32 %v3666, %v3690
  %v3695 = vlaneseq
  %v3696 = vshrl.u32 %v3695, 7
  %v3697 = vsub.s32 0, %v3696
  %v3698 = vrot.slane %v3649, %v3697
  %v3699 = vmul.f32 %v3691, %v3698
  %v3700 = vmul.f32 %v3692, %v3698
  %v3701 = vmul.f32 %v3693, %v3698
  %v3702 = vmul.f32 %v3694, %v3698
  %v3703 = vlaneseq
  %v3704 = vshrl.u32 %v3703, 7
  %v3705 = vsub.s32 0, %v3704
  %v3706 = vrot.slane %v3650, %v3705
  %v3707 = vadd.f32 %v3699, %v3706
  %v3708 = vadd.f32 %v3700, %v3706
  %v3709 = vadd.f32 %v3701, %v3706
  %v3710 = vadd.f32 %v3702, %v3706
  %s3711 = scalar_lea.vmem %s7, 192
  %v3712 = vld [vmem:[%s3711] sm:$0xff]
  %v3713 = vld [vmem:[%s3711 + $0x8] sm:$0xf]
  %v3714 = vld [vmem:[%s3711 + $0xc] sm:$0xff]
  %v3715 = vld [vmem:[%s3711 + $0x14] sm:$0xf]
  %v3716 = vld [vmem:[%s3711 + $0x18] sm:$0xff]
  %v3717 = vld [vmem:[%s3711 + $0x20] sm:$0xf]
  %v3718 = vld [vmem:[%s3711 + $0x24] sm:$0xff]
  %v3719 = vld [vmem:[%s3711 + $0x2c] sm:$0xf]
  %v3720 = vld [vmem:[%s3711 + $0x30] sm:$0xff]
  %v3721 = vld [vmem:[%s3711 + $0x38] sm:$0xf]
  %v3722 = vld [vmem:[%s3711 + $0x3c] sm:$0xff]
  %v3723 = vld [vmem:[%s3711 + $0x44] sm:$0xf]
  %v3724 = vld [vmem:[%s3711 + $0x48] sm:$0xff]
  %v3725 = vld [vmem:[%s3711 + $0x50] sm:$0xf]
  %v3726 = vld [vmem:[%s3711 + $0x54] sm:$0xff]
  %v3727 = vld [vmem:[%s3711 + $0x5c] sm:$0xf]
  %v3728 = vld [vmem:[%s3711 + $0x60] sm:$0xff]
  %v3729 = vld [vmem:[%s3711 + $0x68] sm:$0xf]
  %v3730 = vld [vmem:[%s3711 + $0x6c] sm:$0xff]
  %v3731 = vld [vmem:[%s3711 + $0x74] sm:$0xf]
  %v3732 = vld [vmem:[%s3711 + $0x78] sm:$0xff]
  %v3733 = vld [vmem:[%s3711 + $0x80] sm:$0xf]
  %v3734 = vld [vmem:[%s3711 + $0x84] sm:$0xff]
  %v3735 = vld [vmem:[%s3711 + $0x8c] sm:$0xf]
  %v3736 = vld [vmem:[%s3711 + $0x90] sm:$0xff]
  %v3737 = vld [vmem:[%s3711 + $0x98] sm:$0xf]
  %v3738 = vld [vmem:[%s3711 + $0x9c] sm:$0xff]
  %v3739 = vld [vmem:[%s3711 + $0xa4] sm:$0xf]
  %v3740 = vld [vmem:[%s3711 + $0xa8] sm:$0xff]
  %v3741 = vld [vmem:[%s3711 + $0xb0] sm:$0xf]
  %v3742 = vld [vmem:[%s3711 + $0xb4] sm:$0xff]
  %v3743 = vld [vmem:[%s3711 + $0xbc] sm:$0xf]
  %s3744 = scalar_lea.vmem %s4, 1
  %v3745 = vld [vmem:[%s3744] ss:$2 sm:$0x7]
  %v3746 = vpack.c.bf16 %v3708, %v3707
  %v3747 = vpack.c.bf16 %v3710, %v3709
  %v3749 = vlaneseq
  %v3750 = vshrl.u32 %v3749, 7
  %v3751 = vsub.s32 0, %v3750
  %v3752 = vrot.slane %v3745, %v3751
  %v3753 = vlaneseq
  %v3754 = vshrl.u32 %v3753, 7
  %v3755 = vsub.s32 1, %v3754
  %v3756 = vrot.slane %v3745, %v3755
  %v3757 = vlaneseq
  %v3758 = vshrl.u32 %v3757, 7
  %v3759 = vsub.s32 2, %v3758
  %v3760 = vrot.slane %v3745, %v3759
  %v3796 = vunpack.c.l.b16 %v3712
  %v3797 = vunpack.c.h.b16 %v3712
  %v3798 = vunpack.c.l.b16 %v3713
  %v3799 = vunpack.c.l.b16 %v3714
  %v3800 = vunpack.c.h.b16 %v3714
  %v3801 = vunpack.c.l.b16 %v3715
  %v3802 = vunpack.c.l.b16 %v3716
  %v3803 = vunpack.c.h.b16 %v3716
  %v3804 = vunpack.c.l.b16 %v3717
  %v3805 = vunpack.c.l.b16 %v3718
  %v3806 = vunpack.c.h.b16 %v3718
  %v3807 = vunpack.c.l.b16 %v3719
  %v3808 = vunpack.c.l.b16 %v3720
  %v3809 = vunpack.c.h.b16 %v3720
  %v3810 = vunpack.c.l.b16 %v3721
  %v3811 = vunpack.c.l.b16 %v3722
  %v3812 = vunpack.c.h.b16 %v3722
  %v3813 = vunpack.c.l.b16 %v3723
  %v3814 = vunpack.c.l.b16 %v3724
  %v3815 = vunpack.c.h.b16 %v3724
  %v3816 = vunpack.c.l.b16 %v3725
  %v3817 = vunpack.c.l.b16 %v3726
  %v3818 = vunpack.c.h.b16 %v3726
  %v3819 = vunpack.c.l.b16 %v3727
  %v3820 = vunpack.c.l.b16 %v3728
  %v3821 = vunpack.c.h.b16 %v3728
  %v3822 = vunpack.c.l.b16 %v3729
  %v3823 = vunpack.c.l.b16 %v3730
  %v3824 = vunpack.c.h.b16 %v3730
  %v3825 = vunpack.c.l.b16 %v3731
  %v3826 = vunpack.c.l.b16 %v3732
  %v3827 = vunpack.c.h.b16 %v3732
  %v3828 = vunpack.c.l.b16 %v3733
  %v3829 = vunpack.c.l.b16 %v3734
  %v3830 = vunpack.c.h.b16 %v3734
  %v3831 = vunpack.c.l.b16 %v3735
  %v3832 = vunpack.c.l.b16 %v3736
  %v3833 = vunpack.c.h.b16 %v3736
  %v3834 = vunpack.c.l.b16 %v3737
  %v3835 = vunpack.c.l.b16 %v3738
  %v3836 = vunpack.c.h.b16 %v3738
  %v3837 = vunpack.c.l.b16 %v3739
  %v3838 = vunpack.c.l.b16 %v3740
  %v3839 = vunpack.c.h.b16 %v3740
  %v3840 = vunpack.c.l.b16 %v3741
  %v3841 = vunpack.c.l.b16 %v3742
  %v3842 = vunpack.c.h.b16 %v3742
  %v3843 = vunpack.c.l.b16 %v3743
  %v3844 = vpack.c.b16 %v3799, %v3796
  %v3845 = vpack.c.b16 %v3800, %v3797
  %v3846 = vpack.c.b16 %v3801, %v3798
  %v3847 = vpack.c.b16 %v3805, %v3802
  %v3848 = vpack.c.b16 %v3806, %v3803
  %v3849 = vpack.c.b16 %v3807, %v3804
  %v3850 = vpack.c.b16 %v3811, %v3808
  %v3851 = vpack.c.b16 %v3812, %v3809
  %v3852 = vpack.c.b16 %v3813, %v3810
  %v3853 = vpack.c.b16 %v3817, %v3814
  %v3854 = vpack.c.b16 %v3818, %v3815
  %v3855 = vpack.c.b16 %v3819, %v3816
  %v3856 = vpack.c.b16 %v3823, %v3820
  %v3857 = vpack.c.b16 %v3824, %v3821
  %v3858 = vpack.c.b16 %v3825, %v3822
  %v3859 = vpack.c.b16 %v3829, %v3826
  %v3860 = vpack.c.b16 %v3830, %v3827
  %v3861 = vpack.c.b16 %v3831, %v3828
  %v3862 = vpack.c.b16 %v3835, %v3832
  %v3863 = vpack.c.b16 %v3836, %v3833
  %v3864 = vpack.c.b16 %v3837, %v3834
  %v3865 = vpack.c.b16 %v3841, %v3838
  %v3866 = vpack.c.b16 %v3842, %v3839
  %v3867 = vpack.c.b16 %v3843, %v3840
  %3892 = vmatprep.subr.bf16.mxu0 %v3845
  %3893 = vmatpush1.bf16.msra.mxu0 %v3844
  %3894 = vmatprep.subr.bf16.mxu0 %v3848
  %3895 = vmatpush1.bf16.msra.mxu0 %v3847
  %3896 = vmatprep.subr.bf16.mxu0 %v3851
  %3897 = vmatpush1.bf16.msra.mxu0 %v3850
  %3898 = vmatprep.subr.bf16.mxu0 %v3854
  %3899 = vmatpush1.bf16.msra.mxu0 %v3853
  %3900 = vmatprep.subr.bf16.mxu0 %v3857
  %3901 = vmatpush1.bf16.msra.mxu0 %v3856
  %3902 = vmatprep.subr.bf16.mxu0 %v3860
  %3903 = vmatpush1.bf16.msra.mxu0 %v3859
  %3904 = vmatprep.subr.bf16.mxu0 %v3863
  %3905 = vmatpush1.bf16.msra.mxu0 %v3862
  %3906 = vmatprep.subr.bf16.mxu0 %v3866
  %3907 = vmatpush1.bf16.msra.mxu0 %v3865
  %3908 = vmatprep.subr.bf16.mxu0 0
  %3909 = vmatpush1.bf16.msra.mxu0 0
  %3910 = vmatprep.subr.bf16.mxu0 0
  %3911 = vmatpush1.bf16.msra.mxu0 0
  %3912 = vmatprep.subr.bf16.mxu0 0
  %3913 = vmatpush1.bf16.msra.mxu0 0
  %3914 = vmatprep.subr.bf16.mxu0 0
  %3915 = vmatpush1.bf16.msra.mxu0 0
  %3916 = vmatprep.subr.bf16.mxu0 0
  %3917 = vmatpush1.bf16.msra.mxu0 0
  %3918 = vmatprep.subr.bf16.mxu0 0
  %3919 = vmatpush1.bf16.msra.mxu0 0
  %3920 = vmatprep.subr.bf16.mxu0 0
  %3921 = vmatpush1.bf16.msra.mxu0 0
  %3922 = vmatprep.subr.bf16.mxu0 0
  %3923 = vmatpush1.bf16.msra.mxu0 0
  %3924 = vmatprep.mubr.bf16.mxu0 0
  %3925 = vmatmul.mubr.bf16.gmra.mrb[0].mxu0 %v3746
  %v3926 = vpop.f32.mrb[0].mxu0
  %v3927 = vadd.f32 %v3752, %v3926
  %v3928 = vpop.f32.mrb[0].mxu0
  %v3929 = vadd.f32 %v3756, %v3928
  %v3930 = vpop.f32.mrb[0].mxu0
  %v3931 = vadd.f32 %v3752, %v3930
  %v3932 = vpop.f32.mrb[0].mxu0
  %v3933 = vadd.f32 %v3756, %v3932
  %3934 = vmatprep.mubr.bf16.mxu0 0
  %3935 = vmatmul.mubr.bf16.gmra.mrb[0].mxu0 %v3747
  %v3936 = vpop.f32.mrb[0].mxu0
  %v3937 = vadd.f32 %v3752, %v3936
  %v3938 = vpop.f32.mrb[0].mxu0
  %v3939 = vadd.f32 %v3756, %v3938
  %v3940 = vpop.f32.mrb[0].mxu0
  %v3941 = vadd.f32 %v3752, %v3940
  %v3942 = vpop.f32.mrb[0].mxu0
  %v3943 = vadd.f32 %v3756, %v3942
  %3944 = vdwg.mxu0
  %3945 = vmatprep.subr.bf16.mxu0 0
  %3946 = vmatpush1.bf16.msra.mxu0 %v3846
  %3947 = vmatprep.subr.bf16.mxu0 0
  %3948 = vmatpush1.bf16.msra.mxu0 %v3849
  %3949 = vmatprep.subr.bf16.mxu0 0
  %3950 = vmatpush1.bf16.msra.mxu0 %v3852
  %3951 = vmatprep.subr.bf16.mxu0 0
  %3952 = vmatpush1.bf16.msra.mxu0 %v3855
  %3953 = vmatprep.subr.bf16.mxu0 0
  %3954 = vmatpush1.bf16.msra.mxu0 %v3858
  %3955 = vmatprep.subr.bf16.mxu0 0
  %3956 = vmatpush1.bf16.msra.mxu0 %v3861
  %3957 = vmatprep.subr.bf16.mxu0 0
  %3958 = vmatpush1.bf16.msra.mxu0 %v3864
  %3959 = vmatprep.subr.bf16.mxu0 0
  %3960 = vmatpush1.bf16.msra.mxu0 %v3867
  %3961 = vmatprep.subr.bf16.mxu0 0
  %3962 = vmatpush1.bf16.msra.mxu0 0
  %3963 = vmatprep.subr.bf16.mxu0 0
  %3964 = vmatpush1.bf16.msra.mxu0 0
  %3965 = vmatprep.subr.bf16.mxu0 0
  %3966 = vmatpush1.bf16.msra.mxu0 0
  %3967 = vmatprep.subr.bf16.mxu0 0
  %3968 = vmatpush1.bf16.msra.mxu0 0
  %3969 = vmatprep.subr.bf16.mxu0 0
  %3970 = vmatpush1.bf16.msra.mxu0 0
  %3971 = vmatprep.subr.bf16.mxu0 0
  %3972 = vmatpush1.bf16.msra.mxu0 0
  %3973 = vmatprep.subr.bf16.mxu0 0
  %3974 = vmatpush1.bf16.msra.mxu0 0
  %3975 = vmatprep.subr.bf16.mxu0 0
  %3976 = vmatpush1.bf16.msra.mxu0 0
  %3977 = vmatprep.mubr.bf16.mxu0 0
  %3978 = vmatmul.mubr.bf16.gmra.mrb[0].mxu0 %v3746
  %v3979 = vpop.f32.mrb[0].mxu0
  %v3980 = vadd.f32 %v3760, %v3979
  %v3981 = vpop.f32.mrb[0].mxu0
  %v3982 = vpop.f32.mrb[0].mxu0
  %v3983 = vadd.f32 %v3760, %v3982
  %v3984 = vpop.f32.mrb[0].mxu0
  %3985 = vmatprep.mubr.bf16.mxu0 0
  %3986 = vmatmul.mubr.bf16.gmra.mrb[0].mxu0 %v3747
  %v3987 = vpop.f32.mrb[0].mxu0
  %v3988 = vadd.f32 %v3760, %v3987
  %v3989 = vpop.f32.mrb[0].mxu0
  %v3990 = vpop.f32.mrb[0].mxu0
  %v3991 = vadd.f32 %v3760, %v3990
  %v3992 = vpop.f32.mrb[0].mxu0
  %3993 = vdwg.mxu0
  %v3994 = vpack.c.bf16 %v3931, %v3927
  %v3995 = vpack.c.bf16 %v3941, %v3937
  %v3996 = vpack.c.bf16 %v3933, %v3929
  %v3997 = vpack.c.bf16 %v3943, %v3939
  %v3998 = vpack.c.bf16 %v3983, %v3980
  %v3999 = vpack.c.bf16 %v3991, %v3988
  %v4001 = vsel %vm510, %v3994, 0
  %v4004 = vsel %vm510, %v3996, 0
  %4006 = vmatprep.subr.bf16.mxu0 0
  %4007 = vmatpush1.bf16.xpose.msra.mxu0 %v4004
  %4008 = vmatprep.subr.bf16.mxu0 0
  %4009 = vmatpush1.bf16.xpose.msra.mxu0 0
  %4010 = vmatprep.subr.bf16.mxu0 0
  %4011 = vmatpush1.bf16.xpose.msra.mxu0 0
  %4012 = vmatprep.subr.bf16.mxu0 0
  %4013 = vmatpush1.bf16.xpose.msra.mxu0 0
  %4014 = vmatprep.subr.bf16.mxu0 0
  %4015 = vmatpush1.bf16.xpose.msra.mxu0 0
  %4016 = vmatprep.subr.bf16.mxu0 0
  %4017 = vmatpush1.bf16.xpose.msra.mxu0 0
  %4018 = vmatprep.subr.bf16.mxu0 0
  %4019 = vmatpush1.bf16.xpose.msra.mxu0 0
  %4020 = vmatprep.subr.bf16.mxu0 0
  %4021 = vmatpush1.bf16.xpose.msra.mxu0 0
  %4022 = vmatprep.subr.bf16.mxu0 0
  %4023 = vmatpush1.bf16.xpose.msra.mxu0 0
  %4024 = vmatprep.subr.bf16.mxu0 0
  %4025 = vmatpush1.bf16.xpose.msra.mxu0 0
  %4026 = vmatprep.subr.bf16.mxu0 0
  %4027 = vmatpush1.bf16.xpose.msra.mxu0 0
  %4028 = vmatprep.subr.bf16.mxu0 0
  %4029 = vmatpush1.bf16.xpose.msra.mxu0 0
  %4030 = vmatprep.subr.bf16.mxu0 0
  %4031 = vmatpush1.bf16.xpose.msra.mxu0 0
  %4032 = vmatprep.subr.bf16.mxu0 0
  %4033 = vmatpush1.bf16.xpose.msra.mxu0 0
  %4034 = vmatprep.subr.bf16.mxu0 0
  %4035 = vmatpush1.bf16.xpose.msra.mxu0 0
  %4036 = vmatprep.subr.bf16.mxu0 0
  %4037 = vmatpush1.bf16.xpose.msra.mxu0 0
  %4038 = vmatprep.mubr.bf16.mxu0 0
  %4039 = vmatmul.mubr.bf16.gmra.mrb[0].mxu0 %v4001
  %v4040 = vpop.f32.mrb[0].mxu0
  %v4041 = vadd.f32 0.0, %v4040
  %v4042 = vpop.f32.mrb[0].mxu0
  %v4043 = vpop.f32.mrb[0].mxu0
  %v4044 = vadd.f32 0.0, %v4043
  %v4045 = vpop.f32.mrb[0].mxu0
  %4046 = vdwg.mxu0
  %v4048 = vsel %vm510, %v3995, 0
  %v4051 = vsel %vm510, %v3997, 0
  %4053 = vmatprep.subr.bf16.mxu0 0
  %4054 = vmatpush1.bf16.xpose.msra.mxu0 %v4051
  %4055 = vmatprep.subr.bf16.mxu0 0
  %4056 = vmatpush1.bf16.xpose.msra.mxu0 0
  %4057 = vmatprep.subr.bf16.mxu0 0
  %4058 = vmatpush1.bf16.xpose.msra.mxu0 0
  %4059 = vmatprep.subr.bf16.mxu0 0
  %4060 = vmatpush1.bf16.xpose.msra.mxu0 0
  %4061 = vmatprep.subr.bf16.mxu0 0
  %4062 = vmatpush1.bf16.xpose.msra.mxu0 0
  %4063 = vmatprep.subr.bf16.mxu0 0
  %4064 = vmatpush1.bf16.xpose.msra.mxu0 0
  %4065 = vmatprep.subr.bf16.mxu0 0
  %4066 = vmatpush1.bf16.xpose.msra.mxu0 0
  %4067 = vmatprep.subr.bf16.mxu0 0
  %4068 = vmatpush1.bf16.xpose.msra.mxu0 0
  %4069 = vmatprep.subr.bf16.mxu0 0
  %4070 = vmatpush1.bf16.xpose.msra.mxu0 0
  %4071 = vmatprep.subr.bf16.mxu0 0
  %4072 = vmatpush1.bf16.xpose.msra.mxu0 0
  %4073 = vmatprep.subr.bf16.mxu0 0
  %4074 = vmatpush1.bf16.xpose.msra.mxu0 0
  %4075 = vmatprep.subr.bf16.mxu0 0
  %4076 = vmatpush1.bf16.xpose.msra.mxu0 0
  %4077 = vmatprep.subr.bf16.mxu0 0
  %4078 = vmatpush1.bf16.xpose.msra.mxu0 0
  %4079 = vmatprep.subr.bf16.mxu0 0
  %4080 = vmatpush1.bf16.xpose.msra.mxu0 0
  %4081 = vmatprep.subr.bf16.mxu0 0
  %4082 = vmatpush1.bf16.xpose.msra.mxu0 0
  %4083 = vmatprep.subr.bf16.mxu0 0
  %4084 = vmatpush1.bf16.xpose.msra.mxu0 0
  %4085 = vmatprep.mubr.bf16.mxu0 0
  %4086 = vmatmul.mubr.bf16.gmra.mrb[0].mxu0 %v4048
  %v4087 = vpop.f32.mrb[0].mxu0
  %v4088 = vadd.f32 0.0, %v4087
  %v4089 = vpop.f32.mrb[0].mxu0
  %v4090 = vpop.f32.mrb[0].mxu0
  %v4091 = vadd.f32 0.0, %v4090
  %v4092 = vpop.f32.mrb[0].mxu0
  %4093 = vdwg.mxu0
  %v4094 = vmul.f32 %v4041, 0.25
  %v4095 = vmul.f32 %v4044, 0.25
  %v4096 = vmul.f32 %v4088, 0.25
  %v4097 = vmul.f32 %v4091, 0.25
  %v4098 = vsel %vm510, %v4094, -inf
  %4099 = vmax.xlane.f32.xlu0 %v4098
  %v4100 = vpop.xlane.xlu0 %4099
  %v4101 = vsel %vm510, %v4095, -inf
  %4102 = vmax.xlane.f32.xlu0 %v4101
  %v4103 = vpop.xlane.xlu0 %4102
  %v4104 = vsel %vm510, %v4096, -inf
  %4105 = vmax.xlane.f32.xlu0 %v4104
  %v4106 = vpop.xlane.xlu0 %4105
  %v4107 = vsel %vm510, %v4097, -inf
  %4108 = vmax.xlane.f32.xlu0 %v4107
  %v4109 = vpop.xlane.xlu0 %4108
  %v4110 = vsub.f32 %v4094, %v4100
  %v4111 = vsub.f32 %v4095, %v4103
  %v4112 = vsub.f32 %v4096, %v4106
  %v4113 = vsub.f32 %v4097, %v4109
  %v4114 = vmul.f32 %v4110, 1.442695
  %v4115 = vpow.pop %v4114
  %v4116 = vmul.f32 %v4111, 1.442695
  %v4117 = vpow.pop %v4116
  %v4118 = vmul.f32 %v4112, 1.442695
  %v4119 = vpow.pop %v4118
  %v4120 = vmul.f32 %v4113, 1.442695
  %v4121 = vpow.pop %v4120
  %v4122 = vsel %vm510, %v4115, 0.0
  %4123 = vadd.xlane.f32.xlu0 %v4122
  %v4124 = vpop.xlane.xlu0 %4123
  %v4125 = vsel %vm510, %v4117, 0.0
  %4126 = vadd.xlane.f32.xlu0 %v4125
  %v4127 = vpop.xlane.xlu0 %4126
  %v4128 = vsel %vm510, %v4119, 0.0
  %4129 = vadd.xlane.f32.xlu0 %v4128
  %v4130 = vpop.xlane.xlu0 %4129
  %v4131 = vsel %vm510, %v4121, 0.0
  %4132 = vadd.xlane.f32.xlu0 %v4131
  %v4133 = vpop.xlane.xlu0 %4132
  %v4134 = vrcp.pop %v4124
  %v4135 = vrcp.pop %v4127
  %v4136 = vrcp.pop %v4130
  %v4137 = vrcp.pop %v4133
  %v4138 = vmul.f32 %v4115, %v4134
  %v4139 = vmul.f32 %v4117, %v4135
  %v4140 = vmul.f32 %v4119, %v4136
  %v4141 = vmul.f32 %v4121, %v4137
  %v4142 = vpack.c.bf16 %v4139, %v4138
  %v4143 = vpack.c.bf16 %v4141, %v4140
  %v4145 = vsel %vm510, %v4142, 0
  %4147 = vmatprep.subr.bf16.mxu0 0
  %4148 = vmatpush1.bf16.msra.mxu0 %v3998
  %4149 = vmatprep.subr.bf16.mxu0 0
  %4150 = vmatpush1.bf16.msra.mxu0 0
  %4151 = vmatprep.subr.bf16.mxu0 0
  %4152 = vmatpush1.bf16.msra.mxu0 0
  %4153 = vmatprep.subr.bf16.mxu0 0
  %4154 = vmatpush1.bf16.msra.mxu0 0
  %4155 = vmatprep.subr.bf16.mxu0 0
  %4156 = vmatpush1.bf16.msra.mxu0 0
  %4157 = vmatprep.subr.bf16.mxu0 0
  %4158 = vmatpush1.bf16.msra.mxu0 0
  %4159 = vmatprep.subr.bf16.mxu0 0
  %4160 = vmatpush1.bf16.msra.mxu0 0
  %4161 = vmatprep.subr.bf16.mxu0 0
  %4162 = vmatpush1.bf16.msra.mxu0 0
  %4163 = vmatprep.subr.bf16.mxu0 0
  %4164 = vmatpush1.bf16.msra.mxu0 0
  %4165 = vmatprep.subr.bf16.mxu0 0
  %4166 = vmatpush1.bf16.msra.mxu0 0
  %4167 = vmatprep.subr.bf16.mxu0 0
  %4168 = vmatpush1.bf16.msra.mxu0 0
  %4169 = vmatprep.subr.bf16.mxu0 0
  %4170 = vmatpush1.bf16.msra.mxu0 0
  %4171 = vmatprep.subr.bf16.mxu0 0
  %4172 = vmatpush1.bf16.msra.mxu0 0
  %4173 = vmatprep.subr.bf16.mxu0 0
  %4174 = vmatpush1.bf16.msra.mxu0 0
  %4175 = vmatprep.subr.bf16.mxu0 0
  %4176 = vmatpush1.bf16.msra.mxu0 0
  %4177 = vmatprep.subr.bf16.mxu0 0
  %4178 = vmatpush1.bf16.msra.mxu0 0
  %4179 = vmatprep.mubr.bf16.mxu0 0
  %4180 = vmatmul.mubr.bf16.gmra.mrb[0].mxu0 %v4145
  %v4181 = vpop.f32.mrb[0].mxu0
  %v4182 = vadd.f32 0.0, %v4181
  %v4183 = vpop.f32.mrb[0].mxu0
  %v4184 = vpop.f32.mrb[0].mxu0
  %v4185 = vadd.f32 0.0, %v4184
  %v4186 = vpop.f32.mrb[0].mxu0
  %4187 = vdwg.mxu0
  %v4189 = vsel %vm510, %v4143, 0
  %4191 = vmatprep.subr.bf16.mxu0 0
  %4192 = vmatpush1.bf16.msra.mxu0 %v3999
  %4193 = vmatprep.subr.bf16.mxu0 0
  %4194 = vmatpush1.bf16.msra.mxu0 0
  %4195 = vmatprep.subr.bf16.mxu0 0
  %4196 = vmatpush1.bf16.msra.mxu0 0
  %4197 = vmatprep.subr.bf16.mxu0 0
  %4198 = vmatpush1.bf16.msra.mxu0 0
  %4199 = vmatprep.subr.bf16.mxu0 0
  %4200 = vmatpush1.bf16.msra.mxu0 0
  %4201 = vmatprep.subr.bf16.mxu0 0
  %4202 = vmatpush1.bf16.msra.mxu0 0
  %4203 = vmatprep.subr.bf16.mxu0 0
  %4204 = vmatpush1.bf16.msra.mxu0 0
  %4205 = vmatprep.subr.bf16.mxu0 0
  %4206 = vmatpush1.bf16.msra.mxu0 0
  %4207 = vmatprep.subr.bf16.mxu0 0
  %4208 = vmatpush1.bf16.msra.mxu0 0
  %4209 = vmatprep.subr.bf16.mxu0 0
  %4210 = vmatpush1.bf16.msra.mxu0 0
  %4211 = vmatprep.subr.bf16.mxu0 0
  %4212 = vmatpush1.bf16.msra.mxu0 0
  %4213 = vmatprep.subr.bf16.mxu0 0
  %4214 = vmatpush1.bf16.msra.mxu0 0
  %4215 = vmatprep.subr.bf16.mxu0 0
  %4216 = vmatpush1.bf16.msra.mxu0 0
  %4217 = vmatprep.subr.bf16.mxu0 0
  %4218 = vmatpush1.bf16.msra.mxu0 0
  %4219 = vmatprep.subr.bf16.mxu0 0
  %4220 = vmatpush1.bf16.msra.mxu0 0
  %4221 = vmatprep.subr.bf16.mxu0 0
  %4222 = vmatpush1.bf16.msra.mxu0 0
  %4223 = vmatprep.mubr.bf16.mxu0 0
  %4224 = vmatmul.mubr.bf16.gmra.mrb[0].mxu0 %v4189
  %v4225 = vpop.f32.mrb[0].mxu0
  %v4226 = vadd.f32 0.0, %v4225
  %v4227 = vpop.f32.mrb[0].mxu0
  %v4228 = vpop.f32.mrb[0].mxu0
  %v4229 = vadd.f32 0.0, %v4228
  %v4230 = vpop.f32.mrb[0].mxu0
  %4231 = vdwg.mxu0
  %4232 = vst.msk [vmem:[#allocation2] sm:$0xff] %vm510, %v4182
  %4233 = vst.msk [vmem:[#allocation2 + $0x8] sm:$0xff] %vm510, %v4185
  %4234 = vst.msk [vmem:[#allocation2 + $0x10] sm:$0xff] %vm510, %v4226
  %4235 = vst.msk [vmem:[#allocation2 + $0x18] sm:$0xff] %vm510, %v4229
  %4237 = vrot.lane.b32.xlu0 %v3994, 112
  %v4238 = vpop.permute.xlu0 %4237
  %4240 = vrot.lane.b32.xlu0 %v3996, 112
  %v4241 = vpop.permute.xlu0 %4240
  %v4243 = vsel %vm510, %v4238, 0
  %v4246 = vsel %vm510, %v4241, 0
  %4248 = vmatprep.subr.bf16.mxu0 0
  %4249 = vmatpush1.bf16.xpose.msra.mxu0 %v4246
  %4250 = vmatprep.subr.bf16.mxu0 0
  %4251 = vmatpush1.bf16.xpose.msra.mxu0 0
  %4252 = vmatprep.subr.bf16.mxu0 0
  %4253 = vmatpush1.bf16.xpose.msra.mxu0 0
  %4254 = vmatprep.subr.bf16.mxu0 0
  %4255 = vmatpush1.bf16.xpose.msra.mxu0 0
  %4256 = vmatprep.subr.bf16.mxu0 0
  %4257 = vmatpush1.bf16.xpose.msra.mxu0 0
  %4258 = vmatprep.subr.bf16.mxu0 0
  %4259 = vmatpush1.bf16.xpose.msra.mxu0 0
  %4260 = vmatprep.subr.bf16.mxu0 0
  %4261 = vmatpush1.bf16.xpose.msra.mxu0 0
  %4262 = vmatprep.subr.bf16.mxu0 0
  %4263 = vmatpush1.bf16.xpose.msra.mxu0 0
  %4264 = vmatprep.subr.bf16.mxu0 0
  %4265 = vmatpush1.bf16.xpose.msra.mxu0 0
  %4266 = vmatprep.subr.bf16.mxu0 0
  %4267 = vmatpush1.bf16.xpose.msra.mxu0 0
  %4268 = vmatprep.subr.bf16.mxu0 0
  %4269 = vmatpush1.bf16.xpose.msra.mxu0 0
  %4270 = vmatprep.subr.bf16.mxu0 0
  %4271 = vmatpush1.bf16.xpose.msra.mxu0 0
  %4272 = vmatprep.subr.bf16.mxu0 0
  %4273 = vmatpush1.bf16.xpose.msra.mxu0 0
  %4274 = vmatprep.subr.bf16.mxu0 0
  %4275 = vmatpush1.bf16.xpose.msra.mxu0 0
  %4276 = vmatprep.subr.bf16.mxu0 0
  %4277 = vmatpush1.bf16.xpose.msra.mxu0 0
  %4278 = vmatprep.subr.bf16.mxu0 0
  %4279 = vmatpush1.bf16.xpose.msra.mxu0 0
  %4280 = vmatprep.mubr.bf16.mxu0 0
  %4281 = vmatmul.mubr.bf16.gmra.mrb[0].mxu0 %v4243
  %v4282 = vpop.f32.mrb[0].mxu0
  %v4283 = vadd.f32 0.0, %v4282
  %v4284 = vpop.f32.mrb[0].mxu0
  %v4285 = vpop.f32.mrb[0].mxu0
  %v4286 = vadd.f32 0.0, %v4285
  %v4287 = vpop.f32.mrb[0].mxu0
  %4288 = vdwg.mxu0
  %4290 = vrot.lane.b32.xlu0 %v3995, 112
  %v4291 = vpop.permute.xlu0 %4290
  %4293 = vrot.lane.b32.xlu0 %v3997, 112
  %v4294 = vpop.permute.xlu0 %4293
  %v4296 = vsel %vm510, %v4291, 0
  %v4299 = vsel %vm510, %v4294, 0
  %4301 = vmatprep.subr.bf16.mxu0 0
  %4302 = vmatpush1.bf16.xpose.msra.mxu0 %v4299
  %4303 = vmatprep.subr.bf16.mxu0 0
  %4304 = vmatpush1.bf16.xpose.msra.mxu0 0
  %4305 = vmatprep.subr.bf16.mxu0 0
  %4306 = vmatpush1.bf16.xpose.msra.mxu0 0
  %4307 = vmatprep.subr.bf16.mxu0 0
  %4308 = vmatpush1.bf16.xpose.msra.mxu0 0
  %4309 = vmatprep.subr.bf16.mxu0 0
  %4310 = vmatpush1.bf16.xpose.msra.mxu0 0
  %4311 = vmatprep.subr.bf16.mxu0 0
  %4312 = vmatpush1.bf16.xpose.msra.mxu0 0
  %4313 = vmatprep.subr.bf16.mxu0 0
  %4314 = vmatpush1.bf16.xpose.msra.mxu0 0
  %4315 = vmatprep.subr.bf16.mxu0 0
  %4316 = vmatpush1.bf16.xpose.msra.mxu0 0
  %4317 = vmatprep.subr.bf16.mxu0 0
  %4318 = vmatpush1.bf16.xpose.msra.mxu0 0
  %4319 = vmatprep.subr.bf16.mxu0 0
  %4320 = vmatpush1.bf16.xpose.msra.mxu0 0
  %4321 = vmatprep.subr.bf16.mxu0 0
  %4322 = vmatpush1.bf16.xpose.msra.mxu0 0
  %4323 = vmatprep.subr.bf16.mxu0 0
  %4324 = vmatpush1.bf16.xpose.msra.mxu0 0
  %4325 = vmatprep.subr.bf16.mxu0 0
  %4326 = vmatpush1.bf16.xpose.msra.mxu0 0
  %4327 = vmatprep.subr.bf16.mxu0 0
  %4328 = vmatpush1.bf16.xpose.msra.mxu0 0
  %4329 = vmatprep.subr.bf16.mxu0 0
  %4330 = vmatpush1.bf16.xpose.msra.mxu0 0
  %4331 = vmatprep.subr.bf16.mxu0 0
  %4332 = vmatpush1.bf16.xpose.msra.mxu0 0
  %4333 = vmatprep.mubr.bf16.mxu0 0
  %4334 = vmatmul.mubr.bf16.gmra.mrb[0].mxu0 %v4296
  %v4335 = vpop.f32.mrb[0].mxu0
  %v4336 = vadd.f32 0.0, %v4335
  %v4337 = vpop.f32.mrb[0].mxu0
  %v4338 = vpop.f32.mrb[0].mxu0
  %v4339 = vadd.f32 0.0, %v4338
  %v4340 = vpop.f32.mrb[0].mxu0
  %4341 = vdwg.mxu0
  %v4342 = vmul.f32 %v4283, 0.25
  %v4343 = vmul.f32 %v4286, 0.25
  %v4344 = vmul.f32 %v4336, 0.25
  %v4345 = vmul.f32 %v4339, 0.25
  %v4346 = vsel %vm510, %v4342, -inf
  %4347 = vmax.xlane.f32.xlu0 %v4346
  %v4348 = vpop.xlane.xlu0 %4347
  %v4349 = vsel %vm510, %v4343, -inf
  %4350 = vmax.xlane.f32.xlu0 %v4349
  %v4351 = vpop.xlane.xlu0 %4350
  %v4352 = vsel %vm510, %v4344, -inf
  %4353 = vmax.xlane.f32.xlu0 %v4352
  %v4354 = vpop.xlane.xlu0 %4353
  %v4355 = vsel %vm510, %v4345, -inf
  %4356 = vmax.xlane.f32.xlu0 %v4355
  %v4357 = vpop.xlane.xlu0 %4356
  %v4358 = vsub.f32 %v4342, %v4348
  %v4359 = vsub.f32 %v4343, %v4351
  %v4360 = vsub.f32 %v4344, %v4354
  %v4361 = vsub.f32 %v4345, %v4357
  %v4362 = vmul.f32 %v4358, 1.442695
  %v4363 = vpow.pop %v4362
  %v4364 = vmul.f32 %v4359, 1.442695
  %v4365 = vpow.pop %v4364
  %v4366 = vmul.f32 %v4360, 1.442695
  %v4367 = vpow.pop %v4366
  %v4368 = vmul.f32 %v4361, 1.442695
  %v4369 = vpow.pop %v4368
  %v4370 = vsel %vm510, %v4363, 0.0
  %4371 = vadd.xlane.f32.xlu0 %v4370
  %v4372 = vpop.xlane.xlu0 %4371
  %v4373 = vsel %vm510, %v4365, 0.0
  %4374 = vadd.xlane.f32.xlu0 %v4373
  %v4375 = vpop.xlane.xlu0 %4374
  %v4376 = vsel %vm510, %v4367, 0.0
  %4377 = vadd.xlane.f32.xlu0 %v4376
  %v4378 = vpop.xlane.xlu0 %4377
  %v4379 = vsel %vm510, %v4369, 0.0
  %4380 = vadd.xlane.f32.xlu0 %v4379
  %v4381 = vpop.xlane.xlu0 %4380
  %v4382 = vrcp.pop %v4372
  %v4383 = vrcp.pop %v4375
  %v4384 = vrcp.pop %v4378
  %v4385 = vrcp.pop %v4381
  %v4386 = vmul.f32 %v4363, %v4382
  %v4387 = vmul.f32 %v4365, %v4383
  %v4388 = vmul.f32 %v4367, %v4384
  %v4389 = vmul.f32 %v4369, %v4385
  %v4390 = vpack.c.bf16 %v4387, %v4386
  %v4391 = vpack.c.bf16 %v4389, %v4388
  %4393 = vrot.lane.b32.xlu0 %v3998, 112
  %v4394 = vpop.permute.xlu0 %4393
  %v4397 = vsel %vm510, %v4390, 0
  %4399 = vmatprep.subr.bf16.mxu0 0
  %4400 = vmatpush1.bf16.msra.mxu0 %v4394
  %4401 = vmatprep.subr.bf16.mxu0 0
  %4402 = vmatpush1.bf16.msra.mxu0 0
  %4403 = vmatprep.subr.bf16.mxu0 0
  %4404 = vmatpush1.bf16.msra.mxu0 0
  %4405 = vmatprep.subr.bf16.mxu0 0
  %4406 = vmatpush1.bf16.msra.mxu0 0
  %4407 = vmatprep.subr.bf16.mxu0 0
  %4408 = vmatpush1.bf16.msra.mxu0 0
  %4409 = vmatprep.subr.bf16.mxu0 0
  %4410 = vmatpush1.bf16.msra.mxu0 0
  %4411 = vmatprep.subr.bf16.mxu0 0
  %4412 = vmatpush1.bf16.msra.mxu0 0
  %4413 = vmatprep.subr.bf16.mxu0 0
  %4414 = vmatpush1.bf16.msra.mxu0 0
  %4415 = vmatprep.subr.bf16.mxu0 0
  %4416 = vmatpush1.bf16.msra.mxu0 0
  %4417 = vmatprep.subr.bf16.mxu0 0
  %4418 = vmatpush1.bf16.msra.mxu0 0
  %4419 = vmatprep.subr.bf16.mxu0 0
  %4420 = vmatpush1.bf16.msra.mxu0 0
  %4421 = vmatprep.subr.bf16.mxu0 0
  %4422 = vmatpush1.bf16.msra.mxu0 0
  %4423 = vmatprep.subr.bf16.mxu0 0
  %4424 = vmatpush1.bf16.msra.mxu0 0
  %4425 = vmatprep.subr.bf16.mxu0 0
  %4426 = vmatpush1.bf16.msra.mxu0 0
  %4427 = vmatprep.subr.bf16.mxu0 0
  %4428 = vmatpush1.bf16.msra.mxu0 0
  %4429 = vmatprep.subr.bf16.mxu0 0
  %4430 = vmatpush1.bf16.msra.mxu0 0
  %4431 = vmatprep.mubr.bf16.mxu0 0
  %4432 = vmatmul.mubr.bf16.gmra.mrb[0].mxu0 %v4397
  %v4433 = vpop.f32.mrb[0].mxu0
  %v4434 = vadd.f32 0.0, %v4433
  %v4435 = vpop.f32.mrb[0].mxu0
  %v4436 = vpop.f32.mrb[0].mxu0
  %v4437 = vadd.f32 0.0, %v4436
  %v4438 = vpop.f32.mrb[0].mxu0
  %4439 = vdwg.mxu0
  %4441 = vrot.lane.b32.xlu0 %v3999, 112
  %v4442 = vpop.permute.xlu0 %4441
  %v4445 = vsel %vm510, %v4391, 0
  %4447 = vmatprep.subr.bf16.mxu0 0
  %4448 = vmatpush1.bf16.msra.mxu0 %v4442
  %4449 = vmatprep.subr.bf16.mxu0 0
  %4450 = vmatpush1.bf16.msra.mxu0 0
  %4451 = vmatprep.subr.bf16.mxu0 0
  %4452 = vmatpush1.bf16.msra.mxu0 0
  %4453 = vmatprep.subr.bf16.mxu0 0
  %4454 = vmatpush1.bf16.msra.mxu0 0
  %4455 = vmatprep.subr.bf16.mxu0 0
  %4456 = vmatpush1.bf16.msra.mxu0 0
  %4457 = vmatprep.subr.bf16.mxu0 0
  %4458 = vmatpush1.bf16.msra.mxu0 0
  %4459 = vmatprep.subr.bf16.mxu0 0
  %4460 = vmatpush1.bf16.msra.mxu0 0
  %4461 = vmatprep.subr.bf16.mxu0 0
  %4462 = vmatpush1.bf16.msra.mxu0 0
  %4463 = vmatprep.subr.bf16.mxu0 0
  %4464 = vmatpush1.bf16.msra.mxu0 0
  %4465 = vmatprep.subr.bf16.mxu0 0
  %4466 = vmatpush1.bf16.msra.mxu0 0
  %4467 = vmatprep.subr.bf16.mxu0 0
  %4468 = vmatpush1.bf16.msra.mxu0 0
  %4469 = vmatprep.subr.bf16.mxu0 0
  %4470 = vmatpush1.bf16.msra.mxu0 0
  %4471 = vmatprep.subr.bf16.mxu0 0
  %4472 = vmatpush1.bf16.msra.mxu0 0
  %4473 = vmatprep.subr.bf16.mxu0 0
  %4474 = vmatpush1.bf16.msra.mxu0 0
  %4475 = vmatprep.subr.bf16.mxu0 0
  %4476 = vmatpush1.bf16.msra.mxu0 0
  %4477 = vmatprep.subr.bf16.mxu0 0
  %4478 = vmatpush1.bf16.msra.mxu0 0
  %4479 = vmatprep.mubr.bf16.mxu0 0
  %4480 = vmatmul.mubr.bf16.gmra.mrb[0].mxu0 %v4445
  %v4481 = vpop.f32.mrb[0].mxu0
  %v4482 = vadd.f32 0.0, %v4481
  %v4483 = vpop.f32.mrb[0].mxu0
  %v4484 = vpop.f32.mrb[0].mxu0
  %v4485 = vadd.f32 0.0, %v4484
  %v4486 = vpop.f32.mrb[0].mxu0
  %4487 = vdwg.mxu0
  %4492 = vrot.lane.b32.xlu0 %v4434, 16
  %v4493 = vpop.permute.xlu0 %4492
  %4494 = vrot.lane.b32.xlu0 %v4437, 16
  %v4495 = vpop.permute.xlu0 %4494
  %4496 = vrot.lane.b32.xlu0 %v4482, 16
  %v4497 = vpop.permute.xlu0 %4496
  %4498 = vrot.lane.b32.xlu0 %v4485, 16
  %v4499 = vpop.permute.xlu0 %4498
  %4504 = vst.msk [vmem:[#allocation2] sm:$0xff] %vm1015, %v4493
  %4505 = vst.msk [vmem:[#allocation2 + $0x8] sm:$0xff] %vm1015, %v4495
  %4506 = vst.msk [vmem:[#allocation2 + $0x10] sm:$0xff] %vm1015, %v4497
  %4507 = vst.msk [vmem:[#allocation2 + $0x18] sm:$0xff] %vm1015, %v4499
  %4508 = vrot.lane.b32.xlu0 %v3994, 96
  %v4509 = vpop.permute.xlu0 %4508
  %4510 = vrot.lane.b32.xlu0 %v3996, 96
  %v4511 = vpop.permute.xlu0 %4510
  %v4513 = vsel %vm510, %v4509, 0
  %v4516 = vsel %vm510, %v4511, 0
  %4518 = vmatprep.subr.bf16.mxu0 0
  %4519 = vmatpush1.bf16.xpose.msra.mxu0 %v4516
  %4520 = vmatprep.subr.bf16.mxu0 0
  %4521 = vmatpush1.bf16.xpose.msra.mxu0 0
  %4522 = vmatprep.subr.bf16.mxu0 0
  %4523 = vmatpush1.bf16.xpose.msra.mxu0 0
  %4524 = vmatprep.subr.bf16.mxu0 0
  %4525 = vmatpush1.bf16.xpose.msra.mxu0 0
  %4526 = vmatprep.subr.bf16.mxu0 0
  %4527 = vmatpush1.bf16.xpose.msra.mxu0 0
  %4528 = vmatprep.subr.bf16.mxu0 0
  %4529 = vmatpush1.bf16.xpose.msra.mxu0 0
  %4530 = vmatprep.subr.bf16.mxu0 0
  %4531 = vmatpush1.bf16.xpose.msra.mxu0 0
  %4532 = vmatprep.subr.bf16.mxu0 0
  %4533 = vmatpush1.bf16.xpose.msra.mxu0 0
  %4534 = vmatprep.subr.bf16.mxu0 0
  %4535 = vmatpush1.bf16.xpose.msra.mxu0 0
  %4536 = vmatprep.subr.bf16.mxu0 0
  %4537 = vmatpush1.bf16.xpose.msra.mxu0 0
  %4538 = vmatprep.subr.bf16.mxu0 0
  %4539 = vmatpush1.bf16.xpose.msra.mxu0 0
  %4540 = vmatprep.subr.bf16.mxu0 0
  %4541 = vmatpush1.bf16.xpose.msra.mxu0 0
  %4542 = vmatprep.subr.bf16.mxu0 0
  %4543 = vmatpush1.bf16.xpose.msra.mxu0 0
  %4544 = vmatprep.subr.bf16.mxu0 0
  %4545 = vmatpush1.bf16.xpose.msra.mxu0 0
  %4546 = vmatprep.subr.bf16.mxu0 0
  %4547 = vmatpush1.bf16.xpose.msra.mxu0 0
  %4548 = vmatprep.subr.bf16.mxu0 0
  %4549 = vmatpush1.bf16.xpose.msra.mxu0 0
  %4550 = vmatprep.mubr.bf16.mxu0 0
  %4551 = vmatmul.mubr.bf16.gmra.mrb[0].mxu0 %v4513
  %v4552 = vpop.f32.mrb[0].mxu0
  %v4553 = vadd.f32 0.0, %v4552
  %v4554 = vpop.f32.mrb[0].mxu0
  %v4555 = vpop.f32.mrb[0].mxu0
  %v4556 = vadd.f32 0.0, %v4555
  %v4557 = vpop.f32.mrb[0].mxu0
  %4558 = vdwg.mxu0
  %4559 = vrot.lane.b32.xlu0 %v3995, 96
  %v4560 = vpop.permute.xlu0 %4559
  %4561 = vrot.lane.b32.xlu0 %v3997, 96
  %v4562 = vpop.permute.xlu0 %4561
  %v4564 = vsel %vm510, %v4560, 0
  %v4567 = vsel %vm510, %v4562, 0
  %4569 = vmatprep.subr.bf16.mxu0 0
  %4570 = vmatpush1.bf16.xpose.msra.mxu0 %v4567
  %4571 = vmatprep.subr.bf16.mxu0 0
  %4572 = vmatpush1.bf16.xpose.msra.mxu0 0
  %4573 = vmatprep.subr.bf16.mxu0 0
  %4574 = vmatpush1.bf16.xpose.msra.mxu0 0
  %4575 = vmatprep.subr.bf16.mxu0 0
  %4576 = vmatpush1.bf16.xpose.msra.mxu0 0
  %4577 = vmatprep.subr.bf16.mxu0 0
  %4578 = vmatpush1.bf16.xpose.msra.mxu0 0
  %4579 = vmatprep.subr.bf16.mxu0 0
  %4580 = vmatpush1.bf16.xpose.msra.mxu0 0
  %4581 = vmatprep.subr.bf16.mxu0 0
  %4582 = vmatpush1.bf16.xpose.msra.mxu0 0
  %4583 = vmatprep.subr.bf16.mxu0 0
  %4584 = vmatpush1.bf16.xpose.msra.mxu0 0
  %4585 = vmatprep.subr.bf16.mxu0 0
  %4586 = vmatpush1.bf16.xpose.msra.mxu0 0
  %4587 = vmatprep.subr.bf16.mxu0 0
  %4588 = vmatpush1.bf16.xpose.msra.mxu0 0
  %4589 = vmatprep.subr.bf16.mxu0 0
  %4590 = vmatpush1.bf16.xpose.msra.mxu0 0
  %4591 = vmatprep.subr.bf16.mxu0 0
  %4592 = vmatpush1.bf16.xpose.msra.mxu0 0
  %4593 = vmatprep.subr.bf16.mxu0 0
  %4594 = vmatpush1.bf16.xpose.msra.mxu0 0
  %4595 = vmatprep.subr.bf16.mxu0 0
  %4596 = vmatpush1.bf16.xpose.msra.mxu0 0
  %4597 = vmatprep.subr.bf16.mxu0 0
  %4598 = vmatpush1.bf16.xpose.msra.mxu0 0
  %4599 = vmatprep.subr.bf16.mxu0 0
  %4600 = vmatpush1.bf16.xpose.msra.mxu0 0
  %4601 = vmatprep.mubr.bf16.mxu0 0
  %4602 = vmatmul.mubr.bf16.gmra.mrb[0].mxu0 %v4564
  %v4603 = vpop.f32.mrb[0].mxu0
  %v4604 = vadd.f32 0.0, %v4603
  %v4605 = vpop.f32.mrb[0].mxu0
  %v4606 = vpop.f32.mrb[0].mxu0
  %v4607 = vadd.f32 0.0, %v4606
  %v4608 = vpop.f32.mrb[0].mxu0
  %4609 = vdwg.mxu0
  %v4610 = vmul.f32 %v4553, 0.25
  %v4611 = vmul.f32 %v4556, 0.25
  %v4612 = vmul.f32 %v4604, 0.25
  %v4613 = vmul.f32 %v4607, 0.25
  %v4614 = vsel %vm510, %v4610, -inf
  %4615 = vmax.xlane.f32.xlu0 %v4614
  %v4616 = vpop.xlane.xlu0 %4615
  %v4617 = vsel %vm510, %v4611, -inf
  %4618 = vmax.xlane.f32.xlu0 %v4617
  %v4619 = vpop.xlane.xlu0 %4618
  %v4620 = vsel %vm510, %v4612, -inf
  %4621 = vmax.xlane.f32.xlu0 %v4620
  %v4622 = vpop.xlane.xlu0 %4621
  %v4623 = vsel %vm510, %v4613, -inf
  %4624 = vmax.xlane.f32.xlu0 %v4623
  %v4625 = vpop.xlane.xlu0 %4624
  %v4626 = vsub.f32 %v4610, %v4616
  %v4627 = vsub.f32 %v4611, %v4619
  %v4628 = vsub.f32 %v4612, %v4622
  %v4629 = vsub.f32 %v4613, %v4625
  %v4630 = vmul.f32 %v4626, 1.442695
  %v4631 = vpow.pop %v4630
  %v4632 = vmul.f32 %v4627, 1.442695
  %v4633 = vpow.pop %v4632
  %v4634 = vmul.f32 %v4628, 1.442695
  %v4635 = vpow.pop %v4634
  %v4636 = vmul.f32 %v4629, 1.442695
  %v4637 = vpow.pop %v4636
  %v4638 = vsel %vm510, %v4631, 0.0
  %4639 = vadd.xlane.f32.xlu0 %v4638
  %v4640 = vpop.xlane.xlu0 %4639
  %v4641 = vsel %vm510, %v4633, 0.0
  %4642 = vadd.xlane.f32.xlu0 %v4641
  %v4643 = vpop.xlane.xlu0 %4642
  %v4644 = vsel %vm510, %v4635, 0.0
  %4645 = vadd.xlane.f32.xlu0 %v4644
  %v4646 = vpop.xlane.xlu0 %4645
  %v4647 = vsel %vm510, %v4637, 0.0
  %4648 = vadd.xlane.f32.xlu0 %v4647
  %v4649 = vpop.xlane.xlu0 %4648
  %v4650 = vrcp.pop %v4640
  %v4651 = vrcp.pop %v4643
  %v4652 = vrcp.pop %v4646
  %v4653 = vrcp.pop %v4649
  %v4654 = vmul.f32 %v4631, %v4650
  %v4655 = vmul.f32 %v4633, %v4651
  %v4656 = vmul.f32 %v4635, %v4652
  %v4657 = vmul.f32 %v4637, %v4653
  %v4658 = vpack.c.bf16 %v4655, %v4654
  %v4659 = vpack.c.bf16 %v4657, %v4656
  %4660 = vrot.lane.b32.xlu0 %v3998, 96
  %v4661 = vpop.permute.xlu0 %4660
  %v4664 = vsel %vm510, %v4658, 0
  %4666 = vmatprep.subr.bf16.mxu0 0
  %4667 = vmatpush1.bf16.msra.mxu0 %v4661
  %4668 = vmatprep.subr.bf16.mxu0 0
  %4669 = vmatpush1.bf16.msra.mxu0 0
  %4670 = vmatprep.subr.bf16.mxu0 0
  %4671 = vmatpush1.bf16.msra.mxu0 0
  %4672 = vmatprep.subr.bf16.mxu0 0
  %4673 = vmatpush1.bf16.msra.mxu0 0
  %4674 = vmatprep.subr.bf16.mxu0 0
  %4675 = vmatpush1.bf16.msra.mxu0 0
  %4676 = vmatprep.subr.bf16.mxu0 0
  %4677 = vmatpush1.bf16.msra.mxu0 0
  %4678 = vmatprep.subr.bf16.mxu0 0
  %4679 = vmatpush1.bf16.msra.mxu0 0
  %4680 = vmatprep.subr.bf16.mxu0 0
  %4681 = vmatpush1.bf16.msra.mxu0 0
  %4682 = vmatprep.subr.bf16.mxu0 0
  %4683 = vmatpush1.bf16.msra.mxu0 0
  %4684 = vmatprep.subr.bf16.mxu0 0
  %4685 = vmatpush1.bf16.msra.mxu0 0
  %4686 = vmatprep.subr.bf16.mxu0 0
  %4687 = vmatpush1.bf16.msra.mxu0 0
  %4688 = vmatprep.subr.bf16.mxu0 0
  %4689 = vmatpush1.bf16.msra.mxu0 0
  %4690 = vmatprep.subr.bf16.mxu0 0
  %4691 = vmatpush1.bf16.msra.mxu0 0
  %4692 = vmatprep.subr.bf16.mxu0 0
  %4693 = vmatpush1.bf16.msra.mxu0 0
  %4694 = vmatprep.subr.bf16.mxu0 0
  %4695 = vmatpush1.bf16.msra.mxu0 0
  %4696 = vmatprep.subr.bf16.mxu0 0
  %4697 = vmatpush1.bf16.msra.mxu0 0
  %4698 = vmatprep.mubr.bf16.mxu0 0
  %4699 = vmatmul.mubr.bf16.gmra.mrb[0].mxu0 %v4664
  %v4700 = vpop.f32.mrb[0].mxu0
  %v4701 = vadd.f32 0.0, %v4700
  %v4702 = vpop.f32.mrb[0].mxu0
  %v4703 = vpop.f32.mrb[0].mxu0
  %v4704 = vadd.f32 0.0, %v4703
  %v4705 = vpop.f32.mrb[0].mxu0
  %4706 = vdwg.mxu0
  %4707 = vrot.lane.b32.xlu0 %v3999, 96
  %v4708 = vpop.permute.xlu0 %4707
  %v4711 = vsel %vm510, %v4659, 0
  %4713 = vmatprep.subr.bf16.mxu0 0
  %4714 = vmatpush1.bf16.msra.mxu0 %v4708
  %4715 = vmatprep.subr.bf16.mxu0 0
  %4716 = vmatpush1.bf16.msra.mxu0 0
  %4717 = vmatprep.subr.bf16.mxu0 0
  %4718 = vmatpush1.bf16.msra.mxu0 0
  %4719 = vmatprep.subr.bf16.mxu0 0
  %4720 = vmatpush1.bf16.msra.mxu0 0
  %4721 = vmatprep.subr.bf16.mxu0 0
  %4722 = vmatpush1.bf16.msra.mxu0 0
  %4723 = vmatprep.subr.bf16.mxu0 0
  %4724 = vmatpush1.bf16.msra.mxu0 0
  %4725 = vmatprep.subr.bf16.mxu0 0
  %4726 = vmatpush1.bf16.msra.mxu0 0
  %4727 = vmatprep.subr.bf16.mxu0 0
  %4728 = vmatpush1.bf16.msra.mxu0 0
  %4729 = vmatprep.subr.bf16.mxu0 0
  %4730 = vmatpush1.bf16.msra.mxu0 0
  %4731 = vmatprep.subr.bf16.mxu0 0
  %4732 = vmatpush1.bf16.msra.mxu0 0
  %4733 = vmatprep.subr.bf16.mxu0 0
  %4734 = vmatpush1.bf16.msra.mxu0 0
  %4735 = vmatprep.subr.bf16.mxu0 0
  %4736 = vmatpush1.bf16.msra.mxu0 0
  %4737 = vmatprep.subr.bf16.mxu0 0
  %4738 = vmatpush1.bf16.msra.mxu0 0
  %4739 = vmatprep.subr.bf16.mxu0 0
  %4740 = vmatpush1.bf16.msra.mxu0 0
  %4741 = vmatprep.subr.bf16.mxu0 0
  %4742 = vmatpush1.bf16.msra.mxu0 0
  %4743 = vmatprep.subr.bf16.mxu0 0
  %4744 = vmatpush1.bf16.msra.mxu0 0
  %4745 = vmatprep.mubr.bf16.mxu0 0
  %4746 = vmatmul.mubr.bf16.gmra.mrb[0].mxu0 %v4711
  %v4747 = vpop.f32.mrb[0].mxu0
  %v4748 = vadd.f32 0.0, %v4747
  %v4749 = vpop.f32.mrb[0].mxu0
  %v4750 = vpop.f32.mrb[0].mxu0
  %v4751 = vadd.f32 0.0, %v4750
  %v4752 = vpop.f32.mrb[0].mxu0
  %4753 = vdwg.mxu0
  %4758 = vrot.lane.b32.xlu0 %v4701, 32
  %v4759 = vpop.permute.xlu0 %4758
  %4760 = vrot.lane.b32.xlu0 %v4704, 32
  %v4761 = vpop.permute.xlu0 %4760
  %4762 = vrot.lane.b32.xlu0 %v4748, 32
  %v4763 = vpop.permute.xlu0 %4762
  %4764 = vrot.lane.b32.xlu0 %v4751, 32
  %v4765 = vpop.permute.xlu0 %4764
  %4770 = vst.msk [vmem:[#allocation2] sm:$0xff] %vm1282, %v4759
  %4771 = vst.msk [vmem:[#allocation2 + $0x8] sm:$0xff] %vm1282, %v4761
  %4772 = vst.msk [vmem:[#allocation2 + $0x10] sm:$0xff] %vm1282, %v4763
  %4773 = vst.msk [vmem:[#allocation2 + $0x18] sm:$0xff] %vm1282, %v4765
  %4774 = vrot.lane.b32.xlu0 %v3994, 80
  %v4775 = vpop.permute.xlu0 %4774
  %4776 = vrot.lane.b32.xlu0 %v3996, 80
  %v4777 = vpop.permute.xlu0 %4776
  %v4779 = vsel %vm510, %v4775, 0
  %v4782 = vsel %vm510, %v4777, 0
  %4784 = vmatprep.subr.bf16.mxu0 0
  %4785 = vmatpush1.bf16.xpose.msra.mxu0 %v4782
  %4786 = vmatprep.subr.bf16.mxu0 0
  %4787 = vmatpush1.bf16.xpose.msra.mxu0 0
  %4788 = vmatprep.subr.bf16.mxu0 0
  %4789 = vmatpush1.bf16.xpose.msra.mxu0 0
  %4790 = vmatprep.subr.bf16.mxu0 0
  %4791 = vmatpush1.bf16.xpose.msra.mxu0 0
  %4792 = vmatprep.subr.bf16.mxu0 0
  %4793 = vmatpush1.bf16.xpose.msra.mxu0 0
  %4794 = vmatprep.subr.bf16.mxu0 0
  %4795 = vmatpush1.bf16.xpose.msra.mxu0 0
  %4796 = vmatprep.subr.bf16.mxu0 0
  %4797 = vmatpush1.bf16.xpose.msra.mxu0 0
  %4798 = vmatprep.subr.bf16.mxu0 0
  %4799 = vmatpush1.bf16.xpose.msra.mxu0 0
  %4800 = vmatprep.subr.bf16.mxu0 0
  %4801 = vmatpush1.bf16.xpose.msra.mxu0 0
  %4802 = vmatprep.subr.bf16.mxu0 0
  %4803 = vmatpush1.bf16.xpose.msra.mxu0 0
  %4804 = vmatprep.subr.bf16.mxu0 0
  %4805 = vmatpush1.bf16.xpose.msra.mxu0 0
  %4806 = vmatprep.subr.bf16.mxu0 0
  %4807 = vmatpush1.bf16.xpose.msra.mxu0 0
  %4808 = vmatprep.subr.bf16.mxu0 0
  %4809 = vmatpush1.bf16.xpose.msra.mxu0 0
  %4810 = vmatprep.subr.bf16.mxu0 0
  %4811 = vmatpush1.bf16.xpose.msra.mxu0 0
  %4812 = vmatprep.subr.bf16.mxu0 0
  %4813 = vmatpush1.bf16.xpose.msra.mxu0 0
  %4814 = vmatprep.subr.bf16.mxu0 0
  %4815 = vmatpush1.bf16.xpose.msra.mxu0 0
  %4816 = vmatprep.mubr.bf16.mxu0 0
  %4817 = vmatmul.mubr.bf16.gmra.mrb[0].mxu0 %v4779
  %v4818 = vpop.f32.mrb[0].mxu0
  %v4819 = vadd.f32 0.0, %v4818
  %v4820 = vpop.f32.mrb[0].mxu0
  %v4821 = vpop.f32.mrb[0].mxu0
  %v4822 = vadd.f32 0.0, %v4821
  %v4823 = vpop.f32.mrb[0].mxu0
  %4824 = vdwg.mxu0
  %4825 = vrot.lane.b32.xlu0 %v3995, 80
  %v4826 = vpop.permute.xlu0 %4825
  %4827 = vrot.lane.b32.xlu0 %v3997, 80
  %v4828 = vpop.permute.xlu0 %4827
  %v4830 = vsel %vm510, %v4826, 0
  %v4833 = vsel %vm510, %v4828, 0
  %4835 = vmatprep.subr.bf16.mxu0 0
  %4836 = vmatpush1.bf16.xpose.msra.mxu0 %v4833
  %4837 = vmatprep.subr.bf16.mxu0 0
  %4838 = vmatpush1.bf16.xpose.msra.mxu0 0
  %4839 = vmatprep.subr.bf16.mxu0 0
  %4840 = vmatpush1.bf16.xpose.msra.mxu0 0
  %4841 = vmatprep.subr.bf16.mxu0 0
  %4842 = vmatpush1.bf16.xpose.msra.mxu0 0
  %4843 = vmatprep.subr.bf16.mxu0 0
  %4844 = vmatpush1.bf16.xpose.msra.mxu0 0
  %4845 = vmatprep.subr.bf16.mxu0 0
  %4846 = vmatpush1.bf16.xpose.msra.mxu0 0
  %4847 = vmatprep.subr.bf16.mxu0 0
  %4848 = vmatpush1.bf16.xpose.msra.mxu0 0
  %4849 = vmatprep.subr.bf16.mxu0 0
  %4850 = vmatpush1.bf16.xpose.msra.mxu0 0
  %4851 = vmatprep.subr.bf16.mxu0 0
  %4852 = vmatpush1.bf16.xpose.msra.mxu0 0
  %4853 = vmatprep.subr.bf16.mxu0 0
  %4854 = vmatpush1.bf16.xpose.msra.mxu0 0
  %4855 = vmatprep.subr.bf16.mxu0 0
  %4856 = vmatpush1.bf16.xpose.msra.mxu0 0
  %4857 = vmatprep.subr.bf16.mxu0 0
  %4858 = vmatpush1.bf16.xpose.msra.mxu0 0
  %4859 = vmatprep.subr.bf16.mxu0 0
  %4860 = vmatpush1.bf16.xpose.msra.mxu0 0
  %4861 = vmatprep.subr.bf16.mxu0 0
  %4862 = vmatpush1.bf16.xpose.msra.mxu0 0
  %4863 = vmatprep.subr.bf16.mxu0 0
  %4864 = vmatpush1.bf16.xpose.msra.mxu0 0
  %4865 = vmatprep.subr.bf16.mxu0 0
  %4866 = vmatpush1.bf16.xpose.msra.mxu0 0
  %4867 = vmatprep.mubr.bf16.mxu0 0
  %4868 = vmatmul.mubr.bf16.gmra.mrb[0].mxu0 %v4830
  %v4869 = vpop.f32.mrb[0].mxu0
  %v4870 = vadd.f32 0.0, %v4869
  %v4871 = vpop.f32.mrb[0].mxu0
  %v4872 = vpop.f32.mrb[0].mxu0
  %v4873 = vadd.f32 0.0, %v4872
  %v4874 = vpop.f32.mrb[0].mxu0
  %4875 = vdwg.mxu0
  %v4876 = vmul.f32 %v4819, 0.25
  %v4877 = vmul.f32 %v4822, 0.25
  %v4878 = vmul.f32 %v4870, 0.25
  %v4879 = vmul.f32 %v4873, 0.25
  %v4880 = vsel %vm510, %v4876, -inf
  %4881 = vmax.xlane.f32.xlu0 %v4880
  %v4882 = vpop.xlane.xlu0 %4881
  %v4883 = vsel %vm510, %v4877, -inf
  %4884 = vmax.xlane.f32.xlu0 %v4883
  %v4885 = vpop.xlane.xlu0 %4884
  %v4886 = vsel %vm510, %v4878, -inf
  %4887 = vmax.xlane.f32.xlu0 %v4886
  %v4888 = vpop.xlane.xlu0 %4887
  %v4889 = vsel %vm510, %v4879, -inf
  %4890 = vmax.xlane.f32.xlu0 %v4889
  %v4891 = vpop.xlane.xlu0 %4890
  %v4892 = vsub.f32 %v4876, %v4882
  %v4893 = vsub.f32 %v4877, %v4885
  %v4894 = vsub.f32 %v4878, %v4888
  %v4895 = vsub.f32 %v4879, %v4891
  %v4896 = vmul.f32 %v4892, 1.442695
  %v4897 = vpow.pop %v4896
  %v4898 = vmul.f32 %v4893, 1.442695
  %v4899 = vpow.pop %v4898
  %v4900 = vmul.f32 %v4894, 1.442695
  %v4901 = vpow.pop %v4900
  %v4902 = vmul.f32 %v4895, 1.442695
  %v4903 = vpow.pop %v4902
  %v4904 = vsel %vm510, %v4897, 0.0
  %4905 = vadd.xlane.f32.xlu0 %v4904
  %v4906 = vpop.xlane.xlu0 %4905
  %v4907 = vsel %vm510, %v4899, 0.0
  %4908 = vadd.xlane.f32.xlu0 %v4907
  %v4909 = vpop.xlane.xlu0 %4908
  %v4910 = vsel %vm510, %v4901, 0.0
  %4911 = vadd.xlane.f32.xlu0 %v4910
  %v4912 = vpop.xlane.xlu0 %4911
  %v4913 = vsel %vm510, %v4903, 0.0
  %4914 = vadd.xlane.f32.xlu0 %v4913
  %v4915 = vpop.xlane.xlu0 %4914
  %v4916 = vrcp.pop %v4906
  %v4917 = vrcp.pop %v4909
  %v4918 = vrcp.pop %v4912
  %v4919 = vrcp.pop %v4915
  %v4920 = vmul.f32 %v4897, %v4916
  %v4921 = vmul.f32 %v4899, %v4917
  %v4922 = vmul.f32 %v4901, %v4918
  %v4923 = vmul.f32 %v4903, %v4919
  %v4924 = vpack.c.bf16 %v4921, %v4920
  %v4925 = vpack.c.bf16 %v4923, %v4922
  %4926 = vrot.lane.b32.xlu0 %v3998, 80
  %v4927 = vpop.permute.xlu0 %4926
  %v4930 = vsel %vm510, %v4924, 0
  %4932 = vmatprep.subr.bf16.mxu0 0
  %4933 = vmatpush1.bf16.msra.mxu0 %v4927
  %4934 = vmatprep.subr.bf16.mxu0 0
  %4935 = vmatpush1.bf16.msra.mxu0 0
  %4936 = vmatprep.subr.bf16.mxu0 0
  %4937 = vmatpush1.bf16.msra.mxu0 0
  %4938 = vmatprep.subr.bf16.mxu0 0
  %4939 = vmatpush1.bf16.msra.mxu0 0
  %4940 = vmatprep.subr.bf16.mxu0 0
  %4941 = vmatpush1.bf16.msra.mxu0 0
  %4942 = vmatprep.subr.bf16.mxu0 0
  %4943 = vmatpush1.bf16.msra.mxu0 0
  %4944 = vmatprep.subr.bf16.mxu0 0
  %4945 = vmatpush1.bf16.msra.mxu0 0
  %4946 = vmatprep.subr.bf16.mxu0 0
  %4947 = vmatpush1.bf16.msra.mxu0 0
  %4948 = vmatprep.subr.bf16.mxu0 0
  %4949 = vmatpush1.bf16.msra.mxu0 0
  %4950 = vmatprep.subr.bf16.mxu0 0
  %4951 = vmatpush1.bf16.msra.mxu0 0
  %4952 = vmatprep.subr.bf16.mxu0 0
  %4953 = vmatpush1.bf16.msra.mxu0 0
  %4954 = vmatprep.subr.bf16.mxu0 0
  %4955 = vmatpush1.bf16.msra.mxu0 0
  %4956 = vmatprep.subr.bf16.mxu0 0
  %4957 = vmatpush1.bf16.msra.mxu0 0
  %4958 = vmatprep.subr.bf16.mxu0 0
  %4959 = vmatpush1.bf16.msra.mxu0 0
  %4960 = vmatprep.subr.bf16.mxu0 0
  %4961 = vmatpush1.bf16.msra.mxu0 0
  %4962 = vmatprep.subr.bf16.mxu0 0
  %4963 = vmatpush1.bf16.msra.mxu0 0
  %4964 = vmatprep.mubr.bf16.mxu0 0
  %4965 = vmatmul.mubr.bf16.gmra.mrb[0].mxu0 %v4930
  %v4966 = vpop.f32.mrb[0].mxu0
  %v4967 = vadd.f32 0.0, %v4966
  %v4968 = vpop.f32.mrb[0].mxu0
  %v4969 = vpop.f32.mrb[0].mxu0
  %v4970 = vadd.f32 0.0, %v4969
  %v4971 = vpop.f32.mrb[0].mxu0
  %4972 = vdwg.mxu0
  %4973 = vrot.lane.b32.xlu0 %v3999, 80
  %v4974 = vpop.permute.xlu0 %4973
  %v4977 = vsel %vm510, %v4925, 0
  %4979 = vmatprep.subr.bf16.mxu0 0
  %4980 = vmatpush1.bf16.msra.mxu0 %v4974
  %4981 = vmatprep.subr.bf16.mxu0 0
  %4982 = vmatpush1.bf16.msra.mxu0 0
  %4983 = vmatprep.subr.bf16.mxu0 0
  %4984 = vmatpush1.bf16.msra.mxu0 0
  %4985 = vmatprep.subr.bf16.mxu0 0
  %4986 = vmatpush1.bf16.msra.mxu0 0
  %4987 = vmatprep.subr.bf16.mxu0 0
  %4988 = vmatpush1.bf16.msra.mxu0 0
  %4989 = vmatprep.subr.bf16.mxu0 0
  %4990 = vmatpush1.bf16.msra.mxu0 0
  %4991 = vmatprep.subr.bf16.mxu0 0
  %4992 = vmatpush1.bf16.msra.mxu0 0
  %4993 = vmatprep.subr.bf16.mxu0 0
  %4994 = vmatpush1.bf16.msra.mxu0 0
  %4995 = vmatprep.subr.bf16.mxu0 0
  %4996 = vmatpush1.bf16.msra.mxu0 0
  %4997 = vmatprep.subr.bf16.mxu0 0
  %4998 = vmatpush1.bf16.msra.mxu0 0
  %4999 = vmatprep.subr.bf16.mxu0 0
  %5000 = vmatpush1.bf16.msra.mxu0 0
  %5001 = vmatprep.subr.bf16.mxu0 0
  %5002 = vmatpush1.bf16.msra.mxu0 0
  %5003 = vmatprep.subr.bf16.mxu0 0
  %5004 = vmatpush1.bf16.msra.mxu0 0
  %5005 = vmatprep.subr.bf16.mxu0 0
  %5006 = vmatpush1.bf16.msra.mxu0 0
  %5007 = vmatprep.subr.bf16.mxu0 0
  %5008 = vmatpush1.bf16.msra.mxu0 0
  %5009 = vmatprep.subr.bf16.mxu0 0
  %5010 = vmatpush1.bf16.msra.mxu0 0
  %5011 = vmatprep.mubr.bf16.mxu0 0
  %5012 = vmatmul.mubr.bf16.gmra.mrb[0].mxu0 %v4977
  %v5013 = vpop.f32.mrb[0].mxu0
  %v5014 = vadd.f32 0.0, %v5013
  %v5015 = vpop.f32.mrb[0].mxu0
  %v5016 = vpop.f32.mrb[0].mxu0
  %v5017 = vadd.f32 0.0, %v5016
  %v5018 = vpop.f32.mrb[0].mxu0
  %5019 = vdwg.mxu0
  %5024 = vrot.lane.b32.xlu0 %v4967, 48
  %v5025 = vpop.permute.xlu0 %5024
  %5026 = vrot.lane.b32.xlu0 %v4970, 48
  %v5027 = vpop.permute.xlu0 %5026
  %5028 = vrot.lane.b32.xlu0 %v5014, 48
  %v5029 = vpop.permute.xlu0 %5028
  %5030 = vrot.lane.b32.xlu0 %v5017, 48
  %v5031 = vpop.permute.xlu0 %5030
  %5036 = vst.msk [vmem:[#allocation2] sm:$0xff] %vm1549, %v5025
  %5037 = vst.msk [vmem:[#allocation2 + $0x8] sm:$0xff] %vm1549, %v5027
  %5038 = vst.msk [vmem:[#allocation2 + $0x10] sm:$0xff] %vm1549, %v5029
  %5039 = vst.msk [vmem:[#allocation2 + $0x18] sm:$0xff] %vm1549, %v5031
  %5040 = vrot.lane.b32.xlu0 %v3994, 64
  %v5041 = vpop.permute.xlu0 %5040
  %5042 = vrot.lane.b32.xlu0 %v3996, 64
  %v5043 = vpop.permute.xlu0 %5042
  %v5045 = vsel %vm510, %v5041, 0
  %v5048 = vsel %vm510, %v5043, 0
  %5050 = vmatprep.subr.bf16.mxu0 0
  %5051 = vmatpush1.bf16.xpose.msra.mxu0 %v5048
  %5052 = vmatprep.subr.bf16.mxu0 0
  %5053 = vmatpush1.bf16.xpose.msra.mxu0 0
  %5054 = vmatprep.subr.bf16.mxu0 0
  %5055 = vmatpush1.bf16.xpose.msra.mxu0 0
  %5056 = vmatprep.subr.bf16.mxu0 0
  %5057 = vmatpush1.bf16.xpose.msra.mxu0 0
  %5058 = vmatprep.subr.bf16.mxu0 0
  %5059 = vmatpush1.bf16.xpose.msra.mxu0 0
  %5060 = vmatprep.subr.bf16.mxu0 0
  %5061 = vmatpush1.bf16.xpose.msra.mxu0 0
  %5062 = vmatprep.subr.bf16.mxu0 0
  %5063 = vmatpush1.bf16.xpose.msra.mxu0 0
  %5064 = vmatprep.subr.bf16.mxu0 0
  %5065 = vmatpush1.bf16.xpose.msra.mxu0 0
  %5066 = vmatprep.subr.bf16.mxu0 0
  %5067 = vmatpush1.bf16.xpose.msra.mxu0 0
  %5068 = vmatprep.subr.bf16.mxu0 0
  %5069 = vmatpush1.bf16.xpose.msra.mxu0 0
  %5070 = vmatprep.subr.bf16.mxu0 0
  %5071 = vmatpush1.bf16.xpose.msra.mxu0 0
  %5072 = vmatprep.subr.bf16.mxu0 0
  %5073 = vmatpush1.bf16.xpose.msra.mxu0 0
  %5074 = vmatprep.subr.bf16.mxu0 0
  %5075 = vmatpush1.bf16.xpose.msra.mxu0 0
  %5076 = vmatprep.subr.bf16.mxu0 0
  %5077 = vmatpush1.bf16.xpose.msra.mxu0 0
  %5078 = vmatprep.subr.bf16.mxu0 0
  %5079 = vmatpush1.bf16.xpose.msra.mxu0 0
  %5080 = vmatprep.subr.bf16.mxu0 0
  %5081 = vmatpush1.bf16.xpose.msra.mxu0 0
  %5082 = vmatprep.mubr.bf16.mxu0 0
  %5083 = vmatmul.mubr.bf16.gmra.mrb[0].mxu0 %v5045
  %v5084 = vpop.f32.mrb[0].mxu0
  %v5085 = vadd.f32 0.0, %v5084
  %v5086 = vpop.f32.mrb[0].mxu0
  %v5087 = vpop.f32.mrb[0].mxu0
  %v5088 = vadd.f32 0.0, %v5087
  %v5089 = vpop.f32.mrb[0].mxu0
  %5090 = vdwg.mxu0
  %5091 = vrot.lane.b32.xlu0 %v3995, 64
  %v5092 = vpop.permute.xlu0 %5091
  %5093 = vrot.lane.b32.xlu0 %v3997, 64
  %v5094 = vpop.permute.xlu0 %5093
  %v5096 = vsel %vm510, %v5092, 0
  %v5099 = vsel %vm510, %v5094, 0
  %5101 = vmatprep.subr.bf16.mxu0 0
  %5102 = vmatpush1.bf16.xpose.msra.mxu0 %v5099
  %5103 = vmatprep.subr.bf16.mxu0 0
  %5104 = vmatpush1.bf16.xpose.msra.mxu0 0
  %5105 = vmatprep.subr.bf16.mxu0 0
  %5106 = vmatpush1.bf16.xpose.msra.mxu0 0
  %5107 = vmatprep.subr.bf16.mxu0 0
  %5108 = vmatpush1.bf16.xpose.msra.mxu0 0
  %5109 = vmatprep.subr.bf16.mxu0 0
  %5110 = vmatpush1.bf16.xpose.msra.mxu0 0
  %5111 = vmatprep.subr.bf16.mxu0 0
  %5112 = vmatpush1.bf16.xpose.msra.mxu0 0
  %5113 = vmatprep.subr.bf16.mxu0 0
  %5114 = vmatpush1.bf16.xpose.msra.mxu0 0
  %5115 = vmatprep.subr.bf16.mxu0 0
  %5116 = vmatpush1.bf16.xpose.msra.mxu0 0
  %5117 = vmatprep.subr.bf16.mxu0 0
  %5118 = vmatpush1.bf16.xpose.msra.mxu0 0
  %5119 = vmatprep.subr.bf16.mxu0 0
  %5120 = vmatpush1.bf16.xpose.msra.mxu0 0
  %5121 = vmatprep.subr.bf16.mxu0 0
  %5122 = vmatpush1.bf16.xpose.msra.mxu0 0
  %5123 = vmatprep.subr.bf16.mxu0 0
  %5124 = vmatpush1.bf16.xpose.msra.mxu0 0
  %5125 = vmatprep.subr.bf16.mxu0 0
  %5126 = vmatpush1.bf16.xpose.msra.mxu0 0
  %5127 = vmatprep.subr.bf16.mxu0 0
  %5128 = vmatpush1.bf16.xpose.msra.mxu0 0
  %5129 = vmatprep.subr.bf16.mxu0 0
  %5130 = vmatpush1.bf16.xpose.msra.mxu0 0
  %5131 = vmatprep.subr.bf16.mxu0 0
  %5132 = vmatpush1.bf16.xpose.msra.mxu0 0
  %5133 = vmatprep.mubr.bf16.mxu0 0
  %5134 = vmatmul.mubr.bf16.gmra.mrb[0].mxu0 %v5096
  %v5135 = vpop.f32.mrb[0].mxu0
  %v5136 = vadd.f32 0.0, %v5135
  %v5137 = vpop.f32.mrb[0].mxu0
  %v5138 = vpop.f32.mrb[0].mxu0
  %v5139 = vadd.f32 0.0, %v5138
  %v5140 = vpop.f32.mrb[0].mxu0
  %5141 = vdwg.mxu0
  %v5142 = vmul.f32 %v5085, 0.25
  %v5143 = vmul.f32 %v5088, 0.25
  %v5144 = vmul.f32 %v5136, 0.25
  %v5145 = vmul.f32 %v5139, 0.25
  %v5146 = vsel %vm510, %v5142, -inf
  %5147 = vmax.xlane.f32.xlu0 %v5146
  %v5148 = vpop.xlane.xlu0 %5147
  %v5149 = vsel %vm510, %v5143, -inf
  %5150 = vmax.xlane.f32.xlu0 %v5149
  %v5151 = vpop.xlane.xlu0 %5150
  %v5152 = vsel %vm510, %v5144, -inf
  %5153 = vmax.xlane.f32.xlu0 %v5152
  %v5154 = vpop.xlane.xlu0 %5153
  %v5155 = vsel %vm510, %v5145, -inf
  %5156 = vmax.xlane.f32.xlu0 %v5155
  %v5157 = vpop.xlane.xlu0 %5156
  %v5158 = vsub.f32 %v5142, %v5148
  %v5159 = vsub.f32 %v5143, %v5151
  %v5160 = vsub.f32 %v5144, %v5154
  %v5161 = vsub.f32 %v5145, %v5157
  %v5162 = vmul.f32 %v5158, 1.442695
  %v5163 = vpow.pop %v5162
  %v5164 = vmul.f32 %v5159, 1.442695
  %v5165 = vpow.pop %v5164
  %v5166 = vmul.f32 %v5160, 1.442695
  %v5167 = vpow.pop %v5166
  %v5168 = vmul.f32 %v5161, 1.442695
  %v5169 = vpow.pop %v5168
  %v5170 = vsel %vm510, %v5163, 0.0
  %5171 = vadd.xlane.f32.xlu0 %v5170
  %v5172 = vpop.xlane.xlu0 %5171
  %v5173 = vsel %vm510, %v5165, 0.0
  %5174 = vadd.xlane.f32.xlu0 %v5173
  %v5175 = vpop.xlane.xlu0 %5174
  %v5176 = vsel %vm510, %v5167, 0.0
  %5177 = vadd.xlane.f32.xlu0 %v5176
  %v5178 = vpop.xlane.xlu0 %5177
  %v5179 = vsel %vm510, %v5169, 0.0
  %5180 = vadd.xlane.f32.xlu0 %v5179
  %v5181 = vpop.xlane.xlu0 %5180
  %v5182 = vrcp.pop %v5172
  %v5183 = vrcp.pop %v5175
  %v5184 = vrcp.pop %v5178
  %v5185 = vrcp.pop %v5181
  %v5186 = vmul.f32 %v5163, %v5182
  %v5187 = vmul.f32 %v5165, %v5183
  %v5188 = vmul.f32 %v5167, %v5184
  %v5189 = vmul.f32 %v5169, %v5185
  %v5190 = vpack.c.bf16 %v5187, %v5186
  %v5191 = vpack.c.bf16 %v5189, %v5188
  %5192 = vrot.lane.b32.xlu0 %v3998, 64
  %v5193 = vpop.permute.xlu0 %5192
  %v5196 = vsel %vm510, %v5190, 0
  %5198 = vmatprep.subr.bf16.mxu0 0
  %5199 = vmatpush1.bf16.msra.mxu0 %v5193
  %5200 = vmatprep.subr.bf16.mxu0 0
  %5201 = vmatpush1.bf16.msra.mxu0 0
  %5202 = vmatprep.subr.bf16.mxu0 0
  %5203 = vmatpush1.bf16.msra.mxu0 0
  %5204 = vmatprep.subr.bf16.mxu0 0
  %5205 = vmatpush1.bf16.msra.mxu0 0
  %5206 = vmatprep.subr.bf16.mxu0 0
  %5207 = vmatpush1.bf16.msra.mxu0 0
  %5208 = vmatprep.subr.bf16.mxu0 0
  %5209 = vmatpush1.bf16.msra.mxu0 0
  %5210 = vmatprep.subr.bf16.mxu0 0
  %5211 = vmatpush1.bf16.msra.mxu0 0
  %5212 = vmatprep.subr.bf16.mxu0 0
  %5213 = vmatpush1.bf16.msra.mxu0 0
  %5214 = vmatprep.subr.bf16.mxu0 0
  %5215 = vmatpush1.bf16.msra.mxu0 0
  %5216 = vmatprep.subr.bf16.mxu0 0
  %5217 = vmatpush1.bf16.msra.mxu0 0
  %5218 = vmatprep.subr.bf16.mxu0 0
  %5219 = vmatpush1.bf16.msra.mxu0 0
  %5220 = vmatprep.subr.bf16.mxu0 0
  %5221 = vmatpush1.bf16.msra.mxu0 0
  %5222 = vmatprep.subr.bf16.mxu0 0
  %5223 = vmatpush1.bf16.msra.mxu0 0
  %5224 = vmatprep.subr.bf16.mxu0 0
  %5225 = vmatpush1.bf16.msra.mxu0 0
  %5226 = vmatprep.subr.bf16.mxu0 0
  %5227 = vmatpush1.bf16.msra.mxu0 0
  %5228 = vmatprep.subr.bf16.mxu0 0
  %5229 = vmatpush1.bf16.msra.mxu0 0
  %5230 = vmatprep.mubr.bf16.mxu0 0
  %5231 = vmatmul.mubr.bf16.gmra.mrb[0].mxu0 %v5196
  %v5232 = vpop.f32.mrb[0].mxu0
  %v5233 = vadd.f32 0.0, %v5232
  %v5234 = vpop.f32.mrb[0].mxu0
  %v5235 = vpop.f32.mrb[0].mxu0
  %v5236 = vadd.f32 0.0, %v5235
  %v5237 = vpop.f32.mrb[0].mxu0
  %5238 = vdwg.mxu0
  %5239 = vrot.lane.b32.xlu0 %v3999, 64
  %v5240 = vpop.permute.xlu0 %5239
  %v5243 = vsel %vm510, %v5191, 0
  %5245 = vmatprep.subr.bf16.mxu0 0
  %5246 = vmatpush1.bf16.msra.mxu0 %v5240
  %5247 = vmatprep.subr.bf16.mxu0 0
  %5248 = vmatpush1.bf16.msra.mxu0 0
  %5249 = vmatprep.subr.bf16.mxu0 0
  %5250 = vmatpush1.bf16.msra.mxu0 0
  %5251 = vmatprep.subr.bf16.mxu0 0
  %5252 = vmatpush1.bf16.msra.mxu0 0
  %5253 = vmatprep.subr.bf16.mxu0 0
  %5254 = vmatpush1.bf16.msra.mxu0 0
  %5255 = vmatprep.subr.bf16.mxu0 0
  %5256 = vmatpush1.bf16.msra.mxu0 0
  %5257 = vmatprep.subr.bf16.mxu0 0
  %5258 = vmatpush1.bf16.msra.mxu0 0
  %5259 = vmatprep.subr.bf16.mxu0 0
  %5260 = vmatpush1.bf16.msra.mxu0 0
  %5261 = vmatprep.subr.bf16.mxu0 0
  %5262 = vmatpush1.bf16.msra.mxu0 0
  %5263 = vmatprep.subr.bf16.mxu0 0
  %5264 = vmatpush1.bf16.msra.mxu0 0
  %5265 = vmatprep.subr.bf16.mxu0 0
  %5266 = vmatpush1.bf16.msra.mxu0 0
  %5267 = vmatprep.subr.bf16.mxu0 0
  %5268 = vmatpush1.bf16.msra.mxu0 0
  %5269 = vmatprep.subr.bf16.mxu0 0
  %5270 = vmatpush1.bf16.msra.mxu0 0
  %5271 = vmatprep.subr.bf16.mxu0 0
  %5272 = vmatpush1.bf16.msra.mxu0 0
  %5273 = vmatprep.subr.bf16.mxu0 0
  %5274 = vmatpush1.bf16.msra.mxu0 0
  %5275 = vmatprep.subr.bf16.mxu0 0
  %5276 = vmatpush1.bf16.msra.mxu0 0
  %5277 = vmatprep.mubr.bf16.mxu0 0
  %5278 = vmatmul.mubr.bf16.gmra.mrb[0].mxu0 %v5243
  %v5279 = vpop.f32.mrb[0].mxu0
  %v5280 = vadd.f32 0.0, %v5279
  %v5281 = vpop.f32.mrb[0].mxu0
  %v5282 = vpop.f32.mrb[0].mxu0
  %v5283 = vadd.f32 0.0, %v5282
  %v5284 = vpop.f32.mrb[0].mxu0
  %5285 = vdwg.mxu0
  %5290 = vrot.lane.b32.xlu0 %v5233, 64
  %v5291 = vpop.permute.xlu0 %5290
  %5292 = vrot.lane.b32.xlu0 %v5236, 64
  %v5293 = vpop.permute.xlu0 %5292
  %5294 = vrot.lane.b32.xlu0 %v5280, 64
  %v5295 = vpop.permute.xlu0 %5294
  %5296 = vrot.lane.b32.xlu0 %v5283, 64
  %v5297 = vpop.permute.xlu0 %5296
  %5302 = vst.msk [vmem:[#allocation2] sm:$0xff] %vm1816, %v5291
  %5303 = vst.msk [vmem:[#allocation2 + $0x8] sm:$0xff] %vm1816, %v5293
  %5304 = vst.msk [vmem:[#allocation2 + $0x10] sm:$0xff] %vm1816, %v5295
  %5305 = vst.msk [vmem:[#allocation2 + $0x18] sm:$0xff] %vm1816, %v5297
  %5306 = vrot.lane.b32.xlu0 %v3994, 48
  %v5307 = vpop.permute.xlu0 %5306
  %5308 = vrot.lane.b32.xlu0 %v3996, 48
  %v5309 = vpop.permute.xlu0 %5308
  %v5311 = vsel %vm510, %v5307, 0
  %v5314 = vsel %vm510, %v5309, 0
  %5316 = vmatprep.subr.bf16.mxu0 0
  %5317 = vmatpush1.bf16.xpose.msra.mxu0 %v5314
  %5318 = vmatprep.subr.bf16.mxu0 0
  %5319 = vmatpush1.bf16.xpose.msra.mxu0 0
  %5320 = vmatprep.subr.bf16.mxu0 0
  %5321 = vmatpush1.bf16.xpose.msra.mxu0 0
  %5322 = vmatprep.subr.bf16.mxu0 0
  %5323 = vmatpush1.bf16.xpose.msra.mxu0 0
  %5324 = vmatprep.subr.bf16.mxu0 0
  %5325 = vmatpush1.bf16.xpose.msra.mxu0 0
  %5326 = vmatprep.subr.bf16.mxu0 0
  %5327 = vmatpush1.bf16.xpose.msra.mxu0 0
  %5328 = vmatprep.subr.bf16.mxu0 0
  %5329 = vmatpush1.bf16.xpose.msra.mxu0 0
  %5330 = vmatprep.subr.bf16.mxu0 0
  %5331 = vmatpush1.bf16.xpose.msra.mxu0 0
  %5332 = vmatprep.subr.bf16.mxu0 0
  %5333 = vmatpush1.bf16.xpose.msra.mxu0 0
  %5334 = vmatprep.subr.bf16.mxu0 0
  %5335 = vmatpush1.bf16.xpose.msra.mxu0 0
  %5336 = vmatprep.subr.bf16.mxu0 0
  %5337 = vmatpush1.bf16.xpose.msra.mxu0 0
  %5338 = vmatprep.subr.bf16.mxu0 0
  %5339 = vmatpush1.bf16.xpose.msra.mxu0 0
  %5340 = vmatprep.subr.bf16.mxu0 0
  %5341 = vmatpush1.bf16.xpose.msra.mxu0 0
  %5342 = vmatprep.subr.bf16.mxu0 0
  %5343 = vmatpush1.bf16.xpose.msra.mxu0 0
  %5344 = vmatprep.subr.bf16.mxu0 0
  %5345 = vmatpush1.bf16.xpose.msra.mxu0 0
  %5346 = vmatprep.subr.bf16.mxu0 0
  %5347 = vmatpush1.bf16.xpose.msra.mxu0 0
  %5348 = vmatprep.mubr.bf16.mxu0 0
  %5349 = vmatmul.mubr.bf16.gmra.mrb[0].mxu0 %v5311
  %v5350 = vpop.f32.mrb[0].mxu0
  %v5351 = vadd.f32 0.0, %v5350
  %v5352 = vpop.f32.mrb[0].mxu0
  %v5353 = vpop.f32.mrb[0].mxu0
  %v5354 = vadd.f32 0.0, %v5353
  %v5355 = vpop.f32.mrb[0].mxu0
  %5356 = vdwg.mxu0
  %5357 = vrot.lane.b32.xlu0 %v3995, 48
  %v5358 = vpop.permute.xlu0 %5357
  %5359 = vrot.lane.b32.xlu0 %v3997, 48
  %v5360 = vpop.permute.xlu0 %5359
  %v5362 = vsel %vm510, %v5358, 0
  %v5365 = vsel %vm510, %v5360, 0
  %5367 = vmatprep.subr.bf16.mxu0 0
  %5368 = vmatpush1.bf16.xpose.msra.mxu0 %v5365
  %5369 = vmatprep.subr.bf16.mxu0 0
  %5370 = vmatpush1.bf16.xpose.msra.mxu0 0
  %5371 = vmatprep.subr.bf16.mxu0 0
  %5372 = vmatpush1.bf16.xpose.msra.mxu0 0
  %5373 = vmatprep.subr.bf16.mxu0 0
  %5374 = vmatpush1.bf16.xpose.msra.mxu0 0
  %5375 = vmatprep.subr.bf16.mxu0 0
  %5376 = vmatpush1.bf16.xpose.msra.mxu0 0
  %5377 = vmatprep.subr.bf16.mxu0 0
  %5378 = vmatpush1.bf16.xpose.msra.mxu0 0
  %5379 = vmatprep.subr.bf16.mxu0 0
  %5380 = vmatpush1.bf16.xpose.msra.mxu0 0
  %5381 = vmatprep.subr.bf16.mxu0 0
  %5382 = vmatpush1.bf16.xpose.msra.mxu0 0
  %5383 = vmatprep.subr.bf16.mxu0 0
  %5384 = vmatpush1.bf16.xpose.msra.mxu0 0
  %5385 = vmatprep.subr.bf16.mxu0 0
  %5386 = vmatpush1.bf16.xpose.msra.mxu0 0
  %5387 = vmatprep.subr.bf16.mxu0 0
  %5388 = vmatpush1.bf16.xpose.msra.mxu0 0
  %5389 = vmatprep.subr.bf16.mxu0 0
  %5390 = vmatpush1.bf16.xpose.msra.mxu0 0
  %5391 = vmatprep.subr.bf16.mxu0 0
  %5392 = vmatpush1.bf16.xpose.msra.mxu0 0
  %5393 = vmatprep.subr.bf16.mxu0 0
  %5394 = vmatpush1.bf16.xpose.msra.mxu0 0
  %5395 = vmatprep.subr.bf16.mxu0 0
  %5396 = vmatpush1.bf16.xpose.msra.mxu0 0
  %5397 = vmatprep.subr.bf16.mxu0 0
  %5398 = vmatpush1.bf16.xpose.msra.mxu0 0
  %5399 = vmatprep.mubr.bf16.mxu0 0
  %5400 = vmatmul.mubr.bf16.gmra.mrb[0].mxu0 %v5362
  %v5401 = vpop.f32.mrb[0].mxu0
  %v5402 = vadd.f32 0.0, %v5401
  %v5403 = vpop.f32.mrb[0].mxu0
  %v5404 = vpop.f32.mrb[0].mxu0
  %v5405 = vadd.f32 0.0, %v5404
  %v5406 = vpop.f32.mrb[0].mxu0
  %5407 = vdwg.mxu0
  %v5408 = vmul.f32 %v5351, 0.25
  %v5409 = vmul.f32 %v5354, 0.25
  %v5410 = vmul.f32 %v5402, 0.25
  %v5411 = vmul.f32 %v5405, 0.25
  %v5412 = vsel %vm510, %v5408, -inf
  %5413 = vmax.xlane.f32.xlu0 %v5412
  %v5414 = vpop.xlane.xlu0 %5413
  %v5415 = vsel %vm510, %v5409, -inf
  %5416 = vmax.xlane.f32.xlu0 %v5415
  %v5417 = vpop.xlane.xlu0 %5416
  %v5418 = vsel %vm510, %v5410, -inf
  %5419 = vmax.xlane.f32.xlu0 %v5418
  %v5420 = vpop.xlane.xlu0 %5419
  %v5421 = vsel %vm510, %v5411, -inf
  %5422 = vmax.xlane.f32.xlu0 %v5421
  %v5423 = vpop.xlane.xlu0 %5422
  %v5424 = vsub.f32 %v5408, %v5414
  %v5425 = vsub.f32 %v5409, %v5417
  %v5426 = vsub.f32 %v5410, %v5420
  %v5427 = vsub.f32 %v5411, %v5423
  %v5428 = vmul.f32 %v5424, 1.442695
  %v5429 = vpow.pop %v5428
  %v5430 = vmul.f32 %v5425, 1.442695
  %v5431 = vpow.pop %v5430
  %v5432 = vmul.f32 %v5426, 1.442695
  %v5433 = vpow.pop %v5432
  %v5434 = vmul.f32 %v5427, 1.442695
  %v5435 = vpow.pop %v5434
  %v5436 = vsel %vm510, %v5429, 0.0
  %5437 = vadd.xlane.f32.xlu0 %v5436
  %v5438 = vpop.xlane.xlu0 %5437
  %v5439 = vsel %vm510, %v5431, 0.0
  %5440 = vadd.xlane.f32.xlu0 %v5439
  %v5441 = vpop.xlane.xlu0 %5440
  %v5442 = vsel %vm510, %v5433, 0.0
  %5443 = vadd.xlane.f32.xlu0 %v5442
  %v5444 = vpop.xlane.xlu0 %5443
  %v5445 = vsel %vm510, %v5435, 0.0
  %5446 = vadd.xlane.f32.xlu0 %v5445
  %v5447 = vpop.xlane.xlu0 %5446
  %v5448 = vrcp.pop %v5438
  %v5449 = vrcp.pop %v5441
  %v5450 = vrcp.pop %v5444
  %v5451 = vrcp.pop %v5447
  %v5452 = vmul.f32 %v5429, %v5448
  %v5453 = vmul.f32 %v5431, %v5449
  %v5454 = vmul.f32 %v5433, %v5450
  %v5455 = vmul.f32 %v5435, %v5451
  %v5456 = vpack.c.bf16 %v5453, %v5452
  %v5457 = vpack.c.bf16 %v5455, %v5454
  %5458 = vrot.lane.b32.xlu0 %v3998, 48
  %v5459 = vpop.permute.xlu0 %5458
  %v5462 = vsel %vm510, %v5456, 0
  %5464 = vmatprep.subr.bf16.mxu0 0
  %5465 = vmatpush1.bf16.msra.mxu0 %v5459
  %5466 = vmatprep.subr.bf16.mxu0 0
  %5467 = vmatpush1.bf16.msra.mxu0 0
  %5468 = vmatprep.subr.bf16.mxu0 0
  %5469 = vmatpush1.bf16.msra.mxu0 0
  %5470 = vmatprep.subr.bf16.mxu0 0
  %5471 = vmatpush1.bf16.msra.mxu0 0
  %5472 = vmatprep.subr.bf16.mxu0 0
  %5473 = vmatpush1.bf16.msra.mxu0 0
  %5474 = vmatprep.subr.bf16.mxu0 0
  %5475 = vmatpush1.bf16.msra.mxu0 0
  %5476 = vmatprep.subr.bf16.mxu0 0
  %5477 = vmatpush1.bf16.msra.mxu0 0
  %5478 = vmatprep.subr.bf16.mxu0 0
  %5479 = vmatpush1.bf16.msra.mxu0 0
  %5480 = vmatprep.subr.bf16.mxu0 0
  %5481 = vmatpush1.bf16.msra.mxu0 0
  %5482 = vmatprep.subr.bf16.mxu0 0
  %5483 = vmatpush1.bf16.msra.mxu0 0
  %5484 = vmatprep.subr.bf16.mxu0 0
  %5485 = vmatpush1.bf16.msra.mxu0 0
  %5486 = vmatprep.subr.bf16.mxu0 0
  %5487 = vmatpush1.bf16.msra.mxu0 0
  %5488 = vmatprep.subr.bf16.mxu0 0
  %5489 = vmatpush1.bf16.msra.mxu0 0
  %5490 = vmatprep.subr.bf16.mxu0 0
  %5491 = vmatpush1.bf16.msra.mxu0 0
  %5492 = vmatprep.subr.bf16.mxu0 0
  %5493 = vmatpush1.bf16.msra.mxu0 0
  %5494 = vmatprep.subr.bf16.mxu0 0
  %5495 = vmatpush1.bf16.msra.mxu0 0
  %5496 = vmatprep.mubr.bf16.mxu0 0
  %5497 = vmatmul.mubr.bf16.gmra.mrb[0].mxu0 %v5462
  %v5498 = vpop.f32.mrb[0].mxu0
  %v5499 = vadd.f32 0.0, %v5498
  %v5500 = vpop.f32.mrb[0].mxu0
  %v5501 = vpop.f32.mrb[0].mxu0
  %v5502 = vadd.f32 0.0, %v5501
  %v5503 = vpop.f32.mrb[0].mxu0
  %5504 = vdwg.mxu0
  %5505 = vrot.lane.b32.xlu0 %v3999, 48
  %v5506 = vpop.permute.xlu0 %5505
  %v5509 = vsel %vm510, %v5457, 0
  %5511 = vmatprep.subr.bf16.mxu0 0
  %5512 = vmatpush1.bf16.msra.mxu0 %v5506
  %5513 = vmatprep.subr.bf16.mxu0 0
  %5514 = vmatpush1.bf16.msra.mxu0 0
  %5515 = vmatprep.subr.bf16.mxu0 0
  %5516 = vmatpush1.bf16.msra.mxu0 0
  %5517 = vmatprep.subr.bf16.mxu0 0
  %5518 = vmatpush1.bf16.msra.mxu0 0
  %5519 = vmatprep.subr.bf16.mxu0 0
  %5520 = vmatpush1.bf16.msra.mxu0 0
  %5521 = vmatprep.subr.bf16.mxu0 0
  %5522 = vmatpush1.bf16.msra.mxu0 0
  %5523 = vmatprep.subr.bf16.mxu0 0
  %5524 = vmatpush1.bf16.msra.mxu0 0
  %5525 = vmatprep.subr.bf16.mxu0 0
  %5526 = vmatpush1.bf16.msra.mxu0 0
  %5527 = vmatprep.subr.bf16.mxu0 0
  %5528 = vmatpush1.bf16.msra.mxu0 0
  %5529 = vmatprep.subr.bf16.mxu0 0
  %5530 = vmatpush1.bf16.msra.mxu0 0
  %5531 = vmatprep.subr.bf16.mxu0 0
  %5532 = vmatpush1.bf16.msra.mxu0 0
  %5533 = vmatprep.subr.bf16.mxu0 0
  %5534 = vmatpush1.bf16.msra.mxu0 0
  %5535 = vmatprep.subr.bf16.mxu0 0
  %5536 = vmatpush1.bf16.msra.mxu0 0
  %5537 = vmatprep.subr.bf16.mxu0 0
  %5538 = vmatpush1.bf16.msra.mxu0 0
  %5539 = vmatprep.subr.bf16.mxu0 0
  %5540 = vmatpush1.bf16.msra.mxu0 0
  %5541 = vmatprep.subr.bf16.mxu0 0
  %5542 = vmatpush1.bf16.msra.mxu0 0
  %5543 = vmatprep.mubr.bf16.mxu0 0
  %5544 = vmatmul.mubr.bf16.gmra.mrb[0].mxu0 %v5509
  %v5545 = vpop.f32.mrb[0].mxu0
  %v5546 = vadd.f32 0.0, %v5545
  %v5547 = vpop.f32.mrb[0].mxu0
  %v5548 = vpop.f32.mrb[0].mxu0
  %v5549 = vadd.f32 0.0, %v5548
  %v5550 = vpop.f32.mrb[0].mxu0
  %5551 = vdwg.mxu0
  %5556 = vrot.lane.b32.xlu0 %v5499, 80
  %v5557 = vpop.permute.xlu0 %5556
  %5558 = vrot.lane.b32.xlu0 %v5502, 80
  %v5559 = vpop.permute.xlu0 %5558
  %5560 = vrot.lane.b32.xlu0 %v5546, 80
  %v5561 = vpop.permute.xlu0 %5560
  %5562 = vrot.lane.b32.xlu0 %v5549, 80
  %v5563 = vpop.permute.xlu0 %5562
  %5568 = vst.msk [vmem:[#allocation2] sm:$0xff] %vm2083, %v5557
  %5569 = vst.msk [vmem:[#allocation2 + $0x8] sm:$0xff] %vm2083, %v5559
  %5570 = vst.msk [vmem:[#allocation2 + $0x10] sm:$0xff] %vm2083, %v5561
  %5571 = vst.msk [vmem:[#allocation2 + $0x18] sm:$0xff] %vm2083, %v5563
  %5572 = vrot.lane.b32.xlu0 %v3994, 32
  %v5573 = vpop.permute.xlu0 %5572
  %5574 = vrot.lane.b32.xlu0 %v3996, 32
  %v5575 = vpop.permute.xlu0 %5574
  %v5577 = vsel %vm510, %v5573, 0
  %v5580 = vsel %vm510, %v5575, 0
  %5582 = vmatprep.subr.bf16.mxu0 0
  %5583 = vmatpush1.bf16.xpose.msra.mxu0 %v5580
  %5584 = vmatprep.subr.bf16.mxu0 0
  %5585 = vmatpush1.bf16.xpose.msra.mxu0 0
  %5586 = vmatprep.subr.bf16.mxu0 0
  %5587 = vmatpush1.bf16.xpose.msra.mxu0 0
  %5588 = vmatprep.subr.bf16.mxu0 0
  %5589 = vmatpush1.bf16.xpose.msra.mxu0 0
  %5590 = vmatprep.subr.bf16.mxu0 0
  %5591 = vmatpush1.bf16.xpose.msra.mxu0 0
  %5592 = vmatprep.subr.bf16.mxu0 0
  %5593 = vmatpush1.bf16.xpose.msra.mxu0 0
  %5594 = vmatprep.subr.bf16.mxu0 0
  %5595 = vmatpush1.bf16.xpose.msra.mxu0 0
  %5596 = vmatprep.subr.bf16.mxu0 0
  %5597 = vmatpush1.bf16.xpose.msra.mxu0 0
  %5598 = vmatprep.subr.bf16.mxu0 0
  %5599 = vmatpush1.bf16.xpose.msra.mxu0 0
  %5600 = vmatprep.subr.bf16.mxu0 0
  %5601 = vmatpush1.bf16.xpose.msra.mxu0 0
  %5602 = vmatprep.subr.bf16.mxu0 0
  %5603 = vmatpush1.bf16.xpose.msra.mxu0 0
  %5604 = vmatprep.subr.bf16.mxu0 0
  %5605 = vmatpush1.bf16.xpose.msra.mxu0 0
  %5606 = vmatprep.subr.bf16.mxu0 0
  %5607 = vmatpush1.bf16.xpose.msra.mxu0 0
  %5608 = vmatprep.subr.bf16.mxu0 0
  %5609 = vmatpush1.bf16.xpose.msra.mxu0 0
  %5610 = vmatprep.subr.bf16.mxu0 0
  %5611 = vmatpush1.bf16.xpose.msra.mxu0 0
  %5612 = vmatprep.subr.bf16.mxu0 0
  %5613 = vmatpush1.bf16.xpose.msra.mxu0 0
  %5614 = vmatprep.mubr.bf16.mxu0 0
  %5615 = vmatmul.mubr.bf16.gmra.mrb[0].mxu0 %v5577
  %v5616 = vpop.f32.mrb[0].mxu0
  %v5617 = vadd.f32 0.0, %v5616
  %v5618 = vpop.f32.mrb[0].mxu0
  %v5619 = vpop.f32.mrb[0].mxu0
  %v5620 = vadd.f32 0.0, %v5619
  %v5621 = vpop.f32.mrb[0].mxu0
  %5622 = vdwg.mxu0
  %5623 = vrot.lane.b32.xlu0 %v3995, 32
  %v5624 = vpop.permute.xlu0 %5623
  %5625 = vrot.lane.b32.xlu0 %v3997, 32
  %v5626 = vpop.permute.xlu0 %5625
  %v5628 = vsel %vm510, %v5624, 0
  %v5631 = vsel %vm510, %v5626, 0
  %5633 = vmatprep.subr.bf16.mxu0 0
  %5634 = vmatpush1.bf16.xpose.msra.mxu0 %v5631
  %5635 = vmatprep.subr.bf16.mxu0 0
  %5636 = vmatpush1.bf16.xpose.msra.mxu0 0
  %5637 = vmatprep.subr.bf16.mxu0 0
  %5638 = vmatpush1.bf16.xpose.msra.mxu0 0
  %5639 = vmatprep.subr.bf16.mxu0 0
  %5640 = vmatpush1.bf16.xpose.msra.mxu0 0
  %5641 = vmatprep.subr.bf16.mxu0 0
  %5642 = vmatpush1.bf16.xpose.msra.mxu0 0
  %5643 = vmatprep.subr.bf16.mxu0 0
  %5644 = vmatpush1.bf16.xpose.msra.mxu0 0
  %5645 = vmatprep.subr.bf16.mxu0 0
  %5646 = vmatpush1.bf16.xpose.msra.mxu0 0
  %5647 = vmatprep.subr.bf16.mxu0 0
  %5648 = vmatpush1.bf16.xpose.msra.mxu0 0
  %5649 = vmatprep.subr.bf16.mxu0 0
  %5650 = vmatpush1.bf16.xpose.msra.mxu0 0
  %5651 = vmatprep.subr.bf16.mxu0 0
  %5652 = vmatpush1.bf16.xpose.msra.mxu0 0
  %5653 = vmatprep.subr.bf16.mxu0 0
  %5654 = vmatpush1.bf16.xpose.msra.mxu0 0
  %5655 = vmatprep.subr.bf16.mxu0 0
  %5656 = vmatpush1.bf16.xpose.msra.mxu0 0
  %5657 = vmatprep.subr.bf16.mxu0 0
  %5658 = vmatpush1.bf16.xpose.msra.mxu0 0
  %5659 = vmatprep.subr.bf16.mxu0 0
  %5660 = vmatpush1.bf16.xpose.msra.mxu0 0
  %5661 = vmatprep.subr.bf16.mxu0 0
  %5662 = vmatpush1.bf16.xpose.msra.mxu0 0
  %5663 = vmatprep.subr.bf16.mxu0 0
  %5664 = vmatpush1.bf16.xpose.msra.mxu0 0
  %5665 = vmatprep.mubr.bf16.mxu0 0
  %5666 = vmatmul.mubr.bf16.gmra.mrb[0].mxu0 %v5628
  %v5667 = vpop.f32.mrb[0].mxu0
  %v5668 = vadd.f32 0.0, %v5667
  %v5669 = vpop.f32.mrb[0].mxu0
  %v5670 = vpop.f32.mrb[0].mxu0
  %v5671 = vadd.f32 0.0, %v5670
  %v5672 = vpop.f32.mrb[0].mxu0
  %5673 = vdwg.mxu0
  %v5674 = vmul.f32 %v5617, 0.25
  %v5675 = vmul.f32 %v5620, 0.25
  %v5676 = vmul.f32 %v5668, 0.25
  %v5677 = vmul.f32 %v5671, 0.25
  %v5678 = vsel %vm510, %v5674, -inf
  %5679 = vmax.xlane.f32.xlu0 %v5678
  %v5680 = vpop.xlane.xlu0 %5679
  %v5681 = vsel %vm510, %v5675, -inf
  %5682 = vmax.xlane.f32.xlu0 %v5681
  %v5683 = vpop.xlane.xlu0 %5682
  %v5684 = vsel %vm510, %v5676, -inf
  %5685 = vmax.xlane.f32.xlu0 %v5684
  %v5686 = vpop.xlane.xlu0 %5685
  %v5687 = vsel %vm510, %v5677, -inf
  %5688 = vmax.xlane.f32.xlu0 %v5687
  %v5689 = vpop.xlane.xlu0 %5688
  %v5690 = vsub.f32 %v5674, %v5680
  %v5691 = vsub.f32 %v5675, %v5683
  %v5692 = vsub.f32 %v5676, %v5686
  %v5693 = vsub.f32 %v5677, %v5689
  %v5694 = vmul.f32 %v5690, 1.442695
  %v5695 = vpow.pop %v5694
  %v5696 = vmul.f32 %v5691, 1.442695
  %v5697 = vpow.pop %v5696
  %v5698 = vmul.f32 %v5692, 1.442695
  %v5699 = vpow.pop %v5698
  %v5700 = vmul.f32 %v5693, 1.442695
  %v5701 = vpow.pop %v5700
  %v5702 = vsel %vm510, %v5695, 0.0
  %5703 = vadd.xlane.f32.xlu0 %v5702
  %v5704 = vpop.xlane.xlu0 %5703
  %v5705 = vsel %vm510, %v5697, 0.0
  %5706 = vadd.xlane.f32.xlu0 %v5705
  %v5707 = vpop.xlane.xlu0 %5706
  %v5708 = vsel %vm510, %v5699, 0.0
  %5709 = vadd.xlane.f32.xlu0 %v5708
  %v5710 = vpop.xlane.xlu0 %5709
  %v5711 = vsel %vm510, %v5701, 0.0
  %5712 = vadd.xlane.f32.xlu0 %v5711
  %v5713 = vpop.xlane.xlu0 %5712
  %v5714 = vrcp.pop %v5704
  %v5715 = vrcp.pop %v5707
  %v5716 = vrcp.pop %v5710
  %v5717 = vrcp.pop %v5713
  %v5718 = vmul.f32 %v5695, %v5714
  %v5719 = vmul.f32 %v5697, %v5715
  %v5720 = vmul.f32 %v5699, %v5716
  %v5721 = vmul.f32 %v5701, %v5717
  %v5722 = vpack.c.bf16 %v5719, %v5718
  %v5723 = vpack.c.bf16 %v5721, %v5720
  %5724 = vrot.lane.b32.xlu0 %v3998, 32
  %v5725 = vpop.permute.xlu0 %5724
  %v5728 = vsel %vm510, %v5722, 0
  %5730 = vmatprep.subr.bf16.mxu0 0
  %5731 = vmatpush1.bf16.msra.mxu0 %v5725
  %5732 = vmatprep.subr.bf16.mxu0 0
  %5733 = vmatpush1.bf16.msra.mxu0 0
  %5734 = vmatprep.subr.bf16.mxu0 0
  %5735 = vmatpush1.bf16.msra.mxu0 0
  %5736 = vmatprep.subr.bf16.mxu0 0
  %5737 = vmatpush1.bf16.msra.mxu0 0
  %5738 = vmatprep.subr.bf16.mxu0 0
  %5739 = vmatpush1.bf16.msra.mxu0 0
  %5740 = vmatprep.subr.bf16.mxu0 0
  %5741 = vmatpush1.bf16.msra.mxu0 0
  %5742 = vmatprep.subr.bf16.mxu0 0
  %5743 = vmatpush1.bf16.msra.mxu0 0
  %5744 = vmatprep.subr.bf16.mxu0 0
  %5745 = vmatpush1.bf16.msra.mxu0 0
  %5746 = vmatprep.subr.bf16.mxu0 0
  %5747 = vmatpush1.bf16.msra.mxu0 0
  %5748 = vmatprep.subr.bf16.mxu0 0
  %5749 = vmatpush1.bf16.msra.mxu0 0
  %5750 = vmatprep.subr.bf16.mxu0 0
  %5751 = vmatpush1.bf16.msra.mxu0 0
  %5752 = vmatprep.subr.bf16.mxu0 0
  %5753 = vmatpush1.bf16.msra.mxu0 0
  %5754 = vmatprep.subr.bf16.mxu0 0
  %5755 = vmatpush1.bf16.msra.mxu0 0
  %5756 = vmatprep.subr.bf16.mxu0 0
  %5757 = vmatpush1.bf16.msra.mxu0 0
  %5758 = vmatprep.subr.bf16.mxu0 0
  %5759 = vmatpush1.bf16.msra.mxu0 0
  %5760 = vmatprep.subr.bf16.mxu0 0
  %5761 = vmatpush1.bf16.msra.mxu0 0
  %5762 = vmatprep.mubr.bf16.mxu0 0
  %5763 = vmatmul.mubr.bf16.gmra.mrb[0].mxu0 %v5728
  %v5764 = vpop.f32.mrb[0].mxu0
  %v5765 = vadd.f32 0.0, %v5764
  %v5766 = vpop.f32.mrb[0].mxu0
  %v5767 = vpop.f32.mrb[0].mxu0
  %v5768 = vadd.f32 0.0, %v5767
  %v5769 = vpop.f32.mrb[0].mxu0
  %5770 = vdwg.mxu0
  %5771 = vrot.lane.b32.xlu0 %v3999, 32
  %v5772 = vpop.permute.xlu0 %5771
  %v5775 = vsel %vm510, %v5723, 0
  %5777 = vmatprep.subr.bf16.mxu0 0
  %5778 = vmatpush1.bf16.msra.mxu0 %v5772
  %5779 = vmatprep.subr.bf16.mxu0 0
  %5780 = vmatpush1.bf16.msra.mxu0 0
  %5781 = vmatprep.subr.bf16.mxu0 0
  %5782 = vmatpush1.bf16.msra.mxu0 0
  %5783 = vmatprep.subr.bf16.mxu0 0
  %5784 = vmatpush1.bf16.msra.mxu0 0
  %5785 = vmatprep.subr.bf16.mxu0 0
  %5786 = vmatpush1.bf16.msra.mxu0 0
  %5787 = vmatprep.subr.bf16.mxu0 0
  %5788 = vmatpush1.bf16.msra.mxu0 0
  %5789 = vmatprep.subr.bf16.mxu0 0
  %5790 = vmatpush1.bf16.msra.mxu0 0
  %5791 = vmatprep.subr.bf16.mxu0 0
  %5792 = vmatpush1.bf16.msra.mxu0 0
  %5793 = vmatprep.subr.bf16.mxu0 0
  %5794 = vmatpush1.bf16.msra.mxu0 0
  %5795 = vmatprep.subr.bf16.mxu0 0
  %5796 = vmatpush1.bf16.msra.mxu0 0
  %5797 = vmatprep.subr.bf16.mxu0 0
  %5798 = vmatpush1.bf16.msra.mxu0 0
  %5799 = vmatprep.subr.bf16.mxu0 0
  %5800 = vmatpush1.bf16.msra.mxu0 0
  %5801 = vmatprep.subr.bf16.mxu0 0
  %5802 = vmatpush1.bf16.msra.mxu0 0
  %5803 = vmatprep.subr.bf16.mxu0 0
  %5804 = vmatpush1.bf16.msra.mxu0 0
  %5805 = vmatprep.subr.bf16.mxu0 0
  %5806 = vmatpush1.bf16.msra.mxu0 0
  %5807 = vmatprep.subr.bf16.mxu0 0
  %5808 = vmatpush1.bf16.msra.mxu0 0
  %5809 = vmatprep.mubr.bf16.mxu0 0
  %5810 = vmatmul.mubr.bf16.gmra.mrb[0].mxu0 %v5775
  %v5811 = vpop.f32.mrb[0].mxu0
  %v5812 = vadd.f32 0.0, %v5811
  %v5813 = vpop.f32.mrb[0].mxu0
  %v5814 = vpop.f32.mrb[0].mxu0
  %v5815 = vadd.f32 0.0, %v5814
  %v5816 = vpop.f32.mrb[0].mxu0
  %5817 = vdwg.mxu0
  %5822 = vrot.lane.b32.xlu0 %v5765, 96
  %v5823 = vpop.permute.xlu0 %5822
  %5824 = vrot.lane.b32.xlu0 %v5768, 96
  %v5825 = vpop.permute.xlu0 %5824
  %5826 = vrot.lane.b32.xlu0 %v5812, 96
  %v5827 = vpop.permute.xlu0 %5826
  %5828 = vrot.lane.b32.xlu0 %v5815, 96
  %v5829 = vpop.permute.xlu0 %5828
  %5834 = vst.msk [vmem:[#allocation2] sm:$0xff] %vm2350, %v5823
  %5835 = vst.msk [vmem:[#allocation2 + $0x8] sm:$0xff] %vm2350, %v5825
  %5836 = vst.msk [vmem:[#allocation2 + $0x10] sm:$0xff] %vm2350, %v5827
  %5837 = vst.msk [vmem:[#allocation2 + $0x18] sm:$0xff] %vm2350, %v5829
  %5838 = vrot.lane.b32.xlu0 %v3994, 16
  %v5839 = vpop.permute.xlu0 %5838
  %5840 = vrot.lane.b32.xlu0 %v3996, 16
  %v5841 = vpop.permute.xlu0 %5840
  %v5843 = vsel %vm510, %v5839, 0
  %v5846 = vsel %vm510, %v5841, 0
  %5848 = vmatprep.subr.bf16.mxu0 0
  %5849 = vmatpush1.bf16.xpose.msra.mxu0 %v5846
  %5850 = vmatprep.subr.bf16.mxu0 0
  %5851 = vmatpush1.bf16.xpose.msra.mxu0 0
  %5852 = vmatprep.subr.bf16.mxu0 0
  %5853 = vmatpush1.bf16.xpose.msra.mxu0 0
  %5854 = vmatprep.subr.bf16.mxu0 0
  %5855 = vmatpush1.bf16.xpose.msra.mxu0 0
  %5856 = vmatprep.subr.bf16.mxu0 0
  %5857 = vmatpush1.bf16.xpose.msra.mxu0 0
  %5858 = vmatprep.subr.bf16.mxu0 0
  %5859 = vmatpush1.bf16.xpose.msra.mxu0 0
  %5860 = vmatprep.subr.bf16.mxu0 0
  %5861 = vmatpush1.bf16.xpose.msra.mxu0 0
  %5862 = vmatprep.subr.bf16.mxu0 0
  %5863 = vmatpush1.bf16.xpose.msra.mxu0 0
  %5864 = vmatprep.subr.bf16.mxu0 0
  %5865 = vmatpush1.bf16.xpose.msra.mxu0 0
  %5866 = vmatprep.subr.bf16.mxu0 0
  %5867 = vmatpush1.bf16.xpose.msra.mxu0 0
  %5868 = vmatprep.subr.bf16.mxu0 0
  %5869 = vmatpush1.bf16.xpose.msra.mxu0 0
  %5870 = vmatprep.subr.bf16.mxu0 0
  %5871 = vmatpush1.bf16.xpose.msra.mxu0 0
  %5872 = vmatprep.subr.bf16.mxu0 0
  %5873 = vmatpush1.bf16.xpose.msra.mxu0 0
  %5874 = vmatprep.subr.bf16.mxu0 0
  %5875 = vmatpush1.bf16.xpose.msra.mxu0 0
  %5876 = vmatprep.subr.bf16.mxu0 0
  %5877 = vmatpush1.bf16.xpose.msra.mxu0 0
  %5878 = vmatprep.subr.bf16.mxu0 0
  %5879 = vmatpush1.bf16.xpose.msra.mxu0 0
  %5880 = vmatprep.mubr.bf16.mxu0 0
  %5881 = vmatmul.mubr.bf16.gmra.mrb[0].mxu0 %v5843
  %v5882 = vpop.f32.mrb[0].mxu0
  %v5883 = vadd.f32 0.0, %v5882
  %v5884 = vpop.f32.mrb[0].mxu0
  %v5885 = vpop.f32.mrb[0].mxu0
  %v5886 = vadd.f32 0.0, %v5885
  %v5887 = vpop.f32.mrb[0].mxu0
  %5888 = vdwg.mxu0
  %5889 = vrot.lane.b32.xlu0 %v3995, 16
  %v5890 = vpop.permute.xlu0 %5889
  %5891 = vrot.lane.b32.xlu0 %v3997, 16
  %v5892 = vpop.permute.xlu0 %5891
  %v5894 = vsel %vm510, %v5890, 0
  %v5897 = vsel %vm510, %v5892, 0
  %5899 = vmatprep.subr.bf16.mxu0 0
  %5900 = vmatpush1.bf16.xpose.msra.mxu0 %v5897
  %5901 = vmatprep.subr.bf16.mxu0 0
  %5902 = vmatpush1.bf16.xpose.msra.mxu0 0
  %5903 = vmatprep.subr.bf16.mxu0 0
  %5904 = vmatpush1.bf16.xpose.msra.mxu0 0
  %5905 = vmatprep.subr.bf16.mxu0 0
  %5906 = vmatpush1.bf16.xpose.msra.mxu0 0
  %5907 = vmatprep.subr.bf16.mxu0 0
  %5908 = vmatpush1.bf16.xpose.msra.mxu0 0
  %5909 = vmatprep.subr.bf16.mxu0 0
  %5910 = vmatpush1.bf16.xpose.msra.mxu0 0
  %5911 = vmatprep.subr.bf16.mxu0 0
  %5912 = vmatpush1.bf16.xpose.msra.mxu0 0
  %5913 = vmatprep.subr.bf16.mxu0 0
  %5914 = vmatpush1.bf16.xpose.msra.mxu0 0
  %5915 = vmatprep.subr.bf16.mxu0 0
  %5916 = vmatpush1.bf16.xpose.msra.mxu0 0
  %5917 = vmatprep.subr.bf16.mxu0 0
  %5918 = vmatpush1.bf16.xpose.msra.mxu0 0
  %5919 = vmatprep.subr.bf16.mxu0 0
  %5920 = vmatpush1.bf16.xpose.msra.mxu0 0
  %5921 = vmatprep.subr.bf16.mxu0 0
  %5922 = vmatpush1.bf16.xpose.msra.mxu0 0
  %5923 = vmatprep.subr.bf16.mxu0 0
  %5924 = vmatpush1.bf16.xpose.msra.mxu0 0
  %5925 = vmatprep.subr.bf16.mxu0 0
  %5926 = vmatpush1.bf16.xpose.msra.mxu0 0
  %5927 = vmatprep.subr.bf16.mxu0 0
  %5928 = vmatpush1.bf16.xpose.msra.mxu0 0
  %5929 = vmatprep.subr.bf16.mxu0 0
  %5930 = vmatpush1.bf16.xpose.msra.mxu0 0
  %5931 = vmatprep.mubr.bf16.mxu0 0
  %5932 = vmatmul.mubr.bf16.gmra.mrb[0].mxu0 %v5894
  %v5933 = vpop.f32.mrb[0].mxu0
  %v5934 = vadd.f32 0.0, %v5933
  %v5935 = vpop.f32.mrb[0].mxu0
  %v5936 = vpop.f32.mrb[0].mxu0
  %v5937 = vadd.f32 0.0, %v5936
  %v5938 = vpop.f32.mrb[0].mxu0
  %5939 = vdwg.mxu0
  %v5940 = vmul.f32 %v5883, 0.25
  %v5941 = vmul.f32 %v5886, 0.25
  %v5942 = vmul.f32 %v5934, 0.25
  %v5943 = vmul.f32 %v5937, 0.25
  %v5944 = vsel %vm510, %v5940, -inf
  %5945 = vmax.xlane.f32.xlu0 %v5944
  %v5946 = vpop.xlane.xlu0 %5945
  %v5947 = vsel %vm510, %v5941, -inf
  %5948 = vmax.xlane.f32.xlu0 %v5947
  %v5949 = vpop.xlane.xlu0 %5948
  %v5950 = vsel %vm510, %v5942, -inf
  %5951 = vmax.xlane.f32.xlu0 %v5950
  %v5952 = vpop.xlane.xlu0 %5951
  %v5953 = vsel %vm510, %v5943, -inf
  %5954 = vmax.xlane.f32.xlu0 %v5953
  %v5955 = vpop.xlane.xlu0 %5954
  %v5956 = vsub.f32 %v5940, %v5946
  %v5957 = vsub.f32 %v5941, %v5949
  %v5958 = vsub.f32 %v5942, %v5952
  %v5959 = vsub.f32 %v5943, %v5955
  %v5960 = vmul.f32 %v5956, 1.442695
  %v5961 = vpow.pop %v5960
  %v5962 = vmul.f32 %v5957, 1.442695
  %v5963 = vpow.pop %v5962
  %v5964 = vmul.f32 %v5958, 1.442695
  %v5965 = vpow.pop %v5964
  %v5966 = vmul.f32 %v5959, 1.442695
  %v5967 = vpow.pop %v5966
  %v5968 = vsel %vm510, %v5961, 0.0
  %5969 = vadd.xlane.f32.xlu0 %v5968
  %v5970 = vpop.xlane.xlu0 %5969
  %v5971 = vsel %vm510, %v5963, 0.0
  %5972 = vadd.xlane.f32.xlu0 %v5971
  %v5973 = vpop.xlane.xlu0 %5972
  %v5974 = vsel %vm510, %v5965, 0.0
  %5975 = vadd.xlane.f32.xlu0 %v5974
  %v5976 = vpop.xlane.xlu0 %5975
  %v5977 = vsel %vm510, %v5967, 0.0
  %5978 = vadd.xlane.f32.xlu0 %v5977
  %v5979 = vpop.xlane.xlu0 %5978
  %v5980 = vrcp.pop %v5970
  %v5981 = vrcp.pop %v5973
  %v5982 = vrcp.pop %v5976
  %v5983 = vrcp.pop %v5979
  %v5984 = vmul.f32 %v5961, %v5980
  %v5985 = vmul.f32 %v5963, %v5981
  %v5986 = vmul.f32 %v5965, %v5982
  %v5987 = vmul.f32 %v5967, %v5983
  %v5988 = vpack.c.bf16 %v5985, %v5984
  %v5989 = vpack.c.bf16 %v5987, %v5986
  %5990 = vrot.lane.b32.xlu0 %v3998, 16
  %v5991 = vpop.permute.xlu0 %5990
  %v5994 = vsel %vm510, %v5988, 0
  %5996 = vmatprep.subr.bf16.mxu0 0
  %5997 = vmatpush1.bf16.msra.mxu0 %v5991
  %5998 = vmatprep.subr.bf16.mxu0 0
  %5999 = vmatpush1.bf16.msra.mxu0 0
  %6000 = vmatprep.subr.bf16.mxu0 0
  %6001 = vmatpush1.bf16.msra.mxu0 0
  %6002 = vmatprep.subr.bf16.mxu0 0
  %6003 = vmatpush1.bf16.msra.mxu0 0
  %6004 = vmatprep.subr.bf16.mxu0 0
  %6005 = vmatpush1.bf16.msra.mxu0 0
  %6006 = vmatprep.subr.bf16.mxu0 0
  %6007 = vmatpush1.bf16.msra.mxu0 0
  %6008 = vmatprep.subr.bf16.mxu0 0
  %6009 = vmatpush1.bf16.msra.mxu0 0
  %6010 = vmatprep.subr.bf16.mxu0 0
  %6011 = vmatpush1.bf16.msra.mxu0 0
  %6012 = vmatprep.subr.bf16.mxu0 0
  %6013 = vmatpush1.bf16.msra.mxu0 0
  %6014 = vmatprep.subr.bf16.mxu0 0
  %6015 = vmatpush1.bf16.msra.mxu0 0
  %6016 = vmatprep.subr.bf16.mxu0 0
  %6017 = vmatpush1.bf16.msra.mxu0 0
  %6018 = vmatprep.subr.bf16.mxu0 0
  %6019 = vmatpush1.bf16.msra.mxu0 0
  %6020 = vmatprep.subr.bf16.mxu0 0
  %6021 = vmatpush1.bf16.msra.mxu0 0
  %6022 = vmatprep.subr.bf16.mxu0 0
  %6023 = vmatpush1.bf16.msra.mxu0 0
  %6024 = vmatprep.subr.bf16.mxu0 0
  %6025 = vmatpush1.bf16.msra.mxu0 0
  %6026 = vmatprep.subr.bf16.mxu0 0
  %6027 = vmatpush1.bf16.msra.mxu0 0
  %6028 = vmatprep.mubr.bf16.mxu0 0
  %6029 = vmatmul.mubr.bf16.gmra.mrb[0].mxu0 %v5994
  %v6030 = vpop.f32.mrb[0].mxu0
  %v6031 = vadd.f32 0.0, %v6030
  %v6032 = vpop.f32.mrb[0].mxu0
  %v6033 = vpop.f32.mrb[0].mxu0
  %v6034 = vadd.f32 0.0, %v6033
  %v6035 = vpop.f32.mrb[0].mxu0
  %6036 = vdwg.mxu0
  %6037 = vrot.lane.b32.xlu0 %v3999, 16
  %v6038 = vpop.permute.xlu0 %6037
  %v6041 = vsel %vm510, %v5989, 0
  %6043 = vmatprep.subr.bf16.mxu0 0
  %6044 = vmatpush1.bf16.msra.mxu0 %v6038
  %6045 = vmatprep.subr.bf16.mxu0 0
  %6046 = vmatpush1.bf16.msra.mxu0 0
  %6047 = vmatprep.subr.bf16.mxu0 0
  %6048 = vmatpush1.bf16.msra.mxu0 0
  %6049 = vmatprep.subr.bf16.mxu0 0
  %6050 = vmatpush1.bf16.msra.mxu0 0
  %6051 = vmatprep.subr.bf16.mxu0 0
  %6052 = vmatpush1.bf16.msra.mxu0 0
  %6053 = vmatprep.subr.bf16.mxu0 0
  %6054 = vmatpush1.bf16.msra.mxu0 0
  %6055 = vmatprep.subr.bf16.mxu0 0
  %6056 = vmatpush1.bf16.msra.mxu0 0
  %6057 = vmatprep.subr.bf16.mxu0 0
  %6058 = vmatpush1.bf16.msra.mxu0 0
  %6059 = vmatprep.subr.bf16.mxu0 0
  %6060 = vmatpush1.bf16.msra.mxu0 0
  %6061 = vmatprep.subr.bf16.mxu0 0
  %6062 = vmatpush1.bf16.msra.mxu0 0
  %6063 = vmatprep.subr.bf16.mxu0 0
  %6064 = vmatpush1.bf16.msra.mxu0 0
  %6065 = vmatprep.subr.bf16.mxu0 0
  %6066 = vmatpush1.bf16.msra.mxu0 0
  %6067 = vmatprep.subr.bf16.mxu0 0
  %6068 = vmatpush1.bf16.msra.mxu0 0
  %6069 = vmatprep.subr.bf16.mxu0 0
  %6070 = vmatpush1.bf16.msra.mxu0 0
  %6071 = vmatprep.subr.bf16.mxu0 0
  %6072 = vmatpush1.bf16.msra.mxu0 0
  %6073 = vmatprep.subr.bf16.mxu0 0
  %6074 = vmatpush1.bf16.msra.mxu0 0
  %6075 = vmatprep.mubr.bf16.mxu0 0
  %6076 = vmatmul.mubr.bf16.gmra.mrb[0].mxu0 %v6041
  %v6077 = vpop.f32.mrb[0].mxu0
  %v6078 = vadd.f32 0.0, %v6077
  %v6079 = vpop.f32.mrb[0].mxu0
  %v6080 = vpop.f32.mrb[0].mxu0
  %v6081 = vadd.f32 0.0, %v6080
  %v6082 = vpop.f32.mrb[0].mxu0
  %6083 = vdwg.mxu0
  %6088 = vrot.lane.b32.xlu0 %v6031, 112
  %v6089 = vpop.permute.xlu0 %6088
  %6090 = vrot.lane.b32.xlu0 %v6034, 112
  %v6091 = vpop.permute.xlu0 %6090
  %6092 = vrot.lane.b32.xlu0 %v6078, 112
  %v6093 = vpop.permute.xlu0 %6092
  %6094 = vrot.lane.b32.xlu0 %v6081, 112
  %v6095 = vpop.permute.xlu0 %6094
  %6100 = vst.msk [vmem:[#allocation2] sm:$0xff] %vm2617, %v6089
  %6101 = vst.msk [vmem:[#allocation2 + $0x8] sm:$0xff] %vm2617, %v6091
  %6102 = vst.msk [vmem:[#allocation2 + $0x10] sm:$0xff] %vm2617, %v6093
  %6103 = vst.msk [vmem:[#allocation2 + $0x18] sm:$0xff] %vm2617, %v6095
  %v6104 = vld [vmem:[#allocation2] sm:$0xff]
  %v6105 = vld [vmem:[#allocation2 + $0x8] sm:$0xff]
  %v6106 = vld [vmem:[#allocation2 + $0x10] sm:$0xff]
  %v6107 = vld [vmem:[#allocation2 + $0x18] sm:$0xff]
  %s6108 = scalar_lea.vmem %s8, 64
  %v6109 = vld [vmem:[%s6108] sm:$0xf]
  %v6110 = vld [vmem:[%s6108 + $0x4] sm:$0xf]
  %v6111 = vld [vmem:[%s6108 + $0x8] sm:$0xf]
  %v6112 = vld [vmem:[%s6108 + $0xc] sm:$0xf]
  %v6113 = vld [vmem:[%s6108 + $0x10] sm:$0xf]
  %v6114 = vld [vmem:[%s6108 + $0x14] sm:$0xf]
  %v6115 = vld [vmem:[%s6108 + $0x18] sm:$0xf]
  %v6116 = vld [vmem:[%s6108 + $0x1c] sm:$0xf]
  %v6117 = vld [vmem:[%s6108 + $0x20] sm:$0xf]
  %v6118 = vld [vmem:[%s6108 + $0x24] sm:$0xf]
  %v6119 = vld [vmem:[%s6108 + $0x28] sm:$0xf]
  %v6120 = vld [vmem:[%s6108 + $0x2c] sm:$0xf]
  %v6121 = vld [vmem:[%s6108 + $0x30] sm:$0xf]
  %v6122 = vld [vmem:[%s6108 + $0x34] sm:$0xf]
  %v6123 = vld [vmem:[%s6108 + $0x38] sm:$0xf]
  %v6124 = vld [vmem:[%s6108 + $0x3c] sm:$0xf]
  %v6125 = vld [vmem:[%s3 + $0xb] sm:$0x1]
  %v6126 = vpack.c.bf16 %v6105, %v6104
  %v6127 = vpack.c.bf16 %v6107, %v6106
  %v6128 = vlaneseq
  %v6129 = vshrl.u32 %v6128, 7
  %v6130 = vsub.s32 0, %v6129
  %v6131 = vrot.slane %v6125, %v6130
  %v6148 = vunpack.c.l.b16 %v6109
  %v6149 = vunpack.c.l.b16 %v6110
  %v6150 = vunpack.c.l.b16 %v6111
  %v6151 = vunpack.c.l.b16 %v6112
  %v6152 = vunpack.c.l.b16 %v6113
  %v6153 = vunpack.c.l.b16 %v6114
  %v6154 = vunpack.c.l.b16 %v6115
  %v6155 = vunpack.c.l.b16 %v6116
  %v6156 = vunpack.c.l.b16 %v6117
  %v6157 = vunpack.c.l.b16 %v6118
  %v6158 = vunpack.c.l.b16 %v6119
  %v6159 = vunpack.c.l.b16 %v6120
  %v6160 = vunpack.c.l.b16 %v6121
  %v6161 = vunpack.c.l.b16 %v6122
  %v6162 = vunpack.c.l.b16 %v6123
  %v6163 = vunpack.c.l.b16 %v6124
  %v6164 = vpack.c.b16 %v6149, %v6148
  %v6165 = vpack.c.b16 %v6151, %v6150
  %v6166 = vpack.c.b16 %v6153, %v6152
  %v6167 = vpack.c.b16 %v6155, %v6154
  %v6168 = vpack.c.b16 %v6157, %v6156
  %v6169 = vpack.c.b16 %v6159, %v6158
  %v6170 = vpack.c.b16 %v6161, %v6160
  %v6171 = vpack.c.b16 %v6163, %v6162
  %6180 = vmatprep.subr.bf16.mxu0 0
  %6181 = vmatpush1.bf16.msra.mxu0 %v6164
  %6182 = vmatprep.subr.bf16.mxu0 0
  %6183 = vmatpush1.bf16.msra.mxu0 %v6165
  %6184 = vmatprep.subr.bf16.mxu0 0
  %6185 = vmatpush1.bf16.msra.mxu0 %v6166
  %6186 = vmatprep.subr.bf16.mxu0 0
  %6187 = vmatpush1.bf16.msra.mxu0 %v6167
  %6188 = vmatprep.subr.bf16.mxu0 0
  %6189 = vmatpush1.bf16.msra.mxu0 %v6168
  %6190 = vmatprep.subr.bf16.mxu0 0
  %6191 = vmatpush1.bf16.msra.mxu0 %v6169
  %6192 = vmatprep.subr.bf16.mxu0 0
  %6193 = vmatpush1.bf16.msra.mxu0 %v6170
  %6194 = vmatprep.subr.bf16.mxu0 0
  %6195 = vmatpush1.bf16.msra.mxu0 %v6171
  %6196 = vmatprep.subr.bf16.mxu0 0
  %6197 = vmatpush1.bf16.msra.mxu0 0
  %6198 = vmatprep.subr.bf16.mxu0 0
  %6199 = vmatpush1.bf16.msra.mxu0 0
  %6200 = vmatprep.subr.bf16.mxu0 0
  %6201 = vmatpush1.bf16.msra.mxu0 0
  %6202 = vmatprep.subr.bf16.mxu0 0
  %6203 = vmatpush1.bf16.msra.mxu0 0
  %6204 = vmatprep.subr.bf16.mxu0 0
  %6205 = vmatpush1.bf16.msra.mxu0 0
  %6206 = vmatprep.subr.bf16.mxu0 0
  %6207 = vmatpush1.bf16.msra.mxu0 0
  %6208 = vmatprep.subr.bf16.mxu0 0
  %6209 = vmatpush1.bf16.msra.mxu0 0
  %6210 = vmatprep.subr.bf16.mxu0 0
  %6211 = vmatpush1.bf16.msra.mxu0 0
  %6212 = vmatprep.mubr.bf16.mxu0 0
  %6213 = vmatmul.mubr.bf16.gmra.mrb[0].mxu0 %v6126
  %v6214 = vpop.f32.mrb[0].mxu0
  %v6215 = vadd.f32 %v6131, %v6214
  %v6216 = vpop.f32.mrb[0].mxu0
  %v6217 = vpop.f32.mrb[0].mxu0
  %v6218 = vadd.f32 %v6131, %v6217
  %v6219 = vpop.f32.mrb[0].mxu0
  %6220 = vmatprep.mubr.bf16.mxu0 0
  %6221 = vmatmul.mubr.bf16.gmra.mrb[0].mxu0 %v6127
  %v6222 = vpop.f32.mrb[0].mxu0
  %v6223 = vadd.f32 %v6131, %v6222
  %v6224 = vpop.f32.mrb[0].mxu0
  %v6225 = vpop.f32.mrb[0].mxu0
  %v6226 = vadd.f32 %v6131, %v6225
  %v6227 = vpop.f32.mrb[0].mxu0
  %6228 = vdwg.mxu0
  %v6229 = vadd.f32 %v3707, %v6215
  %v6230 = vadd.f32 %v3708, %v6218
  %v6231 = vadd.f32 %v3709, %v6223
  %v6232 = vadd.f32 %v3710, %v6226
  %v6233 = vld [vmem:[%s3 + $0xc] sm:$0x1]
  %v6234 = vld [vmem:[%s3 + $0xd] sm:$0x1]
  %6235 = vadd.xlane.f32.xlu0 %v6229
  %v6236 = vpop.xlane.xlu0 %6235
  %6237 = vadd.xlane.f32.xlu0 %v6230
  %v6238 = vpop.xlane.xlu0 %6237
  %6239 = vadd.xlane.f32.xlu0 %v6231
  %v6240 = vpop.xlane.xlu0 %6239
  %6241 = vadd.xlane.f32.xlu0 %v6232
  %v6242 = vpop.xlane.xlu0 %6241
  %v6243 = vmul.f32 %v6236, %v170
  %v6244 = vmul.f32 %v6238, %v170
  %v6245 = vmul.f32 %v6240, %v170
  %v6246 = vmul.f32 %v6242, %v170
  %v6247 = vsub.f32 %v6229, %v6243
  %v6248 = vsub.f32 %v6230, %v6244
  %v6249 = vsub.f32 %v6231, %v6245
  %v6250 = vsub.f32 %v6232, %v6246
  %v6251 = vmul.f32 %v6247, %v6247
  %v6252 = vmul.f32 %v6248, %v6248
  %v6253 = vmul.f32 %v6249, %v6249
  %v6254 = vmul.f32 %v6250, %v6250
  %6255 = vadd.xlane.f32.xlu0 %v6251
  %v6256 = vpop.xlane.xlu0 %6255
  %6257 = vadd.xlane.f32.xlu0 %v6252
  %v6258 = vpop.xlane.xlu0 %6257
  %6259 = vadd.xlane.f32.xlu0 %v6253
  %v6260 = vpop.xlane.xlu0 %6259
  %6261 = vadd.xlane.f32.xlu0 %v6254
  %v6262 = vpop.xlane.xlu0 %6261
  %v6263 = vmul.f32 %v6256, %v170
  %v6264 = vmul.f32 %v6258, %v170
  %v6265 = vmul.f32 %v6260, %v170
  %v6266 = vmul.f32 %v6262, %v170
  %v6267 = vadd.f32 %v6263, 1e-05
  %v6268 = vadd.f32 %v6264, 1e-05
  %v6269 = vadd.f32 %v6265, 1e-05
  %v6270 = vadd.f32 %v6266, 1e-05
  %v6271 = vrsqrt.pop %v6267
  %v6272 = vrsqrt.pop %v6268
  %v6273 = vrsqrt.pop %v6269
  %v6274 = vrsqrt.pop %v6270
  %v6275 = vmul.f32 %v6247, %v6271
  %v6276 = vmul.f32 %v6248, %v6272
  %v6277 = vmul.f32 %v6249, %v6273
  %v6278 = vmul.f32 %v6250, %v6274
  %v6279 = vlaneseq
  %v6280 = vshrl.u32 %v6279, 7
  %v6281 = vsub.s32 0, %v6280
  %v6282 = vrot.slane %v6233, %v6281
  %v6283 = vmul.f32 %v6275, %v6282
  %v6284 = vmul.f32 %v6276, %v6282
  %v6285 = vmul.f32 %v6277, %v6282
  %v6286 = vmul.f32 %v6278, %v6282
  %v6287 = vlaneseq
  %v6288 = vshrl.u32 %v6287, 7
  %v6289 = vsub.s32 0, %v6288
  %v6290 = vrot.slane %v6234, %v6289
  %v6291 = vadd.f32 %v6283, %v6290
  %v6292 = vadd.f32 %v6284, %v6290
  %v6293 = vadd.f32 %v6285, %v6290
  %v6294 = vadd.f32 %v6286, %v6290
  %s6295 = scalar_lea.vmem %s9, 256
  %v6296 = vld [vmem:[%s6295] sm:$0xff]
  %v6297 = vld [vmem:[%s6295 + $0x8] sm:$0xff]
  %v6298 = vld [vmem:[%s6295 + $0x10] sm:$0xff]
  %v6299 = vld [vmem:[%s6295 + $0x18] sm:$0xff]
  %v6300 = vld [vmem:[%s6295 + $0x20] sm:$0xff]
  %v6301 = vld [vmem:[%s6295 + $0x28] sm:$0xff]
  %v6302 = vld [vmem:[%s6295 + $0x30] sm:$0xff]
  %v6303 = vld [vmem:[%s6295 + $0x38] sm:$0xff]
  %v6304 = vld [vmem:[%s6295 + $0x40] sm:$0xff]
  %v6305 = vld [vmem:[%s6295 + $0x48] sm:$0xff]
  %v6306 = vld [vmem:[%s6295 + $0x50] sm:$0xff]
  %v6307 = vld [vmem:[%s6295 + $0x58] sm:$0xff]
  %v6308 = vld [vmem:[%s6295 + $0x60] sm:$0xff]
  %v6309 = vld [vmem:[%s6295 + $0x68] sm:$0xff]
  %v6310 = vld [vmem:[%s6295 + $0x70] sm:$0xff]
  %v6311 = vld [vmem:[%s6295 + $0x78] sm:$0xff]
  %v6312 = vld [vmem:[%s6295 + $0x80] sm:$0xff]
  %v6313 = vld [vmem:[%s6295 + $0x88] sm:$0xff]
  %v6314 = vld [vmem:[%s6295 + $0x90] sm:$0xff]
  %v6315 = vld [vmem:[%s6295 + $0x98] sm:$0xff]
  %v6316 = vld [vmem:[%s6295 + $0xa0] sm:$0xff]
  %v6317 = vld [vmem:[%s6295 + $0xa8] sm:$0xff]
  %v6318 = vld [vmem:[%s6295 + $0xb0] sm:$0xff]
  %v6319 = vld [vmem:[%s6295 + $0xb8] sm:$0xff]
  %v6320 = vld [vmem:[%s6295 + $0xc0] sm:$0xff]
  %v6321 = vld [vmem:[%s6295 + $0xc8] sm:$0xff]
  %v6322 = vld [vmem:[%s6295 + $0xd0] sm:$0xff]
  %v6323 = vld [vmem:[%s6295 + $0xd8] sm:$0xff]
  %v6324 = vld [vmem:[%s6295 + $0xe0] sm:$0xff]
  %v6325 = vld [vmem:[%s6295 + $0xe8] sm:$0xff]
  %v6326 = vld [vmem:[%s6295 + $0xf0] sm:$0xff]
  %v6327 = vld [vmem:[%s6295 + $0xf8] sm:$0xff]
  %s6328 = scalar_lea.vmem %s5, 1
  %v6329 = vld [vmem:[%s6328] ss:$2 sm:$0xf]
  %v6330 = vpack.c.bf16 %v6292, %v6291
  %v6331 = vpack.c.bf16 %v6294, %v6293
  %v6333 = vlaneseq
  %v6334 = vshrl.u32 %v6333, 7
  %v6335 = vsub.s32 0, %v6334
  %v6336 = vrot.slane %v6329, %v6335
  %v6337 = vlaneseq
  %v6338 = vshrl.u32 %v6337, 7
  %v6339 = vsub.s32 1, %v6338
  %v6340 = vrot.slane %v6329, %v6339
  %v6341 = vlaneseq
  %v6342 = vshrl.u32 %v6341, 7
  %v6343 = vsub.s32 2, %v6342
  %v6344 = vrot.slane %v6329, %v6343
  %v6345 = vlaneseq
  %v6346 = vshrl.u32 %v6345, 7
  %v6347 = vsub.s32 3, %v6346
  %v6348 = vrot.slane %v6329, %v6347
  %v6385 = vunpack.c.l.b16 %v6296
  %v6386 = vunpack.c.h.b16 %v6296
  %v6387 = vunpack.c.l.b16 %v6297
  %v6388 = vunpack.c.h.b16 %v6297
  %v6389 = vunpack.c.l.b16 %v6298
  %v6390 = vunpack.c.h.b16 %v6298
  %v6391 = vunpack.c.l.b16 %v6299
  %v6392 = vunpack.c.h.b16 %v6299
  %v6393 = vunpack.c.l.b16 %v6300
  %v6394 = vunpack.c.h.b16 %v6300
  %v6395 = vunpack.c.l.b16 %v6301
  %v6396 = vunpack.c.h.b16 %v6301
  %v6397 = vunpack.c.l.b16 %v6302
  %v6398 = vunpack.c.h.b16 %v6302
  %v6399 = vunpack.c.l.b16 %v6303
  %v6400 = vunpack.c.h.b16 %v6303
  %v6401 = vunpack.c.l.b16 %v6304
  %v6402 = vunpack.c.h.b16 %v6304
  %v6403 = vunpack.c.l.b16 %v6305
  %v6404 = vunpack.c.h.b16 %v6305
  %v6405 = vunpack.c.l.b16 %v6306
  %v6406 = vunpack.c.h.b16 %v6306
  %v6407 = vunpack.c.l.b16 %v6307
  %v6408 = vunpack.c.h.b16 %v6307
  %v6409 = vunpack.c.l.b16 %v6308
  %v6410 = vunpack.c.h.b16 %v6308
  %v6411 = vunpack.c.l.b16 %v6309
  %v6412 = vunpack.c.h.b16 %v6309
  %v6413 = vunpack.c.l.b16 %v6310
  %v6414 = vunpack.c.h.b16 %v6310
  %v6415 = vunpack.c.l.b16 %v6311
  %v6416 = vunpack.c.h.b16 %v6311
  %v6417 = vunpack.c.l.b16 %v6312
  %v6418 = vunpack.c.h.b16 %v6312
  %v6419 = vunpack.c.l.b16 %v6313
  %v6420 = vunpack.c.h.b16 %v6313
  %v6421 = vunpack.c.l.b16 %v6314
  %v6422 = vunpack.c.h.b16 %v6314
  %v6423 = vunpack.c.l.b16 %v6315
  %v6424 = vunpack.c.h.b16 %v6315
  %v6425 = vunpack.c.l.b16 %v6316
  %v6426 = vunpack.c.h.b16 %v6316
  %v6427 = vunpack.c.l.b16 %v6317
  %v6428 = vunpack.c.h.b16 %v6317
  %v6429 = vunpack.c.l.b16 %v6318
  %v6430 = vunpack.c.h.b16 %v6318
  %v6431 = vunpack.c.l.b16 %v6319
  %v6432 = vunpack.c.h.b16 %v6319
  %v6433 = vunpack.c.l.b16 %v6320
  %v6434 = vunpack.c.h.b16 %v6320
  %v6435 = vunpack.c.l.b16 %v6321
  %v6436 = vunpack.c.h.b16 %v6321
  %v6437 = vunpack.c.l.b16 %v6322
  %v6438 = vunpack.c.h.b16 %v6322
  %v6439 = vunpack.c.l.b16 %v6323
  %v6440 = vunpack.c.h.b16 %v6323
  %v6441 = vunpack.c.l.b16 %v6324
  %v6442 = vunpack.c.h.b16 %v6324
  %v6443 = vunpack.c.l.b16 %v6325
  %v6444 = vunpack.c.h.b16 %v6325
  %v6445 = vunpack.c.l.b16 %v6326
  %v6446 = vunpack.c.h.b16 %v6326
  %v6447 = vunpack.c.l.b16 %v6327
  %v6448 = vunpack.c.h.b16 %v6327
  %v6449 = vpack.c.b16 %v6389, %v6385
  %v6450 = vpack.c.b16 %v6390, %v6386
  %v6451 = vpack.c.b16 %v6391, %v6387
  %v6452 = vpack.c.b16 %v6392, %v6388
  %v6453 = vpack.c.b16 %v6397, %v6393
  %v6454 = vpack.c.b16 %v6398, %v6394
  %v6455 = vpack.c.b16 %v6399, %v6395
  %v6456 = vpack.c.b16 %v6400, %v6396
  %v6457 = vpack.c.b16 %v6405, %v6401
  %v6458 = vpack.c.b16 %v6406, %v6402
  %v6459 = vpack.c.b16 %v6407, %v6403
  %v6460 = vpack.c.b16 %v6408, %v6404
  %v6461 = vpack.c.b16 %v6413, %v6409
  %v6462 = vpack.c.b16 %v6414, %v6410
  %v6463 = vpack.c.b16 %v6415, %v6411
  %v6464 = vpack.c.b16 %v6416, %v6412
  %v6465 = vpack.c.b16 %v6421, %v6417
  %v6466 = vpack.c.b16 %v6422, %v6418
  %v6467 = vpack.c.b16 %v6423, %v6419
  %v6468 = vpack.c.b16 %v6424, %v6420
  %v6469 = vpack.c.b16 %v6429, %v6425
  %v6470 = vpack.c.b16 %v6430, %v6426
  %v6471 = vpack.c.b16 %v6431, %v6427
  %v6472 = vpack.c.b16 %v6432, %v6428
  %v6473 = vpack.c.b16 %v6437, %v6433
  %v6474 = vpack.c.b16 %v6438, %v6434
  %v6475 = vpack.c.b16 %v6439, %v6435
  %v6476 = vpack.c.b16 %v6440, %v6436
  %v6477 = vpack.c.b16 %v6445, %v6441
  %v6478 = vpack.c.b16 %v6446, %v6442
  %v6479 = vpack.c.b16 %v6447, %v6443
  %v6480 = vpack.c.b16 %v6448, %v6444
  %6513 = vmatprep.subr.bf16.mxu0 %v6450
  %6514 = vmatpush1.bf16.msra.mxu0 %v6449
  %6515 = vmatprep.subr.bf16.mxu0 %v6454
  %6516 = vmatpush1.bf16.msra.mxu0 %v6453
  %6517 = vmatprep.subr.bf16.mxu0 %v6458
  %6518 = vmatpush1.bf16.msra.mxu0 %v6457
  %6519 = vmatprep.subr.bf16.mxu0 %v6462
  %6520 = vmatpush1.bf16.msra.mxu0 %v6461
  %6521 = vmatprep.subr.bf16.mxu0 %v6466
  %6522 = vmatpush1.bf16.msra.mxu0 %v6465
  %6523 = vmatprep.subr.bf16.mxu0 %v6470
  %6524 = vmatpush1.bf16.msra.mxu0 %v6469
  %6525 = vmatprep.subr.bf16.mxu0 %v6474
  %6526 = vmatpush1.bf16.msra.mxu0 %v6473
  %6527 = vmatprep.subr.bf16.mxu0 %v6478
  %6528 = vmatpush1.bf16.msra.mxu0 %v6477
  %6529 = vmatprep.subr.bf16.mxu0 0
  %6530 = vmatpush1.bf16.msra.mxu0 0
  %6531 = vmatprep.subr.bf16.mxu0 0
  %6532 = vmatpush1.bf16.msra.mxu0 0
  %6533 = vmatprep.subr.bf16.mxu0 0
  %6534 = vmatpush1.bf16.msra.mxu0 0
  %6535 = vmatprep.subr.bf16.mxu0 0
  %6536 = vmatpush1.bf16.msra.mxu0 0
  %6537 = vmatprep.subr.bf16.mxu0 0
  %6538 = vmatpush1.bf16.msra.mxu0 0
  %6539 = vmatprep.subr.bf16.mxu0 0
  %6540 = vmatpush1.bf16.msra.mxu0 0
  %6541 = vmatprep.subr.bf16.mxu0 0
  %6542 = vmatpush1.bf16.msra.mxu0 0
  %6543 = vmatprep.subr.bf16.mxu0 0
  %6544 = vmatpush1.bf16.msra.mxu0 0
  %6545 = vmatprep.mubr.bf16.mxu0 0
  %6546 = vmatmul.mubr.bf16.gmra.mrb[0].mxu0 %v6330
  %v6547 = vpop.f32.mrb[0].mxu0
  %v6548 = vadd.f32 %v6336, %v6547
  %v6549 = vpop.f32.mrb[0].mxu0
  %v6550 = vadd.f32 %v6340, %v6549
  %v6551 = vpop.f32.mrb[0].mxu0
  %v6552 = vadd.f32 %v6336, %v6551
  %v6553 = vpop.f32.mrb[0].mxu0
  %v6554 = vadd.f32 %v6340, %v6553
  %6555 = vmatprep.mubr.bf16.mxu0 0
  %6556 = vmatmul.mubr.bf16.gmra.mrb[0].mxu0 %v6331
  %v6557 = vpop.f32.mrb[0].mxu0
  %v6558 = vadd.f32 %v6336, %v6557
  %v6559 = vpop.f32.mrb[0].mxu0
  %v6560 = vadd.f32 %v6340, %v6559
  %v6561 = vpop.f32.mrb[0].mxu0
  %v6562 = vadd.f32 %v6336, %v6561
  %v6563 = vpop.f32.mrb[0].mxu0
  %v6564 = vadd.f32 %v6340, %v6563
  %6565 = vdwg.mxu0
  %6566 = vmatprep.subr.bf16.mxu0 %v6452
  %6567 = vmatpush1.bf16.msra.mxu0 %v6451
  %6568 = vmatprep.subr.bf16.mxu0 %v6456
  %6569 = vmatpush1.bf16.msra.mxu0 %v6455
  %6570 = vmatprep.subr.bf16.mxu0 %v6460
  %6571 = vmatpush1.bf16.msra.mxu0 %v6459
  %6572 = vmatprep.subr.bf16.mxu0 %v6464
  %6573 = vmatpush1.bf16.msra.mxu0 %v6463
  %6574 = vmatprep.subr.bf16.mxu0 %v6468
  %6575 = vmatpush1.bf16.msra.mxu0 %v6467
  %6576 = vmatprep.subr.bf16.mxu0 %v6472
  %6577 = vmatpush1.bf16.msra.mxu0 %v6471
  %6578 = vmatprep.subr.bf16.mxu0 %v6476
  %6579 = vmatpush1.bf16.msra.mxu0 %v6475
  %6580 = vmatprep.subr.bf16.mxu0 %v6480
  %6581 = vmatpush1.bf16.msra.mxu0 %v6479
  %6582 = vmatprep.subr.bf16.mxu0 0
  %6583 = vmatpush1.bf16.msra.mxu0 0
  %6584 = vmatprep.subr.bf16.mxu0 0
  %6585 = vmatpush1.bf16.msra.mxu0 0
  %6586 = vmatprep.subr.bf16.mxu0 0
  %6587 = vmatpush1.bf16.msra.mxu0 0
  %6588 = vmatprep.subr.bf16.mxu0 0
  %6589 = vmatpush1.bf16.msra.mxu0 0
  %6590 = vmatprep.subr.bf16.mxu0 0
  %6591 = vmatpush1.bf16.msra.mxu0 0
  %6592 = vmatprep.subr.bf16.mxu0 0
  %6593 = vmatpush1.bf16.msra.mxu0 0
  %6594 = vmatprep.subr.bf16.mxu0 0
  %6595 = vmatpush1.bf16.msra.mxu0 0
  %6596 = vmatprep.subr.bf16.mxu0 0
  %6597 = vmatpush1.bf16.msra.mxu0 0
  %6598 = vmatprep.mubr.bf16.mxu0 0
  %6599 = vmatmul.mubr.bf16.gmra.mrb[0].mxu0 %v6330
  %v6600 = vpop.f32.mrb[0].mxu0
  %v6601 = vadd.f32 %v6344, %v6600
  %v6602 = vpop.f32.mrb[0].mxu0
  %v6603 = vadd.f32 %v6348, %v6602
  %v6604 = vpop.f32.mrb[0].mxu0
  %v6605 = vadd.f32 %v6344, %v6604
  %v6606 = vpop.f32.mrb[0].mxu0
  %v6607 = vadd.f32 %v6348, %v6606
  %6608 = vmatprep.mubr.bf16.mxu0 0
  %6609 = vmatmul.mubr.bf16.gmra.mrb[0].mxu0 %v6331
  %v6610 = vpop.f32.mrb[0].mxu0
  %v6611 = vadd.f32 %v6344, %v6610
  %v6612 = vpop.f32.mrb[0].mxu0
  %v6613 = vadd.f32 %v6348, %v6612
  %v6614 = vpop.f32.mrb[0].mxu0
  %v6615 = vadd.f32 %v6344, %v6614
  %v6616 = vpop.f32.mrb[0].mxu0
  %v6617 = vadd.f32 %v6348, %v6616
  %6618 = vdwg.mxu0
  %v6619 = vmul.f32 %v6548, 0.5
  %v6620 = vmul.f32 %v6550, 0.5
  %v6621 = vmul.f32 %v6601, 0.5
  %v6622 = vmul.f32 %v6603, 0.5
  %v6623 = vmul.f32 %v6552, 0.5
  %v6624 = vmul.f32 %v6554, 0.5
  %v6625 = vmul.f32 %v6605, 0.5
  %v6626 = vmul.f32 %v6607, 0.5
  %v6627 = vmul.f32 %v6558, 0.5
  %v6628 = vmul.f32 %v6560, 0.5
  %v6629 = vmul.f32 %v6611, 0.5
  %v6630 = vmul.f32 %v6613, 0.5
  %v6631 = vmul.f32 %v6562, 0.5
  %v6632 = vmul.f32 %v6564, 0.5
  %v6633 = vmul.f32 %v6615, 0.5
  %v6634 = vmul.f32 %v6617, 0.5
  %v6635 = vmul.f32 %v6548, 0.044715
  %v6636 = vmul.f32 %v6550, 0.044715
  %v6637 = vmul.f32 %v6601, 0.044715
  %v6638 = vmul.f32 %v6603, 0.044715
  %v6639 = vmul.f32 %v6552, 0.044715
  %v6640 = vmul.f32 %v6554, 0.044715
  %v6641 = vmul.f32 %v6605, 0.044715
  %v6642 = vmul.f32 %v6607, 0.044715
  %v6643 = vmul.f32 %v6558, 0.044715
  %v6644 = vmul.f32 %v6560, 0.044715
  %v6645 = vmul.f32 %v6611, 0.044715
  %v6646 = vmul.f32 %v6613, 0.044715
  %v6647 = vmul.f32 %v6562, 0.044715
  %v6648 = vmul.f32 %v6564, 0.044715
  %v6649 = vmul.f32 %v6615, 0.044715
  %v6650 = vmul.f32 %v6617, 0.044715
  %v6651 = vmul.f32 %v6635, %v6548
  %v6652 = vmul.f32 %v6636, %v6550
  %v6653 = vmul.f32 %v6637, %v6601
  %v6654 = vmul.f32 %v6638, %v6603
  %v6655 = vmul.f32 %v6639, %v6552
  %v6656 = vmul.f32 %v6640, %v6554
  %v6657 = vmul.f32 %v6641, %v6605
  %v6658 = vmul.f32 %v6642, %v6607
  %v6659 = vmul.f32 %v6643, %v6558
  %v6660 = vmul.f32 %v6644, %v6560
  %v6661 = vmul.f32 %v6645, %v6611
  %v6662 = vmul.f32 %v6646, %v6613
  %v6663 = vmul.f32 %v6647, %v6562
  %v6664 = vmul.f32 %v6648, %v6564
  %v6665 = vmul.f32 %v6649, %v6615
  %v6666 = vmul.f32 %v6650, %v6617
  %v6667 = vmul.f32 %v6651, %v6548
  %v6668 = vmul.f32 %v6652, %v6550
  %v6669 = vmul.f32 %v6653, %v6601
  %v6670 = vmul.f32 %v6654, %v6603
  %v6671 = vmul.f32 %v6655, %v6552
  %v6672 = vmul.f32 %v6656, %v6554
  %v6673 = vmul.f32 %v6657, %v6605
  %v6674 = vmul.f32 %v6658, %v6607
  %v6675 = vmul.f32 %v6659, %v6558
  %v6676 = vmul.f32 %v6660, %v6560
  %v6677 = vmul.f32 %v6661, %v6611
  %v6678 = vmul.f32 %v6662, %v6613
  %v6679 = vmul.f32 %v6663, %v6562
  %v6680 = vmul.f32 %v6664, %v6564
  %v6681 = vmul.f32 %v6665, %v6615
  %v6682 = vmul.f32 %v6666, %v6617
  %v6683 = vadd.f32 %v6548, %v6667
  %v6684 = vadd.f32 %v6550, %v6668
  %v6685 = vadd.f32 %v6601, %v6669
  %v6686 = vadd.f32 %v6603, %v6670
  %v6687 = vadd.f32 %v6552, %v6671
  %v6688 = vadd.f32 %v6554, %v6672
  %v6689 = vadd.f32 %v6605, %v6673
  %v6690 = vadd.f32 %v6607, %v6674
  %v6691 = vadd.f32 %v6558, %v6675
  %v6692 = vadd.f32 %v6560, %v6676
  %v6693 = vadd.f32 %v6611, %v6677
  %v6694 = vadd.f32 %v6613, %v6678
  %v6695 = vadd.f32 %v6562, %v6679
  %v6696 = vadd.f32 %v6564, %v6680
  %v6697 = vadd.f32 %v6615, %v6681
  %v6698 = vadd.f32 %v6617, %v6682
  %v6699 = vmul.f32 %v6683, 0.7978846
  %v6700 = vmul.f32 %v6684, 0.7978846
  %v6701 = vmul.f32 %v6685, 0.7978846
  %v6702 = vmul.f32 %v6686, 0.7978846
  %v6703 = vmul.f32 %v6687, 0.7978846
  %v6704 = vmul.f32 %v6688, 0.7978846
  %v6705 = vmul.f32 %v6689, 0.7978846
  %v6706 = vmul.f32 %v6690, 0.7978846
  %v6707 = vmul.f32 %v6691, 0.7978846
  %v6708 = vmul.f32 %v6692, 0.7978846
  %v6709 = vmul.f32 %v6693, 0.7978846
  %v6710 = vmul.f32 %v6694, 0.7978846
  %v6711 = vmul.f32 %v6695, 0.7978846
  %v6712 = vmul.f32 %v6696, 0.7978846
  %v6713 = vmul.f32 %v6697, 0.7978846
  %v6714 = vmul.f32 %v6698, 0.7978846
  %v6715 = vtanh.pop %v6699
  %v6716 = vtanh.pop %v6700
  %v6717 = vtanh.pop %v6701
  %v6718 = vtanh.pop %v6702
  %v6719 = vtanh.pop %v6703
  %v6720 = vtanh.pop %v6704
  %v6721 = vtanh.pop %v6705
  %v6722 = vtanh.pop %v6706
  %v6723 = vtanh.pop %v6707
  %v6724 = vtanh.pop %v6708
  %v6725 = vtanh.pop %v6709
  %v6726 = vtanh.pop %v6710
  %v6727 = vtanh.pop %v6711
  %v6728 = vtanh.pop %v6712
  %v6729 = vtanh.pop %v6713
  %v6730 = vtanh.pop %v6714
  %v6731 = vadd.f32 %v6715, 1.0
  %v6732 = vadd.f32 %v6716, 1.0
  %v6733 = vadd.f32 %v6717, 1.0
  %v6734 = vadd.f32 %v6718, 1.0
  %v6735 = vadd.f32 %v6719, 1.0
  %v6736 = vadd.f32 %v6720, 1.0
  %v6737 = vadd.f32 %v6721, 1.0
  %v6738 = vadd.f32 %v6722, 1.0
  %v6739 = vadd.f32 %v6723, 1.0
  %v6740 = vadd.f32 %v6724, 1.0
  %v6741 = vadd.f32 %v6725, 1.0
  %v6742 = vadd.f32 %v6726, 1.0
  %v6743 = vadd.f32 %v6727, 1.0
  %v6744 = vadd.f32 %v6728, 1.0
  %v6745 = vadd.f32 %v6729, 1.0
  %v6746 = vadd.f32 %v6730, 1.0
  %v6747 = vmul.f32 %v6619, %v6731
  %v6748 = vmul.f32 %v6620, %v6732
  %v6749 = vmul.f32 %v6621, %v6733
  %v6750 = vmul.f32 %v6622, %v6734
  %v6751 = vmul.f32 %v6623, %v6735
  %v6752 = vmul.f32 %v6624, %v6736
  %v6753 = vmul.f32 %v6625, %v6737
  %v6754 = vmul.f32 %v6626, %v6738
  %v6755 = vmul.f32 %v6627, %v6739
  %v6756 = vmul.f32 %v6628, %v6740
  %v6757 = vmul.f32 %v6629, %v6741
  %v6758 = vmul.f32 %v6630, %v6742
  %v6759 = vmul.f32 %v6631, %v6743
  %v6760 = vmul.f32 %v6632, %v6744
  %v6761 = vmul.f32 %v6633, %v6745
  %v6762 = vmul.f32 %v6634, %v6746
  %s6763 = scalar_lea.vmem %s10, 256
  %v6764 = vld [vmem:[%s6763] sm:$0xf]
  %v6765 = vld [vmem:[%s6763 + $0x4] sm:$0xf]
  %v6766 = vld [vmem:[%s6763 + $0x8] sm:$0xf]
  %v6767 = vld [vmem:[%s6763 + $0xc] sm:$0xf]
  %v6768 = vld [vmem:[%s6763 + $0x10] sm:$0xf]
  %v6769 = vld [vmem:[%s6763 + $0x14] sm:$0xf]
  %v6770 = vld [vmem:[%s6763 + $0x18] sm:$0xf]
  %v6771 = vld [vmem:[%s6763 + $0x1c] sm:$0xf]
  %v6772 = vld [vmem:[%s6763 + $0x20] sm:$0xf]
  %v6773 = vld [vmem:[%s6763 + $0x24] sm:$0xf]
  %v6774 = vld [vmem:[%s6763 + $0x28] sm:$0xf]
  %v6775 = vld [vmem:[%s6763 + $0x2c] sm:$0xf]
  %v6776 = vld [vmem:[%s6763 + $0x30] sm:$0xf]
  %v6777 = vld [vmem:[%s6763 + $0x34] sm:$0xf]
  %v6778 = vld [vmem:[%s6763 + $0x38] sm:$0xf]
  %v6779 = vld [vmem:[%s6763 + $0x3c] sm:$0xf]
  %v6780 = vld [vmem:[%s6763 + $0x40] sm:$0xf]
  %v6781 = vld [vmem:[%s6763 + $0x44] sm:$0xf]
  %v6782 = vld [vmem:[%s6763 + $0x48] sm:$0xf]
  %v6783 = vld [vmem:[%s6763 + $0x4c] sm:$0xf]
  %v6784 = vld [vmem:[%s6763 + $0x50] sm:$0xf]
  %v6785 = vld [vmem:[%s6763 + $0x54] sm:$0xf]
  %v6786 = vld [vmem:[%s6763 + $0x58] sm:$0xf]
  %v6787 = vld [vmem:[%s6763 + $0x5c] sm:$0xf]
  %v6788 = vld [vmem:[%s6763 + $0x60] sm:$0xf]
  %v6789 = vld [vmem:[%s6763 + $0x64] sm:$0xf]
  %v6790 = vld [vmem:[%s6763 + $0x68] sm:$0xf]
  %v6791 = vld [vmem:[%s6763 + $0x6c] sm:$0xf]
  %v6792 = vld [vmem:[%s6763 + $0x70] sm:$0xf]
  %v6793 = vld [vmem:[%s6763 + $0x74] sm:$0xf]
  %v6794 = vld [vmem:[%s6763 + $0x78] sm:$0xf]
  %v6795 = vld [vmem:[%s6763 + $0x7c] sm:$0xf]
  %v6796 = vld [vmem:[%s6763 + $0x80] sm:$0xf]
  %v6797 = vld [vmem:[%s6763 + $0x84] sm:$0xf]
  %v6798 = vld [vmem:[%s6763 + $0x88] sm:$0xf]
  %v6799 = vld [vmem:[%s6763 + $0x8c] sm:$0xf]
  %v6800 = vld [vmem:[%s6763 + $0x90] sm:$0xf]
  %v6801 = vld [vmem:[%s6763 + $0x94] sm:$0xf]
  %v6802 = vld [vmem:[%s6763 + $0x98] sm:$0xf]
  %v6803 = vld [vmem:[%s6763 + $0x9c] sm:$0xf]
  %v6804 = vld [vmem:[%s6763 + $0xa0] sm:$0xf]
  %v6805 = vld [vmem:[%s6763 + $0xa4] sm:$0xf]
  %v6806 = vld [vmem:[%s6763 + $0xa8] sm:$0xf]
  %v6807 = vld [vmem:[%s6763 + $0xac] sm:$0xf]
  %v6808 = vld [vmem:[%s6763 + $0xb0] sm:$0xf]
  %v6809 = vld [vmem:[%s6763 + $0xb4] sm:$0xf]
  %v6810 = vld [vmem:[%s6763 + $0xb8] sm:$0xf]
  %v6811 = vld [vmem:[%s6763 + $0xbc] sm:$0xf]
  %v6812 = vld [vmem:[%s6763 + $0xc0] sm:$0xf]
  %v6813 = vld [vmem:[%s6763 + $0xc4] sm:$0xf]
  %v6814 = vld [vmem:[%s6763 + $0xc8] sm:$0xf]
  %v6815 = vld [vmem:[%s6763 + $0xcc] sm:$0xf]
  %v6816 = vld [vmem:[%s6763 + $0xd0] sm:$0xf]
  %v6817 = vld [vmem:[%s6763 + $0xd4] sm:$0xf]
  %v6818 = vld [vmem:[%s6763 + $0xd8] sm:$0xf]
  %v6819 = vld [vmem:[%s6763 + $0xdc] sm:$0xf]
  %v6820 = vld [vmem:[%s6763 + $0xe0] sm:$0xf]
  %v6821 = vld [vmem:[%s6763 + $0xe4] sm:$0xf]
  %v6822 = vld [vmem:[%s6763 + $0xe8] sm:$0xf]
  %v6823 = vld [vmem:[%s6763 + $0xec] sm:$0xf]
  %v6824 = vld [vmem:[%s6763 + $0xf0] sm:$0xf]
  %v6825 = vld [vmem:[%s6763 + $0xf4] sm:$0xf]
  %v6826 = vld [vmem:[%s6763 + $0xf8] sm:$0xf]
  %v6827 = vld [vmem:[%s6763 + $0xfc] sm:$0xf]
  %v6828 = vld [vmem:[%s3 + $0xe] sm:$0x1]
  %v6829 = vpack.c.bf16 %v6751, %v6747
  %v6830 = vpack.c.bf16 %v6752, %v6748
  %v6831 = vpack.c.bf16 %v6753, %v6749
  %v6832 = vpack.c.bf16 %v6754, %v6750
  %v6833 = vpack.c.bf16 %v6759, %v6755
  %v6834 = vpack.c.bf16 %v6760, %v6756
  %v6835 = vpack.c.bf16 %v6761, %v6757
  %v6836 = vpack.c.bf16 %v6762, %v6758
  %v6837 = vlaneseq
  %v6838 = vshrl.u32 %v6837, 7
  %v6839 = vsub.s32 0, %v6838
  %v6840 = vrot.slane %v6828, %v6839
  %v6905 = vunpack.c.l.b16 %v6764
  %v6906 = vunpack.c.l.b16 %v6765
  %v6907 = vunpack.c.l.b16 %v6766
  %v6908 = vunpack.c.l.b16 %v6767
  %v6909 = vunpack.c.l.b16 %v6768
  %v6910 = vunpack.c.l.b16 %v6769
  %v6911 = vunpack.c.l.b16 %v6770
  %v6912 = vunpack.c.l.b16 %v6771
  %v6913 = vunpack.c.l.b16 %v6772
  %v6914 = vunpack.c.l.b16 %v6773
  %v6915 = vunpack.c.l.b16 %v6774
  %v6916 = vunpack.c.l.b16 %v6775
  %v6917 = vunpack.c.l.b16 %v6776
  %v6918 = vunpack.c.l.b16 %v6777
  %v6919 = vunpack.c.l.b16 %v6778
  %v6920 = vunpack.c.l.b16 %v6779
  %v6921 = vunpack.c.l.b16 %v6780
  %v6922 = vunpack.c.l.b16 %v6781
  %v6923 = vunpack.c.l.b16 %v6782
  %v6924 = vunpack.c.l.b16 %v6783
  %v6925 = vunpack.c.l.b16 %v6784
  %v6926 = vunpack.c.l.b16 %v6785
  %v6927 = vunpack.c.l.b16 %v6786
  %v6928 = vunpack.c.l.b16 %v6787
  %v6929 = vunpack.c.l.b16 %v6788
  %v6930 = vunpack.c.l.b16 %v6789
  %v6931 = vunpack.c.l.b16 %v6790
  %v6932 = vunpack.c.l.b16 %v6791
  %v6933 = vunpack.c.l.b16 %v6792
  %v6934 = vunpack.c.l.b16 %v6793
  %v6935 = vunpack.c.l.b16 %v6794
  %v6936 = vunpack.c.l.b16 %v6795
  %v6937 = vunpack.c.l.b16 %v6796
  %v6938 = vunpack.c.l.b16 %v6797
  %v6939 = vunpack.c.l.b16 %v6798
  %v6940 = vunpack.c.l.b16 %v6799
  %v6941 = vunpack.c.l.b16 %v6800
  %v6942 = vunpack.c.l.b16 %v6801
  %v6943 = vunpack.c.l.b16 %v6802
  %v6944 = vunpack.c.l.b16 %v6803
  %v6945 = vunpack.c.l.b16 %v6804
  %v6946 = vunpack.c.l.b16 %v6805
  %v6947 = vunpack.c.l.b16 %v6806
  %v6948 = vunpack.c.l.b16 %v6807
  %v6949 = vunpack.c.l.b16 %v6808
  %v6950 = vunpack.c.l.b16 %v6809
  %v6951 = vunpack.c.l.b16 %v6810
  %v6952 = vunpack.c.l.b16 %v6811
  %v6953 = vunpack.c.l.b16 %v6812
  %v6954 = vunpack.c.l.b16 %v6813
  %v6955 = vunpack.c.l.b16 %v6814
  %v6956 = vunpack.c.l.b16 %v6815
  %v6957 = vunpack.c.l.b16 %v6816
  %v6958 = vunpack.c.l.b16 %v6817
  %v6959 = vunpack.c.l.b16 %v6818
  %v6960 = vunpack.c.l.b16 %v6819
  %v6961 = vunpack.c.l.b16 %v6820
  %v6962 = vunpack.c.l.b16 %v6821
  %v6963 = vunpack.c.l.b16 %v6822
  %v6964 = vunpack.c.l.b16 %v6823
  %v6965 = vunpack.c.l.b16 %v6824
  %v6966 = vunpack.c.l.b16 %v6825
  %v6967 = vunpack.c.l.b16 %v6826
  %v6968 = vunpack.c.l.b16 %v6827
  %v6969 = vpack.c.b16 %v6906, %v6905
  %v6970 = vpack.c.b16 %v6908, %v6907
  %v6971 = vpack.c.b16 %v6910, %v6909
  %v6972 = vpack.c.b16 %v6912, %v6911
  %v6973 = vpack.c.b16 %v6914, %v6913
  %v6974 = vpack.c.b16 %v6916, %v6915
  %v6975 = vpack.c.b16 %v6918, %v6917
  %v6976 = vpack.c.b16 %v6920, %v6919
  %v6977 = vpack.c.b16 %v6922, %v6921
  %v6978 = vpack.c.b16 %v6924, %v6923
  %v6979 = vpack.c.b16 %v6926, %v6925
  %v6980 = vpack.c.b16 %v6928, %v6927
  %v6981 = vpack.c.b16 %v6930, %v6929
  %v6982 = vpack.c.b16 %v6932, %v6931
  %v6983 = vpack.c.b16 %v6934, %v6933
  %v6984 = vpack.c.b16 %v6936, %v6935
  %v6985 = vpack.c.b16 %v6938, %v6937
  %v6986 = vpack.c.b16 %v6940, %v6939
  %v6987 = vpack.c.b16 %v6942, %v6941
  %v6988 = vpack.c.b16 %v6944, %v6943
  %v6989 = vpack.c.b16 %v6946, %v6945
  %v6990 = vpack.c.b16 %v6948, %v6947
  %v6991 = vpack.c.b16 %v6950, %v6949
  %v6992 = vpack.c.b16 %v6952, %v6951
  %v6993 = vpack.c.b16 %v6954, %v6953
  %v6994 = vpack.c.b16 %v6956, %v6955
  %v6995 = vpack.c.b16 %v6958, %v6957
  %v6996 = vpack.c.b16 %v6960, %v6959
  %v6997 = vpack.c.b16 %v6962, %v6961
  %v6998 = vpack.c.b16 %v6964, %v6963
  %v6999 = vpack.c.b16 %v6966, %v6965
  %v7000 = vpack.c.b16 %v6968, %v6967
  %7033 = vmatprep.subr.bf16.mxu0 0
  %7034 = vmatpush1.bf16.msra.mxu0 %v6969
  %7035 = vmatprep.subr.bf16.mxu0 0
  %7036 = vmatpush1.bf16.msra.mxu0 %v6970
  %7037 = vmatprep.subr.bf16.mxu0 0
  %7038 = vmatpush1.bf16.msra.mxu0 %v6971
  %7039 = vmatprep.subr.bf16.mxu0 0
  %7040 = vmatpush1.bf16.msra.mxu0 %v6972
  %7041 = vmatprep.subr.bf16.mxu0 0
  %7042 = vmatpush1.bf16.msra.mxu0 %v6973
  %7043 = vmatprep.subr.bf16.mxu0 0
  %7044 = vmatpush1.bf16.msra.mxu0 %v6974
  %7045 = vmatprep.subr.bf16.mxu0 0
  %7046 = vmatpush1.bf16.msra.mxu0 %v6975
  %7047 = vmatprep.subr.bf16.mxu0 0
  %7048 = vmatpush1.bf16.msra.mxu0 %v6976
  %7049 = vmatprep.subr.bf16.mxu0 0
  %7050 = vmatpush1.bf16.msra.mxu0 %v6977
  %7051 = vmatprep.subr.bf16.mxu0 0
  %7052 = vmatpush1.bf16.msra.mxu0 %v6978
  %7053 = vmatprep.subr.bf16.mxu0 0
  %7054 = vmatpush1.bf16.msra.mxu0 %v6979
  %7055 = vmatprep.subr.bf16.mxu0 0
  %7056 = vmatpush1.bf16.msra.mxu0 %v6980
  %7057 = vmatprep.subr.bf16.mxu0 0
  %7058 = vmatpush1.bf16.msra.mxu0 %v6981
  %7059 = vmatprep.subr.bf16.mxu0 0
  %7060 = vmatpush1.bf16.msra.mxu0 %v6982
  %7061 = vmatprep.subr.bf16.mxu0 0
  %7062 = vmatpush1.bf16.msra.mxu0 %v6983
  %7063 = vmatprep.subr.bf16.mxu0 0
  %7064 = vmatpush1.bf16.msra.mxu0 %v6984
  %7065 = vmatprep.mubr.bf16.mxu0 %v6830
  %7066 = vmatmul.mubr.bf16.gmra.mrb[0].mxu0 %v6829
  %v7067 = vpop.f32.mrb[0].mxu0
  %v7068 = vadd.f32 %v6840, %v7067
  %v7069 = vpop.f32.mrb[0].mxu0
  %v7070 = vpop.f32.mrb[0].mxu0
  %v7071 = vadd.f32 %v6840, %v7070
  %v7072 = vpop.f32.mrb[0].mxu0
  %7073 = vmatprep.mubr.bf16.mxu0 %v6834
  %7074 = vmatmul.mubr.bf16.gmra.mrb[0].mxu0 %v6833
  %v7075 = vpop.f32.mrb[0].mxu0
  %v7076 = vadd.f32 %v6840, %v7075
  %v7077 = vpop.f32.mrb[0].mxu0
  %v7078 = vpop.f32.mrb[0].mxu0
  %v7079 = vadd.f32 %v6840, %v7078
  %v7080 = vpop.f32.mrb[0].mxu0
  %7081 = vdwg.mxu0
  %7082 = vmatprep.subr.bf16.mxu0 0
  %7083 = vmatpush1.bf16.msra.mxu0 %v6985
  %7084 = vmatprep.subr.bf16.mxu0 0
  %7085 = vmatpush1.bf16.msra.mxu0 %v6986
  %7086 = vmatprep.subr.bf16.mxu0 0
  %7087 = vmatpush1.bf16.msra.mxu0 %v6987
  %7088 = vmatprep.subr.bf16.mxu0 0
  %7089 = vmatpush1.bf16.msra.mxu0 %v6988
  %7090 = vmatprep.subr.bf16.mxu0 0
  %7091 = vmatpush1.bf16.msra.mxu0 %v6989
  %7092 = vmatprep.subr.bf16.mxu0 0
  %7093 = vmatpush1.bf16.msra.mxu0 %v6990
  %7094 = vmatprep.subr.bf16.mxu0 0
  %7095 = vmatpush1.bf16.msra.mxu0 %v6991
  %7096 = vmatprep.subr.bf16.mxu0 0
  %7097 = vmatpush1.bf16.msra.mxu0 %v6992
  %7098 = vmatprep.subr.bf16.mxu0 0
  %7099 = vmatpush1.bf16.msra.mxu0 %v6993
  %7100 = vmatprep.subr.bf16.mxu0 0
  %7101 = vmatpush1.bf16.msra.mxu0 %v6994
  %7102 = vmatprep.subr.bf16.mxu0 0
  %7103 = vmatpush1.bf16.msra.mxu0 %v6995
  %7104 = vmatprep.subr.bf16.mxu0 0
  %7105 = vmatpush1.bf16.msra.mxu0 %v6996
  %7106 = vmatprep.subr.bf16.mxu0 0
  %7107 = vmatpush1.bf16.msra.mxu0 %v6997
  %7108 = vmatprep.subr.bf16.mxu0 0
  %7109 = vmatpush1.bf16.msra.mxu0 %v6998
  %7110 = vmatprep.subr.bf16.mxu0 0
  %7111 = vmatpush1.bf16.msra.mxu0 %v6999
  %7112 = vmatprep.subr.bf16.mxu0 0
  %7113 = vmatpush1.bf16.msra.mxu0 %v7000
  %7114 = vmatprep.mubr.bf16.mxu0 %v6832
  %7115 = vmatmul.mubr.bf16.gmra.mrb[0].mxu0 %v6831
  %v7116 = vpop.f32.mrb[0].mxu0
  %v7117 = vadd.f32 %v7068, %v7116
  %v7118 = vpop.f32.mrb[0].mxu0
  %v7119 = vpop.f32.mrb[0].mxu0
  %v7120 = vadd.f32 %v7071, %v7119
  %v7121 = vpop.f32.mrb[0].mxu0
  %7122 = vmatprep.mubr.bf16.mxu0 %v6836
  %7123 = vmatmul.mubr.bf16.gmra.mrb[0].mxu0 %v6835
  %v7124 = vpop.f32.mrb[0].mxu0
  %v7125 = vadd.f32 %v7076, %v7124
  %v7126 = vpop.f32.mrb[0].mxu0
  %v7127 = vpop.f32.mrb[0].mxu0
  %v7128 = vadd.f32 %v7079, %v7127
  %v7129 = vpop.f32.mrb[0].mxu0
  %7130 = vdwg.mxu0
  %v7131 = vadd.f32 %v6291, %v7117
  %v7132 = vadd.f32 %v6292, %v7120
  %v7133 = vadd.f32 %v6293, %v7125
  %v7134 = vadd.f32 %v6294, %v7128
  %v7135 = vld [vmem:[%s3 + $0xf] sm:$0x1]
  %v7136 = vld [vmem:[%s3 + $0x10] sm:$0x1]
  %7137 = vadd.xlane.f32.xlu0 %v7131
  %v7138 = vpop.xlane.xlu0 %7137
  %7139 = vadd.xlane.f32.xlu0 %v7132
  %v7140 = vpop.xlane.xlu0 %7139
  %7141 = vadd.xlane.f32.xlu0 %v7133
  %v7142 = vpop.xlane.xlu0 %7141
  %7143 = vadd.xlane.f32.xlu0 %v7134
  %v7144 = vpop.xlane.xlu0 %7143
  %v7145 = vmul.f32 %v7138, %v170
  %v7146 = vmul.f32 %v7140, %v170
  %v7147 = vmul.f32 %v7142, %v170
  %v7148 = vmul.f32 %v7144, %v170
  %v7149 = vsub.f32 %v7131, %v7145
  %v7150 = vsub.f32 %v7132, %v7146
  %v7151 = vsub.f32 %v7133, %v7147
  %v7152 = vsub.f32 %v7134, %v7148
  %v7153 = vmul.f32 %v7149, %v7149
  %v7154 = vmul.f32 %v7150, %v7150
  %v7155 = vmul.f32 %v7151, %v7151
  %v7156 = vmul.f32 %v7152, %v7152
  %7157 = vadd.xlane.f32.xlu0 %v7153
  %v7158 = vpop.xlane.xlu0 %7157
  %7159 = vadd.xlane.f32.xlu0 %v7154
  %v7160 = vpop.xlane.xlu0 %7159
  %7161 = vadd.xlane.f32.xlu0 %v7155
  %v7162 = vpop.xlane.xlu0 %7161
  %7163 = vadd.xlane.f32.xlu0 %v7156
  %v7164 = vpop.xlane.xlu0 %7163
  %v7165 = vmul.f32 %v7158, %v170
  %v7166 = vmul.f32 %v7160, %v170
  %v7167 = vmul.f32 %v7162, %v170
  %v7168 = vmul.f32 %v7164, %v170
  %v7169 = vadd.f32 %v7165, 1e-05
  %v7170 = vadd.f32 %v7166, 1e-05
  %v7171 = vadd.f32 %v7167, 1e-05
  %v7172 = vadd.f32 %v7168, 1e-05
  %v7173 = vrsqrt.pop %v7169
  %v7174 = vrsqrt.pop %v7170
  %v7175 = vrsqrt.pop %v7171
  %v7176 = vrsqrt.pop %v7172
  %v7177 = vmul.f32 %v7149, %v7173
  %v7178 = vmul.f32 %v7150, %v7174
  %v7179 = vmul.f32 %v7151, %v7175
  %v7180 = vmul.f32 %v7152, %v7176
  %v7181 = vlaneseq
  %v7182 = vshrl.u32 %v7181, 7
  %v7183 = vsub.s32 0, %v7182
  %v7184 = vrot.slane %v7135, %v7183
  %v7185 = vmul.f32 %v7177, %v7184
  %v7186 = vmul.f32 %v7178, %v7184
  %v7187 = vmul.f32 %v7179, %v7184
  %v7188 = vmul.f32 %v7180, %v7184
  %v7189 = vlaneseq
  %v7190 = vshrl.u32 %v7189, 7
  %v7191 = vsub.s32 0, %v7190
  %v7192 = vrot.slane %v7136, %v7191
  %v7193 = vadd.f32 %v7185, %v7192
  %v7194 = vadd.f32 %v7186, %v7192
  %v7195 = vadd.f32 %v7187, %v7192
  %v7196 = vadd.f32 %v7188, %v7192
  %v7197 = vld [vmem:[%s11] sm:$0xf]
  %v7198 = vld [vmem:[%s11 + $0x4] sm:$0xf]
  %v7199 = vld [vmem:[%s11 + $0x8] sm:$0xf]
  %v7200 = vld [vmem:[%s11 + $0xc] sm:$0xf]
  %v7201 = vld [vmem:[%s11 + $0x10] sm:$0xf]
  %v7202 = vld [vmem:[%s11 + $0x14] sm:$0xf]
  %v7203 = vld [vmem:[%s11 + $0x18] sm:$0xf]
  %v7204 = vld [vmem:[%s11 + $0x1c] sm:$0xf]
  %v7205 = vld [vmem:[%s11 + $0x20] sm:$0xf]
  %v7206 = vld [vmem:[%s11 + $0x24] sm:$0xf]
  %v7207 = vld [vmem:[%s11 + $0x28] sm:$0xf]
  %v7208 = vld [vmem:[%s11 + $0x2c] sm:$0xf]
  %v7209 = vld [vmem:[%s11 + $0x30] sm:$0xf]
  %v7210 = vld [vmem:[%s11 + $0x34] sm:$0xf]
  %v7211 = vld [vmem:[%s11 + $0x38] sm:$0xf]
  %v7212 = vld [vmem:[%s11 + $0x3c] sm:$0xf]
  %v7213 = vld [vmem:[%s3 + $0x3] sm:$0x1]
  %v7214 = vpack.c.bf16 %v7194, %v7193
  %v7215 = vpack.c.bf16 %v7196, %v7195
  %v7216 = vlaneseq
  %v7217 = vshrl.u32 %v7216, 7
  %v7218 = vsub.s32 0, %v7217
  %v7219 = vrot.slane %v7213, %v7218
  %v7236 = vunpack.c.l.b16 %v7197
  %v7237 = vunpack.c.l.b16 %v7198
  %v7238 = vunpack.c.l.b16 %v7199
  %v7239 = vunpack.c.l.b16 %v7200
  %v7240 = vunpack.c.l.b16 %v7201
  %v7241 = vunpack.c.l.b16 %v7202
  %v7242 = vunpack.c.l.b16 %v7203
  %v7243 = vunpack.c.l.b16 %v7204
  %v7244 = vunpack.c.l.b16 %v7205
  %v7245 = vunpack.c.l.b16 %v7206
  %v7246 = vunpack.c.l.b16 %v7207
  %v7247 = vunpack.c.l.b16 %v7208
  %v7248 = vunpack.c.l.b16 %v7209
  %v7249 = vunpack.c.l.b16 %v7210
  %v7250 = vunpack.c.l.b16 %v7211
  %v7251 = vunpack.c.l.b16 %v7212
  %v7252 = vpack.c.b16 %v7237, %v7236
  %v7253 = vpack.c.b16 %v7239, %v7238
  %v7254 = vpack.c.b16 %v7241, %v7240
  %v7255 = vpack.c.b16 %v7243, %v7242
  %v7256 = vpack.c.b16 %v7245, %v7244
  %v7257 = vpack.c.b16 %v7247, %v7246
  %v7258 = vpack.c.b16 %v7249, %v7248
  %v7259 = vpack.c.b16 %v7251, %v7250
  %7268 = vmatprep.subr.bf16.mxu0 0
  %7269 = vmatpush1.bf16.msra.mxu0 %v7252
  %7270 = vmatprep.subr.bf16.mxu0 0
  %7271 = vmatpush1.bf16.msra.mxu0 %v7253
  %7272 = vmatprep.subr.bf16.mxu0 0
  %7273 = vmatpush1.bf16.msra.mxu0 %v7254
  %7274 = vmatprep.subr.bf16.mxu0 0
  %7275 = vmatpush1.bf16.msra.mxu0 %v7255
  %7276 = vmatprep.subr.bf16.mxu0 0
  %7277 = vmatpush1.bf16.msra.mxu0 %v7256
  %7278 = vmatprep.subr.bf16.mxu0 0
  %7279 = vmatpush1.bf16.msra.mxu0 %v7257
  %7280 = vmatprep.subr.bf16.mxu0 0
  %7281 = vmatpush1.bf16.msra.mxu0 %v7258
  %7282 = vmatprep.subr.bf16.mxu0 0
  %7283 = vmatpush1.bf16.msra.mxu0 %v7259
  %7284 = vmatprep.subr.bf16.mxu0 0
  %7285 = vmatpush1.bf16.msra.mxu0 0
  %7286 = vmatprep.subr.bf16.mxu0 0
  %7287 = vmatpush1.bf16.msra.mxu0 0
  %7288 = vmatprep.subr.bf16.mxu0 0
  %7289 = vmatpush1.bf16.msra.mxu0 0
  %7290 = vmatprep.subr.bf16.mxu0 0
  %7291 = vmatpush1.bf16.msra.mxu0 0
  %7292 = vmatprep.subr.bf16.mxu0 0
  %7293 = vmatpush1.bf16.msra.mxu0 0
  %7294 = vmatprep.subr.bf16.mxu0 0
  %7295 = vmatpush1.bf16.msra.mxu0 0
  %7296 = vmatprep.subr.bf16.mxu0 0
  %7297 = vmatpush1.bf16.msra.mxu0 0
  %7298 = vmatprep.subr.bf16.mxu0 0
  %7299 = vmatpush1.bf16.msra.mxu0 0
  %7300 = vmatprep.mubr.bf16.mxu0 0
  %7301 = vmatmul.mubr.bf16.gmra.mrb[0].mxu0 %v7214
  %v7302 = vpop.f32.mrb[0].mxu0
  %v7303 = vadd.f32 %v7219, %v7302
  %v7304 = vpop.f32.mrb[0].mxu0
  %v7305 = vpop.f32.mrb[0].mxu0
  %v7306 = vadd.f32 %v7219, %v7305
  %v7307 = vpop.f32.mrb[0].mxu0
  %7308 = vmatprep.mubr.bf16.mxu0 0
  %7309 = vmatmul.mubr.bf16.gmra.mrb[0].mxu0 %v7215
  %v7310 = vpop.f32.mrb[0].mxu0
  %v7311 = vadd.f32 %v7219, %v7310
  %v7312 = vpop.f32.mrb[0].mxu0
  %v7313 = vpop.f32.mrb[0].mxu0
  %v7314 = vadd.f32 %v7219, %v7313
  %v7315 = vpop.f32.mrb[0].mxu0
  %7316 = vdwg.mxu0
  %v7317 = vmul.f32 %v7303, 0.5
  %v7318 = vmul.f32 %v7306, 0.5
  %v7319 = vmul.f32 %v7311, 0.5
  %v7320 = vmul.f32 %v7314, 0.5
  %v7321 = vmul.f32 %v7303, 0.044715
  %v7322 = vmul.f32 %v7306, 0.044715
  %v7323 = vmul.f32 %v7311, 0.044715
  %v7324 = vmul.f32 %v7314, 0.044715
  %v7325 = vmul.f32 %v7321, %v7303
  %v7326 = vmul.f32 %v7322, %v7306
  %v7327 = vmul.f32 %v7323, %v7311
  %v7328 = vmul.f32 %v7324, %v7314
  %v7329 = vmul.f32 %v7325, %v7303
  %v7330 = vmul.f32 %v7326, %v7306
  %v7331 = vmul.f32 %v7327, %v7311
  %v7332 = vmul.f32 %v7328, %v7314
  %v7333 = vadd.f32 %v7303, %v7329
  %v7334 = vadd.f32 %v7306, %v7330
  %v7335 = vadd.f32 %v7311, %v7331
  %v7336 = vadd.f32 %v7314, %v7332
  %v7337 = vmul.f32 %v7333, 0.7978846
  %v7338 = vmul.f32 %v7334, 0.7978846
  %v7339 = vmul.f32 %v7335, 0.7978846
  %v7340 = vmul.f32 %v7336, 0.7978846
  %v7341 = vtanh.pop %v7337
  %v7342 = vtanh.pop %v7338
  %v7343 = vtanh.pop %v7339
  %v7344 = vtanh.pop %v7340
  %v7345 = vadd.f32 %v7341, 1.0
  %v7346 = vadd.f32 %v7342, 1.0
  %v7347 = vadd.f32 %v7343, 1.0
  %v7348 = vadd.f32 %v7344, 1.0
  %v7349 = vmul.f32 %v7317, %v7345
  %v7350 = vmul.f32 %v7318, %v7346
  %v7351 = vmul.f32 %v7319, %v7347
  %v7352 = vmul.f32 %v7320, %v7348
  %v7353 = vld [vmem:[%s12] sm:$0xf]
  %v7354 = vld [vmem:[%s12 + $0x4] sm:$0xf]
  %v7355 = vld [vmem:[%s12 + $0x8] sm:$0xf]
  %v7356 = vld [vmem:[%s12 + $0xc] sm:$0xf]
  %v7357 = vld [vmem:[%s12 + $0x10] sm:$0xf]
  %v7358 = vld [vmem:[%s12 + $0x14] sm:$0xf]
  %v7359 = vld [vmem:[%s12 + $0x18] sm:$0xf]
  %v7360 = vld [vmem:[%s12 + $0x1c] sm:$0xf]
  %v7361 = vld [vmem:[%s12 + $0x20] sm:$0xf]
  %v7362 = vld [vmem:[%s12 + $0x24] sm:$0xf]
  %v7363 = vld [vmem:[%s12 + $0x28] sm:$0xf]
  %v7364 = vld [vmem:[%s12 + $0x2c] sm:$0xf]
  %v7365 = vld [vmem:[%s12 + $0x30] sm:$0xf]
  %v7366 = vld [vmem:[%s12 + $0x34] sm:$0xf]
  %v7367 = vld [vmem:[%s12 + $0x38] sm:$0xf]
  %v7368 = vld [vmem:[%s12 + $0x3c] sm:$0xf]
  %v7369 = vld [vmem:[%s3 + $0x4] sm:$0x1]
  %v7370 = vpack.c.bf16 %v7350, %v7349
  %v7371 = vpack.c.bf16 %v7352, %v7351
  %v7372 = vlaneseq
  %v7373 = vshrl.u32 %v7372, 7
  %v7374 = vsub.s32 0, %v7373
  %v7375 = vrot.slane %v7369, %v7374
  %v7392 = vunpack.c.l.b16 %v7353
  %v7393 = vunpack.c.l.b16 %v7354
  %v7394 = vunpack.c.l.b16 %v7355
  %v7395 = vunpack.c.l.b16 %v7356
  %v7396 = vunpack.c.l.b16 %v7357
  %v7397 = vunpack.c.l.b16 %v7358
  %v7398 = vunpack.c.l.b16 %v7359
  %v7399 = vunpack.c.l.b16 %v7360
  %v7400 = vunpack.c.l.b16 %v7361
  %v7401 = vunpack.c.l.b16 %v7362
  %v7402 = vunpack.c.l.b16 %v7363
  %v7403 = vunpack.c.l.b16 %v7364
  %v7404 = vunpack.c.l.b16 %v7365
  %v7405 = vunpack.c.l.b16 %v7366
  %v7406 = vunpack.c.l.b16 %v7367
  %v7407 = vunpack.c.l.b16 %v7368
  %v7408 = vpack.c.b16 %v7393, %v7392
  %v7409 = vpack.c.b16 %v7395, %v7394
  %v7410 = vpack.c.b16 %v7397, %v7396
  %v7411 = vpack.c.b16 %v7399, %v7398
  %v7412 = vpack.c.b16 %v7401, %v7400
  %v7413 = vpack.c.b16 %v7403, %v7402
  %v7414 = vpack.c.b16 %v7405, %v7404
  %v7415 = vpack.c.b16 %v7407, %v7406
  %7424 = vmatprep.subr.bf16.mxu0 0
  %7425 = vmatpush1.bf16.msra.mxu0 %v7408
  %7426 = vmatprep.subr.bf16.mxu0 0
  %7427 = vmatpush1.bf16.msra.mxu0 %v7409
  %7428 = vmatprep.subr.bf16.mxu0 0
  %7429 = vmatpush1.bf16.msra.mxu0 %v7410
  %7430 = vmatprep.subr.bf16.mxu0 0
  %7431 = vmatpush1.bf16.msra.mxu0 %v7411
  %7432 = vmatprep.subr.bf16.mxu0 0
  %7433 = vmatpush1.bf16.msra.mxu0 %v7412
  %7434 = vmatprep.subr.bf16.mxu0 0
  %7435 = vmatpush1.bf16.msra.mxu0 %v7413
  %7436 = vmatprep.subr.bf16.mxu0 0
  %7437 = vmatpush1.bf16.msra.mxu0 %v7414
  %7438 = vmatprep.subr.bf16.mxu0 0
  %7439 = vmatpush1.bf16.msra.mxu0 %v7415
  %7440 = vmatprep.subr.bf16.mxu0 0
  %7441 = vmatpush1.bf16.msra.mxu0 0
  %7442 = vmatprep.subr.bf16.mxu0 0
  %7443 = vmatpush1.bf16.msra.mxu0 0
  %7444 = vmatprep.subr.bf16.mxu0 0
  %7445 = vmatpush1.bf16.msra.mxu0 0
  %7446 = vmatprep.subr.bf16.mxu0 0
  %7447 = vmatpush1.bf16.msra.mxu0 0
  %7448 = vmatprep.subr.bf16.mxu0 0
  %7449 = vmatpush1.bf16.msra.mxu0 0
  %7450 = vmatprep.subr.bf16.mxu0 0
  %7451 = vmatpush1.bf16.msra.mxu0 0
  %7452 = vmatprep.subr.bf16.mxu0 0
  %7453 = vmatpush1.bf16.msra.mxu0 0
  %7454 = vmatprep.subr.bf16.mxu0 0
  %7455 = vmatpush1.bf16.msra.mxu0 0
  %7456 = vmatprep.mubr.bf16.mxu0 0
  %7457 = vmatmul.mubr.bf16.gmra.mrb[0].mxu0 %v7370
  %v7458 = vpop.f32.mrb[0].mxu0
  %v7459 = vadd.f32 %v7375, %v7458
  %v7460 = vpop.f32.mrb[0].mxu0
  %v7461 = vpop.f32.mrb[0].mxu0
  %v7462 = vadd.f32 %v7375, %v7461
  %v7463 = vpop.f32.mrb[0].mxu0
  %7464 = vmatprep.mubr.bf16.mxu0 0
  %7465 = vmatmul.mubr.bf16.gmra.mrb[0].mxu0 %v7371
  %v7466 = vpop.f32.mrb[0].mxu0
  %v7467 = vadd.f32 %v7375, %v7466
  %v7468 = vpop.f32.mrb[0].mxu0
  %v7469 = vpop.f32.mrb[0].mxu0
  %v7470 = vadd.f32 %v7375, %v7469
  %v7471 = vpop.f32.mrb[0].mxu0
  %7472 = vdwg.mxu0
  %7473 = vst [vmem:[%s13] sm:$0xff] %v7459
  %7474 = vst [vmem:[%s13 + $0x8] sm:$0xff] %v7462
  %7475 = vst [vmem:[%s13 + $0x10] sm:$0xff] %v7467
  %7476 = vst [vmem:[%s13 + $0x18] sm:$0xff] %v7470
  // Predicated region
  $region54: #{diffusion_forward.1} parent=0 // pred_check
    _
  $region55: #{diffusion_forward.1} parent=0 // pred_check_branch
    %7478 = sbr.rel (0) target = $region57
  $region56: #{diffusion_forward.1} parent=0 // pred_region
    _
  $region57: #{diffusion_forward.1} parent=0 // pred_fallthru
    _
  // Predicated region
  $region58: #{diffusion_forward.1} parent=0 // pred_check
    _
  $region59: #{diffusion_forward.1} parent=0 // pred_check_branch
    %7480 = sbr.rel (0) target = $region61
  $region60: #{diffusion_forward.1} parent=0 // pred_region
    _
  $region61: #{diffusion_forward.1} parent=0 // pred_fallthru
    _

</llo_original>
